<compile_context>
chip_gen: v7x
topology: tpu7x:2x2x1
jax: 0.10.0
libtpu: 0.0.40
codegen_flags: <defaults>
</compile_context>

<pallas_src>
import jax
import jax.numpy as jnp
from jax.experimental import pallas as pl
from jax.experimental.pallas import tpu as pltpu


def _fused_mlp_kernel(
    x_ref,                       # (B, K0)   f32  VMEM
    w1_hbm, b1_ref,              # (K0,2048) bf16 HBM ; (1,2048) f32 VMEM
    w2_hbm, b2_ref,              # (2048,1024) bf16 HBM ; (1,1024) f32 VMEM
    w3_ref, b3_ref,              # (1024,512) bf16 VMEM ; (1,512) f32
    w4_ref, b4_ref,              # (512,256)
    w5_ref, b5_ref,              # (256,128)
    w6_ref, b6_ref,              # (128,out_dim)
    o_ref,                       # (B, out_dim) f32
    w1_vmem, w2_vmem, dma_sem,   # scratch: bf16 staging buffers + DMA sems
):
    # Kick off both big-weight DMAs immediately; layer-1 compute overlaps the
    # w2 transfer (and w3..w6 were already VMEM-resident before the body ran).
    cp1 = pltpu.make_async_copy(w1_hbm, w1_vmem, dma_sem.at[0])
    cp2 = pltpu.make_async_copy(w2_hbm, w2_vmem, dma_sem.at[1])
    cp1.start()
    cp2.start()

    def layer(h_f32, w_bf16, b_f32, relu=True):
        # bf16 x bf16 MXU matmul with f32 accumulation; bias/ReLU in f32.
        acc = jnp.dot(h_f32.astype(jnp.bfloat16), w_bf16,
                      preferred_element_type=jnp.float32) + b_f32
        return jnp.maximum(acc, 0.0) if relu else acc

    h = x_ref[...]                                   # (B, K0) f32

    cp1.wait()
    h = layer(h, w1_vmem[...], b1_ref[...])          # fc6 + ReLU
    cp2.wait()
    h = layer(h, w2_vmem[...], b2_ref[...])          # fc5 + ReLU
    h = layer(h, w3_ref[...], b3_ref[...])           # fc1 + ReLU
    h = layer(h, w4_ref[...], b4_ref[...])           # fc2 + ReLU
    h = layer(h, w5_ref[...], b5_ref[...])           # fc3 + ReLU
    h = layer(h, w6_ref[...], b6_ref[...], relu=False)  # fc4 (no ReLU)
    o_ref[...] = h.astype(o_ref.dtype)


def starting_network_forward(x_nchw, params):
    """x_nchw: (B, C, H, W) f32; params: list of 6 (W (K,N) bf16, b (N,) f32)."""
    assert len(params) == 6
    B = x_nchw.shape[0]
    x = x_nchw.reshape(B, -1).astype(jnp.float32)    # nn.Flatten()  [plain JAX]
    out_dim = params[-1][1].shape[-1]

    args = [x]
    for w, b in params:
        args.append(w)                               # (K, N)  bf16
        args.append(b.reshape(1, -1))                # (1, N)  f32

    vmem = pl.BlockSpec(memory_space=pltpu.MemorySpace.VMEM)
    hbm = pl.BlockSpec(memory_space=pl.ANY)

    in_specs = [vmem,           # x
                hbm, vmem,      # w1 (manual DMA), b1
                hbm, vmem]      # w2 (manual DMA), b2
    in_specs += [vmem] * 8      # w3..w6 + biases, whole-array VMEM resident

    flops = 2 * B * sum(w.shape[0] * w.shape[1] for w, _ in params)
    bytes_accessed = (x.size * 4 + B * out_dim * 4
                      + sum(w.size * 2 + b.size * 4 for w, b in params))

    return pl.pallas_call(
        _fused_mlp_kernel,
        out_shape=jax.ShapeDtypeStruct((B, out_dim), jnp.float32),
        in_specs=in_specs,
        out_specs=vmem,
        scratch_shapes=[
            pltpu.VMEM(params[0][0].shape, jnp.bfloat16),   # w1 staging (~3 MiB)
            pltpu.VMEM(params[1][0].shape, jnp.bfloat16),   # w2 staging (~4 MiB)
            pltpu.SemaphoreType.DMA((2,)),
        ],
        compiler_params=pltpu.CompilerParams(
            # ~9 MiB actual residency with bf16 weights; keep the request tight
            # so it fits v7x's 64 MiB physical / 32 MiB scoped-default VMEM.
            vmem_limit_bytes=20 * 1024 * 1024,
        ),
        cost_estimate=pl.CostEstimate(
            flops=flops, transcendentals=0, bytes_accessed=bytes_accessed),
    )(*args)


def init_params(key, input_dim, output_dim):
    """nn.Linear-style U(-1/sqrt(fan_in), 1/sqrt(fan_in)); weights cast to bf16."""
    dims = [input_dim, 2048, 1024, 512, 256, 128, output_dim]
    params = []
    for i in range(len(dims) - 1):
        fan_in, fan_out = dims[i], dims[i + 1]
        key, kw, kb = jax.random.split(key, 3)
        bound = 1.0 / jnp.sqrt(fan_in)
        # stored as (K, N) = W^T relative to PyTorch's (out, in)
        w = jax.random.uniform(kw, (fan_in, fan_out), jnp.float32, -bound, bound)
        b = jax.random.uniform(kb, (fan_out,), jnp.float32, -bound, bound)
        params.append((w.astype(jnp.bfloat16), b))
    return params


def _reference_forward(x_nchw, params):
    """Pure-JAX reference: same bf16 weights (upcast), f32 activations."""
    x = x_nchw.reshape(x_nchw.shape[0], -1).astype(jnp.float32)
    n_layers = len(params)
    for i, (w, b) in enumerate(params):
        x = x @ w.astype(jnp.float32) + b
        if i < n_layers - 1:
            x = jnp.maximum(x, 0.0)
    return x


if __name__ == "__main__":
    key = jax.random.PRNGKey(0)
    k_x, k_p = jax.random.split(key)

    # small image-like input: batch=2, 3x16x16 -> input_dim = 768
    B, C, H, W = 2, 3, 16, 16
    input_dim = C * H * W
    output_dim = 10

    x = jax.random.normal(k_x, (B, C, H, W), dtype=jnp.float32)
    params = init_params(k_p, input_dim, output_dim)

    out = starting_network_forward(x, params)
    out = jax.block_until_ready(out)

    ref = _reference_forward(x, params)
    assert out.shape == (B, output_dim), out.shape
    # Kernel casts activations to bf16 for the MXU (weights identical to ref),
    # so allow a small bf16-level tolerance.
    assert jnp.allclose(out, ref, atol=2e-2, rtol=2e-2), (
        float(jnp.max(jnp.abs(out - ref)))
    )

    print("KERNEL_OK")
</pallas_src>

<mosaic_0001>
module attributes {stable_mosaic.version = 11 : i64} {
  func.func @_fused_mlp_kernel(%arg0: memref<2x768xf32, #tpu.memory_space<vmem>>, %arg1: memref<768x2048xbf16, #tpu.memory_space<any>>, %arg2: memref<1x2048xf32, #tpu.memory_space<vmem>>, %arg3: memref<2048x1024xbf16, #tpu.memory_space<any>>, %arg4: memref<1x1024xf32, #tpu.memory_space<vmem>>, %arg5: memref<1024x512xbf16, #tpu.memory_space<vmem>>, %arg6: memref<1x512xf32, #tpu.memory_space<vmem>>, %arg7: memref<512x256xbf16, #tpu.memory_space<vmem>>, %arg8: memref<1x256xf32, #tpu.memory_space<vmem>>, %arg9: memref<256x128xbf16, #tpu.memory_space<vmem>>, %arg10: memref<1x128xf32, #tpu.memory_space<vmem>>, %arg11: memref<128x10xbf16, #tpu.memory_space<vmem>>, %arg12: memref<1x10xf32, #tpu.memory_space<vmem>>, %arg13: memref<2x10xf32, #tpu.memory_space<vmem>>, %arg14: memref<768x2048xbf16, #tpu.memory_space<vmem>>, %arg15: memref<2048x1024xbf16, #tpu.memory_space<vmem>>, %arg16: memref<2x!tpu.dma_semaphore, #tpu.memory_space<semaphore_mem>>) attributes {dimension_semantics = [], scalar_prefetch = 0 : i64, scratch_operands = 3 : i64, tpu.core_type = #tpu.core_type<tc>} {
    %c0_i32 = arith.constant 0 : i32
    %0 = tpu.memref_slice %arg16[%c0_i32] : memref<2x!tpu.dma_semaphore, #tpu.memory_space<semaphore_mem>> -> memref<1x!tpu.dma_semaphore, #tpu.memory_space<semaphore_mem>>
    %1 = tpu.memref_squeeze %0 : memref<1x!tpu.dma_semaphore, #tpu.memory_space<semaphore_mem>> -> memref<!tpu.dma_semaphore, #tpu.memory_space<semaphore_mem>>
    tpu.enqueue_dma source(%arg1 : memref<768x2048xbf16, #tpu.memory_space<any>>) target(%arg14 : memref<768x2048xbf16, #tpu.memory_space<vmem>>) target_semaphore(%1 : memref<!tpu.dma_semaphore, #tpu.memory_space<semaphore_mem>>)
    %c1_i32 = arith.constant 1 : i32
    %2 = tpu.memref_slice %arg16[%c1_i32] : memref<2x!tpu.dma_semaphore, #tpu.memory_space<semaphore_mem>> -> memref<1x!tpu.dma_semaphore, #tpu.memory_space<semaphore_mem>>
    %3 = tpu.memref_squeeze %2 : memref<1x!tpu.dma_semaphore, #tpu.memory_space<semaphore_mem>> -> memref<!tpu.dma_semaphore, #tpu.memory_space<semaphore_mem>>
    tpu.enqueue_dma source(%arg3 : memref<2048x1024xbf16, #tpu.memory_space<any>>) target(%arg15 : memref<2048x1024xbf16, #tpu.memory_space<vmem>>) target_semaphore(%3 : memref<!tpu.dma_semaphore, #tpu.memory_space<semaphore_mem>>)
    %c0 = arith.constant 0 : index
    %c0_0 = arith.constant 0 : index
    %4 = vector.load %arg0[%c0, %c0_0] : memref<2x768xf32, #tpu.memory_space<vmem>>, vector<2x768xf32>
    %c0_i32_1 = arith.constant 0 : i32
    %5 = tpu.memref_slice %arg16[%c0_i32_1] : memref<2x!tpu.dma_semaphore, #tpu.memory_space<semaphore_mem>> -> memref<1x!tpu.dma_semaphore, #tpu.memory_space<semaphore_mem>>
    %6 = tpu.memref_squeeze %5 : memref<1x!tpu.dma_semaphore, #tpu.memory_space<semaphore_mem>> -> memref<!tpu.dma_semaphore, #tpu.memory_space<semaphore_mem>>
    tpu.wait_dma2 semaphore(%6 : memref<!tpu.dma_semaphore, #tpu.memory_space<semaphore_mem>>) src(%arg1 : memref<768x2048xbf16, #tpu.memory_space<any>>) dst(%arg14 : memref<768x2048xbf16, #tpu.memory_space<vmem>>)
    %c0_2 = arith.constant 0 : index
    %c0_3 = arith.constant 0 : index
    %7 = vector.load %arg14[%c0_2, %c0_3] : memref<768x2048xbf16, #tpu.memory_space<vmem>>, vector<768x2048xbf16>
    %c0_4 = arith.constant 0 : index
    %c0_5 = arith.constant 0 : index
    %8 = vector.load %arg2[%c0_4, %c0_5] : memref<1x2048xf32, #tpu.memory_space<vmem>>, vector<1x2048xf32>
    %9 = arith.truncf %4 : vector<2x768xf32> to vector<2x768xbf16>
    %cst = arith.constant dense<0.000000e+00> : vector<2x2048xf32>
    %10 = tpu.matmul %9, %7, %cst {dimension_numbers = #tpu.dot_dimension_numbers<[1], [0], [0], [1], [0, 0, 1, 1], [], []>} : vector<2x768xbf16>, vector<768x2048xbf16>, vector<2x2048xf32> -> vector<2x2048xf32>
    %11 = vector.broadcast %8 : vector<1x2048xf32> to vector<2x2048xf32>
    %12 = arith.addf %10, %11 : vector<2x2048xf32>
    %cst_6 = arith.constant 0.000000e+00 : f32
    %13 = vector.broadcast %cst_6 : f32 to vector<2x2048xf32>
    %14 = arith.maximumf %12, %13 : vector<2x2048xf32>
    %c1_i32_7 = arith.constant 1 : i32
    %15 = tpu.memref_slice %arg16[%c1_i32_7] : memref<2x!tpu.dma_semaphore, #tpu.memory_space<semaphore_mem>> -> memref<1x!tpu.dma_semaphore, #tpu.memory_space<semaphore_mem>>
    %16 = tpu.memref_squeeze %15 : memref<1x!tpu.dma_semaphore, #tpu.memory_space<semaphore_mem>> -> memref<!tpu.dma_semaphore, #tpu.memory_space<semaphore_mem>>
    tpu.wait_dma2 semaphore(%16 : memref<!tpu.dma_semaphore, #tpu.memory_space<semaphore_mem>>) src(%arg3 : memref<2048x1024xbf16, #tpu.memory_space<any>>) dst(%arg15 : memref<2048x1024xbf16, #tpu.memory_space<vmem>>)
    %c0_8 = arith.constant 0 : index
    %c0_9 = arith.constant 0 : index
    %17 = vector.load %arg15[%c0_8, %c0_9] : memref<2048x1024xbf16, #tpu.memory_space<vmem>>, vector<2048x1024xbf16>
    %c0_10 = arith.constant 0 : index
    %c0_11 = arith.constant 0 : index
    %18 = vector.load %arg4[%c0_10, %c0_11] : memref<1x1024xf32, #tpu.memory_space<vmem>>, vector<1x1024xf32>
    %19 = arith.truncf %14 : vector<2x2048xf32> to vector<2x2048xbf16>
    %cst_12 = arith.constant dense<0.000000e+00> : vector<2x1024xf32>
    %20 = tpu.matmul %19, %17, %cst_12 {dimension_numbers = #tpu.dot_dimension_numbers<[1], [0], [0], [1], [0, 0, 1, 1], [], []>} : vector<2x2048xbf16>, vector<2048x1024xbf16>, vector<2x1024xf32> -> vector<2x1024xf32>
    %21 = vector.broadcast %18 : vector<1x1024xf32> to vector<2x1024xf32>
    %22 = arith.addf %20, %21 : vector<2x1024xf32>
    %cst_13 = arith.constant 0.000000e+00 : f32
    %23 = vector.broadcast %cst_13 : f32 to vector<2x1024xf32>
    %24 = arith.maximumf %22, %23 : vector<2x1024xf32>
    %c0_14 = arith.constant 0 : index
    %c0_15 = arith.constant 0 : index
    %25 = vector.load %arg5[%c0_14, %c0_15] : memref<1024x512xbf16, #tpu.memory_space<vmem>>, vector<1024x512xbf16>
    %c0_16 = arith.constant 0 : index
    %c0_17 = arith.constant 0 : index
    %26 = vector.load %arg6[%c0_16, %c0_17] : memref<1x512xf32, #tpu.memory_space<vmem>>, vector<1x512xf32>
    %27 = arith.truncf %24 : vector<2x1024xf32> to vector<2x1024xbf16>
    %cst_18 = arith.constant dense<0.000000e+00> : vector<2x512xf32>
    %28 = tpu.matmul %27, %25, %cst_18 {dimension_numbers = #tpu.dot_dimension_numbers<[1], [0], [0], [1], [0, 0, 1, 1], [], []>} : vector<2x1024xbf16>, vector<1024x512xbf16>, vector<2x512xf32> -> vector<2x512xf32>
    %29 = vector.broadcast %26 : vector<1x512xf32> to vector<2x512xf32>
    %30 = arith.addf %28, %29 : vector<2x512xf32>
    %cst_19 = arith.constant 0.000000e+00 : f32
    %31 = vector.broadcast %cst_19 : f32 to vector<2x512xf32>
    %32 = arith.maximumf %30, %31 : vector<2x512xf32>
    %c0_20 = arith.constant 0 : index
    %c0_21 = arith.constant 0 : index
    %33 = vector.load %arg7[%c0_20, %c0_21] : memref<512x256xbf16, #tpu.memory_space<vmem>>, vector<512x256xbf16>
    %c0_22 = arith.constant 0 : index
    %c0_23 = arith.constant 0 : index
    %34 = vector.load %arg8[%c0_22, %c0_23] : memref<1x256xf32, #tpu.memory_space<vmem>>, vector<1x256xf32>
    %35 = arith.truncf %32 : vector<2x512xf32> to vector<2x512xbf16>
    %cst_24 = arith.constant dense<0.000000e+00> : vector<2x256xf32>
    %36 = tpu.matmul %35, %33, %cst_24 {dimension_numbers = #tpu.dot_dimension_numbers<[1], [0], [0], [1], [0, 0, 1, 1], [], []>} : vector<2x512xbf16>, vector<512x256xbf16>, vector<2x256xf32> -> vector<2x256xf32>
    %37 = vector.broadcast %34 : vector<1x256xf32> to vector<2x256xf32>
    %38 = arith.addf %36, %37 : vector<2x256xf32>
    %cst_25 = arith.constant 0.000000e+00 : f32
    %39 = vector.broadcast %cst_25 : f32 to vector<2x256xf32>
    %40 = arith.maximumf %38, %39 : vector<2x256xf32>
    %c0_26 = arith.constant 0 : index
    %c0_27 = arith.constant 0 : index
    %41 = vector.load %arg9[%c0_26, %c0_27] : memref<256x128xbf16, #tpu.memory_space<vmem>>, vector<256x128xbf16>
    %c0_28 = arith.constant 0 : index
    %c0_29 = arith.constant 0 : index
    %42 = vector.load %arg10[%c0_28, %c0_29] : memref<1x128xf32, #tpu.memory_space<vmem>>, vector<1x128xf32>
    %43 = arith.truncf %40 : vector<2x256xf32> to vector<2x256xbf16>
    %cst_30 = arith.constant dense<0.000000e+00> : vector<2x128xf32>
    %44 = tpu.matmul %43, %41, %cst_30 {dimension_numbers = #tpu.dot_dimension_numbers<[1], [0], [0], [1], [0, 0, 1, 1], [], []>} : vector<2x256xbf16>, vector<256x128xbf16>, vector<2x128xf32> -> vector<2x128xf32>
    %45 = vector.broadcast %42 : vector<1x128xf32> to vector<2x128xf32>
    %46 = arith.addf %44, %45 : vector<2x128xf32>
    %cst_31 = arith.constant 0.000000e+00 : f32
    %47 = vector.broadcast %cst_31 : f32 to vector<2x128xf32>
    %48 = arith.maximumf %46, %47 : vector<2x128xf32>
    %c0_32 = arith.constant 0 : index
    %c0_33 = arith.constant 0 : index
    %49 = vector.load %arg11[%c0_32, %c0_33] : memref<128x10xbf16, #tpu.memory_space<vmem>>, vector<128x10xbf16>
    %c0_34 = arith.constant 0 : index
    %c0_35 = arith.constant 0 : index
    %50 = vector.load %arg12[%c0_34, %c0_35] : memref<1x10xf32, #tpu.memory_space<vmem>>, vector<1x10xf32>
    %51 = arith.truncf %48 : vector<2x128xf32> to vector<2x128xbf16>
    %cst_36 = arith.constant dense<0.000000e+00> : vector<2x10xf32>
    %52 = tpu.matmul %51, %49, %cst_36 {dimension_numbers = #tpu.dot_dimension_numbers<[1], [0], [0], [1], [0, 0, 1, 1], [], []>} : vector<2x128xbf16>, vector<128x10xbf16>, vector<2x10xf32> -> vector<2x10xf32>
    %53 = vector.broadcast %50 : vector<1x10xf32> to vector<2x10xf32>
    %54 = arith.addf %52, %53 : vector<2x10xf32>
    %c0_37 = arith.constant 0 : index
    %c0_38 = arith.constant 0 : index
    %55 = vector.load %arg13[%c0_37, %c0_38] : memref<2x10xf32, #tpu.memory_space<vmem>>, vector<2x10xf32>
    tpu.vector_store %arg13[%c0_37, %c0_38], %54 {strides = array<i32>} : memref<2x10xf32, #tpu.memory_space<vmem>>, vector<2x10xf32>,
    return
  }
}

</mosaic_0001>

<llo_original>
// kernel: tpu_custom_call.1
$region0: #{tpu_custom_call.1}
  #allocation0 [shape = 'u32[]', space=smem, size = 0x4, offset = 0x4, fixed_abs, tag = 'smem constant byte address 0x4 - core index']
  #allocation1 [shape = 'u32[144,128]{1,0:T(1,128)}', space=vmem, size = 0x12000, scoped, tag = 'internal scratch']
  #allocation2 [shape = 'bf16[768,2048]{1,0:T(16,128)(2,1)}', space=vmem, size = 0x300000, scoped, tag = 'scratch operand']
  #allocation3 [shape = 'bf16[2048,1024]{1,0:T(16,128)(2,1)}', space=vmem, size = 0x400000, scoped, tag = 'scratch operand']
  #allocation4 [shape = 's32[2]{0}', space=sflag, size = 0x8, scoped, tag = 'scratch operand']
  #allocation23 [shape = 's32[]', space=sflag, size = 0x4, offset = 0, fixed_abs, tag = 'sflag constant byte address 0x0 - dummy sync flag']
  #allocation25 [shape = 's32[]', space=sflag, size = 0x4, offset = 0, fixed_abs, tag = 'sflag constant byte address 0x0 - dummy sync flag']
  %s0 = inlined_call_operand.hbm [shape: f32[2,768], index: 0, kind: input, shape index: {}]
  %s1 = inlined_call_operand.hbm [shape: bf16[768,2048], index: 1, kind: input, shape index: {}]
  %s2 = inlined_call_operand.hbm [shape: f32[1,2048], index: 2, kind: input, shape index: {}]
  %s3 = inlined_call_operand.hbm [shape: bf16[2048,1024], index: 3, kind: input, shape index: {}]
  %s4 = inlined_call_operand.hbm [shape: f32[1,1024], index: 4, kind: input, shape index: {}]
  %s5 = inlined_call_operand.hbm [shape: bf16[1024,512], index: 5, kind: input, shape index: {}]
  %s6 = inlined_call_operand.hbm [shape: f32[1,512], index: 6, kind: input, shape index: {}]
  %s7 = inlined_call_operand.hbm [shape: bf16[512,256], index: 7, kind: input, shape index: {}]
  %s8 = inlined_call_operand.hbm [shape: f32[1,256], index: 8, kind: input, shape index: {}]
  %s9 = inlined_call_operand.hbm [shape: bf16[256,128], index: 9, kind: input, shape index: {}]
  %s10 = inlined_call_operand.hbm [shape: f32[1,128], index: 10, kind: input, shape index: {}]
  %s11 = inlined_call_operand.vmem [shape: bf16[128,10], index: 11, kind: input, shape index: {}]
  %s12 = inlined_call_operand.hbm [shape: f32[1,10], index: 12, kind: input, shape index: {}]
  %s13 = inlined_call_operand.hbm [shape: f32[2,10], index: 13, kind: output, shape index: {}]
  %s14 = sld [smem:[#allocation0]]
  $region94: #{tpu_custom_call.1} parent=0
    _
  %s16 = ssub.s32 1, %s14
  %s17 = scalar_select 0, %s16, %s14
  $region1: #{tpu_custom_call.1} parent=0
    #allocation5 [shape = 'u8[6144]{0}', space=vmem, size = 0x1800, scoped, tag = 'input window, operand 0, single buffered']
    #allocation6 [shape = 's32[1]{0}', space=sflag, size = 0x4, scoped, tag = 'scoped memory for tpu_custom_call.1']
    #allocation7 [shape = 's32[1]{0}', space=sflag, size = 0x4, scoped, tag = 'scoped memory for tpu_custom_call.1']
    #allocation8 [shape = 'u8[8192]{0}', space=vmem, size = 0x2000, scoped, tag = 'input window, operand 2, single buffered']
    #allocation9 [shape = 's32[1]{0}', space=sflag, size = 0x4, scoped, tag = 'scoped memory for tpu_custom_call.1']
    #allocation10 [shape = 'u8[4096]{0}', space=vmem, size = 0x1000, scoped, tag = 'input window, operand 4, single buffered']
    #allocation11 [shape = 'u8[1048576]{0}', space=vmem, size = 0x100000, scoped, tag = 'input window, operand 5, single buffered']
    #allocation12 [shape = 's32[1]{0}', space=sflag, size = 0x4, scoped, tag = 'scoped memory for tpu_custom_call.1']
    #allocation13 [shape = 'u8[2048]{0}', space=vmem, size = 0x800, scoped, tag = 'input window, operand 6, single buffered']
    #allocation14 [shape = 'u8[262144]{0}', space=vmem, size = 0x40000, scoped, tag = 'input window, operand 7, single buffered']
    #allocation15 [shape = 's32[1]{0}', space=sflag, size = 0x4, scoped, tag = 'scoped memory for tpu_custom_call.1']
    #allocation16 [shape = 'u8[1024]{0}', space=vmem, size = 0x400, scoped, tag = 'input window, operand 8, single buffered']
    #allocation17 [shape = 'u8[65536]{0}', space=vmem, size = 0x10000, scoped, tag = 'input window, operand 9, single buffered']
    #allocation18 [shape = 's32[1]{0}', space=sflag, size = 0x4, scoped, tag = 'scoped memory for tpu_custom_call.1']
    #allocation19 [shape = 'u8[512]{0}', space=vmem, size = 0x400, scoped, tag = 'input window, operand 10, single buffered']
    #allocation20 [shape = 'u8[512]{0}', space=vmem, size = 0x400, scoped, tag = 'input window, operand 12, single buffered']
    #allocation21 [shape = 's32[1]{0}', space=sflag, size = 0x4, scoped, tag = 'scoped memory for tpu_custom_call.1']
    #allocation22 [shape = 'u8[1024]{0}', space=vmem, size = 0x400, scoped, tag = 'output window, operand 0, single buffered']
    #allocation24 [shape = 'u32[9]{0}', space=smem, size = 0x24, scoped, tag = 'DMA stride descriptor']
    #allocation26 [shape = 'u32[9]{0}', space=smem, size = 0x24, scoped, tag = 'DMA stride descriptor']
    %18 = vsyncpa [#allocation6], 0
    %19 = vsyncpa [#allocation9], 0
    %20 = vsyncpa [#allocation12], 0
    %21 = vsyncpa [#allocation15], 0
    %22 = vsyncpa [#allocation18], 0
    %23 = vsyncpa [#allocation21], 0
    %24 = vsyncpa [#allocation7], 0
    // Predicated region
    $region2: #{tpu_custom_call.1} parent=1 // pred_check
      _
    $region3: #{tpu_custom_call.1} parent=1 // pred_check_branch
      %26 = sbr.rel (0) target = $region5
    $region4: #{tpu_custom_call.1} parent=1 // pred_region
      %s28 = ssub.s32 192, 192
      %29 = vsyncadd [#allocation6], %s28
      %s31 = sshll.u32 [#allocation5], 4
      %s32 = int_to_ptr.vmem [resolvable:$true] %s31
      %34 = dma.hbm_to_vmem [thread:$0]  %s0, 192, %s32, [#allocation6]
    $region5: #{tpu_custom_call.1} parent=1 // pred_fallthru
      _
    // Predicated region
    $region6: #{tpu_custom_call.1} parent=1 // pred_check
      _
    $region7: #{tpu_custom_call.1} parent=1 // pred_check_branch
      %36 = sbr.rel (0) target = $region9
    $region8: #{tpu_custom_call.1} parent=1 // pred_region
      %s38 = ssub.s32 256, 256
      %39 = vsyncadd [#allocation9], %s38
      %s41 = sshll.u32 [#allocation8], 4
      %s42 = int_to_ptr.vmem [resolvable:$true] %s41
      %44 = dma.hbm_to_vmem [thread:$0]  %s2, 256, %s42, [#allocation9]
    $region9: #{tpu_custom_call.1} parent=1 // pred_fallthru
      _
    // Predicated region
    $region10: #{tpu_custom_call.1} parent=1 // pred_check
      _
    $region11: #{tpu_custom_call.1} parent=1 // pred_check_branch
      %46 = sbr.rel (0) target = $region13
    $region12: #{tpu_custom_call.1} parent=1 // pred_region
      %s48 = ssub.s32 128, 128
      %49 = vsyncadd [#allocation9], %s48
      %s51 = sshll.u32 [#allocation10], 4
      %s52 = int_to_ptr.vmem [resolvable:$true] %s51
      %54 = dma.hbm_to_vmem [thread:$0]  %s4, 128, %s52, [#allocation9]
    $region13: #{tpu_custom_call.1} parent=1 // pred_fallthru
      _
    // Predicated region
    $region14: #{tpu_custom_call.1} parent=1 // pred_check
      _
    $region15: #{tpu_custom_call.1} parent=1 // pred_check_branch
      %56 = sbr.rel (0) target = $region17
    $region16: #{tpu_custom_call.1} parent=1 // pred_region
      %s58 = ssub.s32 32768, 32768
      %59 = vsyncadd [#allocation12], %s58
      %s60 = sshll.u32 [#allocation11], 4
      %s61 = int_to_ptr.vmem [resolvable:$true] %s60
      %66 = dma.hbm_to_vmem [thread:$0]  %s5, 32768, %s61, [#allocation12], 256, 256, 16
    $region17: #{tpu_custom_call.1} parent=1 // pred_fallthru
      _
    // Predicated region
    $region18: #{tpu_custom_call.1} parent=1 // pred_check
      _
    $region19: #{tpu_custom_call.1} parent=1 // pred_check_branch
      %68 = sbr.rel (0) target = $region21
    $region20: #{tpu_custom_call.1} parent=1 // pred_region
      %s70 = ssub.s32 64, 64
      %71 = vsyncadd [#allocation12], %s70
      %s73 = sshll.u32 [#allocation13], 4
      %s74 = int_to_ptr.vmem [resolvable:$true] %s73
      %76 = dma.hbm_to_vmem [thread:$0]  %s6, 64, %s74, [#allocation12]
    $region21: #{tpu_custom_call.1} parent=1 // pred_fallthru
      _
    // Predicated region
    $region22: #{tpu_custom_call.1} parent=1 // pred_check
      _
    $region23: #{tpu_custom_call.1} parent=1 // pred_check_branch
      %78 = sbr.rel (0) target = $region25
    $region24: #{tpu_custom_call.1} parent=1 // pred_region
      %s80 = ssub.s32 8192, 8192
      %81 = vsyncadd [#allocation15], %s80
      %s82 = sshll.u32 [#allocation14], 4
      %s83 = int_to_ptr.vmem [resolvable:$true] %s82
      %88 = dma.hbm_to_vmem [thread:$0]  %s7, 8192, %s83, [#allocation15], 128, 128, 8
    $region25: #{tpu_custom_call.1} parent=1 // pred_fallthru
      _
    // Predicated region
    $region26: #{tpu_custom_call.1} parent=1 // pred_check
      _
    $region27: #{tpu_custom_call.1} parent=1 // pred_check_branch
      %90 = sbr.rel (0) target = $region29
    $region28: #{tpu_custom_call.1} parent=1 // pred_region
      %s92 = ssub.s32 32, 32
      %93 = vsyncadd [#allocation15], %s92
      %s95 = sshll.u32 [#allocation16], 4
      %s96 = int_to_ptr.vmem [resolvable:$true] %s95
      %98 = dma.hbm_to_vmem [thread:$0]  %s8, 32, %s96, [#allocation15]
    $region29: #{tpu_custom_call.1} parent=1 // pred_fallthru
      _
    // Predicated region
    $region30: #{tpu_custom_call.1} parent=1 // pred_check
      _
    $region31: #{tpu_custom_call.1} parent=1 // pred_check_branch
      %100 = sbr.rel (0) target = $region33
    $region32: #{tpu_custom_call.1} parent=1 // pred_region
      %s102 = ssub.s32 2048, 2048
      %103 = vsyncadd [#allocation18], %s102
      %s104 = sshll.u32 [#allocation17], 4
      %s105 = int_to_ptr.vmem [resolvable:$true] %s104
      %110 = dma.hbm_to_vmem [thread:$0]  %s9, 2048, %s105, [#allocation18], 64, 64, 4
    $region33: #{tpu_custom_call.1} parent=1 // pred_fallthru
      _
    // Predicated region
    $region34: #{tpu_custom_call.1} parent=1 // pred_check
      _
    $region35: #{tpu_custom_call.1} parent=1 // pred_check_branch
      %112 = sbr.rel (0) target = $region37
    $region36: #{tpu_custom_call.1} parent=1 // pred_region
      %s114 = ssub.s32 16, 16
      %115 = vsyncadd [#allocation18], %s114
      %s117 = sshll.u32 [#allocation19], 4
      %s118 = int_to_ptr.vmem [resolvable:$true] %s117
      %120 = dma.hbm_to_vmem [thread:$0]  %s10, 16, %s118, [#allocation18]
    $region37: #{tpu_custom_call.1} parent=1 // pred_fallthru
      _
    // Predicated region
    $region38: #{tpu_custom_call.1} parent=1 // pred_check
      _
    $region39: #{tpu_custom_call.1} parent=1 // pred_check_branch
      %122 = sbr.rel (0) target = $region41
    $region40: #{tpu_custom_call.1} parent=1 // pred_region
      _
    $region41: #{tpu_custom_call.1} parent=1 // pred_fallthru
      _
    // Predicated region
    $region42: #{tpu_custom_call.1} parent=1 // pred_check
      _
    $region43: #{tpu_custom_call.1} parent=1 // pred_check_branch
      %124 = sbr.rel (0) target = $region45
    $region44: #{tpu_custom_call.1} parent=1 // pred_region
      %s126 = ssub.s32 16, 16
      %127 = vsyncadd [#allocation21], %s126
      %s129 = sshll.u32 [#allocation20], 4
      %s130 = int_to_ptr.vmem [resolvable:$true] %s129
      %132 = dma.hbm_to_vmem [thread:$0]  %s12, 16, %s130, [#allocation21]
    $region45: #{tpu_custom_call.1} parent=1 // pred_fallthru
      _
    // Predicated region
    $region46: #{tpu_custom_call.1} parent=1 // pred_check
      _
    $region47: #{tpu_custom_call.1} parent=1 // pred_check_branch
      %134 = sbr.rel (0) target = $region49
    $region48: #{tpu_custom_call.1} parent=1 // pred_region
      %135 = dma.done [#allocation6], 192
    $region49: #{tpu_custom_call.1} parent=1 // pred_fallthru
      _
    // Predicated region
    $region50: #{tpu_custom_call.1} parent=1 // pred_check
      _
    $region51: #{tpu_custom_call.1} parent=1 // pred_check_branch
      %137 = sbr.rel (0) target = $region53
    $region52: #{tpu_custom_call.1} parent=1 // pred_region
      %138 = dma.done [#allocation9], 256
    $region53: #{tpu_custom_call.1} parent=1 // pred_fallthru
      _
    // Predicated region
    $region54: #{tpu_custom_call.1} parent=1 // pred_check
      _
    $region55: #{tpu_custom_call.1} parent=1 // pred_check_branch
      %140 = sbr.rel (0) target = $region57
    $region56: #{tpu_custom_call.1} parent=1 // pred_region
      %141 = dma.done [#allocation9], 128
    $region57: #{tpu_custom_call.1} parent=1 // pred_fallthru
      _
    // Predicated region
    $region58: #{tpu_custom_call.1} parent=1 // pred_check
      _
    $region59: #{tpu_custom_call.1} parent=1 // pred_check_branch
      %143 = sbr.rel (0) target = $region61
    $region60: #{tpu_custom_call.1} parent=1 // pred_region
      %144 = dma.done [#allocation12], 32768
    $region61: #{tpu_custom_call.1} parent=1 // pred_fallthru
      _
    // Predicated region
    $region62: #{tpu_custom_call.1} parent=1 // pred_check
      _
    $region63: #{tpu_custom_call.1} parent=1 // pred_check_branch
      %146 = sbr.rel (0) target = $region65
    $region64: #{tpu_custom_call.1} parent=1 // pred_region
      %147 = dma.done [#allocation12], 64
    $region65: #{tpu_custom_call.1} parent=1 // pred_fallthru
      _
    // Predicated region
    $region66: #{tpu_custom_call.1} parent=1 // pred_check
      _
    $region67: #{tpu_custom_call.1} parent=1 // pred_check_branch
      %149 = sbr.rel (0) target = $region69
    $region68: #{tpu_custom_call.1} parent=1 // pred_region
      %150 = dma.done [#allocation15], 8192
    $region69: #{tpu_custom_call.1} parent=1 // pred_fallthru
      _
    // Predicated region
    $region70: #{tpu_custom_call.1} parent=1 // pred_check
      _
    $region71: #{tpu_custom_call.1} parent=1 // pred_check_branch
      %152 = sbr.rel (0) target = $region73
    $region72: #{tpu_custom_call.1} parent=1 // pred_region
      %153 = dma.done [#allocation15], 32
    $region73: #{tpu_custom_call.1} parent=1 // pred_fallthru
      _
    // Predicated region
    $region74: #{tpu_custom_call.1} parent=1 // pred_check
      _
    $region75: #{tpu_custom_call.1} parent=1 // pred_check_branch
      %155 = sbr.rel (0) target = $region77
    $region76: #{tpu_custom_call.1} parent=1 // pred_region
      %156 = dma.done [#allocation18], 2048
    $region77: #{tpu_custom_call.1} parent=1 // pred_fallthru
      _
    // Predicated region
    $region78: #{tpu_custom_call.1} parent=1 // pred_check
      _
    $region79: #{tpu_custom_call.1} parent=1 // pred_check_branch
      %158 = sbr.rel (0) target = $region81
    $region80: #{tpu_custom_call.1} parent=1 // pred_region
      %159 = dma.done [#allocation18], 16
    $region81: #{tpu_custom_call.1} parent=1 // pred_fallthru
      _
    // Predicated region
    $region82: #{tpu_custom_call.1} parent=1 // pred_check
      _
    $region83: #{tpu_custom_call.1} parent=1 // pred_check_branch
      %161 = sbr.rel (0) target = $region85
    $region84: #{tpu_custom_call.1} parent=1 // pred_region
      %162 = dma.done [#allocation21], 16
    $region85: #{tpu_custom_call.1} parent=1 // pred_fallthru
      _
    %s165 = sshll.u32 1, 14
    %s166 = sxor.u32 4294967295, %s165
    %s168 = sld [smem:[#allocation0]]
    %s169 = sadd.s32 2, %s168
    %s171 = sshll.u32 7, 26
    %s172 = sxor.u32 4294967295, %s171
    %s173 = sand.u32 0, %s172
    %s174 = sshll.u32 %s169, 26
    %s175 = sor.u32 %s173, %s174
    %s176 = sshll.u32 [#allocation2], 4
    %s177 = int_to_ptr.vmem [resolvable:$true] %s176
    %180 = sst [smem:[#allocation24]] 2048
    %s181 = scalar_lea.smem [#allocation24], 1
    %182 = sst [smem:[%s181]] 2048
    %s183 = scalar_lea.smem [#allocation24], 2
    %184 = sst [smem:[%s183]] 16
    %s185 = scalar_lea.smem [#allocation24], 3
    %186 = sst [smem:[%s185]] 64
    %s187 = scalar_lea.smem [#allocation24], 4
    %188 = sst [smem:[%s187]] 128
    %s189 = scalar_lea.smem [#allocation24], 5
    %190 = sst [smem:[%s189]] 2
    %s191 = scalar_lea.smem [#allocation24], 6
    %192 = sst [smem:[%s191]] 1024
    %s193 = scalar_lea.smem [#allocation24], 7
    %194 = sst [smem:[%s193]] 64
    %s195 = scalar_lea.smem [#allocation24], 8
    %196 = sst [smem:[%s195]] 4
    %198 = dma.general %s1, 98304, %s177, [#allocation4], [#allocation23], [#allocation24], %s175, 0
    %s199 = scalar_lea.sflag [#allocation4], 1
    %s201 = sshll.u32 1, 14
    %s202 = sxor.u32 4294967295, %s201
    %s204 = sadd.s32 2, %s168
    %s206 = sshll.u32 7, 26
    %s207 = sxor.u32 4294967295, %s206
    %s208 = sand.u32 0, %s207
    %s209 = sshll.u32 %s204, 26
    %s210 = sor.u32 %s208, %s209
    %s211 = sshll.u32 [#allocation3], 4
    %s212 = int_to_ptr.vmem [resolvable:$true] %s211
    %215 = sst [smem:[#allocation26]] 1024
    %s216 = scalar_lea.smem [#allocation26], 1
    %217 = sst [smem:[%s216]] 1024
    %s218 = scalar_lea.smem [#allocation26], 2
    %219 = sst [smem:[%s218]] 8
    %s220 = scalar_lea.smem [#allocation26], 3
    %221 = sst [smem:[%s220]] 64
    %s222 = scalar_lea.smem [#allocation26], 4
    %223 = sst [smem:[%s222]] 128
    %s224 = scalar_lea.smem [#allocation26], 5
    %225 = sst [smem:[%s224]] 2
    %s226 = scalar_lea.smem [#allocation26], 6
    %227 = sst [smem:[%s226]] 512
    %s228 = scalar_lea.smem [#allocation26], 7
    %229 = sst [smem:[%s228]] 64
    %s230 = scalar_lea.smem [#allocation26], 8
    %231 = sst [smem:[%s230]] 4
    %233 = dma.general %s3, 131072, %s212, %s199, [#allocation25], [#allocation26], %s210, 0
    %v234 = vld [vmem:[#allocation5] sm:$0xff]
    %v235 = vld [vmem:[#allocation5 + $0x8] sm:$0xf]
    %s236 = smul.u32 4, 96
    %s237 = smul.u32 %s236, 16
    %s238 = sshll.u32 %s237, 4
    %239 = dma.done [#allocation4], %s238
    %v240 = vld [vmem:[#allocation2] sm:$0xff]
    %v241 = vld [vmem:[#allocation2 + $0x8] sm:$0xff]
    %v242 = vld [vmem:[#allocation2 + $0x10] sm:$0xff]
    %v243 = vld [vmem:[#allocation2 + $0x18] sm:$0xff]
    %v244 = vld [vmem:[#allocation2 + $0x20] sm:$0xff]
    %v245 = vld [vmem:[#allocation2 + $0x28] sm:$0xff]
    %v246 = vld [vmem:[#allocation2 + $0x30] sm:$0xff]
    %v247 = vld [vmem:[#allocation2 + $0x38] sm:$0xff]
    %v248 = vld [vmem:[#allocation2 + $0x40] sm:$0xff]
    %v249 = vld [vmem:[#allocation2 + $0x48] sm:$0xff]
    %v250 = vld [vmem:[#allocation2 + $0x50] sm:$0xff]
    %v251 = vld [vmem:[#allocation2 + $0x58] sm:$0xff]
    %v252 = vld [vmem:[#allocation2 + $0x60] sm:$0xff]
    %v253 = vld [vmem:[#allocation2 + $0x68] sm:$0xff]
    %v254 = vld [vmem:[#allocation2 + $0x70] sm:$0xff]
    %v255 = vld [vmem:[#allocation2 + $0x78] sm:$0xff]
    %v256 = vld [vmem:[#allocation2 + $0x80] sm:$0xff]
    %v257 = vld [vmem:[#allocation2 + $0x88] sm:$0xff]
    %v258 = vld [vmem:[#allocation2 + $0x90] sm:$0xff]
    %v259 = vld [vmem:[#allocation2 + $0x98] sm:$0xff]
    %v260 = vld [vmem:[#allocation2 + $0xa0] sm:$0xff]
    %v261 = vld [vmem:[#allocation2 + $0xa8] sm:$0xff]
    %v262 = vld [vmem:[#allocation2 + $0xb0] sm:$0xff]
    %v263 = vld [vmem:[#allocation2 + $0xb8] sm:$0xff]
    %v264 = vld [vmem:[#allocation2 + $0xc0] sm:$0xff]
    %v265 = vld [vmem:[#allocation2 + $0xc8] sm:$0xff]
    %v266 = vld [vmem:[#allocation2 + $0xd0] sm:$0xff]
    %v267 = vld [vmem:[#allocation2 + $0xd8] sm:$0xff]
    %v268 = vld [vmem:[#allocation2 + $0xe0] sm:$0xff]
    %v269 = vld [vmem:[#allocation2 + $0xe8] sm:$0xff]
    %v270 = vld [vmem:[#allocation2 + $0xf0] sm:$0xff]
    %v271 = vld [vmem:[#allocation2 + $0xf8] sm:$0xff]
    %v272 = vld [vmem:[#allocation2 + $0x100] sm:$0xff]
    %v273 = vld [vmem:[#allocation2 + $0x108] sm:$0xff]
    %v274 = vld [vmem:[#allocation2 + $0x110] sm:$0xff]
    %v275 = vld [vmem:[#allocation2 + $0x118] sm:$0xff]
    %v276 = vld [vmem:[#allocation2 + $0x120] sm:$0xff]
    %v277 = vld [vmem:[#allocation2 + $0x128] sm:$0xff]
    %v278 = vld [vmem:[#allocation2 + $0x130] sm:$0xff]
    %v279 = vld [vmem:[#allocation2 + $0x138] sm:$0xff]
    %v280 = vld [vmem:[#allocation2 + $0x140] sm:$0xff]
    %v281 = vld [vmem:[#allocation2 + $0x148] sm:$0xff]
    %v282 = vld [vmem:[#allocation2 + $0x150] sm:$0xff]
    %v283 = vld [vmem:[#allocation2 + $0x158] sm:$0xff]
    %v284 = vld [vmem:[#allocation2 + $0x160] sm:$0xff]
    %v285 = vld [vmem:[#allocation2 + $0x168] sm:$0xff]
    %v286 = vld [vmem:[#allocation2 + $0x170] sm:$0xff]
    %v287 = vld [vmem:[#allocation2 + $0x178] sm:$0xff]
    %v288 = vld [vmem:[#allocation2 + $0x180] sm:$0xff]
    %v289 = vld [vmem:[#allocation2 + $0x188] sm:$0xff]
    %v290 = vld [vmem:[#allocation2 + $0x190] sm:$0xff]
    %v291 = vld [vmem:[#allocation2 + $0x198] sm:$0xff]
    %v292 = vld [vmem:[#allocation2 + $0x1a0] sm:$0xff]
    %v293 = vld [vmem:[#allocation2 + $0x1a8] sm:$0xff]
    %v294 = vld [vmem:[#allocation2 + $0x1b0] sm:$0xff]
    %v295 = vld [vmem:[#allocation2 + $0x1b8] sm:$0xff]
    %v296 = vld [vmem:[#allocation2 + $0x1c0] sm:$0xff]
    %v297 = vld [vmem:[#allocation2 + $0x1c8] sm:$0xff]
    %v298 = vld [vmem:[#allocation2 + $0x1d0] sm:$0xff]
    %v299 = vld [vmem:[#allocation2 + $0x1d8] sm:$0xff]
    %v300 = vld [vmem:[#allocation2 + $0x1e0] sm:$0xff]
    %v301 = vld [vmem:[#allocation2 + $0x1e8] sm:$0xff]
    %v302 = vld [vmem:[#allocation2 + $0x1f0] sm:$0xff]
    %v303 = vld [vmem:[#allocation2 + $0x1f8] sm:$0xff]
    %v304 = vld [vmem:[#allocation2 + $0x200] sm:$0xff]
    %v305 = vld [vmem:[#allocation2 + $0x208] sm:$0xff]
    %v306 = vld [vmem:[#allocation2 + $0x210] sm:$0xff]
    %v307 = vld [vmem:[#allocation2 + $0x218] sm:$0xff]
    %v308 = vld [vmem:[#allocation2 + $0x220] sm:$0xff]
    %v309 = vld [vmem:[#allocation2 + $0x228] sm:$0xff]
    %v310 = vld [vmem:[#allocation2 + $0x230] sm:$0xff]
    %v311 = vld [vmem:[#allocation2 + $0x238] sm:$0xff]
    %v312 = vld [vmem:[#allocation2 + $0x240] sm:$0xff]
    %v313 = vld [vmem:[#allocation2 + $0x248] sm:$0xff]
    %v314 = vld [vmem:[#allocation2 + $0x250] sm:$0xff]
    %v315 = vld [vmem:[#allocation2 + $0x258] sm:$0xff]
    %v316 = vld [vmem:[#allocation2 + $0x260] sm:$0xff]
    %v317 = vld [vmem:[#allocation2 + $0x268] sm:$0xff]
    %v318 = vld [vmem:[#allocation2 + $0x270] sm:$0xff]
    %v319 = vld [vmem:[#allocation2 + $0x278] sm:$0xff]
    %v320 = vld [vmem:[#allocation2 + $0x280] sm:$0xff]
    %v321 = vld [vmem:[#allocation2 + $0x288] sm:$0xff]
    %v322 = vld [vmem:[#allocation2 + $0x290] sm:$0xff]
    %v323 = vld [vmem:[#allocation2 + $0x298] sm:$0xff]
    %v324 = vld [vmem:[#allocation2 + $0x2a0] sm:$0xff]
    %v325 = vld [vmem:[#allocation2 + $0x2a8] sm:$0xff]
    %v326 = vld [vmem:[#allocation2 + $0x2b0] sm:$0xff]
    %v327 = vld [vmem:[#allocation2 + $0x2b8] sm:$0xff]
    %v328 = vld [vmem:[#allocation2 + $0x2c0] sm:$0xff]
    %v329 = vld [vmem:[#allocation2 + $0x2c8] sm:$0xff]
    %v330 = vld [vmem:[#allocation2 + $0x2d0] sm:$0xff]
    %v331 = vld [vmem:[#allocation2 + $0x2d8] sm:$0xff]
    %v332 = vld [vmem:[#allocation2 + $0x2e0] sm:$0xff]
    %v333 = vld [vmem:[#allocation2 + $0x2e8] sm:$0xff]
    %v334 = vld [vmem:[#allocation2 + $0x2f0] sm:$0xff]
    %v335 = vld [vmem:[#allocation2 + $0x2f8] sm:$0xff]
    %v336 = vld [vmem:[#allocation2 + $0x300] sm:$0xff]
    %v337 = vld [vmem:[#allocation2 + $0x308] sm:$0xff]
    %v338 = vld [vmem:[#allocation2 + $0x310] sm:$0xff]
    %v339 = vld [vmem:[#allocation2 + $0x318] sm:$0xff]
    %v340 = vld [vmem:[#allocation2 + $0x320] sm:$0xff]
    %v341 = vld [vmem:[#allocation2 + $0x328] sm:$0xff]
    %v342 = vld [vmem:[#allocation2 + $0x330] sm:$0xff]
    %v343 = vld [vmem:[#allocation2 + $0x338] sm:$0xff]
    %v344 = vld [vmem:[#allocation2 + $0x340] sm:$0xff]
    %v345 = vld [vmem:[#allocation2 + $0x348] sm:$0xff]
    %v346 = vld [vmem:[#allocation2 + $0x350] sm:$0xff]
    %v347 = vld [vmem:[#allocation2 + $0x358] sm:$0xff]
    %v348 = vld [vmem:[#allocation2 + $0x360] sm:$0xff]
    %v349 = vld [vmem:[#allocation2 + $0x368] sm:$0xff]
    %v350 = vld [vmem:[#allocation2 + $0x370] sm:$0xff]
    %v351 = vld [vmem:[#allocation2 + $0x378] sm:$0xff]
    %v352 = vld [vmem:[#allocation2 + $0x380] sm:$0xff]
    %v353 = vld [vmem:[#allocation2 + $0x388] sm:$0xff]
    %v354 = vld [vmem:[#allocation2 + $0x390] sm:$0xff]
    %v355 = vld [vmem:[#allocation2 + $0x398] sm:$0xff]
    %v356 = vld [vmem:[#allocation2 + $0x3a0] sm:$0xff]
    %v357 = vld [vmem:[#allocation2 + $0x3a8] sm:$0xff]
    %v358 = vld [vmem:[#allocation2 + $0x3b0] sm:$0xff]
    %v359 = vld [vmem:[#allocation2 + $0x3b8] sm:$0xff]
    %v360 = vld [vmem:[#allocation2 + $0x3c0] sm:$0xff]
    %v361 = vld [vmem:[#allocation2 + $0x3c8] sm:$0xff]
    %v362 = vld [vmem:[#allocation2 + $0x3d0] sm:$0xff]
    %v363 = vld [vmem:[#allocation2 + $0x3d8] sm:$0xff]
    %v364 = vld [vmem:[#allocation2 + $0x3e0] sm:$0xff]
    %v365 = vld [vmem:[#allocation2 + $0x3e8] sm:$0xff]
    %v366 = vld [vmem:[#allocation2 + $0x3f0] sm:$0xff]
    %v367 = vld [vmem:[#allocation2 + $0x3f8] sm:$0xff]
    %v368 = vld [vmem:[#allocation2 + $0x400] sm:$0xff]
    %v369 = vld [vmem:[#allocation2 + $0x408] sm:$0xff]
    %v370 = vld [vmem:[#allocation2 + $0x410] sm:$0xff]
    %v371 = vld [vmem:[#allocation2 + $0x418] sm:$0xff]
    %v372 = vld [vmem:[#allocation2 + $0x420] sm:$0xff]
    %v373 = vld [vmem:[#allocation2 + $0x428] sm:$0xff]
    %v374 = vld [vmem:[#allocation2 + $0x430] sm:$0xff]
    %v375 = vld [vmem:[#allocation2 + $0x438] sm:$0xff]
    %v376 = vld [vmem:[#allocation2 + $0x440] sm:$0xff]
    %v377 = vld [vmem:[#allocation2 + $0x448] sm:$0xff]
    %v378 = vld [vmem:[#allocation2 + $0x450] sm:$0xff]
    %v379 = vld [vmem:[#allocation2 + $0x458] sm:$0xff]
    %v380 = vld [vmem:[#allocation2 + $0x460] sm:$0xff]
    %v381 = vld [vmem:[#allocation2 + $0x468] sm:$0xff]
    %v382 = vld [vmem:[#allocation2 + $0x470] sm:$0xff]
    %v383 = vld [vmem:[#allocation2 + $0x478] sm:$0xff]
    %v384 = vld [vmem:[#allocation2 + $0x480] sm:$0xff]
    %v385 = vld [vmem:[#allocation2 + $0x488] sm:$0xff]
    %v386 = vld [vmem:[#allocation2 + $0x490] sm:$0xff]
    %v387 = vld [vmem:[#allocation2 + $0x498] sm:$0xff]
    %v388 = vld [vmem:[#allocation2 + $0x4a0] sm:$0xff]
    %v389 = vld [vmem:[#allocation2 + $0x4a8] sm:$0xff]
    %v390 = vld [vmem:[#allocation2 + $0x4b0] sm:$0xff]
    %v391 = vld [vmem:[#allocation2 + $0x4b8] sm:$0xff]
    %v392 = vld [vmem:[#allocation2 + $0x4c0] sm:$0xff]
    %v393 = vld [vmem:[#allocation2 + $0x4c8] sm:$0xff]
    %v394 = vld [vmem:[#allocation2 + $0x4d0] sm:$0xff]
    %v395 = vld [vmem:[#allocation2 + $0x4d8] sm:$0xff]
    %v396 = vld [vmem:[#allocation2 + $0x4e0] sm:$0xff]
    %v397 = vld [vmem:[#allocation2 + $0x4e8] sm:$0xff]
    %v398 = vld [vmem:[#allocation2 + $0x4f0] sm:$0xff]
    %v399 = vld [vmem:[#allocation2 + $0x4f8] sm:$0xff]
    %v400 = vld [vmem:[#allocation2 + $0x500] sm:$0xff]
    %v401 = vld [vmem:[#allocation2 + $0x508] sm:$0xff]
    %v402 = vld [vmem:[#allocation2 + $0x510] sm:$0xff]
    %v403 = vld [vmem:[#allocation2 + $0x518] sm:$0xff]
    %v404 = vld [vmem:[#allocation2 + $0x520] sm:$0xff]
    %v405 = vld [vmem:[#allocation2 + $0x528] sm:$0xff]
    %v406 = vld [vmem:[#allocation2 + $0x530] sm:$0xff]
    %v407 = vld [vmem:[#allocation2 + $0x538] sm:$0xff]
    %v408 = vld [vmem:[#allocation2 + $0x540] sm:$0xff]
    %v409 = vld [vmem:[#allocation2 + $0x548] sm:$0xff]
    %v410 = vld [vmem:[#allocation2 + $0x550] sm:$0xff]
    %v411 = vld [vmem:[#allocation2 + $0x558] sm:$0xff]
    %v412 = vld [vmem:[#allocation2 + $0x560] sm:$0xff]
    %v413 = vld [vmem:[#allocation2 + $0x568] sm:$0xff]
    %v414 = vld [vmem:[#allocation2 + $0x570] sm:$0xff]
    %v415 = vld [vmem:[#allocation2 + $0x578] sm:$0xff]
    %v416 = vld [vmem:[#allocation2 + $0x580] sm:$0xff]
    %v417 = vld [vmem:[#allocation2 + $0x588] sm:$0xff]
    %v418 = vld [vmem:[#allocation2 + $0x590] sm:$0xff]
    %v419 = vld [vmem:[#allocation2 + $0x598] sm:$0xff]
    %v420 = vld [vmem:[#allocation2 + $0x5a0] sm:$0xff]
    %v421 = vld [vmem:[#allocation2 + $0x5a8] sm:$0xff]
    %v422 = vld [vmem:[#allocation2 + $0x5b0] sm:$0xff]
    %v423 = vld [vmem:[#allocation2 + $0x5b8] sm:$0xff]
    %v424 = vld [vmem:[#allocation2 + $0x5c0] sm:$0xff]
    %v425 = vld [vmem:[#allocation2 + $0x5c8] sm:$0xff]
    %v426 = vld [vmem:[#allocation2 + $0x5d0] sm:$0xff]
    %v427 = vld [vmem:[#allocation2 + $0x5d8] sm:$0xff]
    %v428 = vld [vmem:[#allocation2 + $0x5e0] sm:$0xff]
    %v429 = vld [vmem:[#allocation2 + $0x5e8] sm:$0xff]
    %v430 = vld [vmem:[#allocation2 + $0x5f0] sm:$0xff]
    %v431 = vld [vmem:[#allocation2 + $0x5f8] sm:$0xff]
    %v432 = vld [vmem:[#allocation2 + $0x600] sm:$0xff]
    %v433 = vld [vmem:[#allocation2 + $0x608] sm:$0xff]
    %v434 = vld [vmem:[#allocation2 + $0x610] sm:$0xff]
    %v435 = vld [vmem:[#allocation2 + $0x618] sm:$0xff]
    %v436 = vld [vmem:[#allocation2 + $0x620] sm:$0xff]
    %v437 = vld [vmem:[#allocation2 + $0x628] sm:$0xff]
    %v438 = vld [vmem:[#allocation2 + $0x630] sm:$0xff]
    %v439 = vld [vmem:[#allocation2 + $0x638] sm:$0xff]
    %v440 = vld [vmem:[#allocation2 + $0x640] sm:$0xff]
    %v441 = vld [vmem:[#allocation2 + $0x648] sm:$0xff]
    %v442 = vld [vmem:[#allocation2 + $0x650] sm:$0xff]
    %v443 = vld [vmem:[#allocation2 + $0x658] sm:$0xff]
    %v444 = vld [vmem:[#allocation2 + $0x660] sm:$0xff]
    %v445 = vld [vmem:[#allocation2 + $0x668] sm:$0xff]
    %v446 = vld [vmem:[#allocation2 + $0x670] sm:$0xff]
    %v447 = vld [vmem:[#allocation2 + $0x678] sm:$0xff]
    %v448 = vld [vmem:[#allocation2 + $0x680] sm:$0xff]
    %v449 = vld [vmem:[#allocation2 + $0x688] sm:$0xff]
    %v450 = vld [vmem:[#allocation2 + $0x690] sm:$0xff]
    %v451 = vld [vmem:[#allocation2 + $0x698] sm:$0xff]
    %v452 = vld [vmem:[#allocation2 + $0x6a0] sm:$0xff]
    %v453 = vld [vmem:[#allocation2 + $0x6a8] sm:$0xff]
    %v454 = vld [vmem:[#allocation2 + $0x6b0] sm:$0xff]
    %v455 = vld [vmem:[#allocation2 + $0x6b8] sm:$0xff]
    %v456 = vld [vmem:[#allocation2 + $0x6c0] sm:$0xff]
    %v457 = vld [vmem:[#allocation2 + $0x6c8] sm:$0xff]
    %v458 = vld [vmem:[#allocation2 + $0x6d0] sm:$0xff]
    %v459 = vld [vmem:[#allocation2 + $0x6d8] sm:$0xff]
    %v460 = vld [vmem:[#allocation2 + $0x6e0] sm:$0xff]
    %v461 = vld [vmem:[#allocation2 + $0x6e8] sm:$0xff]
    %v462 = vld [vmem:[#allocation2 + $0x6f0] sm:$0xff]
    %v463 = vld [vmem:[#allocation2 + $0x6f8] sm:$0xff]
    %v464 = vld [vmem:[#allocation2 + $0x700] sm:$0xff]
    %v465 = vld [vmem:[#allocation2 + $0x708] sm:$0xff]
    %v466 = vld [vmem:[#allocation2 + $0x710] sm:$0xff]
    %v467 = vld [vmem:[#allocation2 + $0x718] sm:$0xff]
    %v468 = vld [vmem:[#allocation2 + $0x720] sm:$0xff]
    %v469 = vld [vmem:[#allocation2 + $0x728] sm:$0xff]
    %v470 = vld [vmem:[#allocation2 + $0x730] sm:$0xff]
    %v471 = vld [vmem:[#allocation2 + $0x738] sm:$0xff]
    %v472 = vld [vmem:[#allocation2 + $0x740] sm:$0xff]
    %v473 = vld [vmem:[#allocation2 + $0x748] sm:$0xff]
    %v474 = vld [vmem:[#allocation2 + $0x750] sm:$0xff]
    %v475 = vld [vmem:[#allocation2 + $0x758] sm:$0xff]
    %v476 = vld [vmem:[#allocation2 + $0x760] sm:$0xff]
    %v477 = vld [vmem:[#allocation2 + $0x768] sm:$0xff]
    %v478 = vld [vmem:[#allocation2 + $0x770] sm:$0xff]
    %v479 = vld [vmem:[#allocation2 + $0x778] sm:$0xff]
    %v480 = vld [vmem:[#allocation2 + $0x780] sm:$0xff]
    %v481 = vld [vmem:[#allocation2 + $0x788] sm:$0xff]
    %v482 = vld [vmem:[#allocation2 + $0x790] sm:$0xff]
    %v483 = vld [vmem:[#allocation2 + $0x798] sm:$0xff]
    %v484 = vld [vmem:[#allocation2 + $0x7a0] sm:$0xff]
    %v485 = vld [vmem:[#allocation2 + $0x7a8] sm:$0xff]
    %v486 = vld [vmem:[#allocation2 + $0x7b0] sm:$0xff]
    %v487 = vld [vmem:[#allocation2 + $0x7b8] sm:$0xff]
    %v488 = vld [vmem:[#allocation2 + $0x7c0] sm:$0xff]
    %v489 = vld [vmem:[#allocation2 + $0x7c8] sm:$0xff]
    %v490 = vld [vmem:[#allocation2 + $0x7d0] sm:$0xff]
    %v491 = vld [vmem:[#allocation2 + $0x7d8] sm:$0xff]
    %v492 = vld [vmem:[#allocation2 + $0x7e0] sm:$0xff]
    %v493 = vld [vmem:[#allocation2 + $0x7e8] sm:$0xff]
    %v494 = vld [vmem:[#allocation2 + $0x7f0] sm:$0xff]
    %v495 = vld [vmem:[#allocation2 + $0x7f8] sm:$0xff]
    %v496 = vld [vmem:[#allocation2 + $0x800] sm:$0xff]
    %v497 = vld [vmem:[#allocation2 + $0x808] sm:$0xff]
    %v498 = vld [vmem:[#allocation2 + $0x810] sm:$0xff]
    %v499 = vld [vmem:[#allocation2 + $0x818] sm:$0xff]
    %v500 = vld [vmem:[#allocation2 + $0x820] sm:$0xff]
    %v501 = vld [vmem:[#allocation2 + $0x828] sm:$0xff]
    %v502 = vld [vmem:[#allocation2 + $0x830] sm:$0xff]
    %v503 = vld [vmem:[#allocation2 + $0x838] sm:$0xff]
    %v504 = vld [vmem:[#allocation2 + $0x840] sm:$0xff]
    %v505 = vld [vmem:[#allocation2 + $0x848] sm:$0xff]
    %v506 = vld [vmem:[#allocation2 + $0x850] sm:$0xff]
    %v507 = vld [vmem:[#allocation2 + $0x858] sm:$0xff]
    %v508 = vld [vmem:[#allocation2 + $0x860] sm:$0xff]
    %v509 = vld [vmem:[#allocation2 + $0x868] sm:$0xff]
    %v510 = vld [vmem:[#allocation2 + $0x870] sm:$0xff]
    %v511 = vld [vmem:[#allocation2 + $0x878] sm:$0xff]
    %v512 = vld [vmem:[#allocation2 + $0x880] sm:$0xff]
    %v513 = vld [vmem:[#allocation2 + $0x888] sm:$0xff]
    %v514 = vld [vmem:[#allocation2 + $0x890] sm:$0xff]
    %v515 = vld [vmem:[#allocation2 + $0x898] sm:$0xff]
    %v516 = vld [vmem:[#allocation2 + $0x8a0] sm:$0xff]
    %v517 = vld [vmem:[#allocation2 + $0x8a8] sm:$0xff]
    %v518 = vld [vmem:[#allocation2 + $0x8b0] sm:$0xff]
    %v519 = vld [vmem:[#allocation2 + $0x8b8] sm:$0xff]
    %v520 = vld [vmem:[#allocation2 + $0x8c0] sm:$0xff]
    %v521 = vld [vmem:[#allocation2 + $0x8c8] sm:$0xff]
    %v522 = vld [vmem:[#allocation2 + $0x8d0] sm:$0xff]
    %v523 = vld [vmem:[#allocation2 + $0x8d8] sm:$0xff]
    %v524 = vld [vmem:[#allocation2 + $0x8e0] sm:$0xff]
    %v525 = vld [vmem:[#allocation2 + $0x8e8] sm:$0xff]
    %v526 = vld [vmem:[#allocation2 + $0x8f0] sm:$0xff]
    %v527 = vld [vmem:[#allocation2 + $0x8f8] sm:$0xff]
    %v528 = vld [vmem:[#allocation2 + $0x900] sm:$0xff]
    %v529 = vld [vmem:[#allocation2 + $0x908] sm:$0xff]
    %v530 = vld [vmem:[#allocation2 + $0x910] sm:$0xff]
    %v531 = vld [vmem:[#allocation2 + $0x918] sm:$0xff]
    %v532 = vld [vmem:[#allocation2 + $0x920] sm:$0xff]
    %v533 = vld [vmem:[#allocation2 + $0x928] sm:$0xff]
    %v534 = vld [vmem:[#allocation2 + $0x930] sm:$0xff]
    %v535 = vld [vmem:[#allocation2 + $0x938] sm:$0xff]
    %v536 = vld [vmem:[#allocation2 + $0x940] sm:$0xff]
    %v537 = vld [vmem:[#allocation2 + $0x948] sm:$0xff]
    %v538 = vld [vmem:[#allocation2 + $0x950] sm:$0xff]
    %v539 = vld [vmem:[#allocation2 + $0x958] sm:$0xff]
    %v540 = vld [vmem:[#allocation2 + $0x960] sm:$0xff]
    %v541 = vld [vmem:[#allocation2 + $0x968] sm:$0xff]
    %v542 = vld [vmem:[#allocation2 + $0x970] sm:$0xff]
    %v543 = vld [vmem:[#allocation2 + $0x978] sm:$0xff]
    %v544 = vld [vmem:[#allocation2 + $0x980] sm:$0xff]
    %v545 = vld [vmem:[#allocation2 + $0x988] sm:$0xff]
    %v546 = vld [vmem:[#allocation2 + $0x990] sm:$0xff]
    %v547 = vld [vmem:[#allocation2 + $0x998] sm:$0xff]
    %v548 = vld [vmem:[#allocation2 + $0x9a0] sm:$0xff]
    %v549 = vld [vmem:[#allocation2 + $0x9a8] sm:$0xff]
    %v550 = vld [vmem:[#allocation2 + $0x9b0] sm:$0xff]
    %v551 = vld [vmem:[#allocation2 + $0x9b8] sm:$0xff]
    %v552 = vld [vmem:[#allocation2 + $0x9c0] sm:$0xff]
    %v553 = vld [vmem:[#allocation2 + $0x9c8] sm:$0xff]
    %v554 = vld [vmem:[#allocation2 + $0x9d0] sm:$0xff]
    %v555 = vld [vmem:[#allocation2 + $0x9d8] sm:$0xff]
    %v556 = vld [vmem:[#allocation2 + $0x9e0] sm:$0xff]
    %v557 = vld [vmem:[#allocation2 + $0x9e8] sm:$0xff]
    %v558 = vld [vmem:[#allocation2 + $0x9f0] sm:$0xff]
    %v559 = vld [vmem:[#allocation2 + $0x9f8] sm:$0xff]
    %v560 = vld [vmem:[#allocation2 + $0xa00] sm:$0xff]
    %v561 = vld [vmem:[#allocation2 + $0xa08] sm:$0xff]
    %v562 = vld [vmem:[#allocation2 + $0xa10] sm:$0xff]
    %v563 = vld [vmem:[#allocation2 + $0xa18] sm:$0xff]
    %v564 = vld [vmem:[#allocation2 + $0xa20] sm:$0xff]
    %v565 = vld [vmem:[#allocation2 + $0xa28] sm:$0xff]
    %v566 = vld [vmem:[#allocation2 + $0xa30] sm:$0xff]
    %v567 = vld [vmem:[#allocation2 + $0xa38] sm:$0xff]
    %v568 = vld [vmem:[#allocation2 + $0xa40] sm:$0xff]
    %v569 = vld [vmem:[#allocation2 + $0xa48] sm:$0xff]
    %v570 = vld [vmem:[#allocation2 + $0xa50] sm:$0xff]
    %v571 = vld [vmem:[#allocation2 + $0xa58] sm:$0xff]
    %v572 = vld [vmem:[#allocation2 + $0xa60] sm:$0xff]
    %v573 = vld [vmem:[#allocation2 + $0xa68] sm:$0xff]
    %v574 = vld [vmem:[#allocation2 + $0xa70] sm:$0xff]
    %v575 = vld [vmem:[#allocation2 + $0xa78] sm:$0xff]
    %v576 = vld [vmem:[#allocation2 + $0xa80] sm:$0xff]
    %v577 = vld [vmem:[#allocation2 + $0xa88] sm:$0xff]
    %v578 = vld [vmem:[#allocation2 + $0xa90] sm:$0xff]
    %v579 = vld [vmem:[#allocation2 + $0xa98] sm:$0xff]
    %v580 = vld [vmem:[#allocation2 + $0xaa0] sm:$0xff]
    %v581 = vld [vmem:[#allocation2 + $0xaa8] sm:$0xff]
    %v582 = vld [vmem:[#allocation2 + $0xab0] sm:$0xff]
    %v583 = vld [vmem:[#allocation2 + $0xab8] sm:$0xff]
    %v584 = vld [vmem:[#allocation2 + $0xac0] sm:$0xff]
    %v585 = vld [vmem:[#allocation2 + $0xac8] sm:$0xff]
    %v586 = vld [vmem:[#allocation2 + $0xad0] sm:$0xff]
    %v587 = vld [vmem:[#allocation2 + $0xad8] sm:$0xff]
    %v588 = vld [vmem:[#allocation2 + $0xae0] sm:$0xff]
    %v589 = vld [vmem:[#allocation2 + $0xae8] sm:$0xff]
    %v590 = vld [vmem:[#allocation2 + $0xaf0] sm:$0xff]
    %v591 = vld [vmem:[#allocation2 + $0xaf8] sm:$0xff]
    %v592 = vld [vmem:[#allocation2 + $0xb00] sm:$0xff]
    %v593 = vld [vmem:[#allocation2 + $0xb08] sm:$0xff]
    %v594 = vld [vmem:[#allocation2 + $0xb10] sm:$0xff]
    %v595 = vld [vmem:[#allocation2 + $0xb18] sm:$0xff]
    %v596 = vld [vmem:[#allocation2 + $0xb20] sm:$0xff]
    %v597 = vld [vmem:[#allocation2 + $0xb28] sm:$0xff]
    %v598 = vld [vmem:[#allocation2 + $0xb30] sm:$0xff]
    %v599 = vld [vmem:[#allocation2 + $0xb38] sm:$0xff]
    %v600 = vld [vmem:[#allocation2 + $0xb40] sm:$0xff]
    %v601 = vld [vmem:[#allocation2 + $0xb48] sm:$0xff]
    %v602 = vld [vmem:[#allocation2 + $0xb50] sm:$0xff]
    %v603 = vld [vmem:[#allocation2 + $0xb58] sm:$0xff]
    %v604 = vld [vmem:[#allocation2 + $0xb60] sm:$0xff]
    %v605 = vld [vmem:[#allocation2 + $0xb68] sm:$0xff]
    %v606 = vld [vmem:[#allocation2 + $0xb70] sm:$0xff]
    %v607 = vld [vmem:[#allocation2 + $0xb78] sm:$0xff]
    %v608 = vld [vmem:[#allocation2 + $0xb80] sm:$0xff]
    %v609 = vld [vmem:[#allocation2 + $0xb88] sm:$0xff]
    %v610 = vld [vmem:[#allocation2 + $0xb90] sm:$0xff]
    %v611 = vld [vmem:[#allocation2 + $0xb98] sm:$0xff]
    %v612 = vld [vmem:[#allocation2 + $0xba0] sm:$0xff]
    %v613 = vld [vmem:[#allocation2 + $0xba8] sm:$0xff]
    %v614 = vld [vmem:[#allocation2 + $0xbb0] sm:$0xff]
    %v615 = vld [vmem:[#allocation2 + $0xbb8] sm:$0xff]
    %v616 = vld [vmem:[#allocation2 + $0xbc0] sm:$0xff]
    %v617 = vld [vmem:[#allocation2 + $0xbc8] sm:$0xff]
    %v618 = vld [vmem:[#allocation2 + $0xbd0] sm:$0xff]
    %v619 = vld [vmem:[#allocation2 + $0xbd8] sm:$0xff]
    %v620 = vld [vmem:[#allocation2 + $0xbe0] sm:$0xff]
    %v621 = vld [vmem:[#allocation2 + $0xbe8] sm:$0xff]
    %v622 = vld [vmem:[#allocation2 + $0xbf0] sm:$0xff]
    %v623 = vld [vmem:[#allocation2 + $0xbf8] sm:$0xff]
    %v624 = vld [vmem:[#allocation2 + $0xc00] sm:$0xff]
    %v625 = vld [vmem:[#allocation2 + $0xc08] sm:$0xff]
    %v626 = vld [vmem:[#allocation2 + $0xc10] sm:$0xff]
    %v627 = vld [vmem:[#allocation2 + $0xc18] sm:$0xff]
    %v628 = vld [vmem:[#allocation2 + $0xc20] sm:$0xff]
    %v629 = vld [vmem:[#allocation2 + $0xc28] sm:$0xff]
    %v630 = vld [vmem:[#allocation2 + $0xc30] sm:$0xff]
    %v631 = vld [vmem:[#allocation2 + $0xc38] sm:$0xff]
    %v632 = vld [vmem:[#allocation2 + $0xc40] sm:$0xff]
    %v633 = vld [vmem:[#allocation2 + $0xc48] sm:$0xff]
    %v634 = vld [vmem:[#allocation2 + $0xc50] sm:$0xff]
    %v635 = vld [vmem:[#allocation2 + $0xc58] sm:$0xff]
    %v636 = vld [vmem:[#allocation2 + $0xc60] sm:$0xff]
    %v637 = vld [vmem:[#allocation2 + $0xc68] sm:$0xff]
    %v638 = vld [vmem:[#allocation2 + $0xc70] sm:$0xff]
    %v639 = vld [vmem:[#allocation2 + $0xc78] sm:$0xff]
    %v640 = vld [vmem:[#allocation2 + $0xc80] sm:$0xff]
    %v641 = vld [vmem:[#allocation2 + $0xc88] sm:$0xff]
    %v642 = vld [vmem:[#allocation2 + $0xc90] sm:$0xff]
    %v643 = vld [vmem:[#allocation2 + $0xc98] sm:$0xff]
    %v644 = vld [vmem:[#allocation2 + $0xca0] sm:$0xff]
    %v645 = vld [vmem:[#allocation2 + $0xca8] sm:$0xff]
    %v646 = vld [vmem:[#allocation2 + $0xcb0] sm:$0xff]
    %v647 = vld [vmem:[#allocation2 + $0xcb8] sm:$0xff]
    %v648 = vld [vmem:[#allocation2 + $0xcc0] sm:$0xff]
    %v649 = vld [vmem:[#allocation2 + $0xcc8] sm:$0xff]
    %v650 = vld [vmem:[#allocation2 + $0xcd0] sm:$0xff]
    %v651 = vld [vmem:[#allocation2 + $0xcd8] sm:$0xff]
    %v652 = vld [vmem:[#allocation2 + $0xce0] sm:$0xff]
    %v653 = vld [vmem:[#allocation2 + $0xce8] sm:$0xff]
    %v654 = vld [vmem:[#allocation2 + $0xcf0] sm:$0xff]
    %v655 = vld [vmem:[#allocation2 + $0xcf8] sm:$0xff]
    %v656 = vld [vmem:[#allocation2 + $0xd00] sm:$0xff]
    %v657 = vld [vmem:[#allocation2 + $0xd08] sm:$0xff]
    %v658 = vld [vmem:[#allocation2 + $0xd10] sm:$0xff]
    %v659 = vld [vmem:[#allocation2 + $0xd18] sm:$0xff]
    %v660 = vld [vmem:[#allocation2 + $0xd20] sm:$0xff]
    %v661 = vld [vmem:[#allocation2 + $0xd28] sm:$0xff]
    %v662 = vld [vmem:[#allocation2 + $0xd30] sm:$0xff]
    %v663 = vld [vmem:[#allocation2 + $0xd38] sm:$0xff]
    %v664 = vld [vmem:[#allocation2 + $0xd40] sm:$0xff]
    %v665 = vld [vmem:[#allocation2 + $0xd48] sm:$0xff]
    %v666 = vld [vmem:[#allocation2 + $0xd50] sm:$0xff]
    %v667 = vld [vmem:[#allocation2 + $0xd58] sm:$0xff]
    %v668 = vld [vmem:[#allocation2 + $0xd60] sm:$0xff]
    %v669 = vld [vmem:[#allocation2 + $0xd68] sm:$0xff]
    %v670 = vld [vmem:[#allocation2 + $0xd70] sm:$0xff]
    %v671 = vld [vmem:[#allocation2 + $0xd78] sm:$0xff]
    %v672 = vld [vmem:[#allocation2 + $0xd80] sm:$0xff]
    %v673 = vld [vmem:[#allocation2 + $0xd88] sm:$0xff]
    %v674 = vld [vmem:[#allocation2 + $0xd90] sm:$0xff]
    %v675 = vld [vmem:[#allocation2 + $0xd98] sm:$0xff]
    %v676 = vld [vmem:[#allocation2 + $0xda0] sm:$0xff]
    %v677 = vld [vmem:[#allocation2 + $0xda8] sm:$0xff]
    %v678 = vld [vmem:[#allocation2 + $0xdb0] sm:$0xff]
    %v679 = vld [vmem:[#allocation2 + $0xdb8] sm:$0xff]
    %v680 = vld [vmem:[#allocation2 + $0xdc0] sm:$0xff]
    %v681 = vld [vmem:[#allocation2 + $0xdc8] sm:$0xff]
    %v682 = vld [vmem:[#allocation2 + $0xdd0] sm:$0xff]
    %v683 = vld [vmem:[#allocation2 + $0xdd8] sm:$0xff]
    %v684 = vld [vmem:[#allocation2 + $0xde0] sm:$0xff]
    %v685 = vld [vmem:[#allocation2 + $0xde8] sm:$0xff]
    %v686 = vld [vmem:[#allocation2 + $0xdf0] sm:$0xff]
    %v687 = vld [vmem:[#allocation2 + $0xdf8] sm:$0xff]
    %v688 = vld [vmem:[#allocation2 + $0xe00] sm:$0xff]
    %v689 = vld [vmem:[#allocation2 + $0xe08] sm:$0xff]
    %v690 = vld [vmem:[#allocation2 + $0xe10] sm:$0xff]
    %v691 = vld [vmem:[#allocation2 + $0xe18] sm:$0xff]
    %v692 = vld [vmem:[#allocation2 + $0xe20] sm:$0xff]
    %v693 = vld [vmem:[#allocation2 + $0xe28] sm:$0xff]
    %v694 = vld [vmem:[#allocation2 + $0xe30] sm:$0xff]
    %v695 = vld [vmem:[#allocation2 + $0xe38] sm:$0xff]
    %v696 = vld [vmem:[#allocation2 + $0xe40] sm:$0xff]
    %v697 = vld [vmem:[#allocation2 + $0xe48] sm:$0xff]
    %v698 = vld [vmem:[#allocation2 + $0xe50] sm:$0xff]
    %v699 = vld [vmem:[#allocation2 + $0xe58] sm:$0xff]
    %v700 = vld [vmem:[#allocation2 + $0xe60] sm:$0xff]
    %v701 = vld [vmem:[#allocation2 + $0xe68] sm:$0xff]
    %v702 = vld [vmem:[#allocation2 + $0xe70] sm:$0xff]
    %v703 = vld [vmem:[#allocation2 + $0xe78] sm:$0xff]
    %v704 = vld [vmem:[#allocation2 + $0xe80] sm:$0xff]
    %v705 = vld [vmem:[#allocation2 + $0xe88] sm:$0xff]
    %v706 = vld [vmem:[#allocation2 + $0xe90] sm:$0xff]
    %v707 = vld [vmem:[#allocation2 + $0xe98] sm:$0xff]
    %v708 = vld [vmem:[#allocation2 + $0xea0] sm:$0xff]
    %v709 = vld [vmem:[#allocation2 + $0xea8] sm:$0xff]
    %v710 = vld [vmem:[#allocation2 + $0xeb0] sm:$0xff]
    %v711 = vld [vmem:[#allocation2 + $0xeb8] sm:$0xff]
    %v712 = vld [vmem:[#allocation2 + $0xec0] sm:$0xff]
    %v713 = vld [vmem:[#allocation2 + $0xec8] sm:$0xff]
    %v714 = vld [vmem:[#allocation2 + $0xed0] sm:$0xff]
    %v715 = vld [vmem:[#allocation2 + $0xed8] sm:$0xff]
    %v716 = vld [vmem:[#allocation2 + $0xee0] sm:$0xff]
    %v717 = vld [vmem:[#allocation2 + $0xee8] sm:$0xff]
    %v718 = vld [vmem:[#allocation2 + $0xef0] sm:$0xff]
    %v719 = vld [vmem:[#allocation2 + $0xef8] sm:$0xff]
    %v720 = vld [vmem:[#allocation2 + $0xf00] sm:$0xff]
    %v721 = vld [vmem:[#allocation2 + $0xf08] sm:$0xff]
    %v722 = vld [vmem:[#allocation2 + $0xf10] sm:$0xff]
    %v723 = vld [vmem:[#allocation2 + $0xf18] sm:$0xff]
    %v724 = vld [vmem:[#allocation2 + $0xf20] sm:$0xff]
    %v725 = vld [vmem:[#allocation2 + $0xf28] sm:$0xff]
    %v726 = vld [vmem:[#allocation2 + $0xf30] sm:$0xff]
    %v727 = vld [vmem:[#allocation2 + $0xf38] sm:$0xff]
    %v728 = vld [vmem:[#allocation2 + $0xf40] sm:$0xff]
    %v729 = vld [vmem:[#allocation2 + $0xf48] sm:$0xff]
    %v730 = vld [vmem:[#allocation2 + $0xf50] sm:$0xff]
    %v731 = vld [vmem:[#allocation2 + $0xf58] sm:$0xff]
    %v732 = vld [vmem:[#allocation2 + $0xf60] sm:$0xff]
    %v733 = vld [vmem:[#allocation2 + $0xf68] sm:$0xff]
    %v734 = vld [vmem:[#allocation2 + $0xf70] sm:$0xff]
    %v735 = vld [vmem:[#allocation2 + $0xf78] sm:$0xff]
    %v736 = vld [vmem:[#allocation2 + $0xf80] sm:$0xff]
    %v737 = vld [vmem:[#allocation2 + $0xf88] sm:$0xff]
    %v738 = vld [vmem:[#allocation2 + $0xf90] sm:$0xff]
    %v739 = vld [vmem:[#allocation2 + $0xf98] sm:$0xff]
    %v740 = vld [vmem:[#allocation2 + $0xfa0] sm:$0xff]
    %v741 = vld [vmem:[#allocation2 + $0xfa8] sm:$0xff]
    %v742 = vld [vmem:[#allocation2 + $0xfb0] sm:$0xff]
    %v743 = vld [vmem:[#allocation2 + $0xfb8] sm:$0xff]
    %v744 = vld [vmem:[#allocation2 + $0xfc0] sm:$0xff]
    %v745 = vld [vmem:[#allocation2 + $0xfc8] sm:$0xff]
    %v746 = vld [vmem:[#allocation2 + $0xfd0] sm:$0xff]
    %v747 = vld [vmem:[#allocation2 + $0xfd8] sm:$0xff]
    %v748 = vld [vmem:[#allocation2 + $0xfe0] sm:$0xff]
    %v749 = vld [vmem:[#allocation2 + $0xfe8] sm:$0xff]
    %v750 = vld [vmem:[#allocation2 + $0xff0] sm:$0xff]
    %v751 = vld [vmem:[#allocation2 + $0xff8] sm:$0xff]
    %v752 = vld [vmem:[#allocation2 + $0x1000] sm:$0xff]
    %v753 = vld [vmem:[#allocation2 + $0x1008] sm:$0xff]
    %v754 = vld [vmem:[#allocation2 + $0x1010] sm:$0xff]
    %v755 = vld [vmem:[#allocation2 + $0x1018] sm:$0xff]
    %v756 = vld [vmem:[#allocation2 + $0x1020] sm:$0xff]
    %v757 = vld [vmem:[#allocation2 + $0x1028] sm:$0xff]
    %v758 = vld [vmem:[#allocation2 + $0x1030] sm:$0xff]
    %v759 = vld [vmem:[#allocation2 + $0x1038] sm:$0xff]
    %v760 = vld [vmem:[#allocation2 + $0x1040] sm:$0xff]
    %v761 = vld [vmem:[#allocation2 + $0x1048] sm:$0xff]
    %v762 = vld [vmem:[#allocation2 + $0x1050] sm:$0xff]
    %v763 = vld [vmem:[#allocation2 + $0x1058] sm:$0xff]
    %v764 = vld [vmem:[#allocation2 + $0x1060] sm:$0xff]
    %v765 = vld [vmem:[#allocation2 + $0x1068] sm:$0xff]
    %v766 = vld [vmem:[#allocation2 + $0x1070] sm:$0xff]
    %v767 = vld [vmem:[#allocation2 + $0x1078] sm:$0xff]
    %v768 = vld [vmem:[#allocation2 + $0x1080] sm:$0xff]
    %v769 = vld [vmem:[#allocation2 + $0x1088] sm:$0xff]
    %v770 = vld [vmem:[#allocation2 + $0x1090] sm:$0xff]
    %v771 = vld [vmem:[#allocation2 + $0x1098] sm:$0xff]
    %v772 = vld [vmem:[#allocation2 + $0x10a0] sm:$0xff]
    %v773 = vld [vmem:[#allocation2 + $0x10a8] sm:$0xff]
    %v774 = vld [vmem:[#allocation2 + $0x10b0] sm:$0xff]
    %v775 = vld [vmem:[#allocation2 + $0x10b8] sm:$0xff]
    %v776 = vld [vmem:[#allocation2 + $0x10c0] sm:$0xff]
    %v777 = vld [vmem:[#allocation2 + $0x10c8] sm:$0xff]
    %v778 = vld [vmem:[#allocation2 + $0x10d0] sm:$0xff]
    %v779 = vld [vmem:[#allocation2 + $0x10d8] sm:$0xff]
    %v780 = vld [vmem:[#allocation2 + $0x10e0] sm:$0xff]
    %v781 = vld [vmem:[#allocation2 + $0x10e8] sm:$0xff]
    %v782 = vld [vmem:[#allocation2 + $0x10f0] sm:$0xff]
    %v783 = vld [vmem:[#allocation2 + $0x10f8] sm:$0xff]
    %v784 = vld [vmem:[#allocation2 + $0x1100] sm:$0xff]
    %v785 = vld [vmem:[#allocation2 + $0x1108] sm:$0xff]
    %v786 = vld [vmem:[#allocation2 + $0x1110] sm:$0xff]
    %v787 = vld [vmem:[#allocation2 + $0x1118] sm:$0xff]
    %v788 = vld [vmem:[#allocation2 + $0x1120] sm:$0xff]
    %v789 = vld [vmem:[#allocation2 + $0x1128] sm:$0xff]
    %v790 = vld [vmem:[#allocation2 + $0x1130] sm:$0xff]
    %v791 = vld [vmem:[#allocation2 + $0x1138] sm:$0xff]
    %v792 = vld [vmem:[#allocation2 + $0x1140] sm:$0xff]
    %v793 = vld [vmem:[#allocation2 + $0x1148] sm:$0xff]
    %v794 = vld [vmem:[#allocation2 + $0x1150] sm:$0xff]
    %v795 = vld [vmem:[#allocation2 + $0x1158] sm:$0xff]
    %v796 = vld [vmem:[#allocation2 + $0x1160] sm:$0xff]
    %v797 = vld [vmem:[#allocation2 + $0x1168] sm:$0xff]
    %v798 = vld [vmem:[#allocation2 + $0x1170] sm:$0xff]
    %v799 = vld [vmem:[#allocation2 + $0x1178] sm:$0xff]
    %v800 = vld [vmem:[#allocation2 + $0x1180] sm:$0xff]
    %v801 = vld [vmem:[#allocation2 + $0x1188] sm:$0xff]
    %v802 = vld [vmem:[#allocation2 + $0x1190] sm:$0xff]
    %v803 = vld [vmem:[#allocation2 + $0x1198] sm:$0xff]
    %v804 = vld [vmem:[#allocation2 + $0x11a0] sm:$0xff]
    %v805 = vld [vmem:[#allocation2 + $0x11a8] sm:$0xff]
    %v806 = vld [vmem:[#allocation2 + $0x11b0] sm:$0xff]
    %v807 = vld [vmem:[#allocation2 + $0x11b8] sm:$0xff]
    %v808 = vld [vmem:[#allocation2 + $0x11c0] sm:$0xff]
    %v809 = vld [vmem:[#allocation2 + $0x11c8] sm:$0xff]
    %v810 = vld [vmem:[#allocation2 + $0x11d0] sm:$0xff]
    %v811 = vld [vmem:[#allocation2 + $0x11d8] sm:$0xff]
    %v812 = vld [vmem:[#allocation2 + $0x11e0] sm:$0xff]
    %v813 = vld [vmem:[#allocation2 + $0x11e8] sm:$0xff]
    %v814 = vld [vmem:[#allocation2 + $0x11f0] sm:$0xff]
    %v815 = vld [vmem:[#allocation2 + $0x11f8] sm:$0xff]
    %v816 = vld [vmem:[#allocation2 + $0x1200] sm:$0xff]
    %v817 = vld [vmem:[#allocation2 + $0x1208] sm:$0xff]
    %v818 = vld [vmem:[#allocation2 + $0x1210] sm:$0xff]
    %v819 = vld [vmem:[#allocation2 + $0x1218] sm:$0xff]
    %v820 = vld [vmem:[#allocation2 + $0x1220] sm:$0xff]
    %v821 = vld [vmem:[#allocation2 + $0x1228] sm:$0xff]
    %v822 = vld [vmem:[#allocation2 + $0x1230] sm:$0xff]
    %v823 = vld [vmem:[#allocation2 + $0x1238] sm:$0xff]
    %v824 = vld [vmem:[#allocation2 + $0x1240] sm:$0xff]
    %v825 = vld [vmem:[#allocation2 + $0x1248] sm:$0xff]
    %v826 = vld [vmem:[#allocation2 + $0x1250] sm:$0xff]
    %v827 = vld [vmem:[#allocation2 + $0x1258] sm:$0xff]
    %v828 = vld [vmem:[#allocation2 + $0x1260] sm:$0xff]
    %v829 = vld [vmem:[#allocation2 + $0x1268] sm:$0xff]
    %v830 = vld [vmem:[#allocation2 + $0x1270] sm:$0xff]
    %v831 = vld [vmem:[#allocation2 + $0x1278] sm:$0xff]
    %v832 = vld [vmem:[#allocation2 + $0x1280] sm:$0xff]
    %v833 = vld [vmem:[#allocation2 + $0x1288] sm:$0xff]
    %v834 = vld [vmem:[#allocation2 + $0x1290] sm:$0xff]
    %v835 = vld [vmem:[#allocation2 + $0x1298] sm:$0xff]
    %v836 = vld [vmem:[#allocation2 + $0x12a0] sm:$0xff]
    %v837 = vld [vmem:[#allocation2 + $0x12a8] sm:$0xff]
    %v838 = vld [vmem:[#allocation2 + $0x12b0] sm:$0xff]
    %v839 = vld [vmem:[#allocation2 + $0x12b8] sm:$0xff]
    %v840 = vld [vmem:[#allocation2 + $0x12c0] sm:$0xff]
    %v841 = vld [vmem:[#allocation2 + $0x12c8] sm:$0xff]
    %v842 = vld [vmem:[#allocation2 + $0x12d0] sm:$0xff]
    %v843 = vld [vmem:[#allocation2 + $0x12d8] sm:$0xff]
    %v844 = vld [vmem:[#allocation2 + $0x12e0] sm:$0xff]
    %v845 = vld [vmem:[#allocation2 + $0x12e8] sm:$0xff]
    %v846 = vld [vmem:[#allocation2 + $0x12f0] sm:$0xff]
    %v847 = vld [vmem:[#allocation2 + $0x12f8] sm:$0xff]
    %v848 = vld [vmem:[#allocation2 + $0x1300] sm:$0xff]
    %v849 = vld [vmem:[#allocation2 + $0x1308] sm:$0xff]
    %v850 = vld [vmem:[#allocation2 + $0x1310] sm:$0xff]
    %v851 = vld [vmem:[#allocation2 + $0x1318] sm:$0xff]
    %v852 = vld [vmem:[#allocation2 + $0x1320] sm:$0xff]
    %v853 = vld [vmem:[#allocation2 + $0x1328] sm:$0xff]
    %v854 = vld [vmem:[#allocation2 + $0x1330] sm:$0xff]
    %v855 = vld [vmem:[#allocation2 + $0x1338] sm:$0xff]
    %v856 = vld [vmem:[#allocation2 + $0x1340] sm:$0xff]
    %v857 = vld [vmem:[#allocation2 + $0x1348] sm:$0xff]
    %v858 = vld [vmem:[#allocation2 + $0x1350] sm:$0xff]
    %v859 = vld [vmem:[#allocation2 + $0x1358] sm:$0xff]
    %v860 = vld [vmem:[#allocation2 + $0x1360] sm:$0xff]
    %v861 = vld [vmem:[#allocation2 + $0x1368] sm:$0xff]
    %v862 = vld [vmem:[#allocation2 + $0x1370] sm:$0xff]
    %v863 = vld [vmem:[#allocation2 + $0x1378] sm:$0xff]
    %v864 = vld [vmem:[#allocation2 + $0x1380] sm:$0xff]
    %v865 = vld [vmem:[#allocation2 + $0x1388] sm:$0xff]
    %v866 = vld [vmem:[#allocation2 + $0x1390] sm:$0xff]
    %v867 = vld [vmem:[#allocation2 + $0x1398] sm:$0xff]
    %v868 = vld [vmem:[#allocation2 + $0x13a0] sm:$0xff]
    %v869 = vld [vmem:[#allocation2 + $0x13a8] sm:$0xff]
    %v870 = vld [vmem:[#allocation2 + $0x13b0] sm:$0xff]
    %v871 = vld [vmem:[#allocation2 + $0x13b8] sm:$0xff]
    %v872 = vld [vmem:[#allocation2 + $0x13c0] sm:$0xff]
    %v873 = vld [vmem:[#allocation2 + $0x13c8] sm:$0xff]
    %v874 = vld [vmem:[#allocation2 + $0x13d0] sm:$0xff]
    %v875 = vld [vmem:[#allocation2 + $0x13d8] sm:$0xff]
    %v876 = vld [vmem:[#allocation2 + $0x13e0] sm:$0xff]
    %v877 = vld [vmem:[#allocation2 + $0x13e8] sm:$0xff]
    %v878 = vld [vmem:[#allocation2 + $0x13f0] sm:$0xff]
    %v879 = vld [vmem:[#allocation2 + $0x13f8] sm:$0xff]
    %v880 = vld [vmem:[#allocation2 + $0x1400] sm:$0xff]
    %v881 = vld [vmem:[#allocation2 + $0x1408] sm:$0xff]
    %v882 = vld [vmem:[#allocation2 + $0x1410] sm:$0xff]
    %v883 = vld [vmem:[#allocation2 + $0x1418] sm:$0xff]
    %v884 = vld [vmem:[#allocation2 + $0x1420] sm:$0xff]
    %v885 = vld [vmem:[#allocation2 + $0x1428] sm:$0xff]
    %v886 = vld [vmem:[#allocation2 + $0x1430] sm:$0xff]
    %v887 = vld [vmem:[#allocation2 + $0x1438] sm:$0xff]
    %v888 = vld [vmem:[#allocation2 + $0x1440] sm:$0xff]
    %v889 = vld [vmem:[#allocation2 + $0x1448] sm:$0xff]
    %v890 = vld [vmem:[#allocation2 + $0x1450] sm:$0xff]
    %v891 = vld [vmem:[#allocation2 + $0x1458] sm:$0xff]
    %v892 = vld [vmem:[#allocation2 + $0x1460] sm:$0xff]
    %v893 = vld [vmem:[#allocation2 + $0x1468] sm:$0xff]
    %v894 = vld [vmem:[#allocation2 + $0x1470] sm:$0xff]
    %v895 = vld [vmem:[#allocation2 + $0x1478] sm:$0xff]
    %v896 = vld [vmem:[#allocation2 + $0x1480] sm:$0xff]
    %v897 = vld [vmem:[#allocation2 + $0x1488] sm:$0xff]
    %v898 = vld [vmem:[#allocation2 + $0x1490] sm:$0xff]
    %v899 = vld [vmem:[#allocation2 + $0x1498] sm:$0xff]
    %v900 = vld [vmem:[#allocation2 + $0x14a0] sm:$0xff]
    %v901 = vld [vmem:[#allocation2 + $0x14a8] sm:$0xff]
    %v902 = vld [vmem:[#allocation2 + $0x14b0] sm:$0xff]
    %v903 = vld [vmem:[#allocation2 + $0x14b8] sm:$0xff]
    %v904 = vld [vmem:[#allocation2 + $0x14c0] sm:$0xff]
    %v905 = vld [vmem:[#allocation2 + $0x14c8] sm:$0xff]
    %v906 = vld [vmem:[#allocation2 + $0x14d0] sm:$0xff]
    %v907 = vld [vmem:[#allocation2 + $0x14d8] sm:$0xff]
    %v908 = vld [vmem:[#allocation2 + $0x14e0] sm:$0xff]
    %v909 = vld [vmem:[#allocation2 + $0x14e8] sm:$0xff]
    %v910 = vld [vmem:[#allocation2 + $0x14f0] sm:$0xff]
    %v911 = vld [vmem:[#allocation2 + $0x14f8] sm:$0xff]
    %v912 = vld [vmem:[#allocation2 + $0x1500] sm:$0xff]
    %v913 = vld [vmem:[#allocation2 + $0x1508] sm:$0xff]
    %v914 = vld [vmem:[#allocation2 + $0x1510] sm:$0xff]
    %v915 = vld [vmem:[#allocation2 + $0x1518] sm:$0xff]
    %v916 = vld [vmem:[#allocation2 + $0x1520] sm:$0xff]
    %v917 = vld [vmem:[#allocation2 + $0x1528] sm:$0xff]
    %v918 = vld [vmem:[#allocation2 + $0x1530] sm:$0xff]
    %v919 = vld [vmem:[#allocation2 + $0x1538] sm:$0xff]
    %v920 = vld [vmem:[#allocation2 + $0x1540] sm:$0xff]
    %v921 = vld [vmem:[#allocation2 + $0x1548] sm:$0xff]
    %v922 = vld [vmem:[#allocation2 + $0x1550] sm:$0xff]
    %v923 = vld [vmem:[#allocation2 + $0x1558] sm:$0xff]
    %v924 = vld [vmem:[#allocation2 + $0x1560] sm:$0xff]
    %v925 = vld [vmem:[#allocation2 + $0x1568] sm:$0xff]
    %v926 = vld [vmem:[#allocation2 + $0x1570] sm:$0xff]
    %v927 = vld [vmem:[#allocation2 + $0x1578] sm:$0xff]
    %v928 = vld [vmem:[#allocation2 + $0x1580] sm:$0xff]
    %v929 = vld [vmem:[#allocation2 + $0x1588] sm:$0xff]
    %v930 = vld [vmem:[#allocation2 + $0x1590] sm:$0xff]
    %v931 = vld [vmem:[#allocation2 + $0x1598] sm:$0xff]
    %v932 = vld [vmem:[#allocation2 + $0x15a0] sm:$0xff]
    %v933 = vld [vmem:[#allocation2 + $0x15a8] sm:$0xff]
    %v934 = vld [vmem:[#allocation2 + $0x15b0] sm:$0xff]
    %v935 = vld [vmem:[#allocation2 + $0x15b8] sm:$0xff]
    %v936 = vld [vmem:[#allocation2 + $0x15c0] sm:$0xff]
    %v937 = vld [vmem:[#allocation2 + $0x15c8] sm:$0xff]
    %v938 = vld [vmem:[#allocation2 + $0x15d0] sm:$0xff]
    %v939 = vld [vmem:[#allocation2 + $0x15d8] sm:$0xff]
    %v940 = vld [vmem:[#allocation2 + $0x15e0] sm:$0xff]
    %v941 = vld [vmem:[#allocation2 + $0x15e8] sm:$0xff]
    %v942 = vld [vmem:[#allocation2 + $0x15f0] sm:$0xff]
    %v943 = vld [vmem:[#allocation2 + $0x15f8] sm:$0xff]
    %v944 = vld [vmem:[#allocation2 + $0x1600] sm:$0xff]
    %v945 = vld [vmem:[#allocation2 + $0x1608] sm:$0xff]
    %v946 = vld [vmem:[#allocation2 + $0x1610] sm:$0xff]
    %v947 = vld [vmem:[#allocation2 + $0x1618] sm:$0xff]
    %v948 = vld [vmem:[#allocation2 + $0x1620] sm:$0xff]
    %v949 = vld [vmem:[#allocation2 + $0x1628] sm:$0xff]
    %v950 = vld [vmem:[#allocation2 + $0x1630] sm:$0xff]
    %v951 = vld [vmem:[#allocation2 + $0x1638] sm:$0xff]
    %v952 = vld [vmem:[#allocation2 + $0x1640] sm:$0xff]
    %v953 = vld [vmem:[#allocation2 + $0x1648] sm:$0xff]
    %v954 = vld [vmem:[#allocation2 + $0x1650] sm:$0xff]
    %v955 = vld [vmem:[#allocation2 + $0x1658] sm:$0xff]
    %v956 = vld [vmem:[#allocation2 + $0x1660] sm:$0xff]
    %v957 = vld [vmem:[#allocation2 + $0x1668] sm:$0xff]
    %v958 = vld [vmem:[#allocation2 + $0x1670] sm:$0xff]
    %v959 = vld [vmem:[#allocation2 + $0x1678] sm:$0xff]
    %v960 = vld [vmem:[#allocation2 + $0x1680] sm:$0xff]
    %v961 = vld [vmem:[#allocation2 + $0x1688] sm:$0xff]
    %v962 = vld [vmem:[#allocation2 + $0x1690] sm:$0xff]
    %v963 = vld [vmem:[#allocation2 + $0x1698] sm:$0xff]
    %v964 = vld [vmem:[#allocation2 + $0x16a0] sm:$0xff]
    %v965 = vld [vmem:[#allocation2 + $0x16a8] sm:$0xff]
    %v966 = vld [vmem:[#allocation2 + $0x16b0] sm:$0xff]
    %v967 = vld [vmem:[#allocation2 + $0x16b8] sm:$0xff]
    %v968 = vld [vmem:[#allocation2 + $0x16c0] sm:$0xff]
    %v969 = vld [vmem:[#allocation2 + $0x16c8] sm:$0xff]
    %v970 = vld [vmem:[#allocation2 + $0x16d0] sm:$0xff]
    %v971 = vld [vmem:[#allocation2 + $0x16d8] sm:$0xff]
    %v972 = vld [vmem:[#allocation2 + $0x16e0] sm:$0xff]
    %v973 = vld [vmem:[#allocation2 + $0x16e8] sm:$0xff]
    %v974 = vld [vmem:[#allocation2 + $0x16f0] sm:$0xff]
    %v975 = vld [vmem:[#allocation2 + $0x16f8] sm:$0xff]
    %v976 = vld [vmem:[#allocation2 + $0x1700] sm:$0xff]
    %v977 = vld [vmem:[#allocation2 + $0x1708] sm:$0xff]
    %v978 = vld [vmem:[#allocation2 + $0x1710] sm:$0xff]
    %v979 = vld [vmem:[#allocation2 + $0x1718] sm:$0xff]
    %v980 = vld [vmem:[#allocation2 + $0x1720] sm:$0xff]
    %v981 = vld [vmem:[#allocation2 + $0x1728] sm:$0xff]
    %v982 = vld [vmem:[#allocation2 + $0x1730] sm:$0xff]
    %v983 = vld [vmem:[#allocation2 + $0x1738] sm:$0xff]
    %v984 = vld [vmem:[#allocation2 + $0x1740] sm:$0xff]
    %v985 = vld [vmem:[#allocation2 + $0x1748] sm:$0xff]
    %v986 = vld [vmem:[#allocation2 + $0x1750] sm:$0xff]
    %v987 = vld [vmem:[#allocation2 + $0x1758] sm:$0xff]
    %v988 = vld [vmem:[#allocation2 + $0x1760] sm:$0xff]
    %v989 = vld [vmem:[#allocation2 + $0x1768] sm:$0xff]
    %v990 = vld [vmem:[#allocation2 + $0x1770] sm:$0xff]
    %v991 = vld [vmem:[#allocation2 + $0x1778] sm:$0xff]
    %v992 = vld [vmem:[#allocation2 + $0x1780] sm:$0xff]
    %v993 = vld [vmem:[#allocation2 + $0x1788] sm:$0xff]
    %v994 = vld [vmem:[#allocation2 + $0x1790] sm:$0xff]
    %v995 = vld [vmem:[#allocation2 + $0x1798] sm:$0xff]
    %v996 = vld [vmem:[#allocation2 + $0x17a0] sm:$0xff]
    %v997 = vld [vmem:[#allocation2 + $0x17a8] sm:$0xff]
    %v998 = vld [vmem:[#allocation2 + $0x17b0] sm:$0xff]
    %v999 = vld [vmem:[#allocation2 + $0x17b8] sm:$0xff]
    %v1000 = vld [vmem:[#allocation2 + $0x17c0] sm:$0xff]
    %v1001 = vld [vmem:[#allocation2 + $0x17c8] sm:$0xff]
    %v1002 = vld [vmem:[#allocation2 + $0x17d0] sm:$0xff]
    %v1003 = vld [vmem:[#allocation2 + $0x17d8] sm:$0xff]
    %v1004 = vld [vmem:[#allocation2 + $0x17e0] sm:$0xff]
    %v1005 = vld [vmem:[#allocation2 + $0x17e8] sm:$0xff]
    %v1006 = vld [vmem:[#allocation2 + $0x17f0] sm:$0xff]
    %v1007 = vld [vmem:[#allocation2 + $0x17f8] sm:$0xff]
    %v1008 = vld [vmem:[#allocation8] sm:$0xff]
    %v1009 = vld [vmem:[#allocation8 + $0x8] sm:$0xff]
    %v1012 = vcombine.high %v234, %v234
    %v1014 = vunpack.c.l.s4 1983009808
    %v1015 = vunpack.c.0.s8 %v1014
    %v1016 = vlaneseq
    %v1017 = vshrl.u32 %v1016, 7
    %v1018 = vsub.s32 %v1015, %v1017
    %v1019 = vrot.slane %v234, %v1018
    %v1021 = vunpack.c.l.s4 1983009808
    %v1022 = vunpack.c.0.s8 %v1021
    %v1023 = vlaneseq
    %v1024 = vshrl.u32 %v1023, 7
    %v1025 = vsub.s32 %v1022, %v1024
    %v1026 = vrot.slane %v1012, %v1025
    %v1027 = vcombine.high %v1019, %v1019
    %v1028 = vcombine.high %v1026, %v1026
    %v1030 = vunpack.c.l.s4 1983009808
    %v1031 = vunpack.c.0.s8 %v1030
    %v1032 = vlaneseq
    %v1033 = vshrl.u32 %v1032, 7
    %v1034 = vsub.s32 %v1031, %v1033
    %v1035 = vrot.slane %v235, %v1034
    %v1036 = vcombine.high %v1035, %v1035
    %v1043 = vpack.c.bf16 %v1019, %v1019
    %v1044 = vpack.c.bf16 %v1027, %v1027
    %v1045 = vpack.c.bf16 %v1026, %v1026
    %v1046 = vpack.c.bf16 %v1028, %v1028
    %v1047 = vpack.c.bf16 %v1035, %v1035
    %v1048 = vpack.c.bf16 %v1036, %v1036
    %v1051 = vlaneseq
    %v1052 = vshrl.u32 %v1051, 7
    %v1053 = vsub.s32 0, %v1052
    %v1054 = vrot.slane %v1008, %v1053
    %v1055 = vlaneseq
    %v1056 = vshrl.u32 %v1055, 7
    %v1057 = vsub.s32 1, %v1056
    %v1058 = vrot.slane %v1008, %v1057
    %v1059 = vlaneseq
    %v1060 = vshrl.u32 %v1059, 7
    %v1061 = vsub.s32 2, %v1060
    %v1062 = vrot.slane %v1008, %v1061
    %v1063 = vlaneseq
    %v1064 = vshrl.u32 %v1063, 7
    %v1065 = vsub.s32 3, %v1064
    %v1066 = vrot.slane %v1008, %v1065
    %v1067 = vlaneseq
    %v1068 = vshrl.u32 %v1067, 7
    %v1069 = vsub.s32 4, %v1068
    %v1070 = vrot.slane %v1008, %v1069
    %v1071 = vlaneseq
    %v1072 = vshrl.u32 %v1071, 7
    %v1073 = vsub.s32 5, %v1072
    %v1074 = vrot.slane %v1008, %v1073
    %v1075 = vlaneseq
    %v1076 = vshrl.u32 %v1075, 7
    %v1077 = vsub.s32 6, %v1076
    %v1078 = vrot.slane %v1008, %v1077
    %v1079 = vlaneseq
    %v1080 = vshrl.u32 %v1079, 7
    %v1081 = vsub.s32 7, %v1080
    %v1082 = vrot.slane %v1008, %v1081
    %v1083 = vlaneseq
    %v1084 = vshrl.u32 %v1083, 7
    %v1085 = vsub.s32 0, %v1084
    %v1086 = vrot.slane %v1009, %v1085
    %v1087 = vlaneseq
    %v1088 = vshrl.u32 %v1087, 7
    %v1089 = vsub.s32 1, %v1088
    %v1090 = vrot.slane %v1009, %v1089
    %v1091 = vlaneseq
    %v1092 = vshrl.u32 %v1091, 7
    %v1093 = vsub.s32 2, %v1092
    %v1094 = vrot.slane %v1009, %v1093
    %v1095 = vlaneseq
    %v1096 = vshrl.u32 %v1095, 7
    %v1097 = vsub.s32 3, %v1096
    %v1098 = vrot.slane %v1009, %v1097
    %v1099 = vlaneseq
    %v1100 = vshrl.u32 %v1099, 7
    %v1101 = vsub.s32 4, %v1100
    %v1102 = vrot.slane %v1009, %v1101
    %v1103 = vlaneseq
    %v1104 = vshrl.u32 %v1103, 7
    %v1105 = vsub.s32 5, %v1104
    %v1106 = vrot.slane %v1009, %v1105
    %v1107 = vlaneseq
    %v1108 = vshrl.u32 %v1107, 7
    %v1109 = vsub.s32 6, %v1108
    %v1110 = vrot.slane %v1009, %v1109
    %v1111 = vlaneseq
    %v1112 = vshrl.u32 %v1111, 7
    %v1113 = vsub.s32 7, %v1112
    %v1114 = vrot.slane %v1009, %v1113
    %1131 = vmatprep.subr.bf16.mxu0 %v241
    %1132 = vmatpush1.bf16.msra.mxu0 %v240
    %1133 = vmatprep.subr.bf16.mxu0 %v257
    %1134 = vmatpush1.bf16.msra.mxu0 %v256
    %1135 = vmatprep.subr.bf16.mxu0 %v273
    %1136 = vmatpush1.bf16.msra.mxu0 %v272
    %1137 = vmatprep.subr.bf16.mxu0 %v289
    %1138 = vmatpush1.bf16.msra.mxu0 %v288
    %1139 = vmatprep.subr.bf16.mxu0 %v305
    %1140 = vmatpush1.bf16.msra.mxu0 %v304
    %1141 = vmatprep.subr.bf16.mxu0 %v321
    %1142 = vmatpush1.bf16.msra.mxu0 %v320
    %1143 = vmatprep.subr.bf16.mxu0 %v337
    %1144 = vmatpush1.bf16.msra.mxu0 %v336
    %1145 = vmatprep.subr.bf16.mxu0 %v353
    %1146 = vmatpush1.bf16.msra.mxu0 %v352
    %1147 = vmatprep.subr.bf16.mxu0 %v369
    %1148 = vmatpush1.bf16.msra.mxu0 %v368
    %1149 = vmatprep.subr.bf16.mxu0 %v385
    %1150 = vmatpush1.bf16.msra.mxu0 %v384
    %1151 = vmatprep.subr.bf16.mxu0 %v401
    %1152 = vmatpush1.bf16.msra.mxu0 %v400
    %1153 = vmatprep.subr.bf16.mxu0 %v417
    %1154 = vmatpush1.bf16.msra.mxu0 %v416
    %1155 = vmatprep.subr.bf16.mxu0 %v433
    %1156 = vmatpush1.bf16.msra.mxu0 %v432
    %1157 = vmatprep.subr.bf16.mxu0 %v449
    %1158 = vmatpush1.bf16.msra.mxu0 %v448
    %1159 = vmatprep.subr.bf16.mxu0 %v465
    %1160 = vmatpush1.bf16.msra.mxu0 %v464
    %1161 = vmatprep.subr.bf16.mxu0 %v481
    %1162 = vmatpush1.bf16.msra.mxu0 %v480
    %1163 = vmatprep.mubr.bf16.mxu0 %v1044
    %1164 = vmatmul.mubr.bf16.gmra.mrb[0].mxu0 %v1043
    %v1165 = vpop.f32.mrb[0].mxu0
    %v1166 = vadd.f32 %v1054, %v1165
    %v1167 = vpop.f32.mrb[0].mxu0
    %v1168 = vadd.f32 %v1058, %v1167
    %v1169 = vpop.f32.mrb[0].mxu0
    %v1170 = vpop.f32.mrb[0].mxu0
    %1171 = vdwg.mxu0
    %1172 = vmatprep.subr.bf16.mxu0 %v497
    %1173 = vmatpush1.bf16.msra.mxu0 %v496
    %1174 = vmatprep.subr.bf16.mxu0 %v513
    %1175 = vmatpush1.bf16.msra.mxu0 %v512
    %1176 = vmatprep.subr.bf16.mxu0 %v529
    %1177 = vmatpush1.bf16.msra.mxu0 %v528
    %1178 = vmatprep.subr.bf16.mxu0 %v545
    %1179 = vmatpush1.bf16.msra.mxu0 %v544
    %1180 = vmatprep.subr.bf16.mxu0 %v561
    %1181 = vmatpush1.bf16.msra.mxu0 %v560
    %1182 = vmatprep.subr.bf16.mxu0 %v577
    %1183 = vmatpush1.bf16.msra.mxu0 %v576
    %1184 = vmatprep.subr.bf16.mxu0 %v593
    %1185 = vmatpush1.bf16.msra.mxu0 %v592
    %1186 = vmatprep.subr.bf16.mxu0 %v609
    %1187 = vmatpush1.bf16.msra.mxu0 %v608
    %1188 = vmatprep.subr.bf16.mxu0 %v625
    %1189 = vmatpush1.bf16.msra.mxu0 %v624
    %1190 = vmatprep.subr.bf16.mxu0 %v641
    %1191 = vmatpush1.bf16.msra.mxu0 %v640
    %1192 = vmatprep.subr.bf16.mxu0 %v657
    %1193 = vmatpush1.bf16.msra.mxu0 %v656
    %1194 = vmatprep.subr.bf16.mxu0 %v673
    %1195 = vmatpush1.bf16.msra.mxu0 %v672
    %1196 = vmatprep.subr.bf16.mxu0 %v689
    %1197 = vmatpush1.bf16.msra.mxu0 %v688
    %1198 = vmatprep.subr.bf16.mxu0 %v705
    %1199 = vmatpush1.bf16.msra.mxu0 %v704
    %1200 = vmatprep.subr.bf16.mxu0 %v721
    %1201 = vmatpush1.bf16.msra.mxu0 %v720
    %1202 = vmatprep.subr.bf16.mxu0 %v737
    %1203 = vmatpush1.bf16.msra.mxu0 %v736
    %1204 = vmatprep.mubr.bf16.mxu0 %v1046
    %1205 = vmatmul.mubr.bf16.gmra.mrb[0].mxu0 %v1045
    %v1206 = vpop.f32.mrb[0].mxu0
    %v1207 = vadd.f32 %v1166, %v1206
    %v1208 = vpop.f32.mrb[0].mxu0
    %v1209 = vadd.f32 %v1168, %v1208
    %v1210 = vpop.f32.mrb[0].mxu0
    %v1211 = vpop.f32.mrb[0].mxu0
    %1212 = vdwg.mxu0
    %1213 = vmatprep.subr.bf16.mxu0 %v753
    %1214 = vmatpush1.bf16.msra.mxu0 %v752
    %1215 = vmatprep.subr.bf16.mxu0 %v769
    %1216 = vmatpush1.bf16.msra.mxu0 %v768
    %1217 = vmatprep.subr.bf16.mxu0 %v785
    %1218 = vmatpush1.bf16.msra.mxu0 %v784
    %1219 = vmatprep.subr.bf16.mxu0 %v801
    %1220 = vmatpush1.bf16.msra.mxu0 %v800
    %1221 = vmatprep.subr.bf16.mxu0 %v817
    %1222 = vmatpush1.bf16.msra.mxu0 %v816
    %1223 = vmatprep.subr.bf16.mxu0 %v833
    %1224 = vmatpush1.bf16.msra.mxu0 %v832
    %1225 = vmatprep.subr.bf16.mxu0 %v849
    %1226 = vmatpush1.bf16.msra.mxu0 %v848
    %1227 = vmatprep.subr.bf16.mxu0 %v865
    %1228 = vmatpush1.bf16.msra.mxu0 %v864
    %1229 = vmatprep.subr.bf16.mxu0 %v881
    %1230 = vmatpush1.bf16.msra.mxu0 %v880
    %1231 = vmatprep.subr.bf16.mxu0 %v897
    %1232 = vmatpush1.bf16.msra.mxu0 %v896
    %1233 = vmatprep.subr.bf16.mxu0 %v913
    %1234 = vmatpush1.bf16.msra.mxu0 %v912
    %1235 = vmatprep.subr.bf16.mxu0 %v929
    %1236 = vmatpush1.bf16.msra.mxu0 %v928
    %1237 = vmatprep.subr.bf16.mxu0 %v945
    %1238 = vmatpush1.bf16.msra.mxu0 %v944
    %1239 = vmatprep.subr.bf16.mxu0 %v961
    %1240 = vmatpush1.bf16.msra.mxu0 %v960
    %1241 = vmatprep.subr.bf16.mxu0 %v977
    %1242 = vmatpush1.bf16.msra.mxu0 %v976
    %1243 = vmatprep.subr.bf16.mxu0 %v993
    %1244 = vmatpush1.bf16.msra.mxu0 %v992
    %1245 = vmatprep.mubr.bf16.mxu0 %v1048
    %1246 = vmatmul.mubr.bf16.gmra.mrb[0].mxu0 %v1047
    %v1247 = vpop.f32.mrb[0].mxu0
    %v1248 = vadd.f32 %v1207, %v1247
    %v1249 = vpop.f32.mrb[0].mxu0
    %v1250 = vadd.f32 %v1209, %v1249
    %v1251 = vpop.f32.mrb[0].mxu0
    %v1252 = vpop.f32.mrb[0].mxu0
    %1253 = vdwg.mxu0
    %1254 = vmatprep.subr.bf16.mxu0 %v243
    %1255 = vmatpush1.bf16.msra.mxu0 %v242
    %1256 = vmatprep.subr.bf16.mxu0 %v259
    %1257 = vmatpush1.bf16.msra.mxu0 %v258
    %1258 = vmatprep.subr.bf16.mxu0 %v275
    %1259 = vmatpush1.bf16.msra.mxu0 %v274
    %1260 = vmatprep.subr.bf16.mxu0 %v291
    %1261 = vmatpush1.bf16.msra.mxu0 %v290
    %1262 = vmatprep.subr.bf16.mxu0 %v307
    %1263 = vmatpush1.bf16.msra.mxu0 %v306
    %1264 = vmatprep.subr.bf16.mxu0 %v323
    %1265 = vmatpush1.bf16.msra.mxu0 %v322
    %1266 = vmatprep.subr.bf16.mxu0 %v339
    %1267 = vmatpush1.bf16.msra.mxu0 %v338
    %1268 = vmatprep.subr.bf16.mxu0 %v355
    %1269 = vmatpush1.bf16.msra.mxu0 %v354
    %1270 = vmatprep.subr.bf16.mxu0 %v371
    %1271 = vmatpush1.bf16.msra.mxu0 %v370
    %1272 = vmatprep.subr.bf16.mxu0 %v387
    %1273 = vmatpush1.bf16.msra.mxu0 %v386
    %1274 = vmatprep.subr.bf16.mxu0 %v403
    %1275 = vmatpush1.bf16.msra.mxu0 %v402
    %1276 = vmatprep.subr.bf16.mxu0 %v419
    %1277 = vmatpush1.bf16.msra.mxu0 %v418
    %1278 = vmatprep.subr.bf16.mxu0 %v435
    %1279 = vmatpush1.bf16.msra.mxu0 %v434
    %1280 = vmatprep.subr.bf16.mxu0 %v451
    %1281 = vmatpush1.bf16.msra.mxu0 %v450
    %1282 = vmatprep.subr.bf16.mxu0 %v467
    %1283 = vmatpush1.bf16.msra.mxu0 %v466
    %1284 = vmatprep.subr.bf16.mxu0 %v483
    %1285 = vmatpush1.bf16.msra.mxu0 %v482
    %1286 = vmatprep.mubr.bf16.mxu0 %v1044
    %1287 = vmatmul.mubr.bf16.gmra.mrb[0].mxu0 %v1043
    %v1288 = vpop.f32.mrb[0].mxu0
    %v1289 = vadd.f32 %v1062, %v1288
    %v1290 = vpop.f32.mrb[0].mxu0
    %v1291 = vadd.f32 %v1066, %v1290
    %v1292 = vpop.f32.mrb[0].mxu0
    %v1293 = vpop.f32.mrb[0].mxu0
    %1294 = vdwg.mxu0
    %1295 = vmatprep.subr.bf16.mxu0 %v499
    %1296 = vmatpush1.bf16.msra.mxu0 %v498
    %1297 = vmatprep.subr.bf16.mxu0 %v515
    %1298 = vmatpush1.bf16.msra.mxu0 %v514
    %1299 = vmatprep.subr.bf16.mxu0 %v531
    %1300 = vmatpush1.bf16.msra.mxu0 %v530
    %1301 = vmatprep.subr.bf16.mxu0 %v547
    %1302 = vmatpush1.bf16.msra.mxu0 %v546
    %1303 = vmatprep.subr.bf16.mxu0 %v563
    %1304 = vmatpush1.bf16.msra.mxu0 %v562
    %1305 = vmatprep.subr.bf16.mxu0 %v579
    %1306 = vmatpush1.bf16.msra.mxu0 %v578
    %1307 = vmatprep.subr.bf16.mxu0 %v595
    %1308 = vmatpush1.bf16.msra.mxu0 %v594
    %1309 = vmatprep.subr.bf16.mxu0 %v611
    %1310 = vmatpush1.bf16.msra.mxu0 %v610
    %1311 = vmatprep.subr.bf16.mxu0 %v627
    %1312 = vmatpush1.bf16.msra.mxu0 %v626
    %1313 = vmatprep.subr.bf16.mxu0 %v643
    %1314 = vmatpush1.bf16.msra.mxu0 %v642
    %1315 = vmatprep.subr.bf16.mxu0 %v659
    %1316 = vmatpush1.bf16.msra.mxu0 %v658
    %1317 = vmatprep.subr.bf16.mxu0 %v675
    %1318 = vmatpush1.bf16.msra.mxu0 %v674
    %1319 = vmatprep.subr.bf16.mxu0 %v691
    %1320 = vmatpush1.bf16.msra.mxu0 %v690
    %1321 = vmatprep.subr.bf16.mxu0 %v707
    %1322 = vmatpush1.bf16.msra.mxu0 %v706
    %1323 = vmatprep.subr.bf16.mxu0 %v723
    %1324 = vmatpush1.bf16.msra.mxu0 %v722
    %1325 = vmatprep.subr.bf16.mxu0 %v739
    %1326 = vmatpush1.bf16.msra.mxu0 %v738
    %1327 = vmatprep.mubr.bf16.mxu0 %v1046
    %1328 = vmatmul.mubr.bf16.gmra.mrb[0].mxu0 %v1045
    %v1329 = vpop.f32.mrb[0].mxu0
    %v1330 = vadd.f32 %v1289, %v1329
    %v1331 = vpop.f32.mrb[0].mxu0
    %v1332 = vadd.f32 %v1291, %v1331
    %v1333 = vpop.f32.mrb[0].mxu0
    %v1334 = vpop.f32.mrb[0].mxu0
    %1335 = vdwg.mxu0
    %1336 = vmatprep.subr.bf16.mxu0 %v755
    %1337 = vmatpush1.bf16.msra.mxu0 %v754
    %1338 = vmatprep.subr.bf16.mxu0 %v771
    %1339 = vmatpush1.bf16.msra.mxu0 %v770
    %1340 = vmatprep.subr.bf16.mxu0 %v787
    %1341 = vmatpush1.bf16.msra.mxu0 %v786
    %1342 = vmatprep.subr.bf16.mxu0 %v803
    %1343 = vmatpush1.bf16.msra.mxu0 %v802
    %1344 = vmatprep.subr.bf16.mxu0 %v819
    %1345 = vmatpush1.bf16.msra.mxu0 %v818
    %1346 = vmatprep.subr.bf16.mxu0 %v835
    %1347 = vmatpush1.bf16.msra.mxu0 %v834
    %1348 = vmatprep.subr.bf16.mxu0 %v851
    %1349 = vmatpush1.bf16.msra.mxu0 %v850
    %1350 = vmatprep.subr.bf16.mxu0 %v867
    %1351 = vmatpush1.bf16.msra.mxu0 %v866
    %1352 = vmatprep.subr.bf16.mxu0 %v883
    %1353 = vmatpush1.bf16.msra.mxu0 %v882
    %1354 = vmatprep.subr.bf16.mxu0 %v899
    %1355 = vmatpush1.bf16.msra.mxu0 %v898
    %1356 = vmatprep.subr.bf16.mxu0 %v915
    %1357 = vmatpush1.bf16.msra.mxu0 %v914
    %1358 = vmatprep.subr.bf16.mxu0 %v931
    %1359 = vmatpush1.bf16.msra.mxu0 %v930
    %1360 = vmatprep.subr.bf16.mxu0 %v947
    %1361 = vmatpush1.bf16.msra.mxu0 %v946
    %1362 = vmatprep.subr.bf16.mxu0 %v963
    %1363 = vmatpush1.bf16.msra.mxu0 %v962
    %1364 = vmatprep.subr.bf16.mxu0 %v979
    %1365 = vmatpush1.bf16.msra.mxu0 %v978
    %1366 = vmatprep.subr.bf16.mxu0 %v995
    %1367 = vmatpush1.bf16.msra.mxu0 %v994
    %1368 = vmatprep.mubr.bf16.mxu0 %v1048
    %1369 = vmatmul.mubr.bf16.gmra.mrb[0].mxu0 %v1047
    %v1370 = vpop.f32.mrb[0].mxu0
    %v1371 = vadd.f32 %v1330, %v1370
    %v1372 = vpop.f32.mrb[0].mxu0
    %v1373 = vadd.f32 %v1332, %v1372
    %v1374 = vpop.f32.mrb[0].mxu0
    %v1375 = vpop.f32.mrb[0].mxu0
    %1376 = vdwg.mxu0
    %1377 = vmatprep.subr.bf16.mxu0 %v245
    %1378 = vmatpush1.bf16.msra.mxu0 %v244
    %1379 = vmatprep.subr.bf16.mxu0 %v261
    %1380 = vmatpush1.bf16.msra.mxu0 %v260
    %1381 = vmatprep.subr.bf16.mxu0 %v277
    %1382 = vmatpush1.bf16.msra.mxu0 %v276
    %1383 = vmatprep.subr.bf16.mxu0 %v293
    %1384 = vmatpush1.bf16.msra.mxu0 %v292
    %1385 = vmatprep.subr.bf16.mxu0 %v309
    %1386 = vmatpush1.bf16.msra.mxu0 %v308
    %1387 = vmatprep.subr.bf16.mxu0 %v325
    %1388 = vmatpush1.bf16.msra.mxu0 %v324
    %1389 = vmatprep.subr.bf16.mxu0 %v341
    %1390 = vmatpush1.bf16.msra.mxu0 %v340
    %1391 = vmatprep.subr.bf16.mxu0 %v357
    %1392 = vmatpush1.bf16.msra.mxu0 %v356
    %1393 = vmatprep.subr.bf16.mxu0 %v373
    %1394 = vmatpush1.bf16.msra.mxu0 %v372
    %1395 = vmatprep.subr.bf16.mxu0 %v389
    %1396 = vmatpush1.bf16.msra.mxu0 %v388
    %1397 = vmatprep.subr.bf16.mxu0 %v405
    %1398 = vmatpush1.bf16.msra.mxu0 %v404
    %1399 = vmatprep.subr.bf16.mxu0 %v421
    %1400 = vmatpush1.bf16.msra.mxu0 %v420
    %1401 = vmatprep.subr.bf16.mxu0 %v437
    %1402 = vmatpush1.bf16.msra.mxu0 %v436
    %1403 = vmatprep.subr.bf16.mxu0 %v453
    %1404 = vmatpush1.bf16.msra.mxu0 %v452
    %1405 = vmatprep.subr.bf16.mxu0 %v469
    %1406 = vmatpush1.bf16.msra.mxu0 %v468
    %1407 = vmatprep.subr.bf16.mxu0 %v485
    %1408 = vmatpush1.bf16.msra.mxu0 %v484
    %1409 = vmatprep.mubr.bf16.mxu0 %v1044
    %1410 = vmatmul.mubr.bf16.gmra.mrb[0].mxu0 %v1043
    %v1411 = vpop.f32.mrb[0].mxu0
    %v1412 = vadd.f32 %v1070, %v1411
    %v1413 = vpop.f32.mrb[0].mxu0
    %v1414 = vadd.f32 %v1074, %v1413
    %v1415 = vpop.f32.mrb[0].mxu0
    %v1416 = vpop.f32.mrb[0].mxu0
    %1417 = vdwg.mxu0
    %1418 = vmatprep.subr.bf16.mxu0 %v501
    %1419 = vmatpush1.bf16.msra.mxu0 %v500
    %1420 = vmatprep.subr.bf16.mxu0 %v517
    %1421 = vmatpush1.bf16.msra.mxu0 %v516
    %1422 = vmatprep.subr.bf16.mxu0 %v533
    %1423 = vmatpush1.bf16.msra.mxu0 %v532
    %1424 = vmatprep.subr.bf16.mxu0 %v549
    %1425 = vmatpush1.bf16.msra.mxu0 %v548
    %1426 = vmatprep.subr.bf16.mxu0 %v565
    %1427 = vmatpush1.bf16.msra.mxu0 %v564
    %1428 = vmatprep.subr.bf16.mxu0 %v581
    %1429 = vmatpush1.bf16.msra.mxu0 %v580
    %1430 = vmatprep.subr.bf16.mxu0 %v597
    %1431 = vmatpush1.bf16.msra.mxu0 %v596
    %1432 = vmatprep.subr.bf16.mxu0 %v613
    %1433 = vmatpush1.bf16.msra.mxu0 %v612
    %1434 = vmatprep.subr.bf16.mxu0 %v629
    %1435 = vmatpush1.bf16.msra.mxu0 %v628
    %1436 = vmatprep.subr.bf16.mxu0 %v645
    %1437 = vmatpush1.bf16.msra.mxu0 %v644
    %1438 = vmatprep.subr.bf16.mxu0 %v661
    %1439 = vmatpush1.bf16.msra.mxu0 %v660
    %1440 = vmatprep.subr.bf16.mxu0 %v677
    %1441 = vmatpush1.bf16.msra.mxu0 %v676
    %1442 = vmatprep.subr.bf16.mxu0 %v693
    %1443 = vmatpush1.bf16.msra.mxu0 %v692
    %1444 = vmatprep.subr.bf16.mxu0 %v709
    %1445 = vmatpush1.bf16.msra.mxu0 %v708
    %1446 = vmatprep.subr.bf16.mxu0 %v725
    %1447 = vmatpush1.bf16.msra.mxu0 %v724
    %1448 = vmatprep.subr.bf16.mxu0 %v741
    %1449 = vmatpush1.bf16.msra.mxu0 %v740
    %1450 = vmatprep.mubr.bf16.mxu0 %v1046
    %1451 = vmatmul.mubr.bf16.gmra.mrb[0].mxu0 %v1045
    %v1452 = vpop.f32.mrb[0].mxu0
    %v1453 = vadd.f32 %v1412, %v1452
    %v1454 = vpop.f32.mrb[0].mxu0
    %v1455 = vadd.f32 %v1414, %v1454
    %v1456 = vpop.f32.mrb[0].mxu0
    %v1457 = vpop.f32.mrb[0].mxu0
    %1458 = vdwg.mxu0
    %1459 = vmatprep.subr.bf16.mxu0 %v757
    %1460 = vmatpush1.bf16.msra.mxu0 %v756
    %1461 = vmatprep.subr.bf16.mxu0 %v773
    %1462 = vmatpush1.bf16.msra.mxu0 %v772
    %1463 = vmatprep.subr.bf16.mxu0 %v789
    %1464 = vmatpush1.bf16.msra.mxu0 %v788
    %1465 = vmatprep.subr.bf16.mxu0 %v805
    %1466 = vmatpush1.bf16.msra.mxu0 %v804
    %1467 = vmatprep.subr.bf16.mxu0 %v821
    %1468 = vmatpush1.bf16.msra.mxu0 %v820
    %1469 = vmatprep.subr.bf16.mxu0 %v837
    %1470 = vmatpush1.bf16.msra.mxu0 %v836
    %1471 = vmatprep.subr.bf16.mxu0 %v853
    %1472 = vmatpush1.bf16.msra.mxu0 %v852
    %1473 = vmatprep.subr.bf16.mxu0 %v869
    %1474 = vmatpush1.bf16.msra.mxu0 %v868
    %1475 = vmatprep.subr.bf16.mxu0 %v885
    %1476 = vmatpush1.bf16.msra.mxu0 %v884
    %1477 = vmatprep.subr.bf16.mxu0 %v901
    %1478 = vmatpush1.bf16.msra.mxu0 %v900
    %1479 = vmatprep.subr.bf16.mxu0 %v917
    %1480 = vmatpush1.bf16.msra.mxu0 %v916
    %1481 = vmatprep.subr.bf16.mxu0 %v933
    %1482 = vmatpush1.bf16.msra.mxu0 %v932
    %1483 = vmatprep.subr.bf16.mxu0 %v949
    %1484 = vmatpush1.bf16.msra.mxu0 %v948
    %1485 = vmatprep.subr.bf16.mxu0 %v965
    %1486 = vmatpush1.bf16.msra.mxu0 %v964
    %1487 = vmatprep.subr.bf16.mxu0 %v981
    %1488 = vmatpush1.bf16.msra.mxu0 %v980
    %1489 = vmatprep.subr.bf16.mxu0 %v997
    %1490 = vmatpush1.bf16.msra.mxu0 %v996
    %1491 = vmatprep.mubr.bf16.mxu0 %v1048
    %1492 = vmatmul.mubr.bf16.gmra.mrb[0].mxu0 %v1047
    %v1493 = vpop.f32.mrb[0].mxu0
    %v1494 = vadd.f32 %v1453, %v1493
    %v1495 = vpop.f32.mrb[0].mxu0
    %v1496 = vadd.f32 %v1455, %v1495
    %v1497 = vpop.f32.mrb[0].mxu0
    %v1498 = vpop.f32.mrb[0].mxu0
    %1499 = vdwg.mxu0
    %1500 = vmatprep.subr.bf16.mxu0 %v247
    %1501 = vmatpush1.bf16.msra.mxu0 %v246
    %1502 = vmatprep.subr.bf16.mxu0 %v263
    %1503 = vmatpush1.bf16.msra.mxu0 %v262
    %1504 = vmatprep.subr.bf16.mxu0 %v279
    %1505 = vmatpush1.bf16.msra.mxu0 %v278
    %1506 = vmatprep.subr.bf16.mxu0 %v295
    %1507 = vmatpush1.bf16.msra.mxu0 %v294
    %1508 = vmatprep.subr.bf16.mxu0 %v311
    %1509 = vmatpush1.bf16.msra.mxu0 %v310
    %1510 = vmatprep.subr.bf16.mxu0 %v327
    %1511 = vmatpush1.bf16.msra.mxu0 %v326
    %1512 = vmatprep.subr.bf16.mxu0 %v343
    %1513 = vmatpush1.bf16.msra.mxu0 %v342
    %1514 = vmatprep.subr.bf16.mxu0 %v359
    %1515 = vmatpush1.bf16.msra.mxu0 %v358
    %1516 = vmatprep.subr.bf16.mxu0 %v375
    %1517 = vmatpush1.bf16.msra.mxu0 %v374
    %1518 = vmatprep.subr.bf16.mxu0 %v391
    %1519 = vmatpush1.bf16.msra.mxu0 %v390
    %1520 = vmatprep.subr.bf16.mxu0 %v407
    %1521 = vmatpush1.bf16.msra.mxu0 %v406
    %1522 = vmatprep.subr.bf16.mxu0 %v423
    %1523 = vmatpush1.bf16.msra.mxu0 %v422
    %1524 = vmatprep.subr.bf16.mxu0 %v439
    %1525 = vmatpush1.bf16.msra.mxu0 %v438
    %1526 = vmatprep.subr.bf16.mxu0 %v455
    %1527 = vmatpush1.bf16.msra.mxu0 %v454
    %1528 = vmatprep.subr.bf16.mxu0 %v471
    %1529 = vmatpush1.bf16.msra.mxu0 %v470
    %1530 = vmatprep.subr.bf16.mxu0 %v487
    %1531 = vmatpush1.bf16.msra.mxu0 %v486
    %1532 = vmatprep.mubr.bf16.mxu0 %v1044
    %1533 = vmatmul.mubr.bf16.gmra.mrb[0].mxu0 %v1043
    %v1534 = vpop.f32.mrb[0].mxu0
    %v1535 = vadd.f32 %v1078, %v1534
    %v1536 = vpop.f32.mrb[0].mxu0
    %v1537 = vadd.f32 %v1082, %v1536
    %v1538 = vpop.f32.mrb[0].mxu0
    %v1539 = vpop.f32.mrb[0].mxu0
    %1540 = vdwg.mxu0
    %1541 = vmatprep.subr.bf16.mxu0 %v503
    %1542 = vmatpush1.bf16.msra.mxu0 %v502
    %1543 = vmatprep.subr.bf16.mxu0 %v519
    %1544 = vmatpush1.bf16.msra.mxu0 %v518
    %1545 = vmatprep.subr.bf16.mxu0 %v535
    %1546 = vmatpush1.bf16.msra.mxu0 %v534
    %1547 = vmatprep.subr.bf16.mxu0 %v551
    %1548 = vmatpush1.bf16.msra.mxu0 %v550
    %1549 = vmatprep.subr.bf16.mxu0 %v567
    %1550 = vmatpush1.bf16.msra.mxu0 %v566
    %1551 = vmatprep.subr.bf16.mxu0 %v583
    %1552 = vmatpush1.bf16.msra.mxu0 %v582
    %1553 = vmatprep.subr.bf16.mxu0 %v599
    %1554 = vmatpush1.bf16.msra.mxu0 %v598
    %1555 = vmatprep.subr.bf16.mxu0 %v615
    %1556 = vmatpush1.bf16.msra.mxu0 %v614
    %1557 = vmatprep.subr.bf16.mxu0 %v631
    %1558 = vmatpush1.bf16.msra.mxu0 %v630
    %1559 = vmatprep.subr.bf16.mxu0 %v647
    %1560 = vmatpush1.bf16.msra.mxu0 %v646
    %1561 = vmatprep.subr.bf16.mxu0 %v663
    %1562 = vmatpush1.bf16.msra.mxu0 %v662
    %1563 = vmatprep.subr.bf16.mxu0 %v679
    %1564 = vmatpush1.bf16.msra.mxu0 %v678
    %1565 = vmatprep.subr.bf16.mxu0 %v695
    %1566 = vmatpush1.bf16.msra.mxu0 %v694
    %1567 = vmatprep.subr.bf16.mxu0 %v711
    %1568 = vmatpush1.bf16.msra.mxu0 %v710
    %1569 = vmatprep.subr.bf16.mxu0 %v727
    %1570 = vmatpush1.bf16.msra.mxu0 %v726
    %1571 = vmatprep.subr.bf16.mxu0 %v743
    %1572 = vmatpush1.bf16.msra.mxu0 %v742
    %1573 = vmatprep.mubr.bf16.mxu0 %v1046
    %1574 = vmatmul.mubr.bf16.gmra.mrb[0].mxu0 %v1045
    %v1575 = vpop.f32.mrb[0].mxu0
    %v1576 = vadd.f32 %v1535, %v1575
    %v1577 = vpop.f32.mrb[0].mxu0
    %v1578 = vadd.f32 %v1537, %v1577
    %v1579 = vpop.f32.mrb[0].mxu0
    %v1580 = vpop.f32.mrb[0].mxu0
    %1581 = vdwg.mxu0
    %1582 = vmatprep.subr.bf16.mxu0 %v759
    %1583 = vmatpush1.bf16.msra.mxu0 %v758
    %1584 = vmatprep.subr.bf16.mxu0 %v775
    %1585 = vmatpush1.bf16.msra.mxu0 %v774
    %1586 = vmatprep.subr.bf16.mxu0 %v791
    %1587 = vmatpush1.bf16.msra.mxu0 %v790
    %1588 = vmatprep.subr.bf16.mxu0 %v807
    %1589 = vmatpush1.bf16.msra.mxu0 %v806
    %1590 = vmatprep.subr.bf16.mxu0 %v823
    %1591 = vmatpush1.bf16.msra.mxu0 %v822
    %1592 = vmatprep.subr.bf16.mxu0 %v839
    %1593 = vmatpush1.bf16.msra.mxu0 %v838
    %1594 = vmatprep.subr.bf16.mxu0 %v855
    %1595 = vmatpush1.bf16.msra.mxu0 %v854
    %1596 = vmatprep.subr.bf16.mxu0 %v871
    %1597 = vmatpush1.bf16.msra.mxu0 %v870
    %1598 = vmatprep.subr.bf16.mxu0 %v887
    %1599 = vmatpush1.bf16.msra.mxu0 %v886
    %1600 = vmatprep.subr.bf16.mxu0 %v903
    %1601 = vmatpush1.bf16.msra.mxu0 %v902
    %1602 = vmatprep.subr.bf16.mxu0 %v919
    %1603 = vmatpush1.bf16.msra.mxu0 %v918
    %1604 = vmatprep.subr.bf16.mxu0 %v935
    %1605 = vmatpush1.bf16.msra.mxu0 %v934
    %1606 = vmatprep.subr.bf16.mxu0 %v951
    %1607 = vmatpush1.bf16.msra.mxu0 %v950
    %1608 = vmatprep.subr.bf16.mxu0 %v967
    %1609 = vmatpush1.bf16.msra.mxu0 %v966
    %1610 = vmatprep.subr.bf16.mxu0 %v983
    %1611 = vmatpush1.bf16.msra.mxu0 %v982
    %1612 = vmatprep.subr.bf16.mxu0 %v999
    %1613 = vmatpush1.bf16.msra.mxu0 %v998
    %1614 = vmatprep.mubr.bf16.mxu0 %v1048
    %1615 = vmatmul.mubr.bf16.gmra.mrb[0].mxu0 %v1047
    %v1616 = vpop.f32.mrb[0].mxu0
    %v1617 = vadd.f32 %v1576, %v1616
    %v1618 = vpop.f32.mrb[0].mxu0
    %v1619 = vadd.f32 %v1578, %v1618
    %v1620 = vpop.f32.mrb[0].mxu0
    %v1621 = vpop.f32.mrb[0].mxu0
    %1622 = vdwg.mxu0
    %1623 = vmatprep.subr.bf16.mxu0 %v249
    %1624 = vmatpush1.bf16.msra.mxu0 %v248
    %1625 = vmatprep.subr.bf16.mxu0 %v265
    %1626 = vmatpush1.bf16.msra.mxu0 %v264
    %1627 = vmatprep.subr.bf16.mxu0 %v281
    %1628 = vmatpush1.bf16.msra.mxu0 %v280
    %1629 = vmatprep.subr.bf16.mxu0 %v297
    %1630 = vmatpush1.bf16.msra.mxu0 %v296
    %1631 = vmatprep.subr.bf16.mxu0 %v313
    %1632 = vmatpush1.bf16.msra.mxu0 %v312
    %1633 = vmatprep.subr.bf16.mxu0 %v329
    %1634 = vmatpush1.bf16.msra.mxu0 %v328
    %1635 = vmatprep.subr.bf16.mxu0 %v345
    %1636 = vmatpush1.bf16.msra.mxu0 %v344
    %1637 = vmatprep.subr.bf16.mxu0 %v361
    %1638 = vmatpush1.bf16.msra.mxu0 %v360
    %1639 = vmatprep.subr.bf16.mxu0 %v377
    %1640 = vmatpush1.bf16.msra.mxu0 %v376
    %1641 = vmatprep.subr.bf16.mxu0 %v393
    %1642 = vmatpush1.bf16.msra.mxu0 %v392
    %1643 = vmatprep.subr.bf16.mxu0 %v409
    %1644 = vmatpush1.bf16.msra.mxu0 %v408
    %1645 = vmatprep.subr.bf16.mxu0 %v425
    %1646 = vmatpush1.bf16.msra.mxu0 %v424
    %1647 = vmatprep.subr.bf16.mxu0 %v441
    %1648 = vmatpush1.bf16.msra.mxu0 %v440
    %1649 = vmatprep.subr.bf16.mxu0 %v457
    %1650 = vmatpush1.bf16.msra.mxu0 %v456
    %1651 = vmatprep.subr.bf16.mxu0 %v473
    %1652 = vmatpush1.bf16.msra.mxu0 %v472
    %1653 = vmatprep.subr.bf16.mxu0 %v489
    %1654 = vmatpush1.bf16.msra.mxu0 %v488
    %1655 = vmatprep.mubr.bf16.mxu0 %v1044
    %1656 = vmatmul.mubr.bf16.gmra.mrb[0].mxu0 %v1043
    %v1657 = vpop.f32.mrb[0].mxu0
    %v1658 = vadd.f32 %v1086, %v1657
    %v1659 = vpop.f32.mrb[0].mxu0
    %v1660 = vadd.f32 %v1090, %v1659
    %v1661 = vpop.f32.mrb[0].mxu0
    %v1662 = vpop.f32.mrb[0].mxu0
    %1663 = vdwg.mxu0
    %1664 = vmatprep.subr.bf16.mxu0 %v505
    %1665 = vmatpush1.bf16.msra.mxu0 %v504
    %1666 = vmatprep.subr.bf16.mxu0 %v521
    %1667 = vmatpush1.bf16.msra.mxu0 %v520
    %1668 = vmatprep.subr.bf16.mxu0 %v537
    %1669 = vmatpush1.bf16.msra.mxu0 %v536
    %1670 = vmatprep.subr.bf16.mxu0 %v553
    %1671 = vmatpush1.bf16.msra.mxu0 %v552
    %1672 = vmatprep.subr.bf16.mxu0 %v569
    %1673 = vmatpush1.bf16.msra.mxu0 %v568
    %1674 = vmatprep.subr.bf16.mxu0 %v585
    %1675 = vmatpush1.bf16.msra.mxu0 %v584
    %1676 = vmatprep.subr.bf16.mxu0 %v601
    %1677 = vmatpush1.bf16.msra.mxu0 %v600
    %1678 = vmatprep.subr.bf16.mxu0 %v617
    %1679 = vmatpush1.bf16.msra.mxu0 %v616
    %1680 = vmatprep.subr.bf16.mxu0 %v633
    %1681 = vmatpush1.bf16.msra.mxu0 %v632
    %1682 = vmatprep.subr.bf16.mxu0 %v649
    %1683 = vmatpush1.bf16.msra.mxu0 %v648
    %1684 = vmatprep.subr.bf16.mxu0 %v665
    %1685 = vmatpush1.bf16.msra.mxu0 %v664
    %1686 = vmatprep.subr.bf16.mxu0 %v681
    %1687 = vmatpush1.bf16.msra.mxu0 %v680
    %1688 = vmatprep.subr.bf16.mxu0 %v697
    %1689 = vmatpush1.bf16.msra.mxu0 %v696
    %1690 = vmatprep.subr.bf16.mxu0 %v713
    %1691 = vmatpush1.bf16.msra.mxu0 %v712
    %1692 = vmatprep.subr.bf16.mxu0 %v729
    %1693 = vmatpush1.bf16.msra.mxu0 %v728
    %1694 = vmatprep.subr.bf16.mxu0 %v745
    %1695 = vmatpush1.bf16.msra.mxu0 %v744
    %1696 = vmatprep.mubr.bf16.mxu0 %v1046
    %1697 = vmatmul.mubr.bf16.gmra.mrb[0].mxu0 %v1045
    %v1698 = vpop.f32.mrb[0].mxu0
    %v1699 = vadd.f32 %v1658, %v1698
    %v1700 = vpop.f32.mrb[0].mxu0
    %v1701 = vadd.f32 %v1660, %v1700
    %v1702 = vpop.f32.mrb[0].mxu0
    %v1703 = vpop.f32.mrb[0].mxu0
    %1704 = vdwg.mxu0
    %1705 = vmatprep.subr.bf16.mxu0 %v761
    %1706 = vmatpush1.bf16.msra.mxu0 %v760
    %1707 = vmatprep.subr.bf16.mxu0 %v777
    %1708 = vmatpush1.bf16.msra.mxu0 %v776
    %1709 = vmatprep.subr.bf16.mxu0 %v793
    %1710 = vmatpush1.bf16.msra.mxu0 %v792
    %1711 = vmatprep.subr.bf16.mxu0 %v809
    %1712 = vmatpush1.bf16.msra.mxu0 %v808
    %1713 = vmatprep.subr.bf16.mxu0 %v825
    %1714 = vmatpush1.bf16.msra.mxu0 %v824
    %1715 = vmatprep.subr.bf16.mxu0 %v841
    %1716 = vmatpush1.bf16.msra.mxu0 %v840
    %1717 = vmatprep.subr.bf16.mxu0 %v857
    %1718 = vmatpush1.bf16.msra.mxu0 %v856
    %1719 = vmatprep.subr.bf16.mxu0 %v873
    %1720 = vmatpush1.bf16.msra.mxu0 %v872
    %1721 = vmatprep.subr.bf16.mxu0 %v889
    %1722 = vmatpush1.bf16.msra.mxu0 %v888
    %1723 = vmatprep.subr.bf16.mxu0 %v905
    %1724 = vmatpush1.bf16.msra.mxu0 %v904
    %1725 = vmatprep.subr.bf16.mxu0 %v921
    %1726 = vmatpush1.bf16.msra.mxu0 %v920
    %1727 = vmatprep.subr.bf16.mxu0 %v937
    %1728 = vmatpush1.bf16.msra.mxu0 %v936
    %1729 = vmatprep.subr.bf16.mxu0 %v953
    %1730 = vmatpush1.bf16.msra.mxu0 %v952
    %1731 = vmatprep.subr.bf16.mxu0 %v969
    %1732 = vmatpush1.bf16.msra.mxu0 %v968
    %1733 = vmatprep.subr.bf16.mxu0 %v985
    %1734 = vmatpush1.bf16.msra.mxu0 %v984
    %1735 = vmatprep.subr.bf16.mxu0 %v1001
    %1736 = vmatpush1.bf16.msra.mxu0 %v1000
    %1737 = vmatprep.mubr.bf16.mxu0 %v1048
    %1738 = vmatmul.mubr.bf16.gmra.mrb[0].mxu0 %v1047
    %v1739 = vpop.f32.mrb[0].mxu0
    %v1740 = vadd.f32 %v1699, %v1739
    %v1741 = vpop.f32.mrb[0].mxu0
    %v1742 = vadd.f32 %v1701, %v1741
    %v1743 = vpop.f32.mrb[0].mxu0
    %v1744 = vpop.f32.mrb[0].mxu0
    %1745 = vdwg.mxu0
    %1746 = vmatprep.subr.bf16.mxu0 %v251
    %1747 = vmatpush1.bf16.msra.mxu0 %v250
    %1748 = vmatprep.subr.bf16.mxu0 %v267
    %1749 = vmatpush1.bf16.msra.mxu0 %v266
    %1750 = vmatprep.subr.bf16.mxu0 %v283
    %1751 = vmatpush1.bf16.msra.mxu0 %v282
    %1752 = vmatprep.subr.bf16.mxu0 %v299
    %1753 = vmatpush1.bf16.msra.mxu0 %v298
    %1754 = vmatprep.subr.bf16.mxu0 %v315
    %1755 = vmatpush1.bf16.msra.mxu0 %v314
    %1756 = vmatprep.subr.bf16.mxu0 %v331
    %1757 = vmatpush1.bf16.msra.mxu0 %v330
    %1758 = vmatprep.subr.bf16.mxu0 %v347
    %1759 = vmatpush1.bf16.msra.mxu0 %v346
    %1760 = vmatprep.subr.bf16.mxu0 %v363
    %1761 = vmatpush1.bf16.msra.mxu0 %v362
    %1762 = vmatprep.subr.bf16.mxu0 %v379
    %1763 = vmatpush1.bf16.msra.mxu0 %v378
    %1764 = vmatprep.subr.bf16.mxu0 %v395
    %1765 = vmatpush1.bf16.msra.mxu0 %v394
    %1766 = vmatprep.subr.bf16.mxu0 %v411
    %1767 = vmatpush1.bf16.msra.mxu0 %v410
    %1768 = vmatprep.subr.bf16.mxu0 %v427
    %1769 = vmatpush1.bf16.msra.mxu0 %v426
    %1770 = vmatprep.subr.bf16.mxu0 %v443
    %1771 = vmatpush1.bf16.msra.mxu0 %v442
    %1772 = vmatprep.subr.bf16.mxu0 %v459
    %1773 = vmatpush1.bf16.msra.mxu0 %v458
    %1774 = vmatprep.subr.bf16.mxu0 %v475
    %1775 = vmatpush1.bf16.msra.mxu0 %v474
    %1776 = vmatprep.subr.bf16.mxu0 %v491
    %1777 = vmatpush1.bf16.msra.mxu0 %v490
    %1778 = vmatprep.mubr.bf16.mxu0 %v1044
    %1779 = vmatmul.mubr.bf16.gmra.mrb[0].mxu0 %v1043
    %v1780 = vpop.f32.mrb[0].mxu0
    %v1781 = vadd.f32 %v1094, %v1780
    %v1782 = vpop.f32.mrb[0].mxu0
    %v1783 = vadd.f32 %v1098, %v1782
    %v1784 = vpop.f32.mrb[0].mxu0
    %v1785 = vpop.f32.mrb[0].mxu0
    %1786 = vdwg.mxu0
    %1787 = vmatprep.subr.bf16.mxu0 %v507
    %1788 = vmatpush1.bf16.msra.mxu0 %v506
    %1789 = vmatprep.subr.bf16.mxu0 %v523
    %1790 = vmatpush1.bf16.msra.mxu0 %v522
    %1791 = vmatprep.subr.bf16.mxu0 %v539
    %1792 = vmatpush1.bf16.msra.mxu0 %v538
    %1793 = vmatprep.subr.bf16.mxu0 %v555
    %1794 = vmatpush1.bf16.msra.mxu0 %v554
    %1795 = vmatprep.subr.bf16.mxu0 %v571
    %1796 = vmatpush1.bf16.msra.mxu0 %v570
    %1797 = vmatprep.subr.bf16.mxu0 %v587
    %1798 = vmatpush1.bf16.msra.mxu0 %v586
    %1799 = vmatprep.subr.bf16.mxu0 %v603
    %1800 = vmatpush1.bf16.msra.mxu0 %v602
    %1801 = vmatprep.subr.bf16.mxu0 %v619
    %1802 = vmatpush1.bf16.msra.mxu0 %v618
    %1803 = vmatprep.subr.bf16.mxu0 %v635
    %1804 = vmatpush1.bf16.msra.mxu0 %v634
    %1805 = vmatprep.subr.bf16.mxu0 %v651
    %1806 = vmatpush1.bf16.msra.mxu0 %v650
    %1807 = vmatprep.subr.bf16.mxu0 %v667
    %1808 = vmatpush1.bf16.msra.mxu0 %v666
    %1809 = vmatprep.subr.bf16.mxu0 %v683
    %1810 = vmatpush1.bf16.msra.mxu0 %v682
    %1811 = vmatprep.subr.bf16.mxu0 %v699
    %1812 = vmatpush1.bf16.msra.mxu0 %v698
    %1813 = vmatprep.subr.bf16.mxu0 %v715
    %1814 = vmatpush1.bf16.msra.mxu0 %v714
    %1815 = vmatprep.subr.bf16.mxu0 %v731
    %1816 = vmatpush1.bf16.msra.mxu0 %v730
    %1817 = vmatprep.subr.bf16.mxu0 %v747
    %1818 = vmatpush1.bf16.msra.mxu0 %v746
    %1819 = vmatprep.mubr.bf16.mxu0 %v1046
    %1820 = vmatmul.mubr.bf16.gmra.mrb[0].mxu0 %v1045
    %v1821 = vpop.f32.mrb[0].mxu0
    %v1822 = vadd.f32 %v1781, %v1821
    %v1823 = vpop.f32.mrb[0].mxu0
    %v1824 = vadd.f32 %v1783, %v1823
    %v1825 = vpop.f32.mrb[0].mxu0
    %v1826 = vpop.f32.mrb[0].mxu0
    %1827 = vdwg.mxu0
    %1828 = vmatprep.subr.bf16.mxu0 %v763
    %1829 = vmatpush1.bf16.msra.mxu0 %v762
    %1830 = vmatprep.subr.bf16.mxu0 %v779
    %1831 = vmatpush1.bf16.msra.mxu0 %v778
    %1832 = vmatprep.subr.bf16.mxu0 %v795
    %1833 = vmatpush1.bf16.msra.mxu0 %v794
    %1834 = vmatprep.subr.bf16.mxu0 %v811
    %1835 = vmatpush1.bf16.msra.mxu0 %v810
    %1836 = vmatprep.subr.bf16.mxu0 %v827
    %1837 = vmatpush1.bf16.msra.mxu0 %v826
    %1838 = vmatprep.subr.bf16.mxu0 %v843
    %1839 = vmatpush1.bf16.msra.mxu0 %v842
    %1840 = vmatprep.subr.bf16.mxu0 %v859
    %1841 = vmatpush1.bf16.msra.mxu0 %v858
    %1842 = vmatprep.subr.bf16.mxu0 %v875
    %1843 = vmatpush1.bf16.msra.mxu0 %v874
    %1844 = vmatprep.subr.bf16.mxu0 %v891
    %1845 = vmatpush1.bf16.msra.mxu0 %v890
    %1846 = vmatprep.subr.bf16.mxu0 %v907
    %1847 = vmatpush1.bf16.msra.mxu0 %v906
    %1848 = vmatprep.subr.bf16.mxu0 %v923
    %1849 = vmatpush1.bf16.msra.mxu0 %v922
    %1850 = vmatprep.subr.bf16.mxu0 %v939
    %1851 = vmatpush1.bf16.msra.mxu0 %v938
    %1852 = vmatprep.subr.bf16.mxu0 %v955
    %1853 = vmatpush1.bf16.msra.mxu0 %v954
    %1854 = vmatprep.subr.bf16.mxu0 %v971
    %1855 = vmatpush1.bf16.msra.mxu0 %v970
    %1856 = vmatprep.subr.bf16.mxu0 %v987
    %1857 = vmatpush1.bf16.msra.mxu0 %v986
    %1858 = vmatprep.subr.bf16.mxu0 %v1003
    %1859 = vmatpush1.bf16.msra.mxu0 %v1002
    %1860 = vmatprep.mubr.bf16.mxu0 %v1048
    %1861 = vmatmul.mubr.bf16.gmra.mrb[0].mxu0 %v1047
    %v1862 = vpop.f32.mrb[0].mxu0
    %v1863 = vadd.f32 %v1822, %v1862
    %v1864 = vpop.f32.mrb[0].mxu0
    %v1865 = vadd.f32 %v1824, %v1864
    %v1866 = vpop.f32.mrb[0].mxu0
    %v1867 = vpop.f32.mrb[0].mxu0
    %1868 = vdwg.mxu0
    %1869 = vmatprep.subr.bf16.mxu0 %v253
    %1870 = vmatpush1.bf16.msra.mxu0 %v252
    %1871 = vmatprep.subr.bf16.mxu0 %v269
    %1872 = vmatpush1.bf16.msra.mxu0 %v268
    %1873 = vmatprep.subr.bf16.mxu0 %v285
    %1874 = vmatpush1.bf16.msra.mxu0 %v284
    %1875 = vmatprep.subr.bf16.mxu0 %v301
    %1876 = vmatpush1.bf16.msra.mxu0 %v300
    %1877 = vmatprep.subr.bf16.mxu0 %v317
    %1878 = vmatpush1.bf16.msra.mxu0 %v316
    %1879 = vmatprep.subr.bf16.mxu0 %v333
    %1880 = vmatpush1.bf16.msra.mxu0 %v332
    %1881 = vmatprep.subr.bf16.mxu0 %v349
    %1882 = vmatpush1.bf16.msra.mxu0 %v348
    %1883 = vmatprep.subr.bf16.mxu0 %v365
    %1884 = vmatpush1.bf16.msra.mxu0 %v364
    %1885 = vmatprep.subr.bf16.mxu0 %v381
    %1886 = vmatpush1.bf16.msra.mxu0 %v380
    %1887 = vmatprep.subr.bf16.mxu0 %v397
    %1888 = vmatpush1.bf16.msra.mxu0 %v396
    %1889 = vmatprep.subr.bf16.mxu0 %v413
    %1890 = vmatpush1.bf16.msra.mxu0 %v412
    %1891 = vmatprep.subr.bf16.mxu0 %v429
    %1892 = vmatpush1.bf16.msra.mxu0 %v428
    %1893 = vmatprep.subr.bf16.mxu0 %v445
    %1894 = vmatpush1.bf16.msra.mxu0 %v444
    %1895 = vmatprep.subr.bf16.mxu0 %v461
    %1896 = vmatpush1.bf16.msra.mxu0 %v460
    %1897 = vmatprep.subr.bf16.mxu0 %v477
    %1898 = vmatpush1.bf16.msra.mxu0 %v476
    %1899 = vmatprep.subr.bf16.mxu0 %v493
    %1900 = vmatpush1.bf16.msra.mxu0 %v492
    %1901 = vmatprep.mubr.bf16.mxu0 %v1044
    %1902 = vmatmul.mubr.bf16.gmra.mrb[0].mxu0 %v1043
    %v1903 = vpop.f32.mrb[0].mxu0
    %v1904 = vadd.f32 %v1102, %v1903
    %v1905 = vpop.f32.mrb[0].mxu0
    %v1906 = vadd.f32 %v1106, %v1905
    %v1907 = vpop.f32.mrb[0].mxu0
    %v1908 = vpop.f32.mrb[0].mxu0
    %1909 = vdwg.mxu0
    %1910 = vmatprep.subr.bf16.mxu0 %v509
    %1911 = vmatpush1.bf16.msra.mxu0 %v508
    %1912 = vmatprep.subr.bf16.mxu0 %v525
    %1913 = vmatpush1.bf16.msra.mxu0 %v524
    %1914 = vmatprep.subr.bf16.mxu0 %v541
    %1915 = vmatpush1.bf16.msra.mxu0 %v540
    %1916 = vmatprep.subr.bf16.mxu0 %v557
    %1917 = vmatpush1.bf16.msra.mxu0 %v556
    %1918 = vmatprep.subr.bf16.mxu0 %v573
    %1919 = vmatpush1.bf16.msra.mxu0 %v572
    %1920 = vmatprep.subr.bf16.mxu0 %v589
    %1921 = vmatpush1.bf16.msra.mxu0 %v588
    %1922 = vmatprep.subr.bf16.mxu0 %v605
    %1923 = vmatpush1.bf16.msra.mxu0 %v604
    %1924 = vmatprep.subr.bf16.mxu0 %v621
    %1925 = vmatpush1.bf16.msra.mxu0 %v620
    %1926 = vmatprep.subr.bf16.mxu0 %v637
    %1927 = vmatpush1.bf16.msra.mxu0 %v636
    %1928 = vmatprep.subr.bf16.mxu0 %v653
    %1929 = vmatpush1.bf16.msra.mxu0 %v652
    %1930 = vmatprep.subr.bf16.mxu0 %v669
    %1931 = vmatpush1.bf16.msra.mxu0 %v668
    %1932 = vmatprep.subr.bf16.mxu0 %v685
    %1933 = vmatpush1.bf16.msra.mxu0 %v684
    %1934 = vmatprep.subr.bf16.mxu0 %v701
    %1935 = vmatpush1.bf16.msra.mxu0 %v700
    %1936 = vmatprep.subr.bf16.mxu0 %v717
    %1937 = vmatpush1.bf16.msra.mxu0 %v716
    %1938 = vmatprep.subr.bf16.mxu0 %v733
    %1939 = vmatpush1.bf16.msra.mxu0 %v732
    %1940 = vmatprep.subr.bf16.mxu0 %v749
    %1941 = vmatpush1.bf16.msra.mxu0 %v748
    %1942 = vmatprep.mubr.bf16.mxu0 %v1046
    %1943 = vmatmul.mubr.bf16.gmra.mrb[0].mxu0 %v1045
    %v1944 = vpop.f32.mrb[0].mxu0
    %v1945 = vadd.f32 %v1904, %v1944
    %v1946 = vpop.f32.mrb[0].mxu0
    %v1947 = vadd.f32 %v1906, %v1946
    %v1948 = vpop.f32.mrb[0].mxu0
    %v1949 = vpop.f32.mrb[0].mxu0
    %1950 = vdwg.mxu0
    %1951 = vmatprep.subr.bf16.mxu0 %v765
    %1952 = vmatpush1.bf16.msra.mxu0 %v764
    %1953 = vmatprep.subr.bf16.mxu0 %v781
    %1954 = vmatpush1.bf16.msra.mxu0 %v780
    %1955 = vmatprep.subr.bf16.mxu0 %v797
    %1956 = vmatpush1.bf16.msra.mxu0 %v796
    %1957 = vmatprep.subr.bf16.mxu0 %v813
    %1958 = vmatpush1.bf16.msra.mxu0 %v812
    %1959 = vmatprep.subr.bf16.mxu0 %v829
    %1960 = vmatpush1.bf16.msra.mxu0 %v828
    %1961 = vmatprep.subr.bf16.mxu0 %v845
    %1962 = vmatpush1.bf16.msra.mxu0 %v844
    %1963 = vmatprep.subr.bf16.mxu0 %v861
    %1964 = vmatpush1.bf16.msra.mxu0 %v860
    %1965 = vmatprep.subr.bf16.mxu0 %v877
    %1966 = vmatpush1.bf16.msra.mxu0 %v876
    %1967 = vmatprep.subr.bf16.mxu0 %v893
    %1968 = vmatpush1.bf16.msra.mxu0 %v892
    %1969 = vmatprep.subr.bf16.mxu0 %v909
    %1970 = vmatpush1.bf16.msra.mxu0 %v908
    %1971 = vmatprep.subr.bf16.mxu0 %v925
    %1972 = vmatpush1.bf16.msra.mxu0 %v924
    %1973 = vmatprep.subr.bf16.mxu0 %v941
    %1974 = vmatpush1.bf16.msra.mxu0 %v940
    %1975 = vmatprep.subr.bf16.mxu0 %v957
    %1976 = vmatpush1.bf16.msra.mxu0 %v956
    %1977 = vmatprep.subr.bf16.mxu0 %v973
    %1978 = vmatpush1.bf16.msra.mxu0 %v972
    %1979 = vmatprep.subr.bf16.mxu0 %v989
    %1980 = vmatpush1.bf16.msra.mxu0 %v988
    %1981 = vmatprep.subr.bf16.mxu0 %v1005
    %1982 = vmatpush1.bf16.msra.mxu0 %v1004
    %1983 = vmatprep.mubr.bf16.mxu0 %v1048
    %1984 = vmatmul.mubr.bf16.gmra.mrb[0].mxu0 %v1047
    %v1985 = vpop.f32.mrb[0].mxu0
    %v1986 = vadd.f32 %v1945, %v1985
    %v1987 = vpop.f32.mrb[0].mxu0
    %v1988 = vadd.f32 %v1947, %v1987
    %v1989 = vpop.f32.mrb[0].mxu0
    %v1990 = vpop.f32.mrb[0].mxu0
    %1991 = vdwg.mxu0
    %1992 = vmatprep.subr.bf16.mxu0 %v255
    %1993 = vmatpush1.bf16.msra.mxu0 %v254
    %1994 = vmatprep.subr.bf16.mxu0 %v271
    %1995 = vmatpush1.bf16.msra.mxu0 %v270
    %1996 = vmatprep.subr.bf16.mxu0 %v287
    %1997 = vmatpush1.bf16.msra.mxu0 %v286
    %1998 = vmatprep.subr.bf16.mxu0 %v303
    %1999 = vmatpush1.bf16.msra.mxu0 %v302
    %2000 = vmatprep.subr.bf16.mxu0 %v319
    %2001 = vmatpush1.bf16.msra.mxu0 %v318
    %2002 = vmatprep.subr.bf16.mxu0 %v335
    %2003 = vmatpush1.bf16.msra.mxu0 %v334
    %2004 = vmatprep.subr.bf16.mxu0 %v351
    %2005 = vmatpush1.bf16.msra.mxu0 %v350
    %2006 = vmatprep.subr.bf16.mxu0 %v367
    %2007 = vmatpush1.bf16.msra.mxu0 %v366
    %2008 = vmatprep.subr.bf16.mxu0 %v383
    %2009 = vmatpush1.bf16.msra.mxu0 %v382
    %2010 = vmatprep.subr.bf16.mxu0 %v399
    %2011 = vmatpush1.bf16.msra.mxu0 %v398
    %2012 = vmatprep.subr.bf16.mxu0 %v415
    %2013 = vmatpush1.bf16.msra.mxu0 %v414
    %2014 = vmatprep.subr.bf16.mxu0 %v431
    %2015 = vmatpush1.bf16.msra.mxu0 %v430
    %2016 = vmatprep.subr.bf16.mxu0 %v447
    %2017 = vmatpush1.bf16.msra.mxu0 %v446
    %2018 = vmatprep.subr.bf16.mxu0 %v463
    %2019 = vmatpush1.bf16.msra.mxu0 %v462
    %2020 = vmatprep.subr.bf16.mxu0 %v479
    %2021 = vmatpush1.bf16.msra.mxu0 %v478
    %2022 = vmatprep.subr.bf16.mxu0 %v495
    %2023 = vmatpush1.bf16.msra.mxu0 %v494
    %2024 = vmatprep.mubr.bf16.mxu0 %v1044
    %2025 = vmatmul.mubr.bf16.gmra.mrb[0].mxu0 %v1043
    %v2026 = vpop.f32.mrb[0].mxu0
    %v2027 = vadd.f32 %v1110, %v2026
    %v2028 = vpop.f32.mrb[0].mxu0
    %v2029 = vadd.f32 %v1114, %v2028
    %v2030 = vpop.f32.mrb[0].mxu0
    %v2031 = vpop.f32.mrb[0].mxu0
    %2032 = vdwg.mxu0
    %2033 = vmatprep.subr.bf16.mxu0 %v511
    %2034 = vmatpush1.bf16.msra.mxu0 %v510
    %2035 = vmatprep.subr.bf16.mxu0 %v527
    %2036 = vmatpush1.bf16.msra.mxu0 %v526
    %2037 = vmatprep.subr.bf16.mxu0 %v543
    %2038 = vmatpush1.bf16.msra.mxu0 %v542
    %2039 = vmatprep.subr.bf16.mxu0 %v559
    %2040 = vmatpush1.bf16.msra.mxu0 %v558
    %2041 = vmatprep.subr.bf16.mxu0 %v575
    %2042 = vmatpush1.bf16.msra.mxu0 %v574
    %2043 = vmatprep.subr.bf16.mxu0 %v591
    %2044 = vmatpush1.bf16.msra.mxu0 %v590
    %2045 = vmatprep.subr.bf16.mxu0 %v607
    %2046 = vmatpush1.bf16.msra.mxu0 %v606
    %2047 = vmatprep.subr.bf16.mxu0 %v623
    %2048 = vmatpush1.bf16.msra.mxu0 %v622
    %2049 = vmatprep.subr.bf16.mxu0 %v639
    %2050 = vmatpush1.bf16.msra.mxu0 %v638
    %2051 = vmatprep.subr.bf16.mxu0 %v655
    %2052 = vmatpush1.bf16.msra.mxu0 %v654
    %2053 = vmatprep.subr.bf16.mxu0 %v671
    %2054 = vmatpush1.bf16.msra.mxu0 %v670
    %2055 = vmatprep.subr.bf16.mxu0 %v687
    %2056 = vmatpush1.bf16.msra.mxu0 %v686
    %2057 = vmatprep.subr.bf16.mxu0 %v703
    %2058 = vmatpush1.bf16.msra.mxu0 %v702
    %2059 = vmatprep.subr.bf16.mxu0 %v719
    %2060 = vmatpush1.bf16.msra.mxu0 %v718
    %2061 = vmatprep.subr.bf16.mxu0 %v735
    %2062 = vmatpush1.bf16.msra.mxu0 %v734
    %2063 = vmatprep.subr.bf16.mxu0 %v751
    %2064 = vmatpush1.bf16.msra.mxu0 %v750
    %2065 = vmatprep.mubr.bf16.mxu0 %v1046
    %2066 = vmatmul.mubr.bf16.gmra.mrb[0].mxu0 %v1045
    %v2067 = vpop.f32.mrb[0].mxu0
    %v2068 = vadd.f32 %v2027, %v2067
    %v2069 = vpop.f32.mrb[0].mxu0
    %v2070 = vadd.f32 %v2029, %v2069
    %v2071 = vpop.f32.mrb[0].mxu0
    %v2072 = vpop.f32.mrb[0].mxu0
    %2073 = vdwg.mxu0
    %2074 = vmatprep.subr.bf16.mxu0 %v767
    %2075 = vmatpush1.bf16.msra.mxu0 %v766
    %2076 = vmatprep.subr.bf16.mxu0 %v783
    %2077 = vmatpush1.bf16.msra.mxu0 %v782
    %2078 = vmatprep.subr.bf16.mxu0 %v799
    %2079 = vmatpush1.bf16.msra.mxu0 %v798
    %2080 = vmatprep.subr.bf16.mxu0 %v815
    %2081 = vmatpush1.bf16.msra.mxu0 %v814
    %2082 = vmatprep.subr.bf16.mxu0 %v831
    %2083 = vmatpush1.bf16.msra.mxu0 %v830
    %2084 = vmatprep.subr.bf16.mxu0 %v847
    %2085 = vmatpush1.bf16.msra.mxu0 %v846
    %2086 = vmatprep.subr.bf16.mxu0 %v863
    %2087 = vmatpush1.bf16.msra.mxu0 %v862
    %2088 = vmatprep.subr.bf16.mxu0 %v879
    %2089 = vmatpush1.bf16.msra.mxu0 %v878
    %2090 = vmatprep.subr.bf16.mxu0 %v895
    %2091 = vmatpush1.bf16.msra.mxu0 %v894
    %2092 = vmatprep.subr.bf16.mxu0 %v911
    %2093 = vmatpush1.bf16.msra.mxu0 %v910
    %2094 = vmatprep.subr.bf16.mxu0 %v927
    %2095 = vmatpush1.bf16.msra.mxu0 %v926
    %2096 = vmatprep.subr.bf16.mxu0 %v943
    %2097 = vmatpush1.bf16.msra.mxu0 %v942
    %2098 = vmatprep.subr.bf16.mxu0 %v959
    %2099 = vmatpush1.bf16.msra.mxu0 %v958
    %2100 = vmatprep.subr.bf16.mxu0 %v975
    %2101 = vmatpush1.bf16.msra.mxu0 %v974
    %2102 = vmatprep.subr.bf16.mxu0 %v991
    %2103 = vmatpush1.bf16.msra.mxu0 %v990
    %2104 = vmatprep.subr.bf16.mxu0 %v1007
    %2105 = vmatpush1.bf16.msra.mxu0 %v1006
    %2106 = vmatprep.mubr.bf16.mxu0 %v1048
    %2107 = vmatmul.mubr.bf16.gmra.mrb[0].mxu0 %v1047
    %v2108 = vpop.f32.mrb[0].mxu0
    %v2109 = vadd.f32 %v2068, %v2108
    %v2110 = vpop.f32.mrb[0].mxu0
    %v2111 = vadd.f32 %v2070, %v2110
    %v2112 = vpop.f32.mrb[0].mxu0
    %v2113 = vpop.f32.mrb[0].mxu0
    %2114 = vdwg.mxu0
    %v2115 = vmax.f32 %v1248, 0.0
    %v2116 = vmax.f32 %v1250, 0.0
    %v2117 = vmax.f32 %v1371, 0.0
    %v2118 = vmax.f32 %v1373, 0.0
    %v2119 = vmax.f32 %v1494, 0.0
    %v2120 = vmax.f32 %v1496, 0.0
    %v2121 = vmax.f32 %v1617, 0.0
    %v2122 = vmax.f32 %v1619, 0.0
    %v2123 = vmax.f32 %v1740, 0.0
    %v2124 = vmax.f32 %v1742, 0.0
    %v2125 = vmax.f32 %v1863, 0.0
    %v2126 = vmax.f32 %v1865, 0.0
    %v2127 = vmax.f32 %v1986, 0.0
    %v2128 = vmax.f32 %v1988, 0.0
    %v2129 = vmax.f32 %v2109, 0.0
    %v2130 = vmax.f32 %v2111, 0.0
    %s2131 = smul.u32 4, 256
    %s2132 = smul.u32 %s2131, 8
    %s2133 = sshll.u32 %s2132, 4
    %2134 = dma.done %s199, %s2133
    %v2135 = vld [vmem:[#allocation3] sm:$0xff]
    %v2136 = vld [vmem:[#allocation3 + $0x8] sm:$0xff]
    %v2137 = vld [vmem:[#allocation3 + $0x10] sm:$0xff]
    %v2138 = vld [vmem:[#allocation3 + $0x18] sm:$0xff]
    %v2139 = vld [vmem:[#allocation3 + $0x20] sm:$0xff]
    %v2140 = vld [vmem:[#allocation3 + $0x28] sm:$0xff]
    %v2141 = vld [vmem:[#allocation3 + $0x30] sm:$0xff]
    %v2142 = vld [vmem:[#allocation3 + $0x38] sm:$0xff]
    %v2143 = vld [vmem:[#allocation3 + $0x40] sm:$0xff]
    %v2144 = vld [vmem:[#allocation3 + $0x48] sm:$0xff]
    %v2145 = vld [vmem:[#allocation3 + $0x50] sm:$0xff]
    %v2146 = vld [vmem:[#allocation3 + $0x58] sm:$0xff]
    %v2147 = vld [vmem:[#allocation3 + $0x60] sm:$0xff]
    %v2148 = vld [vmem:[#allocation3 + $0x68] sm:$0xff]
    %v2149 = vld [vmem:[#allocation3 + $0x70] sm:$0xff]
    %v2150 = vld [vmem:[#allocation3 + $0x78] sm:$0xff]
    %v2151 = vld [vmem:[#allocation3 + $0x80] sm:$0xff]
    %v2152 = vld [vmem:[#allocation3 + $0x88] sm:$0xff]
    %v2153 = vld [vmem:[#allocation3 + $0x90] sm:$0xff]
    %v2154 = vld [vmem:[#allocation3 + $0x98] sm:$0xff]
    %v2155 = vld [vmem:[#allocation3 + $0xa0] sm:$0xff]
    %v2156 = vld [vmem:[#allocation3 + $0xa8] sm:$0xff]
    %v2157 = vld [vmem:[#allocation3 + $0xb0] sm:$0xff]
    %v2158 = vld [vmem:[#allocation3 + $0xb8] sm:$0xff]
    %v2159 = vld [vmem:[#allocation3 + $0xc0] sm:$0xff]
    %v2160 = vld [vmem:[#allocation3 + $0xc8] sm:$0xff]
    %v2161 = vld [vmem:[#allocation3 + $0xd0] sm:$0xff]
    %v2162 = vld [vmem:[#allocation3 + $0xd8] sm:$0xff]
    %v2163 = vld [vmem:[#allocation3 + $0xe0] sm:$0xff]
    %v2164 = vld [vmem:[#allocation3 + $0xe8] sm:$0xff]
    %v2165 = vld [vmem:[#allocation3 + $0xf0] sm:$0xff]
    %v2166 = vld [vmem:[#allocation3 + $0xf8] sm:$0xff]
    %v2167 = vld [vmem:[#allocation3 + $0x100] sm:$0xff]
    %v2168 = vld [vmem:[#allocation3 + $0x108] sm:$0xff]
    %v2169 = vld [vmem:[#allocation3 + $0x110] sm:$0xff]
    %v2170 = vld [vmem:[#allocation3 + $0x118] sm:$0xff]
    %v2171 = vld [vmem:[#allocation3 + $0x120] sm:$0xff]
    %v2172 = vld [vmem:[#allocation3 + $0x128] sm:$0xff]
    %v2173 = vld [vmem:[#allocation3 + $0x130] sm:$0xff]
    %v2174 = vld [vmem:[#allocation3 + $0x138] sm:$0xff]
    %v2175 = vld [vmem:[#allocation3 + $0x140] sm:$0xff]
    %v2176 = vld [vmem:[#allocation3 + $0x148] sm:$0xff]
    %v2177 = vld [vmem:[#allocation3 + $0x150] sm:$0xff]
    %v2178 = vld [vmem:[#allocation3 + $0x158] sm:$0xff]
    %v2179 = vld [vmem:[#allocation3 + $0x160] sm:$0xff]
    %v2180 = vld [vmem:[#allocation3 + $0x168] sm:$0xff]
    %v2181 = vld [vmem:[#allocation3 + $0x170] sm:$0xff]
    %v2182 = vld [vmem:[#allocation3 + $0x178] sm:$0xff]
    %v2183 = vld [vmem:[#allocation3 + $0x180] sm:$0xff]
    %v2184 = vld [vmem:[#allocation3 + $0x188] sm:$0xff]
    %v2185 = vld [vmem:[#allocation3 + $0x190] sm:$0xff]
    %v2186 = vld [vmem:[#allocation3 + $0x198] sm:$0xff]
    %v2187 = vld [vmem:[#allocation3 + $0x1a0] sm:$0xff]
    %v2188 = vld [vmem:[#allocation3 + $0x1a8] sm:$0xff]
    %v2189 = vld [vmem:[#allocation3 + $0x1b0] sm:$0xff]
    %v2190 = vld [vmem:[#allocation3 + $0x1b8] sm:$0xff]
    %v2191 = vld [vmem:[#allocation3 + $0x1c0] sm:$0xff]
    %v2192 = vld [vmem:[#allocation3 + $0x1c8] sm:$0xff]
    %v2193 = vld [vmem:[#allocation3 + $0x1d0] sm:$0xff]
    %v2194 = vld [vmem:[#allocation3 + $0x1d8] sm:$0xff]
    %v2195 = vld [vmem:[#allocation3 + $0x1e0] sm:$0xff]
    %v2196 = vld [vmem:[#allocation3 + $0x1e8] sm:$0xff]
    %v2197 = vld [vmem:[#allocation3 + $0x1f0] sm:$0xff]
    %v2198 = vld [vmem:[#allocation3 + $0x1f8] sm:$0xff]
    %v2199 = vld [vmem:[#allocation3 + $0x200] sm:$0xff]
    %v2200 = vld [vmem:[#allocation3 + $0x208] sm:$0xff]
    %v2201 = vld [vmem:[#allocation3 + $0x210] sm:$0xff]
    %v2202 = vld [vmem:[#allocation3 + $0x218] sm:$0xff]
    %v2203 = vld [vmem:[#allocation3 + $0x220] sm:$0xff]
    %v2204 = vld [vmem:[#allocation3 + $0x228] sm:$0xff]
    %v2205 = vld [vmem:[#allocation3 + $0x230] sm:$0xff]
    %v2206 = vld [vmem:[#allocation3 + $0x238] sm:$0xff]
    %v2207 = vld [vmem:[#allocation3 + $0x240] sm:$0xff]
    %v2208 = vld [vmem:[#allocation3 + $0x248] sm:$0xff]
    %v2209 = vld [vmem:[#allocation3 + $0x250] sm:$0xff]
    %v2210 = vld [vmem:[#allocation3 + $0x258] sm:$0xff]
    %v2211 = vld [vmem:[#allocation3 + $0x260] sm:$0xff]
    %v2212 = vld [vmem:[#allocation3 + $0x268] sm:$0xff]
    %v2213 = vld [vmem:[#allocation3 + $0x270] sm:$0xff]
    %v2214 = vld [vmem:[#allocation3 + $0x278] sm:$0xff]
    %v2215 = vld [vmem:[#allocation3 + $0x280] sm:$0xff]
    %v2216 = vld [vmem:[#allocation3 + $0x288] sm:$0xff]
    %v2217 = vld [vmem:[#allocation3 + $0x290] sm:$0xff]
    %v2218 = vld [vmem:[#allocation3 + $0x298] sm:$0xff]
    %v2219 = vld [vmem:[#allocation3 + $0x2a0] sm:$0xff]
    %v2220 = vld [vmem:[#allocation3 + $0x2a8] sm:$0xff]
    %v2221 = vld [vmem:[#allocation3 + $0x2b0] sm:$0xff]
    %v2222 = vld [vmem:[#allocation3 + $0x2b8] sm:$0xff]
    %v2223 = vld [vmem:[#allocation3 + $0x2c0] sm:$0xff]
    %v2224 = vld [vmem:[#allocation3 + $0x2c8] sm:$0xff]
    %v2225 = vld [vmem:[#allocation3 + $0x2d0] sm:$0xff]
    %v2226 = vld [vmem:[#allocation3 + $0x2d8] sm:$0xff]
    %v2227 = vld [vmem:[#allocation3 + $0x2e0] sm:$0xff]
    %v2228 = vld [vmem:[#allocation3 + $0x2e8] sm:$0xff]
    %v2229 = vld [vmem:[#allocation3 + $0x2f0] sm:$0xff]
    %v2230 = vld [vmem:[#allocation3 + $0x2f8] sm:$0xff]
    %v2231 = vld [vmem:[#allocation3 + $0x300] sm:$0xff]
    %v2232 = vld [vmem:[#allocation3 + $0x308] sm:$0xff]
    %v2233 = vld [vmem:[#allocation3 + $0x310] sm:$0xff]
    %v2234 = vld [vmem:[#allocation3 + $0x318] sm:$0xff]
    %v2235 = vld [vmem:[#allocation3 + $0x320] sm:$0xff]
    %v2236 = vld [vmem:[#allocation3 + $0x328] sm:$0xff]
    %v2237 = vld [vmem:[#allocation3 + $0x330] sm:$0xff]
    %v2238 = vld [vmem:[#allocation3 + $0x338] sm:$0xff]
    %v2239 = vld [vmem:[#allocation3 + $0x340] sm:$0xff]
    %v2240 = vld [vmem:[#allocation3 + $0x348] sm:$0xff]
    %v2241 = vld [vmem:[#allocation3 + $0x350] sm:$0xff]
    %v2242 = vld [vmem:[#allocation3 + $0x358] sm:$0xff]
    %v2243 = vld [vmem:[#allocation3 + $0x360] sm:$0xff]
    %v2244 = vld [vmem:[#allocation3 + $0x368] sm:$0xff]
    %v2245 = vld [vmem:[#allocation3 + $0x370] sm:$0xff]
    %v2246 = vld [vmem:[#allocation3 + $0x378] sm:$0xff]
    %v2247 = vld [vmem:[#allocation3 + $0x380] sm:$0xff]
    %v2248 = vld [vmem:[#allocation3 + $0x388] sm:$0xff]
    %v2249 = vld [vmem:[#allocation3 + $0x390] sm:$0xff]
    %v2250 = vld [vmem:[#allocation3 + $0x398] sm:$0xff]
    %v2251 = vld [vmem:[#allocation3 + $0x3a0] sm:$0xff]
    %v2252 = vld [vmem:[#allocation3 + $0x3a8] sm:$0xff]
    %v2253 = vld [vmem:[#allocation3 + $0x3b0] sm:$0xff]
    %v2254 = vld [vmem:[#allocation3 + $0x3b8] sm:$0xff]
    %v2255 = vld [vmem:[#allocation3 + $0x3c0] sm:$0xff]
    %v2256 = vld [vmem:[#allocation3 + $0x3c8] sm:$0xff]
    %v2257 = vld [vmem:[#allocation3 + $0x3d0] sm:$0xff]
    %v2258 = vld [vmem:[#allocation3 + $0x3d8] sm:$0xff]
    %v2259 = vld [vmem:[#allocation3 + $0x3e0] sm:$0xff]
    %v2260 = vld [vmem:[#allocation3 + $0x3e8] sm:$0xff]
    %v2261 = vld [vmem:[#allocation3 + $0x3f0] sm:$0xff]
    %v2262 = vld [vmem:[#allocation3 + $0x3f8] sm:$0xff]
    %v2263 = vld [vmem:[#allocation3 + $0x400] sm:$0xff]
    %v2264 = vld [vmem:[#allocation3 + $0x408] sm:$0xff]
    %v2265 = vld [vmem:[#allocation3 + $0x410] sm:$0xff]
    %v2266 = vld [vmem:[#allocation3 + $0x418] sm:$0xff]
    %v2267 = vld [vmem:[#allocation3 + $0x420] sm:$0xff]
    %v2268 = vld [vmem:[#allocation3 + $0x428] sm:$0xff]
    %v2269 = vld [vmem:[#allocation3 + $0x430] sm:$0xff]
    %v2270 = vld [vmem:[#allocation3 + $0x438] sm:$0xff]
    %v2271 = vld [vmem:[#allocation3 + $0x440] sm:$0xff]
    %v2272 = vld [vmem:[#allocation3 + $0x448] sm:$0xff]
    %v2273 = vld [vmem:[#allocation3 + $0x450] sm:$0xff]
    %v2274 = vld [vmem:[#allocation3 + $0x458] sm:$0xff]
    %v2275 = vld [vmem:[#allocation3 + $0x460] sm:$0xff]
    %v2276 = vld [vmem:[#allocation3 + $0x468] sm:$0xff]
    %v2277 = vld [vmem:[#allocation3 + $0x470] sm:$0xff]
    %v2278 = vld [vmem:[#allocation3 + $0x478] sm:$0xff]
    %v2279 = vld [vmem:[#allocation3 + $0x480] sm:$0xff]
    %v2280 = vld [vmem:[#allocation3 + $0x488] sm:$0xff]
    %v2281 = vld [vmem:[#allocation3 + $0x490] sm:$0xff]
    %v2282 = vld [vmem:[#allocation3 + $0x498] sm:$0xff]
    %v2283 = vld [vmem:[#allocation3 + $0x4a0] sm:$0xff]
    %v2284 = vld [vmem:[#allocation3 + $0x4a8] sm:$0xff]
    %v2285 = vld [vmem:[#allocation3 + $0x4b0] sm:$0xff]
    %v2286 = vld [vmem:[#allocation3 + $0x4b8] sm:$0xff]
    %v2287 = vld [vmem:[#allocation3 + $0x4c0] sm:$0xff]
    %v2288 = vld [vmem:[#allocation3 + $0x4c8] sm:$0xff]
    %v2289 = vld [vmem:[#allocation3 + $0x4d0] sm:$0xff]
    %v2290 = vld [vmem:[#allocation3 + $0x4d8] sm:$0xff]
    %v2291 = vld [vmem:[#allocation3 + $0x4e0] sm:$0xff]
    %v2292 = vld [vmem:[#allocation3 + $0x4e8] sm:$0xff]
    %v2293 = vld [vmem:[#allocation3 + $0x4f0] sm:$0xff]
    %v2294 = vld [vmem:[#allocation3 + $0x4f8] sm:$0xff]
    %v2295 = vld [vmem:[#allocation3 + $0x500] sm:$0xff]
    %v2296 = vld [vmem:[#allocation3 + $0x508] sm:$0xff]
    %v2297 = vld [vmem:[#allocation3 + $0x510] sm:$0xff]
    %v2298 = vld [vmem:[#allocation3 + $0x518] sm:$0xff]
    %v2299 = vld [vmem:[#allocation3 + $0x520] sm:$0xff]
    %v2300 = vld [vmem:[#allocation3 + $0x528] sm:$0xff]
    %v2301 = vld [vmem:[#allocation3 + $0x530] sm:$0xff]
    %v2302 = vld [vmem:[#allocation3 + $0x538] sm:$0xff]
    %v2303 = vld [vmem:[#allocation3 + $0x540] sm:$0xff]
    %v2304 = vld [vmem:[#allocation3 + $0x548] sm:$0xff]
    %v2305 = vld [vmem:[#allocation3 + $0x550] sm:$0xff]
    %v2306 = vld [vmem:[#allocation3 + $0x558] sm:$0xff]
    %v2307 = vld [vmem:[#allocation3 + $0x560] sm:$0xff]
    %v2308 = vld [vmem:[#allocation3 + $0x568] sm:$0xff]
    %v2309 = vld [vmem:[#allocation3 + $0x570] sm:$0xff]
    %v2310 = vld [vmem:[#allocation3 + $0x578] sm:$0xff]
    %v2311 = vld [vmem:[#allocation3 + $0x580] sm:$0xff]
    %v2312 = vld [vmem:[#allocation3 + $0x588] sm:$0xff]
    %v2313 = vld [vmem:[#allocation3 + $0x590] sm:$0xff]
    %v2314 = vld [vmem:[#allocation3 + $0x598] sm:$0xff]
    %v2315 = vld [vmem:[#allocation3 + $0x5a0] sm:$0xff]
    %v2316 = vld [vmem:[#allocation3 + $0x5a8] sm:$0xff]
    %v2317 = vld [vmem:[#allocation3 + $0x5b0] sm:$0xff]
    %v2318 = vld [vmem:[#allocation3 + $0x5b8] sm:$0xff]
    %v2319 = vld [vmem:[#allocation3 + $0x5c0] sm:$0xff]
    %v2320 = vld [vmem:[#allocation3 + $0x5c8] sm:$0xff]
    %v2321 = vld [vmem:[#allocation3 + $0x5d0] sm:$0xff]
    %v2322 = vld [vmem:[#allocation3 + $0x5d8] sm:$0xff]
    %v2323 = vld [vmem:[#allocation3 + $0x5e0] sm:$0xff]
    %v2324 = vld [vmem:[#allocation3 + $0x5e8] sm:$0xff]
    %v2325 = vld [vmem:[#allocation3 + $0x5f0] sm:$0xff]
    %v2326 = vld [vmem:[#allocation3 + $0x5f8] sm:$0xff]
    %v2327 = vld [vmem:[#allocation3 + $0x600] sm:$0xff]
    %v2328 = vld [vmem:[#allocation3 + $0x608] sm:$0xff]
    %v2329 = vld [vmem:[#allocation3 + $0x610] sm:$0xff]
    %v2330 = vld [vmem:[#allocation3 + $0x618] sm:$0xff]
    %v2331 = vld [vmem:[#allocation3 + $0x620] sm:$0xff]
    %v2332 = vld [vmem:[#allocation3 + $0x628] sm:$0xff]
    %v2333 = vld [vmem:[#allocation3 + $0x630] sm:$0xff]
    %v2334 = vld [vmem:[#allocation3 + $0x638] sm:$0xff]
    %v2335 = vld [vmem:[#allocation3 + $0x640] sm:$0xff]
    %v2336 = vld [vmem:[#allocation3 + $0x648] sm:$0xff]
    %v2337 = vld [vmem:[#allocation3 + $0x650] sm:$0xff]
    %v2338 = vld [vmem:[#allocation3 + $0x658] sm:$0xff]
    %v2339 = vld [vmem:[#allocation3 + $0x660] sm:$0xff]
    %v2340 = vld [vmem:[#allocation3 + $0x668] sm:$0xff]
    %v2341 = vld [vmem:[#allocation3 + $0x670] sm:$0xff]
    %v2342 = vld [vmem:[#allocation3 + $0x678] sm:$0xff]
    %v2343 = vld [vmem:[#allocation3 + $0x680] sm:$0xff]
    %v2344 = vld [vmem:[#allocation3 + $0x688] sm:$0xff]
    %v2345 = vld [vmem:[#allocation3 + $0x690] sm:$0xff]
    %v2346 = vld [vmem:[#allocation3 + $0x698] sm:$0xff]
    %v2347 = vld [vmem:[#allocation3 + $0x6a0] sm:$0xff]
    %v2348 = vld [vmem:[#allocation3 + $0x6a8] sm:$0xff]
    %v2349 = vld [vmem:[#allocation3 + $0x6b0] sm:$0xff]
    %v2350 = vld [vmem:[#allocation3 + $0x6b8] sm:$0xff]
    %v2351 = vld [vmem:[#allocation3 + $0x6c0] sm:$0xff]
    %v2352 = vld [vmem:[#allocation3 + $0x6c8] sm:$0xff]
    %v2353 = vld [vmem:[#allocation3 + $0x6d0] sm:$0xff]
    %v2354 = vld [vmem:[#allocation3 + $0x6d8] sm:$0xff]
    %v2355 = vld [vmem:[#allocation3 + $0x6e0] sm:$0xff]
    %v2356 = vld [vmem:[#allocation3 + $0x6e8] sm:$0xff]
    %v2357 = vld [vmem:[#allocation3 + $0x6f0] sm:$0xff]
    %v2358 = vld [vmem:[#allocation3 + $0x6f8] sm:$0xff]
    %v2359 = vld [vmem:[#allocation3 + $0x700] sm:$0xff]
    %v2360 = vld [vmem:[#allocation3 + $0x708] sm:$0xff]
    %v2361 = vld [vmem:[#allocation3 + $0x710] sm:$0xff]
    %v2362 = vld [vmem:[#allocation3 + $0x718] sm:$0xff]
    %v2363 = vld [vmem:[#allocation3 + $0x720] sm:$0xff]
    %v2364 = vld [vmem:[#allocation3 + $0x728] sm:$0xff]
    %v2365 = vld [vmem:[#allocation3 + $0x730] sm:$0xff]
    %v2366 = vld [vmem:[#allocation3 + $0x738] sm:$0xff]
    %v2367 = vld [vmem:[#allocation3 + $0x740] sm:$0xff]
    %v2368 = vld [vmem:[#allocation3 + $0x748] sm:$0xff]
    %v2369 = vld [vmem:[#allocation3 + $0x750] sm:$0xff]
    %v2370 = vld [vmem:[#allocation3 + $0x758] sm:$0xff]
    %v2371 = vld [vmem:[#allocation3 + $0x760] sm:$0xff]
    %v2372 = vld [vmem:[#allocation3 + $0x768] sm:$0xff]
    %v2373 = vld [vmem:[#allocation3 + $0x770] sm:$0xff]
    %v2374 = vld [vmem:[#allocation3 + $0x778] sm:$0xff]
    %v2375 = vld [vmem:[#allocation3 + $0x780] sm:$0xff]
    %v2376 = vld [vmem:[#allocation3 + $0x788] sm:$0xff]
    %v2377 = vld [vmem:[#allocation3 + $0x790] sm:$0xff]
    %v2378 = vld [vmem:[#allocation3 + $0x798] sm:$0xff]
    %v2379 = vld [vmem:[#allocation3 + $0x7a0] sm:$0xff]
    %v2380 = vld [vmem:[#allocation3 + $0x7a8] sm:$0xff]
    %v2381 = vld [vmem:[#allocation3 + $0x7b0] sm:$0xff]
    %v2382 = vld [vmem:[#allocation3 + $0x7b8] sm:$0xff]
    %v2383 = vld [vmem:[#allocation3 + $0x7c0] sm:$0xff]
    %v2384 = vld [vmem:[#allocation3 + $0x7c8] sm:$0xff]
    %v2385 = vld [vmem:[#allocation3 + $0x7d0] sm:$0xff]
    %v2386 = vld [vmem:[#allocation3 + $0x7d8] sm:$0xff]
    %v2387 = vld [vmem:[#allocation3 + $0x7e0] sm:$0xff]
    %v2388 = vld [vmem:[#allocation3 + $0x7e8] sm:$0xff]
    %v2389 = vld [vmem:[#allocation3 + $0x7f0] sm:$0xff]
    %v2390 = vld [vmem:[#allocation3 + $0x7f8] sm:$0xff]
    %v2391 = vld [vmem:[#allocation3 + $0x800] sm:$0xff]
    %v2392 = vld [vmem:[#allocation3 + $0x808] sm:$0xff]
    %v2393 = vld [vmem:[#allocation3 + $0x810] sm:$0xff]
    %v2394 = vld [vmem:[#allocation3 + $0x818] sm:$0xff]
    %v2395 = vld [vmem:[#allocation3 + $0x820] sm:$0xff]
    %v2396 = vld [vmem:[#allocation3 + $0x828] sm:$0xff]
    %v2397 = vld [vmem:[#allocation3 + $0x830] sm:$0xff]
    %v2398 = vld [vmem:[#allocation3 + $0x838] sm:$0xff]
    %v2399 = vld [vmem:[#allocation3 + $0x840] sm:$0xff]
    %v2400 = vld [vmem:[#allocation3 + $0x848] sm:$0xff]
    %v2401 = vld [vmem:[#allocation3 + $0x850] sm:$0xff]
    %v2402 = vld [vmem:[#allocation3 + $0x858] sm:$0xff]
    %v2403 = vld [vmem:[#allocation3 + $0x860] sm:$0xff]
    %v2404 = vld [vmem:[#allocation3 + $0x868] sm:$0xff]
    %v2405 = vld [vmem:[#allocation3 + $0x870] sm:$0xff]
    %v2406 = vld [vmem:[#allocation3 + $0x878] sm:$0xff]
    %v2407 = vld [vmem:[#allocation3 + $0x880] sm:$0xff]
    %v2408 = vld [vmem:[#allocation3 + $0x888] sm:$0xff]
    %v2409 = vld [vmem:[#allocation3 + $0x890] sm:$0xff]
    %v2410 = vld [vmem:[#allocation3 + $0x898] sm:$0xff]
    %v2411 = vld [vmem:[#allocation3 + $0x8a0] sm:$0xff]
    %v2412 = vld [vmem:[#allocation3 + $0x8a8] sm:$0xff]
    %v2413 = vld [vmem:[#allocation3 + $0x8b0] sm:$0xff]
    %v2414 = vld [vmem:[#allocation3 + $0x8b8] sm:$0xff]
    %v2415 = vld [vmem:[#allocation3 + $0x8c0] sm:$0xff]
    %v2416 = vld [vmem:[#allocation3 + $0x8c8] sm:$0xff]
    %v2417 = vld [vmem:[#allocation3 + $0x8d0] sm:$0xff]
    %v2418 = vld [vmem:[#allocation3 + $0x8d8] sm:$0xff]
    %v2419 = vld [vmem:[#allocation3 + $0x8e0] sm:$0xff]
    %v2420 = vld [vmem:[#allocation3 + $0x8e8] sm:$0xff]
    %v2421 = vld [vmem:[#allocation3 + $0x8f0] sm:$0xff]
    %v2422 = vld [vmem:[#allocation3 + $0x8f8] sm:$0xff]
    %v2423 = vld [vmem:[#allocation3 + $0x900] sm:$0xff]
    %v2424 = vld [vmem:[#allocation3 + $0x908] sm:$0xff]
    %v2425 = vld [vmem:[#allocation3 + $0x910] sm:$0xff]
    %v2426 = vld [vmem:[#allocation3 + $0x918] sm:$0xff]
    %v2427 = vld [vmem:[#allocation3 + $0x920] sm:$0xff]
    %v2428 = vld [vmem:[#allocation3 + $0x928] sm:$0xff]
    %v2429 = vld [vmem:[#allocation3 + $0x930] sm:$0xff]
    %v2430 = vld [vmem:[#allocation3 + $0x938] sm:$0xff]
    %v2431 = vld [vmem:[#allocation3 + $0x940] sm:$0xff]
    %v2432 = vld [vmem:[#allocation3 + $0x948] sm:$0xff]
    %v2433 = vld [vmem:[#allocation3 + $0x950] sm:$0xff]
    %v2434 = vld [vmem:[#allocation3 + $0x958] sm:$0xff]
    %v2435 = vld [vmem:[#allocation3 + $0x960] sm:$0xff]
    %v2436 = vld [vmem:[#allocation3 + $0x968] sm:$0xff]
    %v2437 = vld [vmem:[#allocation3 + $0x970] sm:$0xff]
    %v2438 = vld [vmem:[#allocation3 + $0x978] sm:$0xff]
    %v2439 = vld [vmem:[#allocation3 + $0x980] sm:$0xff]
    %v2440 = vld [vmem:[#allocation3 + $0x988] sm:$0xff]
    %v2441 = vld [vmem:[#allocation3 + $0x990] sm:$0xff]
    %v2442 = vld [vmem:[#allocation3 + $0x998] sm:$0xff]
    %v2443 = vld [vmem:[#allocation3 + $0x9a0] sm:$0xff]
    %v2444 = vld [vmem:[#allocation3 + $0x9a8] sm:$0xff]
    %v2445 = vld [vmem:[#allocation3 + $0x9b0] sm:$0xff]
    %v2446 = vld [vmem:[#allocation3 + $0x9b8] sm:$0xff]
    %v2447 = vld [vmem:[#allocation3 + $0x9c0] sm:$0xff]
    %v2448 = vld [vmem:[#allocation3 + $0x9c8] sm:$0xff]
    %v2449 = vld [vmem:[#allocation3 + $0x9d0] sm:$0xff]
    %v2450 = vld [vmem:[#allocation3 + $0x9d8] sm:$0xff]
    %v2451 = vld [vmem:[#allocation3 + $0x9e0] sm:$0xff]
    %v2452 = vld [vmem:[#allocation3 + $0x9e8] sm:$0xff]
    %v2453 = vld [vmem:[#allocation3 + $0x9f0] sm:$0xff]
    %v2454 = vld [vmem:[#allocation3 + $0x9f8] sm:$0xff]
    %v2455 = vld [vmem:[#allocation3 + $0xa00] sm:$0xff]
    %v2456 = vld [vmem:[#allocation3 + $0xa08] sm:$0xff]
    %v2457 = vld [vmem:[#allocation3 + $0xa10] sm:$0xff]
    %v2458 = vld [vmem:[#allocation3 + $0xa18] sm:$0xff]
    %v2459 = vld [vmem:[#allocation3 + $0xa20] sm:$0xff]
    %v2460 = vld [vmem:[#allocation3 + $0xa28] sm:$0xff]
    %v2461 = vld [vmem:[#allocation3 + $0xa30] sm:$0xff]
    %v2462 = vld [vmem:[#allocation3 + $0xa38] sm:$0xff]
    %v2463 = vld [vmem:[#allocation3 + $0xa40] sm:$0xff]
    %v2464 = vld [vmem:[#allocation3 + $0xa48] sm:$0xff]
    %v2465 = vld [vmem:[#allocation3 + $0xa50] sm:$0xff]
    %v2466 = vld [vmem:[#allocation3 + $0xa58] sm:$0xff]
    %v2467 = vld [vmem:[#allocation3 + $0xa60] sm:$0xff]
    %v2468 = vld [vmem:[#allocation3 + $0xa68] sm:$0xff]
    %v2469 = vld [vmem:[#allocation3 + $0xa70] sm:$0xff]
    %v2470 = vld [vmem:[#allocation3 + $0xa78] sm:$0xff]
    %v2471 = vld [vmem:[#allocation3 + $0xa80] sm:$0xff]
    %v2472 = vld [vmem:[#allocation3 + $0xa88] sm:$0xff]
    %v2473 = vld [vmem:[#allocation3 + $0xa90] sm:$0xff]
    %v2474 = vld [vmem:[#allocation3 + $0xa98] sm:$0xff]
    %v2475 = vld [vmem:[#allocation3 + $0xaa0] sm:$0xff]
    %v2476 = vld [vmem:[#allocation3 + $0xaa8] sm:$0xff]
    %v2477 = vld [vmem:[#allocation3 + $0xab0] sm:$0xff]
    %v2478 = vld [vmem:[#allocation3 + $0xab8] sm:$0xff]
    %v2479 = vld [vmem:[#allocation3 + $0xac0] sm:$0xff]
    %v2480 = vld [vmem:[#allocation3 + $0xac8] sm:$0xff]
    %v2481 = vld [vmem:[#allocation3 + $0xad0] sm:$0xff]
    %v2482 = vld [vmem:[#allocation3 + $0xad8] sm:$0xff]
    %v2483 = vld [vmem:[#allocation3 + $0xae0] sm:$0xff]
    %v2484 = vld [vmem:[#allocation3 + $0xae8] sm:$0xff]
    %v2485 = vld [vmem:[#allocation3 + $0xaf0] sm:$0xff]
    %v2486 = vld [vmem:[#allocation3 + $0xaf8] sm:$0xff]
    %v2487 = vld [vmem:[#allocation3 + $0xb00] sm:$0xff]
    %v2488 = vld [vmem:[#allocation3 + $0xb08] sm:$0xff]
    %v2489 = vld [vmem:[#allocation3 + $0xb10] sm:$0xff]
    %v2490 = vld [vmem:[#allocation3 + $0xb18] sm:$0xff]
    %v2491 = vld [vmem:[#allocation3 + $0xb20] sm:$0xff]
    %v2492 = vld [vmem:[#allocation3 + $0xb28] sm:$0xff]
    %v2493 = vld [vmem:[#allocation3 + $0xb30] sm:$0xff]
    %v2494 = vld [vmem:[#allocation3 + $0xb38] sm:$0xff]
    %v2495 = vld [vmem:[#allocation3 + $0xb40] sm:$0xff]
    %v2496 = vld [vmem:[#allocation3 + $0xb48] sm:$0xff]
    %v2497 = vld [vmem:[#allocation3 + $0xb50] sm:$0xff]
    %v2498 = vld [vmem:[#allocation3 + $0xb58] sm:$0xff]
    %v2499 = vld [vmem:[#allocation3 + $0xb60] sm:$0xff]
    %v2500 = vld [vmem:[#allocation3 + $0xb68] sm:$0xff]
    %v2501 = vld [vmem:[#allocation3 + $0xb70] sm:$0xff]
    %v2502 = vld [vmem:[#allocation3 + $0xb78] sm:$0xff]
    %v2503 = vld [vmem:[#allocation3 + $0xb80] sm:$0xff]
    %v2504 = vld [vmem:[#allocation3 + $0xb88] sm:$0xff]
    %v2505 = vld [vmem:[#allocation3 + $0xb90] sm:$0xff]
    %v2506 = vld [vmem:[#allocation3 + $0xb98] sm:$0xff]
    %v2507 = vld [vmem:[#allocation3 + $0xba0] sm:$0xff]
    %v2508 = vld [vmem:[#allocation3 + $0xba8] sm:$0xff]
    %v2509 = vld [vmem:[#allocation3 + $0xbb0] sm:$0xff]
    %v2510 = vld [vmem:[#allocation3 + $0xbb8] sm:$0xff]
    %v2511 = vld [vmem:[#allocation3 + $0xbc0] sm:$0xff]
    %v2512 = vld [vmem:[#allocation3 + $0xbc8] sm:$0xff]
    %v2513 = vld [vmem:[#allocation3 + $0xbd0] sm:$0xff]
    %v2514 = vld [vmem:[#allocation3 + $0xbd8] sm:$0xff]
    %v2515 = vld [vmem:[#allocation3 + $0xbe0] sm:$0xff]
    %v2516 = vld [vmem:[#allocation3 + $0xbe8] sm:$0xff]
    %v2517 = vld [vmem:[#allocation3 + $0xbf0] sm:$0xff]
    %v2518 = vld [vmem:[#allocation3 + $0xbf8] sm:$0xff]
    %v2519 = vld [vmem:[#allocation3 + $0xc00] sm:$0xff]
    %v2520 = vld [vmem:[#allocation3 + $0xc08] sm:$0xff]
    %v2521 = vld [vmem:[#allocation3 + $0xc10] sm:$0xff]
    %v2522 = vld [vmem:[#allocation3 + $0xc18] sm:$0xff]
    %v2523 = vld [vmem:[#allocation3 + $0xc20] sm:$0xff]
    %v2524 = vld [vmem:[#allocation3 + $0xc28] sm:$0xff]
    %v2525 = vld [vmem:[#allocation3 + $0xc30] sm:$0xff]
    %v2526 = vld [vmem:[#allocation3 + $0xc38] sm:$0xff]
    %v2527 = vld [vmem:[#allocation3 + $0xc40] sm:$0xff]
    %v2528 = vld [vmem:[#allocation3 + $0xc48] sm:$0xff]
    %v2529 = vld [vmem:[#allocation3 + $0xc50] sm:$0xff]
    %v2530 = vld [vmem:[#allocation3 + $0xc58] sm:$0xff]
    %v2531 = vld [vmem:[#allocation3 + $0xc60] sm:$0xff]
    %v2532 = vld [vmem:[#allocation3 + $0xc68] sm:$0xff]
    %v2533 = vld [vmem:[#allocation3 + $0xc70] sm:$0xff]
    %v2534 = vld [vmem:[#allocation3 + $0xc78] sm:$0xff]
    %v2535 = vld [vmem:[#allocation3 + $0xc80] sm:$0xff]
    %v2536 = vld [vmem:[#allocation3 + $0xc88] sm:$0xff]
    %v2537 = vld [vmem:[#allocation3 + $0xc90] sm:$0xff]
    %v2538 = vld [vmem:[#allocation3 + $0xc98] sm:$0xff]
    %v2539 = vld [vmem:[#allocation3 + $0xca0] sm:$0xff]
    %v2540 = vld [vmem:[#allocation3 + $0xca8] sm:$0xff]
    %v2541 = vld [vmem:[#allocation3 + $0xcb0] sm:$0xff]
    %v2542 = vld [vmem:[#allocation3 + $0xcb8] sm:$0xff]
    %v2543 = vld [vmem:[#allocation3 + $0xcc0] sm:$0xff]
    %v2544 = vld [vmem:[#allocation3 + $0xcc8] sm:$0xff]
    %v2545 = vld [vmem:[#allocation3 + $0xcd0] sm:$0xff]
    %v2546 = vld [vmem:[#allocation3 + $0xcd8] sm:$0xff]
    %v2547 = vld [vmem:[#allocation3 + $0xce0] sm:$0xff]
    %v2548 = vld [vmem:[#allocation3 + $0xce8] sm:$0xff]
    %v2549 = vld [vmem:[#allocation3 + $0xcf0] sm:$0xff]
    %v2550 = vld [vmem:[#allocation3 + $0xcf8] sm:$0xff]
    %v2551 = vld [vmem:[#allocation3 + $0xd00] sm:$0xff]
    %v2552 = vld [vmem:[#allocation3 + $0xd08] sm:$0xff]
    %v2553 = vld [vmem:[#allocation3 + $0xd10] sm:$0xff]
    %v2554 = vld [vmem:[#allocation3 + $0xd18] sm:$0xff]
    %v2555 = vld [vmem:[#allocation3 + $0xd20] sm:$0xff]
    %v2556 = vld [vmem:[#allocation3 + $0xd28] sm:$0xff]
    %v2557 = vld [vmem:[#allocation3 + $0xd30] sm:$0xff]
    %v2558 = vld [vmem:[#allocation3 + $0xd38] sm:$0xff]
    %v2559 = vld [vmem:[#allocation3 + $0xd40] sm:$0xff]
    %v2560 = vld [vmem:[#allocation3 + $0xd48] sm:$0xff]
    %v2561 = vld [vmem:[#allocation3 + $0xd50] sm:$0xff]
    %v2562 = vld [vmem:[#allocation3 + $0xd58] sm:$0xff]
    %v2563 = vld [vmem:[#allocation3 + $0xd60] sm:$0xff]
    %v2564 = vld [vmem:[#allocation3 + $0xd68] sm:$0xff]
    %v2565 = vld [vmem:[#allocation3 + $0xd70] sm:$0xff]
    %v2566 = vld [vmem:[#allocation3 + $0xd78] sm:$0xff]
    %v2567 = vld [vmem:[#allocation3 + $0xd80] sm:$0xff]
    %v2568 = vld [vmem:[#allocation3 + $0xd88] sm:$0xff]
    %v2569 = vld [vmem:[#allocation3 + $0xd90] sm:$0xff]
    %v2570 = vld [vmem:[#allocation3 + $0xd98] sm:$0xff]
    %v2571 = vld [vmem:[#allocation3 + $0xda0] sm:$0xff]
    %v2572 = vld [vmem:[#allocation3 + $0xda8] sm:$0xff]
    %v2573 = vld [vmem:[#allocation3 + $0xdb0] sm:$0xff]
    %v2574 = vld [vmem:[#allocation3 + $0xdb8] sm:$0xff]
    %v2575 = vld [vmem:[#allocation3 + $0xdc0] sm:$0xff]
    %v2576 = vld [vmem:[#allocation3 + $0xdc8] sm:$0xff]
    %v2577 = vld [vmem:[#allocation3 + $0xdd0] sm:$0xff]
    %v2578 = vld [vmem:[#allocation3 + $0xdd8] sm:$0xff]
    %v2579 = vld [vmem:[#allocation3 + $0xde0] sm:$0xff]
    %v2580 = vld [vmem:[#allocation3 + $0xde8] sm:$0xff]
    %v2581 = vld [vmem:[#allocation3 + $0xdf0] sm:$0xff]
    %v2582 = vld [vmem:[#allocation3 + $0xdf8] sm:$0xff]
    %v2583 = vld [vmem:[#allocation3 + $0xe00] sm:$0xff]
    %v2584 = vld [vmem:[#allocation3 + $0xe08] sm:$0xff]
    %v2585 = vld [vmem:[#allocation3 + $0xe10] sm:$0xff]
    %v2586 = vld [vmem:[#allocation3 + $0xe18] sm:$0xff]
    %v2587 = vld [vmem:[#allocation3 + $0xe20] sm:$0xff]
    %v2588 = vld [vmem:[#allocation3 + $0xe28] sm:$0xff]
    %v2589 = vld [vmem:[#allocation3 + $0xe30] sm:$0xff]
    %v2590 = vld [vmem:[#allocation3 + $0xe38] sm:$0xff]
    %v2591 = vld [vmem:[#allocation3 + $0xe40] sm:$0xff]
    %v2592 = vld [vmem:[#allocation3 + $0xe48] sm:$0xff]
    %v2593 = vld [vmem:[#allocation3 + $0xe50] sm:$0xff]
    %v2594 = vld [vmem:[#allocation3 + $0xe58] sm:$0xff]
    %v2595 = vld [vmem:[#allocation3 + $0xe60] sm:$0xff]
    %v2596 = vld [vmem:[#allocation3 + $0xe68] sm:$0xff]
    %v2597 = vld [vmem:[#allocation3 + $0xe70] sm:$0xff]
    %v2598 = vld [vmem:[#allocation3 + $0xe78] sm:$0xff]
    %v2599 = vld [vmem:[#allocation3 + $0xe80] sm:$0xff]
    %v2600 = vld [vmem:[#allocation3 + $0xe88] sm:$0xff]
    %v2601 = vld [vmem:[#allocation3 + $0xe90] sm:$0xff]
    %v2602 = vld [vmem:[#allocation3 + $0xe98] sm:$0xff]
    %v2603 = vld [vmem:[#allocation3 + $0xea0] sm:$0xff]
    %v2604 = vld [vmem:[#allocation3 + $0xea8] sm:$0xff]
    %v2605 = vld [vmem:[#allocation3 + $0xeb0] sm:$0xff]
    %v2606 = vld [vmem:[#allocation3 + $0xeb8] sm:$0xff]
    %v2607 = vld [vmem:[#allocation3 + $0xec0] sm:$0xff]
    %v2608 = vld [vmem:[#allocation3 + $0xec8] sm:$0xff]
    %v2609 = vld [vmem:[#allocation3 + $0xed0] sm:$0xff]
    %v2610 = vld [vmem:[#allocation3 + $0xed8] sm:$0xff]
    %v2611 = vld [vmem:[#allocation3 + $0xee0] sm:$0xff]
    %v2612 = vld [vmem:[#allocation3 + $0xee8] sm:$0xff]
    %v2613 = vld [vmem:[#allocation3 + $0xef0] sm:$0xff]
    %v2614 = vld [vmem:[#allocation3 + $0xef8] sm:$0xff]
    %v2615 = vld [vmem:[#allocation3 + $0xf00] sm:$0xff]
    %v2616 = vld [vmem:[#allocation3 + $0xf08] sm:$0xff]
    %v2617 = vld [vmem:[#allocation3 + $0xf10] sm:$0xff]
    %v2618 = vld [vmem:[#allocation3 + $0xf18] sm:$0xff]
    %v2619 = vld [vmem:[#allocation3 + $0xf20] sm:$0xff]
    %v2620 = vld [vmem:[#allocation3 + $0xf28] sm:$0xff]
    %v2621 = vld [vmem:[#allocation3 + $0xf30] sm:$0xff]
    %v2622 = vld [vmem:[#allocation3 + $0xf38] sm:$0xff]
    %v2623 = vld [vmem:[#allocation3 + $0xf40] sm:$0xff]
    %v2624 = vld [vmem:[#allocation3 + $0xf48] sm:$0xff]
    %v2625 = vld [vmem:[#allocation3 + $0xf50] sm:$0xff]
    %v2626 = vld [vmem:[#allocation3 + $0xf58] sm:$0xff]
    %v2627 = vld [vmem:[#allocation3 + $0xf60] sm:$0xff]
    %v2628 = vld [vmem:[#allocation3 + $0xf68] sm:$0xff]
    %v2629 = vld [vmem:[#allocation3 + $0xf70] sm:$0xff]
    %v2630 = vld [vmem:[#allocation3 + $0xf78] sm:$0xff]
    %v2631 = vld [vmem:[#allocation3 + $0xf80] sm:$0xff]
    %v2632 = vld [vmem:[#allocation3 + $0xf88] sm:$0xff]
    %v2633 = vld [vmem:[#allocation3 + $0xf90] sm:$0xff]
    %v2634 = vld [vmem:[#allocation3 + $0xf98] sm:$0xff]
    %v2635 = vld [vmem:[#allocation3 + $0xfa0] sm:$0xff]
    %v2636 = vld [vmem:[#allocation3 + $0xfa8] sm:$0xff]
    %v2637 = vld [vmem:[#allocation3 + $0xfb0] sm:$0xff]
    %v2638 = vld [vmem:[#allocation3 + $0xfb8] sm:$0xff]
    %v2639 = vld [vmem:[#allocation3 + $0xfc0] sm:$0xff]
    %v2640 = vld [vmem:[#allocation3 + $0xfc8] sm:$0xff]
    %v2641 = vld [vmem:[#allocation3 + $0xfd0] sm:$0xff]
    %v2642 = vld [vmem:[#allocation3 + $0xfd8] sm:$0xff]
    %v2643 = vld [vmem:[#allocation3 + $0xfe0] sm:$0xff]
    %v2644 = vld [vmem:[#allocation3 + $0xfe8] sm:$0xff]
    %v2645 = vld [vmem:[#allocation3 + $0xff0] sm:$0xff]
    %v2646 = vld [vmem:[#allocation3 + $0xff8] sm:$0xff]
    %v2647 = vld [vmem:[#allocation3 + $0x1000] sm:$0xff]
    %v2648 = vld [vmem:[#allocation3 + $0x1008] sm:$0xff]
    %v2649 = vld [vmem:[#allocation3 + $0x1010] sm:$0xff]
    %v2650 = vld [vmem:[#allocation3 + $0x1018] sm:$0xff]
    %v2651 = vld [vmem:[#allocation3 + $0x1020] sm:$0xff]
    %v2652 = vld [vmem:[#allocation3 + $0x1028] sm:$0xff]
    %v2653 = vld [vmem:[#allocation3 + $0x1030] sm:$0xff]
    %v2654 = vld [vmem:[#allocation3 + $0x1038] sm:$0xff]
    %v2655 = vld [vmem:[#allocation3 + $0x1040] sm:$0xff]
    %v2656 = vld [vmem:[#allocation3 + $0x1048] sm:$0xff]
    %v2657 = vld [vmem:[#allocation3 + $0x1050] sm:$0xff]
    %v2658 = vld [vmem:[#allocation3 + $0x1058] sm:$0xff]
    %v2659 = vld [vmem:[#allocation3 + $0x1060] sm:$0xff]
    %v2660 = vld [vmem:[#allocation3 + $0x1068] sm:$0xff]
    %v2661 = vld [vmem:[#allocation3 + $0x1070] sm:$0xff]
    %v2662 = vld [vmem:[#allocation3 + $0x1078] sm:$0xff]
    %v2663 = vld [vmem:[#allocation3 + $0x1080] sm:$0xff]
    %v2664 = vld [vmem:[#allocation3 + $0x1088] sm:$0xff]
    %v2665 = vld [vmem:[#allocation3 + $0x1090] sm:$0xff]
    %v2666 = vld [vmem:[#allocation3 + $0x1098] sm:$0xff]
    %v2667 = vld [vmem:[#allocation3 + $0x10a0] sm:$0xff]
    %v2668 = vld [vmem:[#allocation3 + $0x10a8] sm:$0xff]
    %v2669 = vld [vmem:[#allocation3 + $0x10b0] sm:$0xff]
    %v2670 = vld [vmem:[#allocation3 + $0x10b8] sm:$0xff]
    %v2671 = vld [vmem:[#allocation3 + $0x10c0] sm:$0xff]
    %v2672 = vld [vmem:[#allocation3 + $0x10c8] sm:$0xff]
    %v2673 = vld [vmem:[#allocation3 + $0x10d0] sm:$0xff]
    %v2674 = vld [vmem:[#allocation3 + $0x10d8] sm:$0xff]
    %v2675 = vld [vmem:[#allocation3 + $0x10e0] sm:$0xff]
    %v2676 = vld [vmem:[#allocation3 + $0x10e8] sm:$0xff]
    %v2677 = vld [vmem:[#allocation3 + $0x10f0] sm:$0xff]
    %v2678 = vld [vmem:[#allocation3 + $0x10f8] sm:$0xff]
    %v2679 = vld [vmem:[#allocation3 + $0x1100] sm:$0xff]
    %v2680 = vld [vmem:[#allocation3 + $0x1108] sm:$0xff]
    %v2681 = vld [vmem:[#allocation3 + $0x1110] sm:$0xff]
    %v2682 = vld [vmem:[#allocation3 + $0x1118] sm:$0xff]
    %v2683 = vld [vmem:[#allocation3 + $0x1120] sm:$0xff]
    %v2684 = vld [vmem:[#allocation3 + $0x1128] sm:$0xff]
    %v2685 = vld [vmem:[#allocation3 + $0x1130] sm:$0xff]
    %v2686 = vld [vmem:[#allocation3 + $0x1138] sm:$0xff]
    %v2687 = vld [vmem:[#allocation3 + $0x1140] sm:$0xff]
    %v2688 = vld [vmem:[#allocation3 + $0x1148] sm:$0xff]
    %v2689 = vld [vmem:[#allocation3 + $0x1150] sm:$0xff]
    %v2690 = vld [vmem:[#allocation3 + $0x1158] sm:$0xff]
    %v2691 = vld [vmem:[#allocation3 + $0x1160] sm:$0xff]
    %v2692 = vld [vmem:[#allocation3 + $0x1168] sm:$0xff]
    %v2693 = vld [vmem:[#allocation3 + $0x1170] sm:$0xff]
    %v2694 = vld [vmem:[#allocation3 + $0x1178] sm:$0xff]
    %v2695 = vld [vmem:[#allocation3 + $0x1180] sm:$0xff]
    %v2696 = vld [vmem:[#allocation3 + $0x1188] sm:$0xff]
    %v2697 = vld [vmem:[#allocation3 + $0x1190] sm:$0xff]
    %v2698 = vld [vmem:[#allocation3 + $0x1198] sm:$0xff]
    %v2699 = vld [vmem:[#allocation3 + $0x11a0] sm:$0xff]
    %v2700 = vld [vmem:[#allocation3 + $0x11a8] sm:$0xff]
    %v2701 = vld [vmem:[#allocation3 + $0x11b0] sm:$0xff]
    %v2702 = vld [vmem:[#allocation3 + $0x11b8] sm:$0xff]
    %v2703 = vld [vmem:[#allocation3 + $0x11c0] sm:$0xff]
    %v2704 = vld [vmem:[#allocation3 + $0x11c8] sm:$0xff]
    %v2705 = vld [vmem:[#allocation3 + $0x11d0] sm:$0xff]
    %v2706 = vld [vmem:[#allocation3 + $0x11d8] sm:$0xff]
    %v2707 = vld [vmem:[#allocation3 + $0x11e0] sm:$0xff]
    %v2708 = vld [vmem:[#allocation3 + $0x11e8] sm:$0xff]
    %v2709 = vld [vmem:[#allocation3 + $0x11f0] sm:$0xff]
    %v2710 = vld [vmem:[#allocation3 + $0x11f8] sm:$0xff]
    %v2711 = vld [vmem:[#allocation3 + $0x1200] sm:$0xff]
    %v2712 = vld [vmem:[#allocation3 + $0x1208] sm:$0xff]
    %v2713 = vld [vmem:[#allocation3 + $0x1210] sm:$0xff]
    %v2714 = vld [vmem:[#allocation3 + $0x1218] sm:$0xff]
    %v2715 = vld [vmem:[#allocation3 + $0x1220] sm:$0xff]
    %v2716 = vld [vmem:[#allocation3 + $0x1228] sm:$0xff]
    %v2717 = vld [vmem:[#allocation3 + $0x1230] sm:$0xff]
    %v2718 = vld [vmem:[#allocation3 + $0x1238] sm:$0xff]
    %v2719 = vld [vmem:[#allocation3 + $0x1240] sm:$0xff]
    %v2720 = vld [vmem:[#allocation3 + $0x1248] sm:$0xff]
    %v2721 = vld [vmem:[#allocation3 + $0x1250] sm:$0xff]
    %v2722 = vld [vmem:[#allocation3 + $0x1258] sm:$0xff]
    %v2723 = vld [vmem:[#allocation3 + $0x1260] sm:$0xff]
    %v2724 = vld [vmem:[#allocation3 + $0x1268] sm:$0xff]
    %v2725 = vld [vmem:[#allocation3 + $0x1270] sm:$0xff]
    %v2726 = vld [vmem:[#allocation3 + $0x1278] sm:$0xff]
    %v2727 = vld [vmem:[#allocation3 + $0x1280] sm:$0xff]
    %v2728 = vld [vmem:[#allocation3 + $0x1288] sm:$0xff]
    %v2729 = vld [vmem:[#allocation3 + $0x1290] sm:$0xff]
    %v2730 = vld [vmem:[#allocation3 + $0x1298] sm:$0xff]
    %v2731 = vld [vmem:[#allocation3 + $0x12a0] sm:$0xff]
    %v2732 = vld [vmem:[#allocation3 + $0x12a8] sm:$0xff]
    %v2733 = vld [vmem:[#allocation3 + $0x12b0] sm:$0xff]
    %v2734 = vld [vmem:[#allocation3 + $0x12b8] sm:$0xff]
    %v2735 = vld [vmem:[#allocation3 + $0x12c0] sm:$0xff]
    %v2736 = vld [vmem:[#allocation3 + $0x12c8] sm:$0xff]
    %v2737 = vld [vmem:[#allocation3 + $0x12d0] sm:$0xff]
    %v2738 = vld [vmem:[#allocation3 + $0x12d8] sm:$0xff]
    %v2739 = vld [vmem:[#allocation3 + $0x12e0] sm:$0xff]
    %v2740 = vld [vmem:[#allocation3 + $0x12e8] sm:$0xff]
    %v2741 = vld [vmem:[#allocation3 + $0x12f0] sm:$0xff]
    %v2742 = vld [vmem:[#allocation3 + $0x12f8] sm:$0xff]
    %v2743 = vld [vmem:[#allocation3 + $0x1300] sm:$0xff]
    %v2744 = vld [vmem:[#allocation3 + $0x1308] sm:$0xff]
    %v2745 = vld [vmem:[#allocation3 + $0x1310] sm:$0xff]
    %v2746 = vld [vmem:[#allocation3 + $0x1318] sm:$0xff]
    %v2747 = vld [vmem:[#allocation3 + $0x1320] sm:$0xff]
    %v2748 = vld [vmem:[#allocation3 + $0x1328] sm:$0xff]
    %v2749 = vld [vmem:[#allocation3 + $0x1330] sm:$0xff]
    %v2750 = vld [vmem:[#allocation3 + $0x1338] sm:$0xff]
    %v2751 = vld [vmem:[#allocation3 + $0x1340] sm:$0xff]
    %v2752 = vld [vmem:[#allocation3 + $0x1348] sm:$0xff]
    %v2753 = vld [vmem:[#allocation3 + $0x1350] sm:$0xff]
    %v2754 = vld [vmem:[#allocation3 + $0x1358] sm:$0xff]
    %v2755 = vld [vmem:[#allocation3 + $0x1360] sm:$0xff]
    %v2756 = vld [vmem:[#allocation3 + $0x1368] sm:$0xff]
    %v2757 = vld [vmem:[#allocation3 + $0x1370] sm:$0xff]
    %v2758 = vld [vmem:[#allocation3 + $0x1378] sm:$0xff]
    %v2759 = vld [vmem:[#allocation3 + $0x1380] sm:$0xff]
    %v2760 = vld [vmem:[#allocation3 + $0x1388] sm:$0xff]
    %v2761 = vld [vmem:[#allocation3 + $0x1390] sm:$0xff]
    %v2762 = vld [vmem:[#allocation3 + $0x1398] sm:$0xff]
    %v2763 = vld [vmem:[#allocation3 + $0x13a0] sm:$0xff]
    %v2764 = vld [vmem:[#allocation3 + $0x13a8] sm:$0xff]
    %v2765 = vld [vmem:[#allocation3 + $0x13b0] sm:$0xff]
    %v2766 = vld [vmem:[#allocation3 + $0x13b8] sm:$0xff]
    %v2767 = vld [vmem:[#allocation3 + $0x13c0] sm:$0xff]
    %v2768 = vld [vmem:[#allocation3 + $0x13c8] sm:$0xff]
    %v2769 = vld [vmem:[#allocation3 + $0x13d0] sm:$0xff]
    %v2770 = vld [vmem:[#allocation3 + $0x13d8] sm:$0xff]
    %v2771 = vld [vmem:[#allocation3 + $0x13e0] sm:$0xff]
    %v2772 = vld [vmem:[#allocation3 + $0x13e8] sm:$0xff]
    %v2773 = vld [vmem:[#allocation3 + $0x13f0] sm:$0xff]
    %v2774 = vld [vmem:[#allocation3 + $0x13f8] sm:$0xff]
    %v2775 = vld [vmem:[#allocation3 + $0x1400] sm:$0xff]
    %v2776 = vld [vmem:[#allocation3 + $0x1408] sm:$0xff]
    %v2777 = vld [vmem:[#allocation3 + $0x1410] sm:$0xff]
    %v2778 = vld [vmem:[#allocation3 + $0x1418] sm:$0xff]
    %v2779 = vld [vmem:[#allocation3 + $0x1420] sm:$0xff]
    %v2780 = vld [vmem:[#allocation3 + $0x1428] sm:$0xff]
    %v2781 = vld [vmem:[#allocation3 + $0x1430] sm:$0xff]
    %v2782 = vld [vmem:[#allocation3 + $0x1438] sm:$0xff]
    %v2783 = vld [vmem:[#allocation3 + $0x1440] sm:$0xff]
    %v2784 = vld [vmem:[#allocation3 + $0x1448] sm:$0xff]
    %v2785 = vld [vmem:[#allocation3 + $0x1450] sm:$0xff]
    %v2786 = vld [vmem:[#allocation3 + $0x1458] sm:$0xff]
    %v2787 = vld [vmem:[#allocation3 + $0x1460] sm:$0xff]
    %v2788 = vld [vmem:[#allocation3 + $0x1468] sm:$0xff]
    %v2789 = vld [vmem:[#allocation3 + $0x1470] sm:$0xff]
    %v2790 = vld [vmem:[#allocation3 + $0x1478] sm:$0xff]
    %v2791 = vld [vmem:[#allocation3 + $0x1480] sm:$0xff]
    %v2792 = vld [vmem:[#allocation3 + $0x1488] sm:$0xff]
    %v2793 = vld [vmem:[#allocation3 + $0x1490] sm:$0xff]
    %v2794 = vld [vmem:[#allocation3 + $0x1498] sm:$0xff]
    %v2795 = vld [vmem:[#allocation3 + $0x14a0] sm:$0xff]
    %v2796 = vld [vmem:[#allocation3 + $0x14a8] sm:$0xff]
    %v2797 = vld [vmem:[#allocation3 + $0x14b0] sm:$0xff]
    %v2798 = vld [vmem:[#allocation3 + $0x14b8] sm:$0xff]
    %v2799 = vld [vmem:[#allocation3 + $0x14c0] sm:$0xff]
    %v2800 = vld [vmem:[#allocation3 + $0x14c8] sm:$0xff]
    %v2801 = vld [vmem:[#allocation3 + $0x14d0] sm:$0xff]
    %v2802 = vld [vmem:[#allocation3 + $0x14d8] sm:$0xff]
    %v2803 = vld [vmem:[#allocation3 + $0x14e0] sm:$0xff]
    %v2804 = vld [vmem:[#allocation3 + $0x14e8] sm:$0xff]
    %v2805 = vld [vmem:[#allocation3 + $0x14f0] sm:$0xff]
    %v2806 = vld [vmem:[#allocation3 + $0x14f8] sm:$0xff]
    %v2807 = vld [vmem:[#allocation3 + $0x1500] sm:$0xff]
    %v2808 = vld [vmem:[#allocation3 + $0x1508] sm:$0xff]
    %v2809 = vld [vmem:[#allocation3 + $0x1510] sm:$0xff]
    %v2810 = vld [vmem:[#allocation3 + $0x1518] sm:$0xff]
    %v2811 = vld [vmem:[#allocation3 + $0x1520] sm:$0xff]
    %v2812 = vld [vmem:[#allocation3 + $0x1528] sm:$0xff]
    %v2813 = vld [vmem:[#allocation3 + $0x1530] sm:$0xff]
    %v2814 = vld [vmem:[#allocation3 + $0x1538] sm:$0xff]
    %v2815 = vld [vmem:[#allocation3 + $0x1540] sm:$0xff]
    %v2816 = vld [vmem:[#allocation3 + $0x1548] sm:$0xff]
    %v2817 = vld [vmem:[#allocation3 + $0x1550] sm:$0xff]
    %v2818 = vld [vmem:[#allocation3 + $0x1558] sm:$0xff]
    %v2819 = vld [vmem:[#allocation3 + $0x1560] sm:$0xff]
    %v2820 = vld [vmem:[#allocation3 + $0x1568] sm:$0xff]
    %v2821 = vld [vmem:[#allocation3 + $0x1570] sm:$0xff]
    %v2822 = vld [vmem:[#allocation3 + $0x1578] sm:$0xff]
    %v2823 = vld [vmem:[#allocation3 + $0x1580] sm:$0xff]
    %v2824 = vld [vmem:[#allocation3 + $0x1588] sm:$0xff]
    %v2825 = vld [vmem:[#allocation3 + $0x1590] sm:$0xff]
    %v2826 = vld [vmem:[#allocation3 + $0x1598] sm:$0xff]
    %v2827 = vld [vmem:[#allocation3 + $0x15a0] sm:$0xff]
    %v2828 = vld [vmem:[#allocation3 + $0x15a8] sm:$0xff]
    %v2829 = vld [vmem:[#allocation3 + $0x15b0] sm:$0xff]
    %v2830 = vld [vmem:[#allocation3 + $0x15b8] sm:$0xff]
    %v2831 = vld [vmem:[#allocation3 + $0x15c0] sm:$0xff]
    %v2832 = vld [vmem:[#allocation3 + $0x15c8] sm:$0xff]
    %v2833 = vld [vmem:[#allocation3 + $0x15d0] sm:$0xff]
    %v2834 = vld [vmem:[#allocation3 + $0x15d8] sm:$0xff]
    %v2835 = vld [vmem:[#allocation3 + $0x15e0] sm:$0xff]
    %v2836 = vld [vmem:[#allocation3 + $0x15e8] sm:$0xff]
    %v2837 = vld [vmem:[#allocation3 + $0x15f0] sm:$0xff]
    %v2838 = vld [vmem:[#allocation3 + $0x15f8] sm:$0xff]
    %v2839 = vld [vmem:[#allocation3 + $0x1600] sm:$0xff]
    %v2840 = vld [vmem:[#allocation3 + $0x1608] sm:$0xff]
    %v2841 = vld [vmem:[#allocation3 + $0x1610] sm:$0xff]
    %v2842 = vld [vmem:[#allocation3 + $0x1618] sm:$0xff]
    %v2843 = vld [vmem:[#allocation3 + $0x1620] sm:$0xff]
    %v2844 = vld [vmem:[#allocation3 + $0x1628] sm:$0xff]
    %v2845 = vld [vmem:[#allocation3 + $0x1630] sm:$0xff]
    %v2846 = vld [vmem:[#allocation3 + $0x1638] sm:$0xff]
    %v2847 = vld [vmem:[#allocation3 + $0x1640] sm:$0xff]
    %v2848 = vld [vmem:[#allocation3 + $0x1648] sm:$0xff]
    %v2849 = vld [vmem:[#allocation3 + $0x1650] sm:$0xff]
    %v2850 = vld [vmem:[#allocation3 + $0x1658] sm:$0xff]
    %v2851 = vld [vmem:[#allocation3 + $0x1660] sm:$0xff]
    %v2852 = vld [vmem:[#allocation3 + $0x1668] sm:$0xff]
    %v2853 = vld [vmem:[#allocation3 + $0x1670] sm:$0xff]
    %v2854 = vld [vmem:[#allocation3 + $0x1678] sm:$0xff]
    %v2855 = vld [vmem:[#allocation3 + $0x1680] sm:$0xff]
    %v2856 = vld [vmem:[#allocation3 + $0x1688] sm:$0xff]
    %v2857 = vld [vmem:[#allocation3 + $0x1690] sm:$0xff]
    %v2858 = vld [vmem:[#allocation3 + $0x1698] sm:$0xff]
    %v2859 = vld [vmem:[#allocation3 + $0x16a0] sm:$0xff]
    %v2860 = vld [vmem:[#allocation3 + $0x16a8] sm:$0xff]
    %v2861 = vld [vmem:[#allocation3 + $0x16b0] sm:$0xff]
    %v2862 = vld [vmem:[#allocation3 + $0x16b8] sm:$0xff]
    %v2863 = vld [vmem:[#allocation3 + $0x16c0] sm:$0xff]
    %v2864 = vld [vmem:[#allocation3 + $0x16c8] sm:$0xff]
    %v2865 = vld [vmem:[#allocation3 + $0x16d0] sm:$0xff]
    %v2866 = vld [vmem:[#allocation3 + $0x16d8] sm:$0xff]
    %v2867 = vld [vmem:[#allocation3 + $0x16e0] sm:$0xff]
    %v2868 = vld [vmem:[#allocation3 + $0x16e8] sm:$0xff]
    %v2869 = vld [vmem:[#allocation3 + $0x16f0] sm:$0xff]
    %v2870 = vld [vmem:[#allocation3 + $0x16f8] sm:$0xff]
    %v2871 = vld [vmem:[#allocation3 + $0x1700] sm:$0xff]
    %v2872 = vld [vmem:[#allocation3 + $0x1708] sm:$0xff]
    %v2873 = vld [vmem:[#allocation3 + $0x1710] sm:$0xff]
    %v2874 = vld [vmem:[#allocation3 + $0x1718] sm:$0xff]
    %v2875 = vld [vmem:[#allocation3 + $0x1720] sm:$0xff]
    %v2876 = vld [vmem:[#allocation3 + $0x1728] sm:$0xff]
    %v2877 = vld [vmem:[#allocation3 + $0x1730] sm:$0xff]
    %v2878 = vld [vmem:[#allocation3 + $0x1738] sm:$0xff]
    %v2879 = vld [vmem:[#allocation3 + $0x1740] sm:$0xff]
    %v2880 = vld [vmem:[#allocation3 + $0x1748] sm:$0xff]
    %v2881 = vld [vmem:[#allocation3 + $0x1750] sm:$0xff]
    %v2882 = vld [vmem:[#allocation3 + $0x1758] sm:$0xff]
    %v2883 = vld [vmem:[#allocation3 + $0x1760] sm:$0xff]
    %v2884 = vld [vmem:[#allocation3 + $0x1768] sm:$0xff]
    %v2885 = vld [vmem:[#allocation3 + $0x1770] sm:$0xff]
    %v2886 = vld [vmem:[#allocation3 + $0x1778] sm:$0xff]
    %v2887 = vld [vmem:[#allocation3 + $0x1780] sm:$0xff]
    %v2888 = vld [vmem:[#allocation3 + $0x1788] sm:$0xff]
    %v2889 = vld [vmem:[#allocation3 + $0x1790] sm:$0xff]
    %v2890 = vld [vmem:[#allocation3 + $0x1798] sm:$0xff]
    %v2891 = vld [vmem:[#allocation3 + $0x17a0] sm:$0xff]
    %v2892 = vld [vmem:[#allocation3 + $0x17a8] sm:$0xff]
    %v2893 = vld [vmem:[#allocation3 + $0x17b0] sm:$0xff]
    %v2894 = vld [vmem:[#allocation3 + $0x17b8] sm:$0xff]
    %v2895 = vld [vmem:[#allocation3 + $0x17c0] sm:$0xff]
    %v2896 = vld [vmem:[#allocation3 + $0x17c8] sm:$0xff]
    %v2897 = vld [vmem:[#allocation3 + $0x17d0] sm:$0xff]
    %v2898 = vld [vmem:[#allocation3 + $0x17d8] sm:$0xff]
    %v2899 = vld [vmem:[#allocation3 + $0x17e0] sm:$0xff]
    %v2900 = vld [vmem:[#allocation3 + $0x17e8] sm:$0xff]
    %v2901 = vld [vmem:[#allocation3 + $0x17f0] sm:$0xff]
    %v2902 = vld [vmem:[#allocation3 + $0x17f8] sm:$0xff]
    %v2903 = vld [vmem:[#allocation3 + $0x1800] sm:$0xff]
    %v2904 = vld [vmem:[#allocation3 + $0x1808] sm:$0xff]
    %v2905 = vld [vmem:[#allocation3 + $0x1810] sm:$0xff]
    %v2906 = vld [vmem:[#allocation3 + $0x1818] sm:$0xff]
    %v2907 = vld [vmem:[#allocation3 + $0x1820] sm:$0xff]
    %v2908 = vld [vmem:[#allocation3 + $0x1828] sm:$0xff]
    %v2909 = vld [vmem:[#allocation3 + $0x1830] sm:$0xff]
    %v2910 = vld [vmem:[#allocation3 + $0x1838] sm:$0xff]
    %v2911 = vld [vmem:[#allocation3 + $0x1840] sm:$0xff]
    %v2912 = vld [vmem:[#allocation3 + $0x1848] sm:$0xff]
    %v2913 = vld [vmem:[#allocation3 + $0x1850] sm:$0xff]
    %v2914 = vld [vmem:[#allocation3 + $0x1858] sm:$0xff]
    %v2915 = vld [vmem:[#allocation3 + $0x1860] sm:$0xff]
    %v2916 = vld [vmem:[#allocation3 + $0x1868] sm:$0xff]
    %v2917 = vld [vmem:[#allocation3 + $0x1870] sm:$0xff]
    %v2918 = vld [vmem:[#allocation3 + $0x1878] sm:$0xff]
    %v2919 = vld [vmem:[#allocation3 + $0x1880] sm:$0xff]
    %v2920 = vld [vmem:[#allocation3 + $0x1888] sm:$0xff]
    %v2921 = vld [vmem:[#allocation3 + $0x1890] sm:$0xff]
    %v2922 = vld [vmem:[#allocation3 + $0x1898] sm:$0xff]
    %v2923 = vld [vmem:[#allocation3 + $0x18a0] sm:$0xff]
    %v2924 = vld [vmem:[#allocation3 + $0x18a8] sm:$0xff]
    %v2925 = vld [vmem:[#allocation3 + $0x18b0] sm:$0xff]
    %v2926 = vld [vmem:[#allocation3 + $0x18b8] sm:$0xff]
    %v2927 = vld [vmem:[#allocation3 + $0x18c0] sm:$0xff]
    %v2928 = vld [vmem:[#allocation3 + $0x18c8] sm:$0xff]
    %v2929 = vld [vmem:[#allocation3 + $0x18d0] sm:$0xff]
    %v2930 = vld [vmem:[#allocation3 + $0x18d8] sm:$0xff]
    %v2931 = vld [vmem:[#allocation3 + $0x18e0] sm:$0xff]
    %v2932 = vld [vmem:[#allocation3 + $0x18e8] sm:$0xff]
    %v2933 = vld [vmem:[#allocation3 + $0x18f0] sm:$0xff]
    %v2934 = vld [vmem:[#allocation3 + $0x18f8] sm:$0xff]
    %v2935 = vld [vmem:[#allocation3 + $0x1900] sm:$0xff]
    %v2936 = vld [vmem:[#allocation3 + $0x1908] sm:$0xff]
    %v2937 = vld [vmem:[#allocation3 + $0x1910] sm:$0xff]
    %v2938 = vld [vmem:[#allocation3 + $0x1918] sm:$0xff]
    %v2939 = vld [vmem:[#allocation3 + $0x1920] sm:$0xff]
    %v2940 = vld [vmem:[#allocation3 + $0x1928] sm:$0xff]
    %v2941 = vld [vmem:[#allocation3 + $0x1930] sm:$0xff]
    %v2942 = vld [vmem:[#allocation3 + $0x1938] sm:$0xff]
    %v2943 = vld [vmem:[#allocation3 + $0x1940] sm:$0xff]
    %v2944 = vld [vmem:[#allocation3 + $0x1948] sm:$0xff]
    %v2945 = vld [vmem:[#allocation3 + $0x1950] sm:$0xff]
    %v2946 = vld [vmem:[#allocation3 + $0x1958] sm:$0xff]
    %v2947 = vld [vmem:[#allocation3 + $0x1960] sm:$0xff]
    %v2948 = vld [vmem:[#allocation3 + $0x1968] sm:$0xff]
    %v2949 = vld [vmem:[#allocation3 + $0x1970] sm:$0xff]
    %v2950 = vld [vmem:[#allocation3 + $0x1978] sm:$0xff]
    %v2951 = vld [vmem:[#allocation3 + $0x1980] sm:$0xff]
    %v2952 = vld [vmem:[#allocation3 + $0x1988] sm:$0xff]
    %v2953 = vld [vmem:[#allocation3 + $0x1990] sm:$0xff]
    %v2954 = vld [vmem:[#allocation3 + $0x1998] sm:$0xff]
    %v2955 = vld [vmem:[#allocation3 + $0x19a0] sm:$0xff]
    %v2956 = vld [vmem:[#allocation3 + $0x19a8] sm:$0xff]
    %v2957 = vld [vmem:[#allocation3 + $0x19b0] sm:$0xff]
    %v2958 = vld [vmem:[#allocation3 + $0x19b8] sm:$0xff]
    %v2959 = vld [vmem:[#allocation3 + $0x19c0] sm:$0xff]
    %v2960 = vld [vmem:[#allocation3 + $0x19c8] sm:$0xff]
    %v2961 = vld [vmem:[#allocation3 + $0x19d0] sm:$0xff]
    %v2962 = vld [vmem:[#allocation3 + $0x19d8] sm:$0xff]
    %v2963 = vld [vmem:[#allocation3 + $0x19e0] sm:$0xff]
    %v2964 = vld [vmem:[#allocation3 + $0x19e8] sm:$0xff]
    %v2965 = vld [vmem:[#allocation3 + $0x19f0] sm:$0xff]
    %v2966 = vld [vmem:[#allocation3 + $0x19f8] sm:$0xff]
    %v2967 = vld [vmem:[#allocation3 + $0x1a00] sm:$0xff]
    %v2968 = vld [vmem:[#allocation3 + $0x1a08] sm:$0xff]
    %v2969 = vld [vmem:[#allocation3 + $0x1a10] sm:$0xff]
    %v2970 = vld [vmem:[#allocation3 + $0x1a18] sm:$0xff]
    %v2971 = vld [vmem:[#allocation3 + $0x1a20] sm:$0xff]
    %v2972 = vld [vmem:[#allocation3 + $0x1a28] sm:$0xff]
    %v2973 = vld [vmem:[#allocation3 + $0x1a30] sm:$0xff]
    %v2974 = vld [vmem:[#allocation3 + $0x1a38] sm:$0xff]
    %v2975 = vld [vmem:[#allocation3 + $0x1a40] sm:$0xff]
    %v2976 = vld [vmem:[#allocation3 + $0x1a48] sm:$0xff]
    %v2977 = vld [vmem:[#allocation3 + $0x1a50] sm:$0xff]
    %v2978 = vld [vmem:[#allocation3 + $0x1a58] sm:$0xff]
    %v2979 = vld [vmem:[#allocation3 + $0x1a60] sm:$0xff]
    %v2980 = vld [vmem:[#allocation3 + $0x1a68] sm:$0xff]
    %v2981 = vld [vmem:[#allocation3 + $0x1a70] sm:$0xff]
    %v2982 = vld [vmem:[#allocation3 + $0x1a78] sm:$0xff]
    %v2983 = vld [vmem:[#allocation3 + $0x1a80] sm:$0xff]
    %v2984 = vld [vmem:[#allocation3 + $0x1a88] sm:$0xff]
    %v2985 = vld [vmem:[#allocation3 + $0x1a90] sm:$0xff]
    %v2986 = vld [vmem:[#allocation3 + $0x1a98] sm:$0xff]
    %v2987 = vld [vmem:[#allocation3 + $0x1aa0] sm:$0xff]
    %v2988 = vld [vmem:[#allocation3 + $0x1aa8] sm:$0xff]
    %v2989 = vld [vmem:[#allocation3 + $0x1ab0] sm:$0xff]
    %v2990 = vld [vmem:[#allocation3 + $0x1ab8] sm:$0xff]
    %v2991 = vld [vmem:[#allocation3 + $0x1ac0] sm:$0xff]
    %v2992 = vld [vmem:[#allocation3 + $0x1ac8] sm:$0xff]
    %v2993 = vld [vmem:[#allocation3 + $0x1ad0] sm:$0xff]
    %v2994 = vld [vmem:[#allocation3 + $0x1ad8] sm:$0xff]
    %v2995 = vld [vmem:[#allocation3 + $0x1ae0] sm:$0xff]
    %v2996 = vld [vmem:[#allocation3 + $0x1ae8] sm:$0xff]
    %v2997 = vld [vmem:[#allocation3 + $0x1af0] sm:$0xff]
    %v2998 = vld [vmem:[#allocation3 + $0x1af8] sm:$0xff]
    %v2999 = vld [vmem:[#allocation3 + $0x1b00] sm:$0xff]
    %v3000 = vld [vmem:[#allocation3 + $0x1b08] sm:$0xff]
    %v3001 = vld [vmem:[#allocation3 + $0x1b10] sm:$0xff]
    %v3002 = vld [vmem:[#allocation3 + $0x1b18] sm:$0xff]
    %v3003 = vld [vmem:[#allocation3 + $0x1b20] sm:$0xff]
    %v3004 = vld [vmem:[#allocation3 + $0x1b28] sm:$0xff]
    %v3005 = vld [vmem:[#allocation3 + $0x1b30] sm:$0xff]
    %v3006 = vld [vmem:[#allocation3 + $0x1b38] sm:$0xff]
    %v3007 = vld [vmem:[#allocation3 + $0x1b40] sm:$0xff]
    %v3008 = vld [vmem:[#allocation3 + $0x1b48] sm:$0xff]
    %v3009 = vld [vmem:[#allocation3 + $0x1b50] sm:$0xff]
    %v3010 = vld [vmem:[#allocation3 + $0x1b58] sm:$0xff]
    %v3011 = vld [vmem:[#allocation3 + $0x1b60] sm:$0xff]
    %v3012 = vld [vmem:[#allocation3 + $0x1b68] sm:$0xff]
    %v3013 = vld [vmem:[#allocation3 + $0x1b70] sm:$0xff]
    %v3014 = vld [vmem:[#allocation3 + $0x1b78] sm:$0xff]
    %v3015 = vld [vmem:[#allocation3 + $0x1b80] sm:$0xff]
    %v3016 = vld [vmem:[#allocation3 + $0x1b88] sm:$0xff]
    %v3017 = vld [vmem:[#allocation3 + $0x1b90] sm:$0xff]
    %v3018 = vld [vmem:[#allocation3 + $0x1b98] sm:$0xff]
    %v3019 = vld [vmem:[#allocation3 + $0x1ba0] sm:$0xff]
    %v3020 = vld [vmem:[#allocation3 + $0x1ba8] sm:$0xff]
    %v3021 = vld [vmem:[#allocation3 + $0x1bb0] sm:$0xff]
    %v3022 = vld [vmem:[#allocation3 + $0x1bb8] sm:$0xff]
    %v3023 = vld [vmem:[#allocation3 + $0x1bc0] sm:$0xff]
    %v3024 = vld [vmem:[#allocation3 + $0x1bc8] sm:$0xff]
    %v3025 = vld [vmem:[#allocation3 + $0x1bd0] sm:$0xff]
    %v3026 = vld [vmem:[#allocation3 + $0x1bd8] sm:$0xff]
    %v3027 = vld [vmem:[#allocation3 + $0x1be0] sm:$0xff]
    %v3028 = vld [vmem:[#allocation3 + $0x1be8] sm:$0xff]
    %v3029 = vld [vmem:[#allocation3 + $0x1bf0] sm:$0xff]
    %v3030 = vld [vmem:[#allocation3 + $0x1bf8] sm:$0xff]
    %v3031 = vld [vmem:[#allocation3 + $0x1c00] sm:$0xff]
    %v3032 = vld [vmem:[#allocation3 + $0x1c08] sm:$0xff]
    %v3033 = vld [vmem:[#allocation3 + $0x1c10] sm:$0xff]
    %v3034 = vld [vmem:[#allocation3 + $0x1c18] sm:$0xff]
    %v3035 = vld [vmem:[#allocation3 + $0x1c20] sm:$0xff]
    %v3036 = vld [vmem:[#allocation3 + $0x1c28] sm:$0xff]
    %v3037 = vld [vmem:[#allocation3 + $0x1c30] sm:$0xff]
    %v3038 = vld [vmem:[#allocation3 + $0x1c38] sm:$0xff]
    %v3039 = vld [vmem:[#allocation3 + $0x1c40] sm:$0xff]
    %v3040 = vld [vmem:[#allocation3 + $0x1c48] sm:$0xff]
    %v3041 = vld [vmem:[#allocation3 + $0x1c50] sm:$0xff]
    %v3042 = vld [vmem:[#allocation3 + $0x1c58] sm:$0xff]
    %v3043 = vld [vmem:[#allocation3 + $0x1c60] sm:$0xff]
    %v3044 = vld [vmem:[#allocation3 + $0x1c68] sm:$0xff]
    %v3045 = vld [vmem:[#allocation3 + $0x1c70] sm:$0xff]
    %v3046 = vld [vmem:[#allocation3 + $0x1c78] sm:$0xff]
    %v3047 = vld [vmem:[#allocation3 + $0x1c80] sm:$0xff]
    %v3048 = vld [vmem:[#allocation3 + $0x1c88] sm:$0xff]
    %v3049 = vld [vmem:[#allocation3 + $0x1c90] sm:$0xff]
    %v3050 = vld [vmem:[#allocation3 + $0x1c98] sm:$0xff]
    %v3051 = vld [vmem:[#allocation3 + $0x1ca0] sm:$0xff]
    %v3052 = vld [vmem:[#allocation3 + $0x1ca8] sm:$0xff]
    %v3053 = vld [vmem:[#allocation3 + $0x1cb0] sm:$0xff]
    %v3054 = vld [vmem:[#allocation3 + $0x1cb8] sm:$0xff]
    %v3055 = vld [vmem:[#allocation3 + $0x1cc0] sm:$0xff]
    %v3056 = vld [vmem:[#allocation3 + $0x1cc8] sm:$0xff]
    %v3057 = vld [vmem:[#allocation3 + $0x1cd0] sm:$0xff]
    %v3058 = vld [vmem:[#allocation3 + $0x1cd8] sm:$0xff]
    %v3059 = vld [vmem:[#allocation3 + $0x1ce0] sm:$0xff]
    %v3060 = vld [vmem:[#allocation3 + $0x1ce8] sm:$0xff]
    %v3061 = vld [vmem:[#allocation3 + $0x1cf0] sm:$0xff]
    %v3062 = vld [vmem:[#allocation3 + $0x1cf8] sm:$0xff]
    %v3063 = vld [vmem:[#allocation3 + $0x1d00] sm:$0xff]
    %v3064 = vld [vmem:[#allocation3 + $0x1d08] sm:$0xff]
    %v3065 = vld [vmem:[#allocation3 + $0x1d10] sm:$0xff]
    %v3066 = vld [vmem:[#allocation3 + $0x1d18] sm:$0xff]
    %v3067 = vld [vmem:[#allocation3 + $0x1d20] sm:$0xff]
    %v3068 = vld [vmem:[#allocation3 + $0x1d28] sm:$0xff]
    %v3069 = vld [vmem:[#allocation3 + $0x1d30] sm:$0xff]
    %v3070 = vld [vmem:[#allocation3 + $0x1d38] sm:$0xff]
    %v3071 = vld [vmem:[#allocation3 + $0x1d40] sm:$0xff]
    %v3072 = vld [vmem:[#allocation3 + $0x1d48] sm:$0xff]
    %v3073 = vld [vmem:[#allocation3 + $0x1d50] sm:$0xff]
    %v3074 = vld [vmem:[#allocation3 + $0x1d58] sm:$0xff]
    %v3075 = vld [vmem:[#allocation3 + $0x1d60] sm:$0xff]
    %v3076 = vld [vmem:[#allocation3 + $0x1d68] sm:$0xff]
    %v3077 = vld [vmem:[#allocation3 + $0x1d70] sm:$0xff]
    %v3078 = vld [vmem:[#allocation3 + $0x1d78] sm:$0xff]
    %v3079 = vld [vmem:[#allocation3 + $0x1d80] sm:$0xff]
    %v3080 = vld [vmem:[#allocation3 + $0x1d88] sm:$0xff]
    %v3081 = vld [vmem:[#allocation3 + $0x1d90] sm:$0xff]
    %v3082 = vld [vmem:[#allocation3 + $0x1d98] sm:$0xff]
    %v3083 = vld [vmem:[#allocation3 + $0x1da0] sm:$0xff]
    %v3084 = vld [vmem:[#allocation3 + $0x1da8] sm:$0xff]
    %v3085 = vld [vmem:[#allocation3 + $0x1db0] sm:$0xff]
    %v3086 = vld [vmem:[#allocation3 + $0x1db8] sm:$0xff]
    %v3087 = vld [vmem:[#allocation3 + $0x1dc0] sm:$0xff]
    %v3088 = vld [vmem:[#allocation3 + $0x1dc8] sm:$0xff]
    %v3089 = vld [vmem:[#allocation3 + $0x1dd0] sm:$0xff]
    %v3090 = vld [vmem:[#allocation3 + $0x1dd8] sm:$0xff]
    %v3091 = vld [vmem:[#allocation3 + $0x1de0] sm:$0xff]
    %v3092 = vld [vmem:[#allocation3 + $0x1de8] sm:$0xff]
    %v3093 = vld [vmem:[#allocation3 + $0x1df0] sm:$0xff]
    %v3094 = vld [vmem:[#allocation3 + $0x1df8] sm:$0xff]
    %v3095 = vld [vmem:[#allocation3 + $0x1e00] sm:$0xff]
    %v3096 = vld [vmem:[#allocation3 + $0x1e08] sm:$0xff]
    %v3097 = vld [vmem:[#allocation3 + $0x1e10] sm:$0xff]
    %v3098 = vld [vmem:[#allocation3 + $0x1e18] sm:$0xff]
    %v3099 = vld [vmem:[#allocation3 + $0x1e20] sm:$0xff]
    %v3100 = vld [vmem:[#allocation3 + $0x1e28] sm:$0xff]
    %v3101 = vld [vmem:[#allocation3 + $0x1e30] sm:$0xff]
    %v3102 = vld [vmem:[#allocation3 + $0x1e38] sm:$0xff]
    %v3103 = vld [vmem:[#allocation3 + $0x1e40] sm:$0xff]
    %v3104 = vld [vmem:[#allocation3 + $0x1e48] sm:$0xff]
    %v3105 = vld [vmem:[#allocation3 + $0x1e50] sm:$0xff]
    %v3106 = vld [vmem:[#allocation3 + $0x1e58] sm:$0xff]
    %v3107 = vld [vmem:[#allocation3 + $0x1e60] sm:$0xff]
    %v3108 = vld [vmem:[#allocation3 + $0x1e68] sm:$0xff]
    %v3109 = vld [vmem:[#allocation3 + $0x1e70] sm:$0xff]
    %v3110 = vld [vmem:[#allocation3 + $0x1e78] sm:$0xff]
    %v3111 = vld [vmem:[#allocation3 + $0x1e80] sm:$0xff]
    %v3112 = vld [vmem:[#allocation3 + $0x1e88] sm:$0xff]
    %v3113 = vld [vmem:[#allocation3 + $0x1e90] sm:$0xff]
    %v3114 = vld [vmem:[#allocation3 + $0x1e98] sm:$0xff]
    %v3115 = vld [vmem:[#allocation3 + $0x1ea0] sm:$0xff]
    %v3116 = vld [vmem:[#allocation3 + $0x1ea8] sm:$0xff]
    %v3117 = vld [vmem:[#allocation3 + $0x1eb0] sm:$0xff]
    %v3118 = vld [vmem:[#allocation3 + $0x1eb8] sm:$0xff]
    %v3119 = vld [vmem:[#allocation3 + $0x1ec0] sm:$0xff]
    %v3120 = vld [vmem:[#allocation3 + $0x1ec8] sm:$0xff]
    %v3121 = vld [vmem:[#allocation3 + $0x1ed0] sm:$0xff]
    %v3122 = vld [vmem:[#allocation3 + $0x1ed8] sm:$0xff]
    %v3123 = vld [vmem:[#allocation3 + $0x1ee0] sm:$0xff]
    %v3124 = vld [vmem:[#allocation3 + $0x1ee8] sm:$0xff]
    %v3125 = vld [vmem:[#allocation3 + $0x1ef0] sm:$0xff]
    %v3126 = vld [vmem:[#allocation3 + $0x1ef8] sm:$0xff]
    %v3127 = vld [vmem:[#allocation3 + $0x1f00] sm:$0xff]
    %v3128 = vld [vmem:[#allocation3 + $0x1f08] sm:$0xff]
    %v3129 = vld [vmem:[#allocation3 + $0x1f10] sm:$0xff]
    %v3130 = vld [vmem:[#allocation3 + $0x1f18] sm:$0xff]
    %v3131 = vld [vmem:[#allocation3 + $0x1f20] sm:$0xff]
    %v3132 = vld [vmem:[#allocation3 + $0x1f28] sm:$0xff]
    %v3133 = vld [vmem:[#allocation3 + $0x1f30] sm:$0xff]
    %v3134 = vld [vmem:[#allocation3 + $0x1f38] sm:$0xff]
    %v3135 = vld [vmem:[#allocation3 + $0x1f40] sm:$0xff]
    %v3136 = vld [vmem:[#allocation3 + $0x1f48] sm:$0xff]
    %v3137 = vld [vmem:[#allocation3 + $0x1f50] sm:$0xff]
    %v3138 = vld [vmem:[#allocation3 + $0x1f58] sm:$0xff]
    %v3139 = vld [vmem:[#allocation3 + $0x1f60] sm:$0xff]
    %v3140 = vld [vmem:[#allocation3 + $0x1f68] sm:$0xff]
    %v3141 = vld [vmem:[#allocation3 + $0x1f70] sm:$0xff]
    %v3142 = vld [vmem:[#allocation3 + $0x1f78] sm:$0xff]
    %v3143 = vld [vmem:[#allocation3 + $0x1f80] sm:$0xff]
    %v3144 = vld [vmem:[#allocation3 + $0x1f88] sm:$0xff]
    %v3145 = vld [vmem:[#allocation3 + $0x1f90] sm:$0xff]
    %v3146 = vld [vmem:[#allocation3 + $0x1f98] sm:$0xff]
    %v3147 = vld [vmem:[#allocation3 + $0x1fa0] sm:$0xff]
    %v3148 = vld [vmem:[#allocation3 + $0x1fa8] sm:$0xff]
    %v3149 = vld [vmem:[#allocation3 + $0x1fb0] sm:$0xff]
    %v3150 = vld [vmem:[#allocation3 + $0x1fb8] sm:$0xff]
    %v3151 = vld [vmem:[#allocation3 + $0x1fc0] sm:$0xff]
    %v3152 = vld [vmem:[#allocation3 + $0x1fc8] sm:$0xff]
    %v3153 = vld [vmem:[#allocation3 + $0x1fd0] sm:$0xff]
    %v3154 = vld [vmem:[#allocation3 + $0x1fd8] sm:$0xff]
    %v3155 = vld [vmem:[#allocation3 + $0x1fe0] sm:$0xff]
    %v3156 = vld [vmem:[#allocation3 + $0x1fe8] sm:$0xff]
    %v3157 = vld [vmem:[#allocation3 + $0x1ff0] sm:$0xff]
    %v3158 = vld [vmem:[#allocation3 + $0x1ff8] sm:$0xff]
    %v3159 = vld [vmem:[#allocation10] sm:$0xff]
    %v3160 = vpack.c.bf16 %v2115, %v2115
    %v3161 = vpack.c.bf16 %v2116, %v2116
    %v3162 = vpack.c.bf16 %v2117, %v2117
    %v3163 = vpack.c.bf16 %v2118, %v2118
    %v3164 = vpack.c.bf16 %v2119, %v2119
    %v3165 = vpack.c.bf16 %v2120, %v2120
    %v3166 = vpack.c.bf16 %v2121, %v2121
    %v3167 = vpack.c.bf16 %v2122, %v2122
    %v3168 = vpack.c.bf16 %v2123, %v2123
    %v3169 = vpack.c.bf16 %v2124, %v2124
    %v3170 = vpack.c.bf16 %v2125, %v2125
    %v3171 = vpack.c.bf16 %v2126, %v2126
    %v3172 = vpack.c.bf16 %v2127, %v2127
    %v3173 = vpack.c.bf16 %v2128, %v2128
    %v3174 = vpack.c.bf16 %v2129, %v2129
    %v3175 = vpack.c.bf16 %v2130, %v2130
    %v3177 = vlaneseq
    %v3178 = vshrl.u32 %v3177, 7
    %v3179 = vsub.s32 0, %v3178
    %v3180 = vrot.slane %v3159, %v3179
    %v3181 = vlaneseq
    %v3182 = vshrl.u32 %v3181, 7
    %v3183 = vsub.s32 1, %v3182
    %v3184 = vrot.slane %v3159, %v3183
    %v3185 = vlaneseq
    %v3186 = vshrl.u32 %v3185, 7
    %v3187 = vsub.s32 2, %v3186
    %v3188 = vrot.slane %v3159, %v3187
    %v3189 = vlaneseq
    %v3190 = vshrl.u32 %v3189, 7
    %v3191 = vsub.s32 3, %v3190
    %v3192 = vrot.slane %v3159, %v3191
    %v3193 = vlaneseq
    %v3194 = vshrl.u32 %v3193, 7
    %v3195 = vsub.s32 4, %v3194
    %v3196 = vrot.slane %v3159, %v3195
    %v3197 = vlaneseq
    %v3198 = vshrl.u32 %v3197, 7
    %v3199 = vsub.s32 5, %v3198
    %v3200 = vrot.slane %v3159, %v3199
    %v3201 = vlaneseq
    %v3202 = vshrl.u32 %v3201, 7
    %v3203 = vsub.s32 6, %v3202
    %v3204 = vrot.slane %v3159, %v3203
    %v3205 = vlaneseq
    %v3206 = vshrl.u32 %v3205, 7
    %v3207 = vsub.s32 7, %v3206
    %v3208 = vrot.slane %v3159, %v3207
    %3217 = vmatprep.subr.bf16.mxu0 %v2136
    %3218 = vmatpush1.bf16.msra.mxu0 %v2135
    %3219 = vmatprep.subr.bf16.mxu0 %v2144
    %3220 = vmatpush1.bf16.msra.mxu0 %v2143
    %3221 = vmatprep.subr.bf16.mxu0 %v2152
    %3222 = vmatpush1.bf16.msra.mxu0 %v2151
    %3223 = vmatprep.subr.bf16.mxu0 %v2160
    %3224 = vmatpush1.bf16.msra.mxu0 %v2159
    %3225 = vmatprep.subr.bf16.mxu0 %v2168
    %3226 = vmatpush1.bf16.msra.mxu0 %v2167
    %3227 = vmatprep.subr.bf16.mxu0 %v2176
    %3228 = vmatpush1.bf16.msra.mxu0 %v2175
    %3229 = vmatprep.subr.bf16.mxu0 %v2184
    %3230 = vmatpush1.bf16.msra.mxu0 %v2183
    %3231 = vmatprep.subr.bf16.mxu0 %v2192
    %3232 = vmatpush1.bf16.msra.mxu0 %v2191
    %3233 = vmatprep.subr.bf16.mxu0 %v2200
    %3234 = vmatpush1.bf16.msra.mxu0 %v2199
    %3235 = vmatprep.subr.bf16.mxu0 %v2208
    %3236 = vmatpush1.bf16.msra.mxu0 %v2207
    %3237 = vmatprep.subr.bf16.mxu0 %v2216
    %3238 = vmatpush1.bf16.msra.mxu0 %v2215
    %3239 = vmatprep.subr.bf16.mxu0 %v2224
    %3240 = vmatpush1.bf16.msra.mxu0 %v2223
    %3241 = vmatprep.subr.bf16.mxu0 %v2232
    %3242 = vmatpush1.bf16.msra.mxu0 %v2231
    %3243 = vmatprep.subr.bf16.mxu0 %v2240
    %3244 = vmatpush1.bf16.msra.mxu0 %v2239
    %3245 = vmatprep.subr.bf16.mxu0 %v2248
    %3246 = vmatpush1.bf16.msra.mxu0 %v2247
    %3247 = vmatprep.subr.bf16.mxu0 %v2256
    %3248 = vmatpush1.bf16.msra.mxu0 %v2255
    %3249 = vmatprep.mubr.bf16.mxu0 %v3161
    %3250 = vmatmul.mubr.bf16.gmra.mrb[0].mxu0 %v3160
    %v3251 = vpop.f32.mrb[0].mxu0
    %v3252 = vadd.f32 %v3180, %v3251
    %v3253 = vpop.f32.mrb[0].mxu0
    %v3254 = vadd.f32 %v3184, %v3253
    %v3255 = vpop.f32.mrb[0].mxu0
    %v3256 = vpop.f32.mrb[0].mxu0
    %3257 = vdwg.mxu0
    %3258 = vmatprep.subr.bf16.mxu0 %v2264
    %3259 = vmatpush1.bf16.msra.mxu0 %v2263
    %3260 = vmatprep.subr.bf16.mxu0 %v2272
    %3261 = vmatpush1.bf16.msra.mxu0 %v2271
    %3262 = vmatprep.subr.bf16.mxu0 %v2280
    %3263 = vmatpush1.bf16.msra.mxu0 %v2279
    %3264 = vmatprep.subr.bf16.mxu0 %v2288
    %3265 = vmatpush1.bf16.msra.mxu0 %v2287
    %3266 = vmatprep.subr.bf16.mxu0 %v2296
    %3267 = vmatpush1.bf16.msra.mxu0 %v2295
    %3268 = vmatprep.subr.bf16.mxu0 %v2304
    %3269 = vmatpush1.bf16.msra.mxu0 %v2303
    %3270 = vmatprep.subr.bf16.mxu0 %v2312
    %3271 = vmatpush1.bf16.msra.mxu0 %v2311
    %3272 = vmatprep.subr.bf16.mxu0 %v2320
    %3273 = vmatpush1.bf16.msra.mxu0 %v2319
    %3274 = vmatprep.subr.bf16.mxu0 %v2328
    %3275 = vmatpush1.bf16.msra.mxu0 %v2327
    %3276 = vmatprep.subr.bf16.mxu0 %v2336
    %3277 = vmatpush1.bf16.msra.mxu0 %v2335
    %3278 = vmatprep.subr.bf16.mxu0 %v2344
    %3279 = vmatpush1.bf16.msra.mxu0 %v2343
    %3280 = vmatprep.subr.bf16.mxu0 %v2352
    %3281 = vmatpush1.bf16.msra.mxu0 %v2351
    %3282 = vmatprep.subr.bf16.mxu0 %v2360
    %3283 = vmatpush1.bf16.msra.mxu0 %v2359
    %3284 = vmatprep.subr.bf16.mxu0 %v2368
    %3285 = vmatpush1.bf16.msra.mxu0 %v2367
    %3286 = vmatprep.subr.bf16.mxu0 %v2376
    %3287 = vmatpush1.bf16.msra.mxu0 %v2375
    %3288 = vmatprep.subr.bf16.mxu0 %v2384
    %3289 = vmatpush1.bf16.msra.mxu0 %v2383
    %3290 = vmatprep.mubr.bf16.mxu0 %v3163
    %3291 = vmatmul.mubr.bf16.gmra.mrb[0].mxu0 %v3162
    %v3292 = vpop.f32.mrb[0].mxu0
    %v3293 = vadd.f32 %v3252, %v3292
    %v3294 = vpop.f32.mrb[0].mxu0
    %v3295 = vadd.f32 %v3254, %v3294
    %v3296 = vpop.f32.mrb[0].mxu0
    %v3297 = vpop.f32.mrb[0].mxu0
    %3298 = vdwg.mxu0
    %3299 = vmatprep.subr.bf16.mxu0 %v2392
    %3300 = vmatpush1.bf16.msra.mxu0 %v2391
    %3301 = vmatprep.subr.bf16.mxu0 %v2400
    %3302 = vmatpush1.bf16.msra.mxu0 %v2399
    %3303 = vmatprep.subr.bf16.mxu0 %v2408
    %3304 = vmatpush1.bf16.msra.mxu0 %v2407
    %3305 = vmatprep.subr.bf16.mxu0 %v2416
    %3306 = vmatpush1.bf16.msra.mxu0 %v2415
    %3307 = vmatprep.subr.bf16.mxu0 %v2424
    %3308 = vmatpush1.bf16.msra.mxu0 %v2423
    %3309 = vmatprep.subr.bf16.mxu0 %v2432
    %3310 = vmatpush1.bf16.msra.mxu0 %v2431
    %3311 = vmatprep.subr.bf16.mxu0 %v2440
    %3312 = vmatpush1.bf16.msra.mxu0 %v2439
    %3313 = vmatprep.subr.bf16.mxu0 %v2448
    %3314 = vmatpush1.bf16.msra.mxu0 %v2447
    %3315 = vmatprep.subr.bf16.mxu0 %v2456
    %3316 = vmatpush1.bf16.msra.mxu0 %v2455
    %3317 = vmatprep.subr.bf16.mxu0 %v2464
    %3318 = vmatpush1.bf16.msra.mxu0 %v2463
    %3319 = vmatprep.subr.bf16.mxu0 %v2472
    %3320 = vmatpush1.bf16.msra.mxu0 %v2471
    %3321 = vmatprep.subr.bf16.mxu0 %v2480
    %3322 = vmatpush1.bf16.msra.mxu0 %v2479
    %3323 = vmatprep.subr.bf16.mxu0 %v2488
    %3324 = vmatpush1.bf16.msra.mxu0 %v2487
    %3325 = vmatprep.subr.bf16.mxu0 %v2496
    %3326 = vmatpush1.bf16.msra.mxu0 %v2495
    %3327 = vmatprep.subr.bf16.mxu0 %v2504
    %3328 = vmatpush1.bf16.msra.mxu0 %v2503
    %3329 = vmatprep.subr.bf16.mxu0 %v2512
    %3330 = vmatpush1.bf16.msra.mxu0 %v2511
    %3331 = vmatprep.mubr.bf16.mxu0 %v3165
    %3332 = vmatmul.mubr.bf16.gmra.mrb[0].mxu0 %v3164
    %v3333 = vpop.f32.mrb[0].mxu0
    %v3334 = vadd.f32 %v3293, %v3333
    %v3335 = vpop.f32.mrb[0].mxu0
    %v3336 = vadd.f32 %v3295, %v3335
    %v3337 = vpop.f32.mrb[0].mxu0
    %v3338 = vpop.f32.mrb[0].mxu0
    %3339 = vdwg.mxu0
    %3340 = vmatprep.subr.bf16.mxu0 %v2520
    %3341 = vmatpush1.bf16.msra.mxu0 %v2519
    %3342 = vmatprep.subr.bf16.mxu0 %v2528
    %3343 = vmatpush1.bf16.msra.mxu0 %v2527
    %3344 = vmatprep.subr.bf16.mxu0 %v2536
    %3345 = vmatpush1.bf16.msra.mxu0 %v2535
    %3346 = vmatprep.subr.bf16.mxu0 %v2544
    %3347 = vmatpush1.bf16.msra.mxu0 %v2543
    %3348 = vmatprep.subr.bf16.mxu0 %v2552
    %3349 = vmatpush1.bf16.msra.mxu0 %v2551
    %3350 = vmatprep.subr.bf16.mxu0 %v2560
    %3351 = vmatpush1.bf16.msra.mxu0 %v2559
    %3352 = vmatprep.subr.bf16.mxu0 %v2568
    %3353 = vmatpush1.bf16.msra.mxu0 %v2567
    %3354 = vmatprep.subr.bf16.mxu0 %v2576
    %3355 = vmatpush1.bf16.msra.mxu0 %v2575
    %3356 = vmatprep.subr.bf16.mxu0 %v2584
    %3357 = vmatpush1.bf16.msra.mxu0 %v2583
    %3358 = vmatprep.subr.bf16.mxu0 %v2592
    %3359 = vmatpush1.bf16.msra.mxu0 %v2591
    %3360 = vmatprep.subr.bf16.mxu0 %v2600
    %3361 = vmatpush1.bf16.msra.mxu0 %v2599
    %3362 = vmatprep.subr.bf16.mxu0 %v2608
    %3363 = vmatpush1.bf16.msra.mxu0 %v2607
    %3364 = vmatprep.subr.bf16.mxu0 %v2616
    %3365 = vmatpush1.bf16.msra.mxu0 %v2615
    %3366 = vmatprep.subr.bf16.mxu0 %v2624
    %3367 = vmatpush1.bf16.msra.mxu0 %v2623
    %3368 = vmatprep.subr.bf16.mxu0 %v2632
    %3369 = vmatpush1.bf16.msra.mxu0 %v2631
    %3370 = vmatprep.subr.bf16.mxu0 %v2640
    %3371 = vmatpush1.bf16.msra.mxu0 %v2639
    %3372 = vmatprep.mubr.bf16.mxu0 %v3167
    %3373 = vmatmul.mubr.bf16.gmra.mrb[0].mxu0 %v3166
    %v3374 = vpop.f32.mrb[0].mxu0
    %v3375 = vadd.f32 %v3334, %v3374
    %v3376 = vpop.f32.mrb[0].mxu0
    %v3377 = vadd.f32 %v3336, %v3376
    %v3378 = vpop.f32.mrb[0].mxu0
    %v3379 = vpop.f32.mrb[0].mxu0
    %3380 = vdwg.mxu0
    %3381 = vmatprep.subr.bf16.mxu0 %v2648
    %3382 = vmatpush1.bf16.msra.mxu0 %v2647
    %3383 = vmatprep.subr.bf16.mxu0 %v2656
    %3384 = vmatpush1.bf16.msra.mxu0 %v2655
    %3385 = vmatprep.subr.bf16.mxu0 %v2664
    %3386 = vmatpush1.bf16.msra.mxu0 %v2663
    %3387 = vmatprep.subr.bf16.mxu0 %v2672
    %3388 = vmatpush1.bf16.msra.mxu0 %v2671
    %3389 = vmatprep.subr.bf16.mxu0 %v2680
    %3390 = vmatpush1.bf16.msra.mxu0 %v2679
    %3391 = vmatprep.subr.bf16.mxu0 %v2688
    %3392 = vmatpush1.bf16.msra.mxu0 %v2687
    %3393 = vmatprep.subr.bf16.mxu0 %v2696
    %3394 = vmatpush1.bf16.msra.mxu0 %v2695
    %3395 = vmatprep.subr.bf16.mxu0 %v2704
    %3396 = vmatpush1.bf16.msra.mxu0 %v2703
    %3397 = vmatprep.subr.bf16.mxu0 %v2712
    %3398 = vmatpush1.bf16.msra.mxu0 %v2711
    %3399 = vmatprep.subr.bf16.mxu0 %v2720
    %3400 = vmatpush1.bf16.msra.mxu0 %v2719
    %3401 = vmatprep.subr.bf16.mxu0 %v2728
    %3402 = vmatpush1.bf16.msra.mxu0 %v2727
    %3403 = vmatprep.subr.bf16.mxu0 %v2736
    %3404 = vmatpush1.bf16.msra.mxu0 %v2735
    %3405 = vmatprep.subr.bf16.mxu0 %v2744
    %3406 = vmatpush1.bf16.msra.mxu0 %v2743
    %3407 = vmatprep.subr.bf16.mxu0 %v2752
    %3408 = vmatpush1.bf16.msra.mxu0 %v2751
    %3409 = vmatprep.subr.bf16.mxu0 %v2760
    %3410 = vmatpush1.bf16.msra.mxu0 %v2759
    %3411 = vmatprep.subr.bf16.mxu0 %v2768
    %3412 = vmatpush1.bf16.msra.mxu0 %v2767
    %3413 = vmatprep.mubr.bf16.mxu0 %v3169
    %3414 = vmatmul.mubr.bf16.gmra.mrb[0].mxu0 %v3168
    %v3415 = vpop.f32.mrb[0].mxu0
    %v3416 = vadd.f32 %v3375, %v3415
    %v3417 = vpop.f32.mrb[0].mxu0
    %v3418 = vadd.f32 %v3377, %v3417
    %v3419 = vpop.f32.mrb[0].mxu0
    %v3420 = vpop.f32.mrb[0].mxu0
    %3421 = vdwg.mxu0
    %3422 = vmatprep.subr.bf16.mxu0 %v2776
    %3423 = vmatpush1.bf16.msra.mxu0 %v2775
    %3424 = vmatprep.subr.bf16.mxu0 %v2784
    %3425 = vmatpush1.bf16.msra.mxu0 %v2783
    %3426 = vmatprep.subr.bf16.mxu0 %v2792
    %3427 = vmatpush1.bf16.msra.mxu0 %v2791
    %3428 = vmatprep.subr.bf16.mxu0 %v2800
    %3429 = vmatpush1.bf16.msra.mxu0 %v2799
    %3430 = vmatprep.subr.bf16.mxu0 %v2808
    %3431 = vmatpush1.bf16.msra.mxu0 %v2807
    %3432 = vmatprep.subr.bf16.mxu0 %v2816
    %3433 = vmatpush1.bf16.msra.mxu0 %v2815
    %3434 = vmatprep.subr.bf16.mxu0 %v2824
    %3435 = vmatpush1.bf16.msra.mxu0 %v2823
    %3436 = vmatprep.subr.bf16.mxu0 %v2832
    %3437 = vmatpush1.bf16.msra.mxu0 %v2831
    %3438 = vmatprep.subr.bf16.mxu0 %v2840
    %3439 = vmatpush1.bf16.msra.mxu0 %v2839
    %3440 = vmatprep.subr.bf16.mxu0 %v2848
    %3441 = vmatpush1.bf16.msra.mxu0 %v2847
    %3442 = vmatprep.subr.bf16.mxu0 %v2856
    %3443 = vmatpush1.bf16.msra.mxu0 %v2855
    %3444 = vmatprep.subr.bf16.mxu0 %v2864
    %3445 = vmatpush1.bf16.msra.mxu0 %v2863
    %3446 = vmatprep.subr.bf16.mxu0 %v2872
    %3447 = vmatpush1.bf16.msra.mxu0 %v2871
    %3448 = vmatprep.subr.bf16.mxu0 %v2880
    %3449 = vmatpush1.bf16.msra.mxu0 %v2879
    %3450 = vmatprep.subr.bf16.mxu0 %v2888
    %3451 = vmatpush1.bf16.msra.mxu0 %v2887
    %3452 = vmatprep.subr.bf16.mxu0 %v2896
    %3453 = vmatpush1.bf16.msra.mxu0 %v2895
    %3454 = vmatprep.mubr.bf16.mxu0 %v3171
    %3455 = vmatmul.mubr.bf16.gmra.mrb[0].mxu0 %v3170
    %v3456 = vpop.f32.mrb[0].mxu0
    %v3457 = vadd.f32 %v3416, %v3456
    %v3458 = vpop.f32.mrb[0].mxu0
    %v3459 = vadd.f32 %v3418, %v3458
    %v3460 = vpop.f32.mrb[0].mxu0
    %v3461 = vpop.f32.mrb[0].mxu0
    %3462 = vdwg.mxu0
    %3463 = vmatprep.subr.bf16.mxu0 %v2904
    %3464 = vmatpush1.bf16.msra.mxu0 %v2903
    %3465 = vmatprep.subr.bf16.mxu0 %v2912
    %3466 = vmatpush1.bf16.msra.mxu0 %v2911
    %3467 = vmatprep.subr.bf16.mxu0 %v2920
    %3468 = vmatpush1.bf16.msra.mxu0 %v2919
    %3469 = vmatprep.subr.bf16.mxu0 %v2928
    %3470 = vmatpush1.bf16.msra.mxu0 %v2927
    %3471 = vmatprep.subr.bf16.mxu0 %v2936
    %3472 = vmatpush1.bf16.msra.mxu0 %v2935
    %3473 = vmatprep.subr.bf16.mxu0 %v2944
    %3474 = vmatpush1.bf16.msra.mxu0 %v2943
    %3475 = vmatprep.subr.bf16.mxu0 %v2952
    %3476 = vmatpush1.bf16.msra.mxu0 %v2951
    %3477 = vmatprep.subr.bf16.mxu0 %v2960
    %3478 = vmatpush1.bf16.msra.mxu0 %v2959
    %3479 = vmatprep.subr.bf16.mxu0 %v2968
    %3480 = vmatpush1.bf16.msra.mxu0 %v2967
    %3481 = vmatprep.subr.bf16.mxu0 %v2976
    %3482 = vmatpush1.bf16.msra.mxu0 %v2975
    %3483 = vmatprep.subr.bf16.mxu0 %v2984
    %3484 = vmatpush1.bf16.msra.mxu0 %v2983
    %3485 = vmatprep.subr.bf16.mxu0 %v2992
    %3486 = vmatpush1.bf16.msra.mxu0 %v2991
    %3487 = vmatprep.subr.bf16.mxu0 %v3000
    %3488 = vmatpush1.bf16.msra.mxu0 %v2999
    %3489 = vmatprep.subr.bf16.mxu0 %v3008
    %3490 = vmatpush1.bf16.msra.mxu0 %v3007
    %3491 = vmatprep.subr.bf16.mxu0 %v3016
    %3492 = vmatpush1.bf16.msra.mxu0 %v3015
    %3493 = vmatprep.subr.bf16.mxu0 %v3024
    %3494 = vmatpush1.bf16.msra.mxu0 %v3023
    %3495 = vmatprep.mubr.bf16.mxu0 %v3173
    %3496 = vmatmul.mubr.bf16.gmra.mrb[0].mxu0 %v3172
    %v3497 = vpop.f32.mrb[0].mxu0
    %v3498 = vadd.f32 %v3457, %v3497
    %v3499 = vpop.f32.mrb[0].mxu0
    %v3500 = vadd.f32 %v3459, %v3499
    %v3501 = vpop.f32.mrb[0].mxu0
    %v3502 = vpop.f32.mrb[0].mxu0
    %3503 = vdwg.mxu0
    %3504 = vmatprep.subr.bf16.mxu0 %v3032
    %3505 = vmatpush1.bf16.msra.mxu0 %v3031
    %3506 = vmatprep.subr.bf16.mxu0 %v3040
    %3507 = vmatpush1.bf16.msra.mxu0 %v3039
    %3508 = vmatprep.subr.bf16.mxu0 %v3048
    %3509 = vmatpush1.bf16.msra.mxu0 %v3047
    %3510 = vmatprep.subr.bf16.mxu0 %v3056
    %3511 = vmatpush1.bf16.msra.mxu0 %v3055
    %3512 = vmatprep.subr.bf16.mxu0 %v3064
    %3513 = vmatpush1.bf16.msra.mxu0 %v3063
    %3514 = vmatprep.subr.bf16.mxu0 %v3072
    %3515 = vmatpush1.bf16.msra.mxu0 %v3071
    %3516 = vmatprep.subr.bf16.mxu0 %v3080
    %3517 = vmatpush1.bf16.msra.mxu0 %v3079
    %3518 = vmatprep.subr.bf16.mxu0 %v3088
    %3519 = vmatpush1.bf16.msra.mxu0 %v3087
    %3520 = vmatprep.subr.bf16.mxu0 %v3096
    %3521 = vmatpush1.bf16.msra.mxu0 %v3095
    %3522 = vmatprep.subr.bf16.mxu0 %v3104
    %3523 = vmatpush1.bf16.msra.mxu0 %v3103
    %3524 = vmatprep.subr.bf16.mxu0 %v3112
    %3525 = vmatpush1.bf16.msra.mxu0 %v3111
    %3526 = vmatprep.subr.bf16.mxu0 %v3120
    %3527 = vmatpush1.bf16.msra.mxu0 %v3119
    %3528 = vmatprep.subr.bf16.mxu0 %v3128
    %3529 = vmatpush1.bf16.msra.mxu0 %v3127
    %3530 = vmatprep.subr.bf16.mxu0 %v3136
    %3531 = vmatpush1.bf16.msra.mxu0 %v3135
    %3532 = vmatprep.subr.bf16.mxu0 %v3144
    %3533 = vmatpush1.bf16.msra.mxu0 %v3143
    %3534 = vmatprep.subr.bf16.mxu0 %v3152
    %3535 = vmatpush1.bf16.msra.mxu0 %v3151
    %3536 = vmatprep.mubr.bf16.mxu0 %v3175
    %3537 = vmatmul.mubr.bf16.gmra.mrb[0].mxu0 %v3174
    %v3538 = vpop.f32.mrb[0].mxu0
    %v3539 = vadd.f32 %v3498, %v3538
    %v3540 = vpop.f32.mrb[0].mxu0
    %v3541 = vadd.f32 %v3500, %v3540
    %v3542 = vpop.f32.mrb[0].mxu0
    %v3543 = vpop.f32.mrb[0].mxu0
    %3544 = vdwg.mxu0
    %3545 = vmatprep.subr.bf16.mxu0 %v2138
    %3546 = vmatpush1.bf16.msra.mxu0 %v2137
    %3547 = vmatprep.subr.bf16.mxu0 %v2146
    %3548 = vmatpush1.bf16.msra.mxu0 %v2145
    %3549 = vmatprep.subr.bf16.mxu0 %v2154
    %3550 = vmatpush1.bf16.msra.mxu0 %v2153
    %3551 = vmatprep.subr.bf16.mxu0 %v2162
    %3552 = vmatpush1.bf16.msra.mxu0 %v2161
    %3553 = vmatprep.subr.bf16.mxu0 %v2170
    %3554 = vmatpush1.bf16.msra.mxu0 %v2169
    %3555 = vmatprep.subr.bf16.mxu0 %v2178
    %3556 = vmatpush1.bf16.msra.mxu0 %v2177
    %3557 = vmatprep.subr.bf16.mxu0 %v2186
    %3558 = vmatpush1.bf16.msra.mxu0 %v2185
    %3559 = vmatprep.subr.bf16.mxu0 %v2194
    %3560 = vmatpush1.bf16.msra.mxu0 %v2193
    %3561 = vmatprep.subr.bf16.mxu0 %v2202
    %3562 = vmatpush1.bf16.msra.mxu0 %v2201
    %3563 = vmatprep.subr.bf16.mxu0 %v2210
    %3564 = vmatpush1.bf16.msra.mxu0 %v2209
    %3565 = vmatprep.subr.bf16.mxu0 %v2218
    %3566 = vmatpush1.bf16.msra.mxu0 %v2217
    %3567 = vmatprep.subr.bf16.mxu0 %v2226
    %3568 = vmatpush1.bf16.msra.mxu0 %v2225
    %3569 = vmatprep.subr.bf16.mxu0 %v2234
    %3570 = vmatpush1.bf16.msra.mxu0 %v2233
    %3571 = vmatprep.subr.bf16.mxu0 %v2242
    %3572 = vmatpush1.bf16.msra.mxu0 %v2241
    %3573 = vmatprep.subr.bf16.mxu0 %v2250
    %3574 = vmatpush1.bf16.msra.mxu0 %v2249
    %3575 = vmatprep.subr.bf16.mxu0 %v2258
    %3576 = vmatpush1.bf16.msra.mxu0 %v2257
    %3577 = vmatprep.mubr.bf16.mxu0 %v3161
    %3578 = vmatmul.mubr.bf16.gmra.mrb[0].mxu0 %v3160
    %v3579 = vpop.f32.mrb[0].mxu0
    %v3580 = vadd.f32 %v3188, %v3579
    %v3581 = vpop.f32.mrb[0].mxu0
    %v3582 = vadd.f32 %v3192, %v3581
    %v3583 = vpop.f32.mrb[0].mxu0
    %v3584 = vpop.f32.mrb[0].mxu0
    %3585 = vdwg.mxu0
    %3586 = vmatprep.subr.bf16.mxu0 %v2266
    %3587 = vmatpush1.bf16.msra.mxu0 %v2265
    %3588 = vmatprep.subr.bf16.mxu0 %v2274
    %3589 = vmatpush1.bf16.msra.mxu0 %v2273
    %3590 = vmatprep.subr.bf16.mxu0 %v2282
    %3591 = vmatpush1.bf16.msra.mxu0 %v2281
    %3592 = vmatprep.subr.bf16.mxu0 %v2290
    %3593 = vmatpush1.bf16.msra.mxu0 %v2289
    %3594 = vmatprep.subr.bf16.mxu0 %v2298
    %3595 = vmatpush1.bf16.msra.mxu0 %v2297
    %3596 = vmatprep.subr.bf16.mxu0 %v2306
    %3597 = vmatpush1.bf16.msra.mxu0 %v2305
    %3598 = vmatprep.subr.bf16.mxu0 %v2314
    %3599 = vmatpush1.bf16.msra.mxu0 %v2313
    %3600 = vmatprep.subr.bf16.mxu0 %v2322
    %3601 = vmatpush1.bf16.msra.mxu0 %v2321
    %3602 = vmatprep.subr.bf16.mxu0 %v2330
    %3603 = vmatpush1.bf16.msra.mxu0 %v2329
    %3604 = vmatprep.subr.bf16.mxu0 %v2338
    %3605 = vmatpush1.bf16.msra.mxu0 %v2337
    %3606 = vmatprep.subr.bf16.mxu0 %v2346
    %3607 = vmatpush1.bf16.msra.mxu0 %v2345
    %3608 = vmatprep.subr.bf16.mxu0 %v2354
    %3609 = vmatpush1.bf16.msra.mxu0 %v2353
    %3610 = vmatprep.subr.bf16.mxu0 %v2362
    %3611 = vmatpush1.bf16.msra.mxu0 %v2361
    %3612 = vmatprep.subr.bf16.mxu0 %v2370
    %3613 = vmatpush1.bf16.msra.mxu0 %v2369
    %3614 = vmatprep.subr.bf16.mxu0 %v2378
    %3615 = vmatpush1.bf16.msra.mxu0 %v2377
    %3616 = vmatprep.subr.bf16.mxu0 %v2386
    %3617 = vmatpush1.bf16.msra.mxu0 %v2385
    %3618 = vmatprep.mubr.bf16.mxu0 %v3163
    %3619 = vmatmul.mubr.bf16.gmra.mrb[0].mxu0 %v3162
    %v3620 = vpop.f32.mrb[0].mxu0
    %v3621 = vadd.f32 %v3580, %v3620
    %v3622 = vpop.f32.mrb[0].mxu0
    %v3623 = vadd.f32 %v3582, %v3622
    %v3624 = vpop.f32.mrb[0].mxu0
    %v3625 = vpop.f32.mrb[0].mxu0
    %3626 = vdwg.mxu0
    %3627 = vmatprep.subr.bf16.mxu0 %v2394
    %3628 = vmatpush1.bf16.msra.mxu0 %v2393
    %3629 = vmatprep.subr.bf16.mxu0 %v2402
    %3630 = vmatpush1.bf16.msra.mxu0 %v2401
    %3631 = vmatprep.subr.bf16.mxu0 %v2410
    %3632 = vmatpush1.bf16.msra.mxu0 %v2409
    %3633 = vmatprep.subr.bf16.mxu0 %v2418
    %3634 = vmatpush1.bf16.msra.mxu0 %v2417
    %3635 = vmatprep.subr.bf16.mxu0 %v2426
    %3636 = vmatpush1.bf16.msra.mxu0 %v2425
    %3637 = vmatprep.subr.bf16.mxu0 %v2434
    %3638 = vmatpush1.bf16.msra.mxu0 %v2433
    %3639 = vmatprep.subr.bf16.mxu0 %v2442
    %3640 = vmatpush1.bf16.msra.mxu0 %v2441
    %3641 = vmatprep.subr.bf16.mxu0 %v2450
    %3642 = vmatpush1.bf16.msra.mxu0 %v2449
    %3643 = vmatprep.subr.bf16.mxu0 %v2458
    %3644 = vmatpush1.bf16.msra.mxu0 %v2457
    %3645 = vmatprep.subr.bf16.mxu0 %v2466
    %3646 = vmatpush1.bf16.msra.mxu0 %v2465
    %3647 = vmatprep.subr.bf16.mxu0 %v2474
    %3648 = vmatpush1.bf16.msra.mxu0 %v2473
    %3649 = vmatprep.subr.bf16.mxu0 %v2482
    %3650 = vmatpush1.bf16.msra.mxu0 %v2481
    %3651 = vmatprep.subr.bf16.mxu0 %v2490
    %3652 = vmatpush1.bf16.msra.mxu0 %v2489
    %3653 = vmatprep.subr.bf16.mxu0 %v2498
    %3654 = vmatpush1.bf16.msra.mxu0 %v2497
    %3655 = vmatprep.subr.bf16.mxu0 %v2506
    %3656 = vmatpush1.bf16.msra.mxu0 %v2505
    %3657 = vmatprep.subr.bf16.mxu0 %v2514
    %3658 = vmatpush1.bf16.msra.mxu0 %v2513
    %3659 = vmatprep.mubr.bf16.mxu0 %v3165
    %3660 = vmatmul.mubr.bf16.gmra.mrb[0].mxu0 %v3164
    %v3661 = vpop.f32.mrb[0].mxu0
    %v3662 = vadd.f32 %v3621, %v3661
    %v3663 = vpop.f32.mrb[0].mxu0
    %v3664 = vadd.f32 %v3623, %v3663
    %v3665 = vpop.f32.mrb[0].mxu0
    %v3666 = vpop.f32.mrb[0].mxu0
    %3667 = vdwg.mxu0
    %3668 = vmatprep.subr.bf16.mxu0 %v2522
    %3669 = vmatpush1.bf16.msra.mxu0 %v2521
    %3670 = vmatprep.subr.bf16.mxu0 %v2530
    %3671 = vmatpush1.bf16.msra.mxu0 %v2529
    %3672 = vmatprep.subr.bf16.mxu0 %v2538
    %3673 = vmatpush1.bf16.msra.mxu0 %v2537
    %3674 = vmatprep.subr.bf16.mxu0 %v2546
    %3675 = vmatpush1.bf16.msra.mxu0 %v2545
    %3676 = vmatprep.subr.bf16.mxu0 %v2554
    %3677 = vmatpush1.bf16.msra.mxu0 %v2553
    %3678 = vmatprep.subr.bf16.mxu0 %v2562
    %3679 = vmatpush1.bf16.msra.mxu0 %v2561
    %3680 = vmatprep.subr.bf16.mxu0 %v2570
    %3681 = vmatpush1.bf16.msra.mxu0 %v2569
    %3682 = vmatprep.subr.bf16.mxu0 %v2578
    %3683 = vmatpush1.bf16.msra.mxu0 %v2577
    %3684 = vmatprep.subr.bf16.mxu0 %v2586
    %3685 = vmatpush1.bf16.msra.mxu0 %v2585
    %3686 = vmatprep.subr.bf16.mxu0 %v2594
    %3687 = vmatpush1.bf16.msra.mxu0 %v2593
    %3688 = vmatprep.subr.bf16.mxu0 %v2602
    %3689 = vmatpush1.bf16.msra.mxu0 %v2601
    %3690 = vmatprep.subr.bf16.mxu0 %v2610
    %3691 = vmatpush1.bf16.msra.mxu0 %v2609
    %3692 = vmatprep.subr.bf16.mxu0 %v2618
    %3693 = vmatpush1.bf16.msra.mxu0 %v2617
    %3694 = vmatprep.subr.bf16.mxu0 %v2626
    %3695 = vmatpush1.bf16.msra.mxu0 %v2625
    %3696 = vmatprep.subr.bf16.mxu0 %v2634
    %3697 = vmatpush1.bf16.msra.mxu0 %v2633
    %3698 = vmatprep.subr.bf16.mxu0 %v2642
    %3699 = vmatpush1.bf16.msra.mxu0 %v2641
    %3700 = vmatprep.mubr.bf16.mxu0 %v3167
    %3701 = vmatmul.mubr.bf16.gmra.mrb[0].mxu0 %v3166
    %v3702 = vpop.f32.mrb[0].mxu0
    %v3703 = vadd.f32 %v3662, %v3702
    %v3704 = vpop.f32.mrb[0].mxu0
    %v3705 = vadd.f32 %v3664, %v3704
    %v3706 = vpop.f32.mrb[0].mxu0
    %v3707 = vpop.f32.mrb[0].mxu0
    %3708 = vdwg.mxu0
    %3709 = vmatprep.subr.bf16.mxu0 %v2650
    %3710 = vmatpush1.bf16.msra.mxu0 %v2649
    %3711 = vmatprep.subr.bf16.mxu0 %v2658
    %3712 = vmatpush1.bf16.msra.mxu0 %v2657
    %3713 = vmatprep.subr.bf16.mxu0 %v2666
    %3714 = vmatpush1.bf16.msra.mxu0 %v2665
    %3715 = vmatprep.subr.bf16.mxu0 %v2674
    %3716 = vmatpush1.bf16.msra.mxu0 %v2673
    %3717 = vmatprep.subr.bf16.mxu0 %v2682
    %3718 = vmatpush1.bf16.msra.mxu0 %v2681
    %3719 = vmatprep.subr.bf16.mxu0 %v2690
    %3720 = vmatpush1.bf16.msra.mxu0 %v2689
    %3721 = vmatprep.subr.bf16.mxu0 %v2698
    %3722 = vmatpush1.bf16.msra.mxu0 %v2697
    %3723 = vmatprep.subr.bf16.mxu0 %v2706
    %3724 = vmatpush1.bf16.msra.mxu0 %v2705
    %3725 = vmatprep.subr.bf16.mxu0 %v2714
    %3726 = vmatpush1.bf16.msra.mxu0 %v2713
    %3727 = vmatprep.subr.bf16.mxu0 %v2722
    %3728 = vmatpush1.bf16.msra.mxu0 %v2721
    %3729 = vmatprep.subr.bf16.mxu0 %v2730
    %3730 = vmatpush1.bf16.msra.mxu0 %v2729
    %3731 = vmatprep.subr.bf16.mxu0 %v2738
    %3732 = vmatpush1.bf16.msra.mxu0 %v2737
    %3733 = vmatprep.subr.bf16.mxu0 %v2746
    %3734 = vmatpush1.bf16.msra.mxu0 %v2745
    %3735 = vmatprep.subr.bf16.mxu0 %v2754
    %3736 = vmatpush1.bf16.msra.mxu0 %v2753
    %3737 = vmatprep.subr.bf16.mxu0 %v2762
    %3738 = vmatpush1.bf16.msra.mxu0 %v2761
    %3739 = vmatprep.subr.bf16.mxu0 %v2770
    %3740 = vmatpush1.bf16.msra.mxu0 %v2769
    %3741 = vmatprep.mubr.bf16.mxu0 %v3169
    %3742 = vmatmul.mubr.bf16.gmra.mrb[0].mxu0 %v3168
    %v3743 = vpop.f32.mrb[0].mxu0
    %v3744 = vadd.f32 %v3703, %v3743
    %v3745 = vpop.f32.mrb[0].mxu0
    %v3746 = vadd.f32 %v3705, %v3745
    %v3747 = vpop.f32.mrb[0].mxu0
    %v3748 = vpop.f32.mrb[0].mxu0
    %3749 = vdwg.mxu0
    %3750 = vmatprep.subr.bf16.mxu0 %v2778
    %3751 = vmatpush1.bf16.msra.mxu0 %v2777
    %3752 = vmatprep.subr.bf16.mxu0 %v2786
    %3753 = vmatpush1.bf16.msra.mxu0 %v2785
    %3754 = vmatprep.subr.bf16.mxu0 %v2794
    %3755 = vmatpush1.bf16.msra.mxu0 %v2793
    %3756 = vmatprep.subr.bf16.mxu0 %v2802
    %3757 = vmatpush1.bf16.msra.mxu0 %v2801
    %3758 = vmatprep.subr.bf16.mxu0 %v2810
    %3759 = vmatpush1.bf16.msra.mxu0 %v2809
    %3760 = vmatprep.subr.bf16.mxu0 %v2818
    %3761 = vmatpush1.bf16.msra.mxu0 %v2817
    %3762 = vmatprep.subr.bf16.mxu0 %v2826
    %3763 = vmatpush1.bf16.msra.mxu0 %v2825
    %3764 = vmatprep.subr.bf16.mxu0 %v2834
    %3765 = vmatpush1.bf16.msra.mxu0 %v2833
    %3766 = vmatprep.subr.bf16.mxu0 %v2842
    %3767 = vmatpush1.bf16.msra.mxu0 %v2841
    %3768 = vmatprep.subr.bf16.mxu0 %v2850
    %3769 = vmatpush1.bf16.msra.mxu0 %v2849
    %3770 = vmatprep.subr.bf16.mxu0 %v2858
    %3771 = vmatpush1.bf16.msra.mxu0 %v2857
    %3772 = vmatprep.subr.bf16.mxu0 %v2866
    %3773 = vmatpush1.bf16.msra.mxu0 %v2865
    %3774 = vmatprep.subr.bf16.mxu0 %v2874
    %3775 = vmatpush1.bf16.msra.mxu0 %v2873
    %3776 = vmatprep.subr.bf16.mxu0 %v2882
    %3777 = vmatpush1.bf16.msra.mxu0 %v2881
    %3778 = vmatprep.subr.bf16.mxu0 %v2890
    %3779 = vmatpush1.bf16.msra.mxu0 %v2889
    %3780 = vmatprep.subr.bf16.mxu0 %v2898
    %3781 = vmatpush1.bf16.msra.mxu0 %v2897
    %3782 = vmatprep.mubr.bf16.mxu0 %v3171
    %3783 = vmatmul.mubr.bf16.gmra.mrb[0].mxu0 %v3170
    %v3784 = vpop.f32.mrb[0].mxu0
    %v3785 = vadd.f32 %v3744, %v3784
    %v3786 = vpop.f32.mrb[0].mxu0
    %v3787 = vadd.f32 %v3746, %v3786
    %v3788 = vpop.f32.mrb[0].mxu0
    %v3789 = vpop.f32.mrb[0].mxu0
    %3790 = vdwg.mxu0
    %3791 = vmatprep.subr.bf16.mxu0 %v2906
    %3792 = vmatpush1.bf16.msra.mxu0 %v2905
    %3793 = vmatprep.subr.bf16.mxu0 %v2914
    %3794 = vmatpush1.bf16.msra.mxu0 %v2913
    %3795 = vmatprep.subr.bf16.mxu0 %v2922
    %3796 = vmatpush1.bf16.msra.mxu0 %v2921
    %3797 = vmatprep.subr.bf16.mxu0 %v2930
    %3798 = vmatpush1.bf16.msra.mxu0 %v2929
    %3799 = vmatprep.subr.bf16.mxu0 %v2938
    %3800 = vmatpush1.bf16.msra.mxu0 %v2937
    %3801 = vmatprep.subr.bf16.mxu0 %v2946
    %3802 = vmatpush1.bf16.msra.mxu0 %v2945
    %3803 = vmatprep.subr.bf16.mxu0 %v2954
    %3804 = vmatpush1.bf16.msra.mxu0 %v2953
    %3805 = vmatprep.subr.bf16.mxu0 %v2962
    %3806 = vmatpush1.bf16.msra.mxu0 %v2961
    %3807 = vmatprep.subr.bf16.mxu0 %v2970
    %3808 = vmatpush1.bf16.msra.mxu0 %v2969
    %3809 = vmatprep.subr.bf16.mxu0 %v2978
    %3810 = vmatpush1.bf16.msra.mxu0 %v2977
    %3811 = vmatprep.subr.bf16.mxu0 %v2986
    %3812 = vmatpush1.bf16.msra.mxu0 %v2985
    %3813 = vmatprep.subr.bf16.mxu0 %v2994
    %3814 = vmatpush1.bf16.msra.mxu0 %v2993
    %3815 = vmatprep.subr.bf16.mxu0 %v3002
    %3816 = vmatpush1.bf16.msra.mxu0 %v3001
    %3817 = vmatprep.subr.bf16.mxu0 %v3010
    %3818 = vmatpush1.bf16.msra.mxu0 %v3009
    %3819 = vmatprep.subr.bf16.mxu0 %v3018
    %3820 = vmatpush1.bf16.msra.mxu0 %v3017
    %3821 = vmatprep.subr.bf16.mxu0 %v3026
    %3822 = vmatpush1.bf16.msra.mxu0 %v3025
    %3823 = vmatprep.mubr.bf16.mxu0 %v3173
    %3824 = vmatmul.mubr.bf16.gmra.mrb[0].mxu0 %v3172
    %v3825 = vpop.f32.mrb[0].mxu0
    %v3826 = vadd.f32 %v3785, %v3825
    %v3827 = vpop.f32.mrb[0].mxu0
    %v3828 = vadd.f32 %v3787, %v3827
    %v3829 = vpop.f32.mrb[0].mxu0
    %v3830 = vpop.f32.mrb[0].mxu0
    %3831 = vdwg.mxu0
    %3832 = vmatprep.subr.bf16.mxu0 %v3034
    %3833 = vmatpush1.bf16.msra.mxu0 %v3033
    %3834 = vmatprep.subr.bf16.mxu0 %v3042
    %3835 = vmatpush1.bf16.msra.mxu0 %v3041
    %3836 = vmatprep.subr.bf16.mxu0 %v3050
    %3837 = vmatpush1.bf16.msra.mxu0 %v3049
    %3838 = vmatprep.subr.bf16.mxu0 %v3058
    %3839 = vmatpush1.bf16.msra.mxu0 %v3057
    %3840 = vmatprep.subr.bf16.mxu0 %v3066
    %3841 = vmatpush1.bf16.msra.mxu0 %v3065
    %3842 = vmatprep.subr.bf16.mxu0 %v3074
    %3843 = vmatpush1.bf16.msra.mxu0 %v3073
    %3844 = vmatprep.subr.bf16.mxu0 %v3082
    %3845 = vmatpush1.bf16.msra.mxu0 %v3081
    %3846 = vmatprep.subr.bf16.mxu0 %v3090
    %3847 = vmatpush1.bf16.msra.mxu0 %v3089
    %3848 = vmatprep.subr.bf16.mxu0 %v3098
    %3849 = vmatpush1.bf16.msra.mxu0 %v3097
    %3850 = vmatprep.subr.bf16.mxu0 %v3106
    %3851 = vmatpush1.bf16.msra.mxu0 %v3105
    %3852 = vmatprep.subr.bf16.mxu0 %v3114
    %3853 = vmatpush1.bf16.msra.mxu0 %v3113
    %3854 = vmatprep.subr.bf16.mxu0 %v3122
    %3855 = vmatpush1.bf16.msra.mxu0 %v3121
    %3856 = vmatprep.subr.bf16.mxu0 %v3130
    %3857 = vmatpush1.bf16.msra.mxu0 %v3129
    %3858 = vmatprep.subr.bf16.mxu0 %v3138
    %3859 = vmatpush1.bf16.msra.mxu0 %v3137
    %3860 = vmatprep.subr.bf16.mxu0 %v3146
    %3861 = vmatpush1.bf16.msra.mxu0 %v3145
    %3862 = vmatprep.subr.bf16.mxu0 %v3154
    %3863 = vmatpush1.bf16.msra.mxu0 %v3153
    %3864 = vmatprep.mubr.bf16.mxu0 %v3175
    %3865 = vmatmul.mubr.bf16.gmra.mrb[0].mxu0 %v3174
    %v3866 = vpop.f32.mrb[0].mxu0
    %v3867 = vadd.f32 %v3826, %v3866
    %v3868 = vpop.f32.mrb[0].mxu0
    %v3869 = vadd.f32 %v3828, %v3868
    %v3870 = vpop.f32.mrb[0].mxu0
    %v3871 = vpop.f32.mrb[0].mxu0
    %3872 = vdwg.mxu0
    %3873 = vmatprep.subr.bf16.mxu0 %v2140
    %3874 = vmatpush1.bf16.msra.mxu0 %v2139
    %3875 = vmatprep.subr.bf16.mxu0 %v2148
    %3876 = vmatpush1.bf16.msra.mxu0 %v2147
    %3877 = vmatprep.subr.bf16.mxu0 %v2156
    %3878 = vmatpush1.bf16.msra.mxu0 %v2155
    %3879 = vmatprep.subr.bf16.mxu0 %v2164
    %3880 = vmatpush1.bf16.msra.mxu0 %v2163
    %3881 = vmatprep.subr.bf16.mxu0 %v2172
    %3882 = vmatpush1.bf16.msra.mxu0 %v2171
    %3883 = vmatprep.subr.bf16.mxu0 %v2180
    %3884 = vmatpush1.bf16.msra.mxu0 %v2179
    %3885 = vmatprep.subr.bf16.mxu0 %v2188
    %3886 = vmatpush1.bf16.msra.mxu0 %v2187
    %3887 = vmatprep.subr.bf16.mxu0 %v2196
    %3888 = vmatpush1.bf16.msra.mxu0 %v2195
    %3889 = vmatprep.subr.bf16.mxu0 %v2204
    %3890 = vmatpush1.bf16.msra.mxu0 %v2203
    %3891 = vmatprep.subr.bf16.mxu0 %v2212
    %3892 = vmatpush1.bf16.msra.mxu0 %v2211
    %3893 = vmatprep.subr.bf16.mxu0 %v2220
    %3894 = vmatpush1.bf16.msra.mxu0 %v2219
    %3895 = vmatprep.subr.bf16.mxu0 %v2228
    %3896 = vmatpush1.bf16.msra.mxu0 %v2227
    %3897 = vmatprep.subr.bf16.mxu0 %v2236
    %3898 = vmatpush1.bf16.msra.mxu0 %v2235
    %3899 = vmatprep.subr.bf16.mxu0 %v2244
    %3900 = vmatpush1.bf16.msra.mxu0 %v2243
    %3901 = vmatprep.subr.bf16.mxu0 %v2252
    %3902 = vmatpush1.bf16.msra.mxu0 %v2251
    %3903 = vmatprep.subr.bf16.mxu0 %v2260
    %3904 = vmatpush1.bf16.msra.mxu0 %v2259
    %3905 = vmatprep.mubr.bf16.mxu0 %v3161
    %3906 = vmatmul.mubr.bf16.gmra.mrb[0].mxu0 %v3160
    %v3907 = vpop.f32.mrb[0].mxu0
    %v3908 = vadd.f32 %v3196, %v3907
    %v3909 = vpop.f32.mrb[0].mxu0
    %v3910 = vadd.f32 %v3200, %v3909
    %v3911 = vpop.f32.mrb[0].mxu0
    %v3912 = vpop.f32.mrb[0].mxu0
    %3913 = vdwg.mxu0
    %3914 = vmatprep.subr.bf16.mxu0 %v2268
    %3915 = vmatpush1.bf16.msra.mxu0 %v2267
    %3916 = vmatprep.subr.bf16.mxu0 %v2276
    %3917 = vmatpush1.bf16.msra.mxu0 %v2275
    %3918 = vmatprep.subr.bf16.mxu0 %v2284
    %3919 = vmatpush1.bf16.msra.mxu0 %v2283
    %3920 = vmatprep.subr.bf16.mxu0 %v2292
    %3921 = vmatpush1.bf16.msra.mxu0 %v2291
    %3922 = vmatprep.subr.bf16.mxu0 %v2300
    %3923 = vmatpush1.bf16.msra.mxu0 %v2299
    %3924 = vmatprep.subr.bf16.mxu0 %v2308
    %3925 = vmatpush1.bf16.msra.mxu0 %v2307
    %3926 = vmatprep.subr.bf16.mxu0 %v2316
    %3927 = vmatpush1.bf16.msra.mxu0 %v2315
    %3928 = vmatprep.subr.bf16.mxu0 %v2324
    %3929 = vmatpush1.bf16.msra.mxu0 %v2323
    %3930 = vmatprep.subr.bf16.mxu0 %v2332
    %3931 = vmatpush1.bf16.msra.mxu0 %v2331
    %3932 = vmatprep.subr.bf16.mxu0 %v2340
    %3933 = vmatpush1.bf16.msra.mxu0 %v2339
    %3934 = vmatprep.subr.bf16.mxu0 %v2348
    %3935 = vmatpush1.bf16.msra.mxu0 %v2347
    %3936 = vmatprep.subr.bf16.mxu0 %v2356
    %3937 = vmatpush1.bf16.msra.mxu0 %v2355
    %3938 = vmatprep.subr.bf16.mxu0 %v2364
    %3939 = vmatpush1.bf16.msra.mxu0 %v2363
    %3940 = vmatprep.subr.bf16.mxu0 %v2372
    %3941 = vmatpush1.bf16.msra.mxu0 %v2371
    %3942 = vmatprep.subr.bf16.mxu0 %v2380
    %3943 = vmatpush1.bf16.msra.mxu0 %v2379
    %3944 = vmatprep.subr.bf16.mxu0 %v2388
    %3945 = vmatpush1.bf16.msra.mxu0 %v2387
    %3946 = vmatprep.mubr.bf16.mxu0 %v3163
    %3947 = vmatmul.mubr.bf16.gmra.mrb[0].mxu0 %v3162
    %v3948 = vpop.f32.mrb[0].mxu0
    %v3949 = vadd.f32 %v3908, %v3948
    %v3950 = vpop.f32.mrb[0].mxu0
    %v3951 = vadd.f32 %v3910, %v3950
    %v3952 = vpop.f32.mrb[0].mxu0
    %v3953 = vpop.f32.mrb[0].mxu0
    %3954 = vdwg.mxu0
    %3955 = vmatprep.subr.bf16.mxu0 %v2396
    %3956 = vmatpush1.bf16.msra.mxu0 %v2395
    %3957 = vmatprep.subr.bf16.mxu0 %v2404
    %3958 = vmatpush1.bf16.msra.mxu0 %v2403
    %3959 = vmatprep.subr.bf16.mxu0 %v2412
    %3960 = vmatpush1.bf16.msra.mxu0 %v2411
    %3961 = vmatprep.subr.bf16.mxu0 %v2420
    %3962 = vmatpush1.bf16.msra.mxu0 %v2419
    %3963 = vmatprep.subr.bf16.mxu0 %v2428
    %3964 = vmatpush1.bf16.msra.mxu0 %v2427
    %3965 = vmatprep.subr.bf16.mxu0 %v2436
    %3966 = vmatpush1.bf16.msra.mxu0 %v2435
    %3967 = vmatprep.subr.bf16.mxu0 %v2444
    %3968 = vmatpush1.bf16.msra.mxu0 %v2443
    %3969 = vmatprep.subr.bf16.mxu0 %v2452
    %3970 = vmatpush1.bf16.msra.mxu0 %v2451
    %3971 = vmatprep.subr.bf16.mxu0 %v2460
    %3972 = vmatpush1.bf16.msra.mxu0 %v2459
    %3973 = vmatprep.subr.bf16.mxu0 %v2468
    %3974 = vmatpush1.bf16.msra.mxu0 %v2467
    %3975 = vmatprep.subr.bf16.mxu0 %v2476
    %3976 = vmatpush1.bf16.msra.mxu0 %v2475
    %3977 = vmatprep.subr.bf16.mxu0 %v2484
    %3978 = vmatpush1.bf16.msra.mxu0 %v2483
    %3979 = vmatprep.subr.bf16.mxu0 %v2492
    %3980 = vmatpush1.bf16.msra.mxu0 %v2491
    %3981 = vmatprep.subr.bf16.mxu0 %v2500
    %3982 = vmatpush1.bf16.msra.mxu0 %v2499
    %3983 = vmatprep.subr.bf16.mxu0 %v2508
    %3984 = vmatpush1.bf16.msra.mxu0 %v2507
    %3985 = vmatprep.subr.bf16.mxu0 %v2516
    %3986 = vmatpush1.bf16.msra.mxu0 %v2515
    %3987 = vmatprep.mubr.bf16.mxu0 %v3165
    %3988 = vmatmul.mubr.bf16.gmra.mrb[0].mxu0 %v3164
    %v3989 = vpop.f32.mrb[0].mxu0
    %v3990 = vadd.f32 %v3949, %v3989
    %v3991 = vpop.f32.mrb[0].mxu0
    %v3992 = vadd.f32 %v3951, %v3991
    %v3993 = vpop.f32.mrb[0].mxu0
    %v3994 = vpop.f32.mrb[0].mxu0
    %3995 = vdwg.mxu0
    %3996 = vmatprep.subr.bf16.mxu0 %v2524
    %3997 = vmatpush1.bf16.msra.mxu0 %v2523
    %3998 = vmatprep.subr.bf16.mxu0 %v2532
    %3999 = vmatpush1.bf16.msra.mxu0 %v2531
    %4000 = vmatprep.subr.bf16.mxu0 %v2540
    %4001 = vmatpush1.bf16.msra.mxu0 %v2539
    %4002 = vmatprep.subr.bf16.mxu0 %v2548
    %4003 = vmatpush1.bf16.msra.mxu0 %v2547
    %4004 = vmatprep.subr.bf16.mxu0 %v2556
    %4005 = vmatpush1.bf16.msra.mxu0 %v2555
    %4006 = vmatprep.subr.bf16.mxu0 %v2564
    %4007 = vmatpush1.bf16.msra.mxu0 %v2563
    %4008 = vmatprep.subr.bf16.mxu0 %v2572
    %4009 = vmatpush1.bf16.msra.mxu0 %v2571
    %4010 = vmatprep.subr.bf16.mxu0 %v2580
    %4011 = vmatpush1.bf16.msra.mxu0 %v2579
    %4012 = vmatprep.subr.bf16.mxu0 %v2588
    %4013 = vmatpush1.bf16.msra.mxu0 %v2587
    %4014 = vmatprep.subr.bf16.mxu0 %v2596
    %4015 = vmatpush1.bf16.msra.mxu0 %v2595
    %4016 = vmatprep.subr.bf16.mxu0 %v2604
    %4017 = vmatpush1.bf16.msra.mxu0 %v2603
    %4018 = vmatprep.subr.bf16.mxu0 %v2612
    %4019 = vmatpush1.bf16.msra.mxu0 %v2611
    %4020 = vmatprep.subr.bf16.mxu0 %v2620
    %4021 = vmatpush1.bf16.msra.mxu0 %v2619
    %4022 = vmatprep.subr.bf16.mxu0 %v2628
    %4023 = vmatpush1.bf16.msra.mxu0 %v2627
    %4024 = vmatprep.subr.bf16.mxu0 %v2636
    %4025 = vmatpush1.bf16.msra.mxu0 %v2635
    %4026 = vmatprep.subr.bf16.mxu0 %v2644
    %4027 = vmatpush1.bf16.msra.mxu0 %v2643
    %4028 = vmatprep.mubr.bf16.mxu0 %v3167
    %4029 = vmatmul.mubr.bf16.gmra.mrb[0].mxu0 %v3166
    %v4030 = vpop.f32.mrb[0].mxu0
    %v4031 = vadd.f32 %v3990, %v4030
    %v4032 = vpop.f32.mrb[0].mxu0
    %v4033 = vadd.f32 %v3992, %v4032
    %v4034 = vpop.f32.mrb[0].mxu0
    %v4035 = vpop.f32.mrb[0].mxu0
    %4036 = vdwg.mxu0
    %4037 = vmatprep.subr.bf16.mxu0 %v2652
    %4038 = vmatpush1.bf16.msra.mxu0 %v2651
    %4039 = vmatprep.subr.bf16.mxu0 %v2660
    %4040 = vmatpush1.bf16.msra.mxu0 %v2659
    %4041 = vmatprep.subr.bf16.mxu0 %v2668
    %4042 = vmatpush1.bf16.msra.mxu0 %v2667
    %4043 = vmatprep.subr.bf16.mxu0 %v2676
    %4044 = vmatpush1.bf16.msra.mxu0 %v2675
    %4045 = vmatprep.subr.bf16.mxu0 %v2684
    %4046 = vmatpush1.bf16.msra.mxu0 %v2683
    %4047 = vmatprep.subr.bf16.mxu0 %v2692
    %4048 = vmatpush1.bf16.msra.mxu0 %v2691
    %4049 = vmatprep.subr.bf16.mxu0 %v2700
    %4050 = vmatpush1.bf16.msra.mxu0 %v2699
    %4051 = vmatprep.subr.bf16.mxu0 %v2708
    %4052 = vmatpush1.bf16.msra.mxu0 %v2707
    %4053 = vmatprep.subr.bf16.mxu0 %v2716
    %4054 = vmatpush1.bf16.msra.mxu0 %v2715
    %4055 = vmatprep.subr.bf16.mxu0 %v2724
    %4056 = vmatpush1.bf16.msra.mxu0 %v2723
    %4057 = vmatprep.subr.bf16.mxu0 %v2732
    %4058 = vmatpush1.bf16.msra.mxu0 %v2731
    %4059 = vmatprep.subr.bf16.mxu0 %v2740
    %4060 = vmatpush1.bf16.msra.mxu0 %v2739
    %4061 = vmatprep.subr.bf16.mxu0 %v2748
    %4062 = vmatpush1.bf16.msra.mxu0 %v2747
    %4063 = vmatprep.subr.bf16.mxu0 %v2756
    %4064 = vmatpush1.bf16.msra.mxu0 %v2755
    %4065 = vmatprep.subr.bf16.mxu0 %v2764
    %4066 = vmatpush1.bf16.msra.mxu0 %v2763
    %4067 = vmatprep.subr.bf16.mxu0 %v2772
    %4068 = vmatpush1.bf16.msra.mxu0 %v2771
    %4069 = vmatprep.mubr.bf16.mxu0 %v3169
    %4070 = vmatmul.mubr.bf16.gmra.mrb[0].mxu0 %v3168
    %v4071 = vpop.f32.mrb[0].mxu0
    %v4072 = vadd.f32 %v4031, %v4071
    %v4073 = vpop.f32.mrb[0].mxu0
    %v4074 = vadd.f32 %v4033, %v4073
    %v4075 = vpop.f32.mrb[0].mxu0
    %v4076 = vpop.f32.mrb[0].mxu0
    %4077 = vdwg.mxu0
    %4078 = vmatprep.subr.bf16.mxu0 %v2780
    %4079 = vmatpush1.bf16.msra.mxu0 %v2779
    %4080 = vmatprep.subr.bf16.mxu0 %v2788
    %4081 = vmatpush1.bf16.msra.mxu0 %v2787
    %4082 = vmatprep.subr.bf16.mxu0 %v2796
    %4083 = vmatpush1.bf16.msra.mxu0 %v2795
    %4084 = vmatprep.subr.bf16.mxu0 %v2804
    %4085 = vmatpush1.bf16.msra.mxu0 %v2803
    %4086 = vmatprep.subr.bf16.mxu0 %v2812
    %4087 = vmatpush1.bf16.msra.mxu0 %v2811
    %4088 = vmatprep.subr.bf16.mxu0 %v2820
    %4089 = vmatpush1.bf16.msra.mxu0 %v2819
    %4090 = vmatprep.subr.bf16.mxu0 %v2828
    %4091 = vmatpush1.bf16.msra.mxu0 %v2827
    %4092 = vmatprep.subr.bf16.mxu0 %v2836
    %4093 = vmatpush1.bf16.msra.mxu0 %v2835
    %4094 = vmatprep.subr.bf16.mxu0 %v2844
    %4095 = vmatpush1.bf16.msra.mxu0 %v2843
    %4096 = vmatprep.subr.bf16.mxu0 %v2852
    %4097 = vmatpush1.bf16.msra.mxu0 %v2851
    %4098 = vmatprep.subr.bf16.mxu0 %v2860
    %4099 = vmatpush1.bf16.msra.mxu0 %v2859
    %4100 = vmatprep.subr.bf16.mxu0 %v2868
    %4101 = vmatpush1.bf16.msra.mxu0 %v2867
    %4102 = vmatprep.subr.bf16.mxu0 %v2876
    %4103 = vmatpush1.bf16.msra.mxu0 %v2875
    %4104 = vmatprep.subr.bf16.mxu0 %v2884
    %4105 = vmatpush1.bf16.msra.mxu0 %v2883
    %4106 = vmatprep.subr.bf16.mxu0 %v2892
    %4107 = vmatpush1.bf16.msra.mxu0 %v2891
    %4108 = vmatprep.subr.bf16.mxu0 %v2900
    %4109 = vmatpush1.bf16.msra.mxu0 %v2899
    %4110 = vmatprep.mubr.bf16.mxu0 %v3171
    %4111 = vmatmul.mubr.bf16.gmra.mrb[0].mxu0 %v3170
    %v4112 = vpop.f32.mrb[0].mxu0
    %v4113 = vadd.f32 %v4072, %v4112
    %v4114 = vpop.f32.mrb[0].mxu0
    %v4115 = vadd.f32 %v4074, %v4114
    %v4116 = vpop.f32.mrb[0].mxu0
    %v4117 = vpop.f32.mrb[0].mxu0
    %4118 = vdwg.mxu0
    %4119 = vmatprep.subr.bf16.mxu0 %v2908
    %4120 = vmatpush1.bf16.msra.mxu0 %v2907
    %4121 = vmatprep.subr.bf16.mxu0 %v2916
    %4122 = vmatpush1.bf16.msra.mxu0 %v2915
    %4123 = vmatprep.subr.bf16.mxu0 %v2924
    %4124 = vmatpush1.bf16.msra.mxu0 %v2923
    %4125 = vmatprep.subr.bf16.mxu0 %v2932
    %4126 = vmatpush1.bf16.msra.mxu0 %v2931
    %4127 = vmatprep.subr.bf16.mxu0 %v2940
    %4128 = vmatpush1.bf16.msra.mxu0 %v2939
    %4129 = vmatprep.subr.bf16.mxu0 %v2948
    %4130 = vmatpush1.bf16.msra.mxu0 %v2947
    %4131 = vmatprep.subr.bf16.mxu0 %v2956
    %4132 = vmatpush1.bf16.msra.mxu0 %v2955
    %4133 = vmatprep.subr.bf16.mxu0 %v2964
    %4134 = vmatpush1.bf16.msra.mxu0 %v2963
    %4135 = vmatprep.subr.bf16.mxu0 %v2972
    %4136 = vmatpush1.bf16.msra.mxu0 %v2971
    %4137 = vmatprep.subr.bf16.mxu0 %v2980
    %4138 = vmatpush1.bf16.msra.mxu0 %v2979
    %4139 = vmatprep.subr.bf16.mxu0 %v2988
    %4140 = vmatpush1.bf16.msra.mxu0 %v2987
    %4141 = vmatprep.subr.bf16.mxu0 %v2996
    %4142 = vmatpush1.bf16.msra.mxu0 %v2995
    %4143 = vmatprep.subr.bf16.mxu0 %v3004
    %4144 = vmatpush1.bf16.msra.mxu0 %v3003
    %4145 = vmatprep.subr.bf16.mxu0 %v3012
    %4146 = vmatpush1.bf16.msra.mxu0 %v3011
    %4147 = vmatprep.subr.bf16.mxu0 %v3020
    %4148 = vmatpush1.bf16.msra.mxu0 %v3019
    %4149 = vmatprep.subr.bf16.mxu0 %v3028
    %4150 = vmatpush1.bf16.msra.mxu0 %v3027
    %4151 = vmatprep.mubr.bf16.mxu0 %v3173
    %4152 = vmatmul.mubr.bf16.gmra.mrb[0].mxu0 %v3172
    %v4153 = vpop.f32.mrb[0].mxu0
    %v4154 = vadd.f32 %v4113, %v4153
    %v4155 = vpop.f32.mrb[0].mxu0
    %v4156 = vadd.f32 %v4115, %v4155
    %v4157 = vpop.f32.mrb[0].mxu0
    %v4158 = vpop.f32.mrb[0].mxu0
    %4159 = vdwg.mxu0
    %4160 = vmatprep.subr.bf16.mxu0 %v3036
    %4161 = vmatpush1.bf16.msra.mxu0 %v3035
    %4162 = vmatprep.subr.bf16.mxu0 %v3044
    %4163 = vmatpush1.bf16.msra.mxu0 %v3043
    %4164 = vmatprep.subr.bf16.mxu0 %v3052
    %4165 = vmatpush1.bf16.msra.mxu0 %v3051
    %4166 = vmatprep.subr.bf16.mxu0 %v3060
    %4167 = vmatpush1.bf16.msra.mxu0 %v3059
    %4168 = vmatprep.subr.bf16.mxu0 %v3068
    %4169 = vmatpush1.bf16.msra.mxu0 %v3067
    %4170 = vmatprep.subr.bf16.mxu0 %v3076
    %4171 = vmatpush1.bf16.msra.mxu0 %v3075
    %4172 = vmatprep.subr.bf16.mxu0 %v3084
    %4173 = vmatpush1.bf16.msra.mxu0 %v3083
    %4174 = vmatprep.subr.bf16.mxu0 %v3092
    %4175 = vmatpush1.bf16.msra.mxu0 %v3091
    %4176 = vmatprep.subr.bf16.mxu0 %v3100
    %4177 = vmatpush1.bf16.msra.mxu0 %v3099
    %4178 = vmatprep.subr.bf16.mxu0 %v3108
    %4179 = vmatpush1.bf16.msra.mxu0 %v3107
    %4180 = vmatprep.subr.bf16.mxu0 %v3116
    %4181 = vmatpush1.bf16.msra.mxu0 %v3115
    %4182 = vmatprep.subr.bf16.mxu0 %v3124
    %4183 = vmatpush1.bf16.msra.mxu0 %v3123
    %4184 = vmatprep.subr.bf16.mxu0 %v3132
    %4185 = vmatpush1.bf16.msra.mxu0 %v3131
    %4186 = vmatprep.subr.bf16.mxu0 %v3140
    %4187 = vmatpush1.bf16.msra.mxu0 %v3139
    %4188 = vmatprep.subr.bf16.mxu0 %v3148
    %4189 = vmatpush1.bf16.msra.mxu0 %v3147
    %4190 = vmatprep.subr.bf16.mxu0 %v3156
    %4191 = vmatpush1.bf16.msra.mxu0 %v3155
    %4192 = vmatprep.mubr.bf16.mxu0 %v3175
    %4193 = vmatmul.mubr.bf16.gmra.mrb[0].mxu0 %v3174
    %v4194 = vpop.f32.mrb[0].mxu0
    %v4195 = vadd.f32 %v4154, %v4194
    %v4196 = vpop.f32.mrb[0].mxu0
    %v4197 = vadd.f32 %v4156, %v4196
    %v4198 = vpop.f32.mrb[0].mxu0
    %v4199 = vpop.f32.mrb[0].mxu0
    %4200 = vdwg.mxu0
    %4201 = vmatprep.subr.bf16.mxu0 %v2142
    %4202 = vmatpush1.bf16.msra.mxu0 %v2141
    %4203 = vmatprep.subr.bf16.mxu0 %v2150
    %4204 = vmatpush1.bf16.msra.mxu0 %v2149
    %4205 = vmatprep.subr.bf16.mxu0 %v2158
    %4206 = vmatpush1.bf16.msra.mxu0 %v2157
    %4207 = vmatprep.subr.bf16.mxu0 %v2166
    %4208 = vmatpush1.bf16.msra.mxu0 %v2165
    %4209 = vmatprep.subr.bf16.mxu0 %v2174
    %4210 = vmatpush1.bf16.msra.mxu0 %v2173
    %4211 = vmatprep.subr.bf16.mxu0 %v2182
    %4212 = vmatpush1.bf16.msra.mxu0 %v2181
    %4213 = vmatprep.subr.bf16.mxu0 %v2190
    %4214 = vmatpush1.bf16.msra.mxu0 %v2189
    %4215 = vmatprep.subr.bf16.mxu0 %v2198
    %4216 = vmatpush1.bf16.msra.mxu0 %v2197
    %4217 = vmatprep.subr.bf16.mxu0 %v2206
    %4218 = vmatpush1.bf16.msra.mxu0 %v2205
    %4219 = vmatprep.subr.bf16.mxu0 %v2214
    %4220 = vmatpush1.bf16.msra.mxu0 %v2213
    %4221 = vmatprep.subr.bf16.mxu0 %v2222
    %4222 = vmatpush1.bf16.msra.mxu0 %v2221
    %4223 = vmatprep.subr.bf16.mxu0 %v2230
    %4224 = vmatpush1.bf16.msra.mxu0 %v2229
    %4225 = vmatprep.subr.bf16.mxu0 %v2238
    %4226 = vmatpush1.bf16.msra.mxu0 %v2237
    %4227 = vmatprep.subr.bf16.mxu0 %v2246
    %4228 = vmatpush1.bf16.msra.mxu0 %v2245
    %4229 = vmatprep.subr.bf16.mxu0 %v2254
    %4230 = vmatpush1.bf16.msra.mxu0 %v2253
    %4231 = vmatprep.subr.bf16.mxu0 %v2262
    %4232 = vmatpush1.bf16.msra.mxu0 %v2261
    %4233 = vmatprep.mubr.bf16.mxu0 %v3161
    %4234 = vmatmul.mubr.bf16.gmra.mrb[0].mxu0 %v3160
    %v4235 = vpop.f32.mrb[0].mxu0
    %v4236 = vadd.f32 %v3204, %v4235
    %v4237 = vpop.f32.mrb[0].mxu0
    %v4238 = vadd.f32 %v3208, %v4237
    %v4239 = vpop.f32.mrb[0].mxu0
    %v4240 = vpop.f32.mrb[0].mxu0
    %4241 = vdwg.mxu0
    %4242 = vmatprep.subr.bf16.mxu0 %v2270
    %4243 = vmatpush1.bf16.msra.mxu0 %v2269
    %4244 = vmatprep.subr.bf16.mxu0 %v2278
    %4245 = vmatpush1.bf16.msra.mxu0 %v2277
    %4246 = vmatprep.subr.bf16.mxu0 %v2286
    %4247 = vmatpush1.bf16.msra.mxu0 %v2285
    %4248 = vmatprep.subr.bf16.mxu0 %v2294
    %4249 = vmatpush1.bf16.msra.mxu0 %v2293
    %4250 = vmatprep.subr.bf16.mxu0 %v2302
    %4251 = vmatpush1.bf16.msra.mxu0 %v2301
    %4252 = vmatprep.subr.bf16.mxu0 %v2310
    %4253 = vmatpush1.bf16.msra.mxu0 %v2309
    %4254 = vmatprep.subr.bf16.mxu0 %v2318
    %4255 = vmatpush1.bf16.msra.mxu0 %v2317
    %4256 = vmatprep.subr.bf16.mxu0 %v2326
    %4257 = vmatpush1.bf16.msra.mxu0 %v2325
    %4258 = vmatprep.subr.bf16.mxu0 %v2334
    %4259 = vmatpush1.bf16.msra.mxu0 %v2333
    %4260 = vmatprep.subr.bf16.mxu0 %v2342
    %4261 = vmatpush1.bf16.msra.mxu0 %v2341
    %4262 = vmatprep.subr.bf16.mxu0 %v2350
    %4263 = vmatpush1.bf16.msra.mxu0 %v2349
    %4264 = vmatprep.subr.bf16.mxu0 %v2358
    %4265 = vmatpush1.bf16.msra.mxu0 %v2357
    %4266 = vmatprep.subr.bf16.mxu0 %v2366
    %4267 = vmatpush1.bf16.msra.mxu0 %v2365
    %4268 = vmatprep.subr.bf16.mxu0 %v2374
    %4269 = vmatpush1.bf16.msra.mxu0 %v2373
    %4270 = vmatprep.subr.bf16.mxu0 %v2382
    %4271 = vmatpush1.bf16.msra.mxu0 %v2381
    %4272 = vmatprep.subr.bf16.mxu0 %v2390
    %4273 = vmatpush1.bf16.msra.mxu0 %v2389
    %4274 = vmatprep.mubr.bf16.mxu0 %v3163
    %4275 = vmatmul.mubr.bf16.gmra.mrb[0].mxu0 %v3162
    %v4276 = vpop.f32.mrb[0].mxu0
    %v4277 = vadd.f32 %v4236, %v4276
    %v4278 = vpop.f32.mrb[0].mxu0
    %v4279 = vadd.f32 %v4238, %v4278
    %v4280 = vpop.f32.mrb[0].mxu0
    %v4281 = vpop.f32.mrb[0].mxu0
    %4282 = vdwg.mxu0
    %4283 = vmatprep.subr.bf16.mxu0 %v2398
    %4284 = vmatpush1.bf16.msra.mxu0 %v2397
    %4285 = vmatprep.subr.bf16.mxu0 %v2406
    %4286 = vmatpush1.bf16.msra.mxu0 %v2405
    %4287 = vmatprep.subr.bf16.mxu0 %v2414
    %4288 = vmatpush1.bf16.msra.mxu0 %v2413
    %4289 = vmatprep.subr.bf16.mxu0 %v2422
    %4290 = vmatpush1.bf16.msra.mxu0 %v2421
    %4291 = vmatprep.subr.bf16.mxu0 %v2430
    %4292 = vmatpush1.bf16.msra.mxu0 %v2429
    %4293 = vmatprep.subr.bf16.mxu0 %v2438
    %4294 = vmatpush1.bf16.msra.mxu0 %v2437
    %4295 = vmatprep.subr.bf16.mxu0 %v2446
    %4296 = vmatpush1.bf16.msra.mxu0 %v2445
    %4297 = vmatprep.subr.bf16.mxu0 %v2454
    %4298 = vmatpush1.bf16.msra.mxu0 %v2453
    %4299 = vmatprep.subr.bf16.mxu0 %v2462
    %4300 = vmatpush1.bf16.msra.mxu0 %v2461
    %4301 = vmatprep.subr.bf16.mxu0 %v2470
    %4302 = vmatpush1.bf16.msra.mxu0 %v2469
    %4303 = vmatprep.subr.bf16.mxu0 %v2478
    %4304 = vmatpush1.bf16.msra.mxu0 %v2477
    %4305 = vmatprep.subr.bf16.mxu0 %v2486
    %4306 = vmatpush1.bf16.msra.mxu0 %v2485
    %4307 = vmatprep.subr.bf16.mxu0 %v2494
    %4308 = vmatpush1.bf16.msra.mxu0 %v2493
    %4309 = vmatprep.subr.bf16.mxu0 %v2502
    %4310 = vmatpush1.bf16.msra.mxu0 %v2501
    %4311 = vmatprep.subr.bf16.mxu0 %v2510
    %4312 = vmatpush1.bf16.msra.mxu0 %v2509
    %4313 = vmatprep.subr.bf16.mxu0 %v2518
    %4314 = vmatpush1.bf16.msra.mxu0 %v2517
    %4315 = vmatprep.mubr.bf16.mxu0 %v3165
    %4316 = vmatmul.mubr.bf16.gmra.mrb[0].mxu0 %v3164
    %v4317 = vpop.f32.mrb[0].mxu0
    %v4318 = vadd.f32 %v4277, %v4317
    %v4319 = vpop.f32.mrb[0].mxu0
    %v4320 = vadd.f32 %v4279, %v4319
    %v4321 = vpop.f32.mrb[0].mxu0
    %v4322 = vpop.f32.mrb[0].mxu0
    %4323 = vdwg.mxu0
    %4324 = vmatprep.subr.bf16.mxu0 %v2526
    %4325 = vmatpush1.bf16.msra.mxu0 %v2525
    %4326 = vmatprep.subr.bf16.mxu0 %v2534
    %4327 = vmatpush1.bf16.msra.mxu0 %v2533
    %4328 = vmatprep.subr.bf16.mxu0 %v2542
    %4329 = vmatpush1.bf16.msra.mxu0 %v2541
    %4330 = vmatprep.subr.bf16.mxu0 %v2550
    %4331 = vmatpush1.bf16.msra.mxu0 %v2549
    %4332 = vmatprep.subr.bf16.mxu0 %v2558
    %4333 = vmatpush1.bf16.msra.mxu0 %v2557
    %4334 = vmatprep.subr.bf16.mxu0 %v2566
    %4335 = vmatpush1.bf16.msra.mxu0 %v2565
    %4336 = vmatprep.subr.bf16.mxu0 %v2574
    %4337 = vmatpush1.bf16.msra.mxu0 %v2573
    %4338 = vmatprep.subr.bf16.mxu0 %v2582
    %4339 = vmatpush1.bf16.msra.mxu0 %v2581
    %4340 = vmatprep.subr.bf16.mxu0 %v2590
    %4341 = vmatpush1.bf16.msra.mxu0 %v2589
    %4342 = vmatprep.subr.bf16.mxu0 %v2598
    %4343 = vmatpush1.bf16.msra.mxu0 %v2597
    %4344 = vmatprep.subr.bf16.mxu0 %v2606
    %4345 = vmatpush1.bf16.msra.mxu0 %v2605
    %4346 = vmatprep.subr.bf16.mxu0 %v2614
    %4347 = vmatpush1.bf16.msra.mxu0 %v2613
    %4348 = vmatprep.subr.bf16.mxu0 %v2622
    %4349 = vmatpush1.bf16.msra.mxu0 %v2621
    %4350 = vmatprep.subr.bf16.mxu0 %v2630
    %4351 = vmatpush1.bf16.msra.mxu0 %v2629
    %4352 = vmatprep.subr.bf16.mxu0 %v2638
    %4353 = vmatpush1.bf16.msra.mxu0 %v2637
    %4354 = vmatprep.subr.bf16.mxu0 %v2646
    %4355 = vmatpush1.bf16.msra.mxu0 %v2645
    %4356 = vmatprep.mubr.bf16.mxu0 %v3167
    %4357 = vmatmul.mubr.bf16.gmra.mrb[0].mxu0 %v3166
    %v4358 = vpop.f32.mrb[0].mxu0
    %v4359 = vadd.f32 %v4318, %v4358
    %v4360 = vpop.f32.mrb[0].mxu0
    %v4361 = vadd.f32 %v4320, %v4360
    %v4362 = vpop.f32.mrb[0].mxu0
    %v4363 = vpop.f32.mrb[0].mxu0
    %4364 = vdwg.mxu0
    %4365 = vmatprep.subr.bf16.mxu0 %v2654
    %4366 = vmatpush1.bf16.msra.mxu0 %v2653
    %4367 = vmatprep.subr.bf16.mxu0 %v2662
    %4368 = vmatpush1.bf16.msra.mxu0 %v2661
    %4369 = vmatprep.subr.bf16.mxu0 %v2670
    %4370 = vmatpush1.bf16.msra.mxu0 %v2669
    %4371 = vmatprep.subr.bf16.mxu0 %v2678
    %4372 = vmatpush1.bf16.msra.mxu0 %v2677
    %4373 = vmatprep.subr.bf16.mxu0 %v2686
    %4374 = vmatpush1.bf16.msra.mxu0 %v2685
    %4375 = vmatprep.subr.bf16.mxu0 %v2694
    %4376 = vmatpush1.bf16.msra.mxu0 %v2693
    %4377 = vmatprep.subr.bf16.mxu0 %v2702
    %4378 = vmatpush1.bf16.msra.mxu0 %v2701
    %4379 = vmatprep.subr.bf16.mxu0 %v2710
    %4380 = vmatpush1.bf16.msra.mxu0 %v2709
    %4381 = vmatprep.subr.bf16.mxu0 %v2718
    %4382 = vmatpush1.bf16.msra.mxu0 %v2717
    %4383 = vmatprep.subr.bf16.mxu0 %v2726
    %4384 = vmatpush1.bf16.msra.mxu0 %v2725
    %4385 = vmatprep.subr.bf16.mxu0 %v2734
    %4386 = vmatpush1.bf16.msra.mxu0 %v2733
    %4387 = vmatprep.subr.bf16.mxu0 %v2742
    %4388 = vmatpush1.bf16.msra.mxu0 %v2741
    %4389 = vmatprep.subr.bf16.mxu0 %v2750
    %4390 = vmatpush1.bf16.msra.mxu0 %v2749
    %4391 = vmatprep.subr.bf16.mxu0 %v2758
    %4392 = vmatpush1.bf16.msra.mxu0 %v2757
    %4393 = vmatprep.subr.bf16.mxu0 %v2766
    %4394 = vmatpush1.bf16.msra.mxu0 %v2765
    %4395 = vmatprep.subr.bf16.mxu0 %v2774
    %4396 = vmatpush1.bf16.msra.mxu0 %v2773
    %4397 = vmatprep.mubr.bf16.mxu0 %v3169
    %4398 = vmatmul.mubr.bf16.gmra.mrb[0].mxu0 %v3168
    %v4399 = vpop.f32.mrb[0].mxu0
    %v4400 = vadd.f32 %v4359, %v4399
    %v4401 = vpop.f32.mrb[0].mxu0
    %v4402 = vadd.f32 %v4361, %v4401
    %v4403 = vpop.f32.mrb[0].mxu0
    %v4404 = vpop.f32.mrb[0].mxu0
    %4405 = vdwg.mxu0
    %4406 = vmatprep.subr.bf16.mxu0 %v2782
    %4407 = vmatpush1.bf16.msra.mxu0 %v2781
    %4408 = vmatprep.subr.bf16.mxu0 %v2790
    %4409 = vmatpush1.bf16.msra.mxu0 %v2789
    %4410 = vmatprep.subr.bf16.mxu0 %v2798
    %4411 = vmatpush1.bf16.msra.mxu0 %v2797
    %4412 = vmatprep.subr.bf16.mxu0 %v2806
    %4413 = vmatpush1.bf16.msra.mxu0 %v2805
    %4414 = vmatprep.subr.bf16.mxu0 %v2814
    %4415 = vmatpush1.bf16.msra.mxu0 %v2813
    %4416 = vmatprep.subr.bf16.mxu0 %v2822
    %4417 = vmatpush1.bf16.msra.mxu0 %v2821
    %4418 = vmatprep.subr.bf16.mxu0 %v2830
    %4419 = vmatpush1.bf16.msra.mxu0 %v2829
    %4420 = vmatprep.subr.bf16.mxu0 %v2838
    %4421 = vmatpush1.bf16.msra.mxu0 %v2837
    %4422 = vmatprep.subr.bf16.mxu0 %v2846
    %4423 = vmatpush1.bf16.msra.mxu0 %v2845
    %4424 = vmatprep.subr.bf16.mxu0 %v2854
    %4425 = vmatpush1.bf16.msra.mxu0 %v2853
    %4426 = vmatprep.subr.bf16.mxu0 %v2862
    %4427 = vmatpush1.bf16.msra.mxu0 %v2861
    %4428 = vmatprep.subr.bf16.mxu0 %v2870
    %4429 = vmatpush1.bf16.msra.mxu0 %v2869
    %4430 = vmatprep.subr.bf16.mxu0 %v2878
    %4431 = vmatpush1.bf16.msra.mxu0 %v2877
    %4432 = vmatprep.subr.bf16.mxu0 %v2886
    %4433 = vmatpush1.bf16.msra.mxu0 %v2885
    %4434 = vmatprep.subr.bf16.mxu0 %v2894
    %4435 = vmatpush1.bf16.msra.mxu0 %v2893
    %4436 = vmatprep.subr.bf16.mxu0 %v2902
    %4437 = vmatpush1.bf16.msra.mxu0 %v2901
    %4438 = vmatprep.mubr.bf16.mxu0 %v3171
    %4439 = vmatmul.mubr.bf16.gmra.mrb[0].mxu0 %v3170
    %v4440 = vpop.f32.mrb[0].mxu0
    %v4441 = vadd.f32 %v4400, %v4440
    %v4442 = vpop.f32.mrb[0].mxu0
    %v4443 = vadd.f32 %v4402, %v4442
    %v4444 = vpop.f32.mrb[0].mxu0
    %v4445 = vpop.f32.mrb[0].mxu0
    %4446 = vdwg.mxu0
    %4447 = vmatprep.subr.bf16.mxu0 %v2910
    %4448 = vmatpush1.bf16.msra.mxu0 %v2909
    %4449 = vmatprep.subr.bf16.mxu0 %v2918
    %4450 = vmatpush1.bf16.msra.mxu0 %v2917
    %4451 = vmatprep.subr.bf16.mxu0 %v2926
    %4452 = vmatpush1.bf16.msra.mxu0 %v2925
    %4453 = vmatprep.subr.bf16.mxu0 %v2934
    %4454 = vmatpush1.bf16.msra.mxu0 %v2933
    %4455 = vmatprep.subr.bf16.mxu0 %v2942
    %4456 = vmatpush1.bf16.msra.mxu0 %v2941
    %4457 = vmatprep.subr.bf16.mxu0 %v2950
    %4458 = vmatpush1.bf16.msra.mxu0 %v2949
    %4459 = vmatprep.subr.bf16.mxu0 %v2958
    %4460 = vmatpush1.bf16.msra.mxu0 %v2957
    %4461 = vmatprep.subr.bf16.mxu0 %v2966
    %4462 = vmatpush1.bf16.msra.mxu0 %v2965
    %4463 = vmatprep.subr.bf16.mxu0 %v2974
    %4464 = vmatpush1.bf16.msra.mxu0 %v2973
    %4465 = vmatprep.subr.bf16.mxu0 %v2982
    %4466 = vmatpush1.bf16.msra.mxu0 %v2981
    %4467 = vmatprep.subr.bf16.mxu0 %v2990
    %4468 = vmatpush1.bf16.msra.mxu0 %v2989
    %4469 = vmatprep.subr.bf16.mxu0 %v2998
    %4470 = vmatpush1.bf16.msra.mxu0 %v2997
    %4471 = vmatprep.subr.bf16.mxu0 %v3006
    %4472 = vmatpush1.bf16.msra.mxu0 %v3005
    %4473 = vmatprep.subr.bf16.mxu0 %v3014
    %4474 = vmatpush1.bf16.msra.mxu0 %v3013
    %4475 = vmatprep.subr.bf16.mxu0 %v3022
    %4476 = vmatpush1.bf16.msra.mxu0 %v3021
    %4477 = vmatprep.subr.bf16.mxu0 %v3030
    %4478 = vmatpush1.bf16.msra.mxu0 %v3029
    %4479 = vmatprep.mubr.bf16.mxu0 %v3173
    %4480 = vmatmul.mubr.bf16.gmra.mrb[0].mxu0 %v3172
    %v4481 = vpop.f32.mrb[0].mxu0
    %v4482 = vadd.f32 %v4441, %v4481
    %v4483 = vpop.f32.mrb[0].mxu0
    %v4484 = vadd.f32 %v4443, %v4483
    %v4485 = vpop.f32.mrb[0].mxu0
    %v4486 = vpop.f32.mrb[0].mxu0
    %4487 = vdwg.mxu0
    %4488 = vmatprep.subr.bf16.mxu0 %v3038
    %4489 = vmatpush1.bf16.msra.mxu0 %v3037
    %4490 = vmatprep.subr.bf16.mxu0 %v3046
    %4491 = vmatpush1.bf16.msra.mxu0 %v3045
    %4492 = vmatprep.subr.bf16.mxu0 %v3054
    %4493 = vmatpush1.bf16.msra.mxu0 %v3053
    %4494 = vmatprep.subr.bf16.mxu0 %v3062
    %4495 = vmatpush1.bf16.msra.mxu0 %v3061
    %4496 = vmatprep.subr.bf16.mxu0 %v3070
    %4497 = vmatpush1.bf16.msra.mxu0 %v3069
    %4498 = vmatprep.subr.bf16.mxu0 %v3078
    %4499 = vmatpush1.bf16.msra.mxu0 %v3077
    %4500 = vmatprep.subr.bf16.mxu0 %v3086
    %4501 = vmatpush1.bf16.msra.mxu0 %v3085
    %4502 = vmatprep.subr.bf16.mxu0 %v3094
    %4503 = vmatpush1.bf16.msra.mxu0 %v3093
    %4504 = vmatprep.subr.bf16.mxu0 %v3102
    %4505 = vmatpush1.bf16.msra.mxu0 %v3101
    %4506 = vmatprep.subr.bf16.mxu0 %v3110
    %4507 = vmatpush1.bf16.msra.mxu0 %v3109
    %4508 = vmatprep.subr.bf16.mxu0 %v3118
    %4509 = vmatpush1.bf16.msra.mxu0 %v3117
    %4510 = vmatprep.subr.bf16.mxu0 %v3126
    %4511 = vmatpush1.bf16.msra.mxu0 %v3125
    %4512 = vmatprep.subr.bf16.mxu0 %v3134
    %4513 = vmatpush1.bf16.msra.mxu0 %v3133
    %4514 = vmatprep.subr.bf16.mxu0 %v3142
    %4515 = vmatpush1.bf16.msra.mxu0 %v3141
    %4516 = vmatprep.subr.bf16.mxu0 %v3150
    %4517 = vmatpush1.bf16.msra.mxu0 %v3149
    %4518 = vmatprep.subr.bf16.mxu0 %v3158
    %4519 = vmatpush1.bf16.msra.mxu0 %v3157
    %4520 = vmatprep.mubr.bf16.mxu0 %v3175
    %4521 = vmatmul.mubr.bf16.gmra.mrb[0].mxu0 %v3174
    %v4522 = vpop.f32.mrb[0].mxu0
    %v4523 = vadd.f32 %v4482, %v4522
    %v4524 = vpop.f32.mrb[0].mxu0
    %v4525 = vadd.f32 %v4484, %v4524
    %v4526 = vpop.f32.mrb[0].mxu0
    %v4527 = vpop.f32.mrb[0].mxu0
    %4528 = vdwg.mxu0
    %v4529 = vmax.f32 %v3539, 0.0
    %v4530 = vmax.f32 %v3541, 0.0
    %v4531 = vmax.f32 %v3867, 0.0
    %v4532 = vmax.f32 %v3869, 0.0
    %v4533 = vmax.f32 %v4195, 0.0
    %v4534 = vmax.f32 %v4197, 0.0
    %v4535 = vmax.f32 %v4523, 0.0
    %v4536 = vmax.f32 %v4525, 0.0
    %v4537 = vld [vmem:[#allocation11] sm:$0xff]
    %v4538 = vld [vmem:[#allocation11 + $0x8] sm:$0xff]
    %v4539 = vld [vmem:[#allocation11 + $0x10] sm:$0xff]
    %v4540 = vld [vmem:[#allocation11 + $0x18] sm:$0xff]
    %v4541 = vld [vmem:[#allocation11 + $0x20] sm:$0xff]
    %v4542 = vld [vmem:[#allocation11 + $0x28] sm:$0xff]
    %v4543 = vld [vmem:[#allocation11 + $0x30] sm:$0xff]
    %v4544 = vld [vmem:[#allocation11 + $0x38] sm:$0xff]
    %v4545 = vld [vmem:[#allocation11 + $0x40] sm:$0xff]
    %v4546 = vld [vmem:[#allocation11 + $0x48] sm:$0xff]
    %v4547 = vld [vmem:[#allocation11 + $0x50] sm:$0xff]
    %v4548 = vld [vmem:[#allocation11 + $0x58] sm:$0xff]
    %v4549 = vld [vmem:[#allocation11 + $0x60] sm:$0xff]
    %v4550 = vld [vmem:[#allocation11 + $0x68] sm:$0xff]
    %v4551 = vld [vmem:[#allocation11 + $0x70] sm:$0xff]
    %v4552 = vld [vmem:[#allocation11 + $0x78] sm:$0xff]
    %v4553 = vld [vmem:[#allocation11 + $0x80] sm:$0xff]
    %v4554 = vld [vmem:[#allocation11 + $0x88] sm:$0xff]
    %v4555 = vld [vmem:[#allocation11 + $0x90] sm:$0xff]
    %v4556 = vld [vmem:[#allocation11 + $0x98] sm:$0xff]
    %v4557 = vld [vmem:[#allocation11 + $0xa0] sm:$0xff]
    %v4558 = vld [vmem:[#allocation11 + $0xa8] sm:$0xff]
    %v4559 = vld [vmem:[#allocation11 + $0xb0] sm:$0xff]
    %v4560 = vld [vmem:[#allocation11 + $0xb8] sm:$0xff]
    %v4561 = vld [vmem:[#allocation11 + $0xc0] sm:$0xff]
    %v4562 = vld [vmem:[#allocation11 + $0xc8] sm:$0xff]
    %v4563 = vld [vmem:[#allocation11 + $0xd0] sm:$0xff]
    %v4564 = vld [vmem:[#allocation11 + $0xd8] sm:$0xff]
    %v4565 = vld [vmem:[#allocation11 + $0xe0] sm:$0xff]
    %v4566 = vld [vmem:[#allocation11 + $0xe8] sm:$0xff]
    %v4567 = vld [vmem:[#allocation11 + $0xf0] sm:$0xff]
    %v4568 = vld [vmem:[#allocation11 + $0xf8] sm:$0xff]
    %v4569 = vld [vmem:[#allocation11 + $0x100] sm:$0xff]
    %v4570 = vld [vmem:[#allocation11 + $0x108] sm:$0xff]
    %v4571 = vld [vmem:[#allocation11 + $0x110] sm:$0xff]
    %v4572 = vld [vmem:[#allocation11 + $0x118] sm:$0xff]
    %v4573 = vld [vmem:[#allocation11 + $0x120] sm:$0xff]
    %v4574 = vld [vmem:[#allocation11 + $0x128] sm:$0xff]
    %v4575 = vld [vmem:[#allocation11 + $0x130] sm:$0xff]
    %v4576 = vld [vmem:[#allocation11 + $0x138] sm:$0xff]
    %v4577 = vld [vmem:[#allocation11 + $0x140] sm:$0xff]
    %v4578 = vld [vmem:[#allocation11 + $0x148] sm:$0xff]
    %v4579 = vld [vmem:[#allocation11 + $0x150] sm:$0xff]
    %v4580 = vld [vmem:[#allocation11 + $0x158] sm:$0xff]
    %v4581 = vld [vmem:[#allocation11 + $0x160] sm:$0xff]
    %v4582 = vld [vmem:[#allocation11 + $0x168] sm:$0xff]
    %v4583 = vld [vmem:[#allocation11 + $0x170] sm:$0xff]
    %v4584 = vld [vmem:[#allocation11 + $0x178] sm:$0xff]
    %v4585 = vld [vmem:[#allocation11 + $0x180] sm:$0xff]
    %v4586 = vld [vmem:[#allocation11 + $0x188] sm:$0xff]
    %v4587 = vld [vmem:[#allocation11 + $0x190] sm:$0xff]
    %v4588 = vld [vmem:[#allocation11 + $0x198] sm:$0xff]
    %v4589 = vld [vmem:[#allocation11 + $0x1a0] sm:$0xff]
    %v4590 = vld [vmem:[#allocation11 + $0x1a8] sm:$0xff]
    %v4591 = vld [vmem:[#allocation11 + $0x1b0] sm:$0xff]
    %v4592 = vld [vmem:[#allocation11 + $0x1b8] sm:$0xff]
    %v4593 = vld [vmem:[#allocation11 + $0x1c0] sm:$0xff]
    %v4594 = vld [vmem:[#allocation11 + $0x1c8] sm:$0xff]
    %v4595 = vld [vmem:[#allocation11 + $0x1d0] sm:$0xff]
    %v4596 = vld [vmem:[#allocation11 + $0x1d8] sm:$0xff]
    %v4597 = vld [vmem:[#allocation11 + $0x1e0] sm:$0xff]
    %v4598 = vld [vmem:[#allocation11 + $0x1e8] sm:$0xff]
    %v4599 = vld [vmem:[#allocation11 + $0x1f0] sm:$0xff]
    %v4600 = vld [vmem:[#allocation11 + $0x1f8] sm:$0xff]
    %v4601 = vld [vmem:[#allocation11 + $0x200] sm:$0xff]
    %v4602 = vld [vmem:[#allocation11 + $0x208] sm:$0xff]
    %v4603 = vld [vmem:[#allocation11 + $0x210] sm:$0xff]
    %v4604 = vld [vmem:[#allocation11 + $0x218] sm:$0xff]
    %v4605 = vld [vmem:[#allocation11 + $0x220] sm:$0xff]
    %v4606 = vld [vmem:[#allocation11 + $0x228] sm:$0xff]
    %v4607 = vld [vmem:[#allocation11 + $0x230] sm:$0xff]
    %v4608 = vld [vmem:[#allocation11 + $0x238] sm:$0xff]
    %v4609 = vld [vmem:[#allocation11 + $0x240] sm:$0xff]
    %v4610 = vld [vmem:[#allocation11 + $0x248] sm:$0xff]
    %v4611 = vld [vmem:[#allocation11 + $0x250] sm:$0xff]
    %v4612 = vld [vmem:[#allocation11 + $0x258] sm:$0xff]
    %v4613 = vld [vmem:[#allocation11 + $0x260] sm:$0xff]
    %v4614 = vld [vmem:[#allocation11 + $0x268] sm:$0xff]
    %v4615 = vld [vmem:[#allocation11 + $0x270] sm:$0xff]
    %v4616 = vld [vmem:[#allocation11 + $0x278] sm:$0xff]
    %v4617 = vld [vmem:[#allocation11 + $0x280] sm:$0xff]
    %v4618 = vld [vmem:[#allocation11 + $0x288] sm:$0xff]
    %v4619 = vld [vmem:[#allocation11 + $0x290] sm:$0xff]
    %v4620 = vld [vmem:[#allocation11 + $0x298] sm:$0xff]
    %v4621 = vld [vmem:[#allocation11 + $0x2a0] sm:$0xff]
    %v4622 = vld [vmem:[#allocation11 + $0x2a8] sm:$0xff]
    %v4623 = vld [vmem:[#allocation11 + $0x2b0] sm:$0xff]
    %v4624 = vld [vmem:[#allocation11 + $0x2b8] sm:$0xff]
    %v4625 = vld [vmem:[#allocation11 + $0x2c0] sm:$0xff]
    %v4626 = vld [vmem:[#allocation11 + $0x2c8] sm:$0xff]
    %v4627 = vld [vmem:[#allocation11 + $0x2d0] sm:$0xff]
    %v4628 = vld [vmem:[#allocation11 + $0x2d8] sm:$0xff]
    %v4629 = vld [vmem:[#allocation11 + $0x2e0] sm:$0xff]
    %v4630 = vld [vmem:[#allocation11 + $0x2e8] sm:$0xff]
    %v4631 = vld [vmem:[#allocation11 + $0x2f0] sm:$0xff]
    %v4632 = vld [vmem:[#allocation11 + $0x2f8] sm:$0xff]
    %v4633 = vld [vmem:[#allocation11 + $0x300] sm:$0xff]
    %v4634 = vld [vmem:[#allocation11 + $0x308] sm:$0xff]
    %v4635 = vld [vmem:[#allocation11 + $0x310] sm:$0xff]
    %v4636 = vld [vmem:[#allocation11 + $0x318] sm:$0xff]
    %v4637 = vld [vmem:[#allocation11 + $0x320] sm:$0xff]
    %v4638 = vld [vmem:[#allocation11 + $0x328] sm:$0xff]
    %v4639 = vld [vmem:[#allocation11 + $0x330] sm:$0xff]
    %v4640 = vld [vmem:[#allocation11 + $0x338] sm:$0xff]
    %v4641 = vld [vmem:[#allocation11 + $0x340] sm:$0xff]
    %v4642 = vld [vmem:[#allocation11 + $0x348] sm:$0xff]
    %v4643 = vld [vmem:[#allocation11 + $0x350] sm:$0xff]
    %v4644 = vld [vmem:[#allocation11 + $0x358] sm:$0xff]
    %v4645 = vld [vmem:[#allocation11 + $0x360] sm:$0xff]
    %v4646 = vld [vmem:[#allocation11 + $0x368] sm:$0xff]
    %v4647 = vld [vmem:[#allocation11 + $0x370] sm:$0xff]
    %v4648 = vld [vmem:[#allocation11 + $0x378] sm:$0xff]
    %v4649 = vld [vmem:[#allocation11 + $0x380] sm:$0xff]
    %v4650 = vld [vmem:[#allocation11 + $0x388] sm:$0xff]
    %v4651 = vld [vmem:[#allocation11 + $0x390] sm:$0xff]
    %v4652 = vld [vmem:[#allocation11 + $0x398] sm:$0xff]
    %v4653 = vld [vmem:[#allocation11 + $0x3a0] sm:$0xff]
    %v4654 = vld [vmem:[#allocation11 + $0x3a8] sm:$0xff]
    %v4655 = vld [vmem:[#allocation11 + $0x3b0] sm:$0xff]
    %v4656 = vld [vmem:[#allocation11 + $0x3b8] sm:$0xff]
    %v4657 = vld [vmem:[#allocation11 + $0x3c0] sm:$0xff]
    %v4658 = vld [vmem:[#allocation11 + $0x3c8] sm:$0xff]
    %v4659 = vld [vmem:[#allocation11 + $0x3d0] sm:$0xff]
    %v4660 = vld [vmem:[#allocation11 + $0x3d8] sm:$0xff]
    %v4661 = vld [vmem:[#allocation11 + $0x3e0] sm:$0xff]
    %v4662 = vld [vmem:[#allocation11 + $0x3e8] sm:$0xff]
    %v4663 = vld [vmem:[#allocation11 + $0x3f0] sm:$0xff]
    %v4664 = vld [vmem:[#allocation11 + $0x3f8] sm:$0xff]
    %v4665 = vld [vmem:[#allocation11 + $0x400] sm:$0xff]
    %v4666 = vld [vmem:[#allocation11 + $0x408] sm:$0xff]
    %v4667 = vld [vmem:[#allocation11 + $0x410] sm:$0xff]
    %v4668 = vld [vmem:[#allocation11 + $0x418] sm:$0xff]
    %v4669 = vld [vmem:[#allocation11 + $0x420] sm:$0xff]
    %v4670 = vld [vmem:[#allocation11 + $0x428] sm:$0xff]
    %v4671 = vld [vmem:[#allocation11 + $0x430] sm:$0xff]
    %v4672 = vld [vmem:[#allocation11 + $0x438] sm:$0xff]
    %v4673 = vld [vmem:[#allocation11 + $0x440] sm:$0xff]
    %v4674 = vld [vmem:[#allocation11 + $0x448] sm:$0xff]
    %v4675 = vld [vmem:[#allocation11 + $0x450] sm:$0xff]
    %v4676 = vld [vmem:[#allocation11 + $0x458] sm:$0xff]
    %v4677 = vld [vmem:[#allocation11 + $0x460] sm:$0xff]
    %v4678 = vld [vmem:[#allocation11 + $0x468] sm:$0xff]
    %v4679 = vld [vmem:[#allocation11 + $0x470] sm:$0xff]
    %v4680 = vld [vmem:[#allocation11 + $0x478] sm:$0xff]
    %v4681 = vld [vmem:[#allocation11 + $0x480] sm:$0xff]
    %v4682 = vld [vmem:[#allocation11 + $0x488] sm:$0xff]
    %v4683 = vld [vmem:[#allocation11 + $0x490] sm:$0xff]
    %v4684 = vld [vmem:[#allocation11 + $0x498] sm:$0xff]
    %v4685 = vld [vmem:[#allocation11 + $0x4a0] sm:$0xff]
    %v4686 = vld [vmem:[#allocation11 + $0x4a8] sm:$0xff]
    %v4687 = vld [vmem:[#allocation11 + $0x4b0] sm:$0xff]
    %v4688 = vld [vmem:[#allocation11 + $0x4b8] sm:$0xff]
    %v4689 = vld [vmem:[#allocation11 + $0x4c0] sm:$0xff]
    %v4690 = vld [vmem:[#allocation11 + $0x4c8] sm:$0xff]
    %v4691 = vld [vmem:[#allocation11 + $0x4d0] sm:$0xff]
    %v4692 = vld [vmem:[#allocation11 + $0x4d8] sm:$0xff]
    %v4693 = vld [vmem:[#allocation11 + $0x4e0] sm:$0xff]
    %v4694 = vld [vmem:[#allocation11 + $0x4e8] sm:$0xff]
    %v4695 = vld [vmem:[#allocation11 + $0x4f0] sm:$0xff]
    %v4696 = vld [vmem:[#allocation11 + $0x4f8] sm:$0xff]
    %v4697 = vld [vmem:[#allocation11 + $0x500] sm:$0xff]
    %v4698 = vld [vmem:[#allocation11 + $0x508] sm:$0xff]
    %v4699 = vld [vmem:[#allocation11 + $0x510] sm:$0xff]
    %v4700 = vld [vmem:[#allocation11 + $0x518] sm:$0xff]
    %v4701 = vld [vmem:[#allocation11 + $0x520] sm:$0xff]
    %v4702 = vld [vmem:[#allocation11 + $0x528] sm:$0xff]
    %v4703 = vld [vmem:[#allocation11 + $0x530] sm:$0xff]
    %v4704 = vld [vmem:[#allocation11 + $0x538] sm:$0xff]
    %v4705 = vld [vmem:[#allocation11 + $0x540] sm:$0xff]
    %v4706 = vld [vmem:[#allocation11 + $0x548] sm:$0xff]
    %v4707 = vld [vmem:[#allocation11 + $0x550] sm:$0xff]
    %v4708 = vld [vmem:[#allocation11 + $0x558] sm:$0xff]
    %v4709 = vld [vmem:[#allocation11 + $0x560] sm:$0xff]
    %v4710 = vld [vmem:[#allocation11 + $0x568] sm:$0xff]
    %v4711 = vld [vmem:[#allocation11 + $0x570] sm:$0xff]
    %v4712 = vld [vmem:[#allocation11 + $0x578] sm:$0xff]
    %v4713 = vld [vmem:[#allocation11 + $0x580] sm:$0xff]
    %v4714 = vld [vmem:[#allocation11 + $0x588] sm:$0xff]
    %v4715 = vld [vmem:[#allocation11 + $0x590] sm:$0xff]
    %v4716 = vld [vmem:[#allocation11 + $0x598] sm:$0xff]
    %v4717 = vld [vmem:[#allocation11 + $0x5a0] sm:$0xff]
    %v4718 = vld [vmem:[#allocation11 + $0x5a8] sm:$0xff]
    %v4719 = vld [vmem:[#allocation11 + $0x5b0] sm:$0xff]
    %v4720 = vld [vmem:[#allocation11 + $0x5b8] sm:$0xff]
    %v4721 = vld [vmem:[#allocation11 + $0x5c0] sm:$0xff]
    %v4722 = vld [vmem:[#allocation11 + $0x5c8] sm:$0xff]
    %v4723 = vld [vmem:[#allocation11 + $0x5d0] sm:$0xff]
    %v4724 = vld [vmem:[#allocation11 + $0x5d8] sm:$0xff]
    %v4725 = vld [vmem:[#allocation11 + $0x5e0] sm:$0xff]
    %v4726 = vld [vmem:[#allocation11 + $0x5e8] sm:$0xff]
    %v4727 = vld [vmem:[#allocation11 + $0x5f0] sm:$0xff]
    %v4728 = vld [vmem:[#allocation11 + $0x5f8] sm:$0xff]
    %v4729 = vld [vmem:[#allocation11 + $0x600] sm:$0xff]
    %v4730 = vld [vmem:[#allocation11 + $0x608] sm:$0xff]
    %v4731 = vld [vmem:[#allocation11 + $0x610] sm:$0xff]
    %v4732 = vld [vmem:[#allocation11 + $0x618] sm:$0xff]
    %v4733 = vld [vmem:[#allocation11 + $0x620] sm:$0xff]
    %v4734 = vld [vmem:[#allocation11 + $0x628] sm:$0xff]
    %v4735 = vld [vmem:[#allocation11 + $0x630] sm:$0xff]
    %v4736 = vld [vmem:[#allocation11 + $0x638] sm:$0xff]
    %v4737 = vld [vmem:[#allocation11 + $0x640] sm:$0xff]
    %v4738 = vld [vmem:[#allocation11 + $0x648] sm:$0xff]
    %v4739 = vld [vmem:[#allocation11 + $0x650] sm:$0xff]
    %v4740 = vld [vmem:[#allocation11 + $0x658] sm:$0xff]
    %v4741 = vld [vmem:[#allocation11 + $0x660] sm:$0xff]
    %v4742 = vld [vmem:[#allocation11 + $0x668] sm:$0xff]
    %v4743 = vld [vmem:[#allocation11 + $0x670] sm:$0xff]
    %v4744 = vld [vmem:[#allocation11 + $0x678] sm:$0xff]
    %v4745 = vld [vmem:[#allocation11 + $0x680] sm:$0xff]
    %v4746 = vld [vmem:[#allocation11 + $0x688] sm:$0xff]
    %v4747 = vld [vmem:[#allocation11 + $0x690] sm:$0xff]
    %v4748 = vld [vmem:[#allocation11 + $0x698] sm:$0xff]
    %v4749 = vld [vmem:[#allocation11 + $0x6a0] sm:$0xff]
    %v4750 = vld [vmem:[#allocation11 + $0x6a8] sm:$0xff]
    %v4751 = vld [vmem:[#allocation11 + $0x6b0] sm:$0xff]
    %v4752 = vld [vmem:[#allocation11 + $0x6b8] sm:$0xff]
    %v4753 = vld [vmem:[#allocation11 + $0x6c0] sm:$0xff]
    %v4754 = vld [vmem:[#allocation11 + $0x6c8] sm:$0xff]
    %v4755 = vld [vmem:[#allocation11 + $0x6d0] sm:$0xff]
    %v4756 = vld [vmem:[#allocation11 + $0x6d8] sm:$0xff]
    %v4757 = vld [vmem:[#allocation11 + $0x6e0] sm:$0xff]
    %v4758 = vld [vmem:[#allocation11 + $0x6e8] sm:$0xff]
    %v4759 = vld [vmem:[#allocation11 + $0x6f0] sm:$0xff]
    %v4760 = vld [vmem:[#allocation11 + $0x6f8] sm:$0xff]
    %v4761 = vld [vmem:[#allocation11 + $0x700] sm:$0xff]
    %v4762 = vld [vmem:[#allocation11 + $0x708] sm:$0xff]
    %v4763 = vld [vmem:[#allocation11 + $0x710] sm:$0xff]
    %v4764 = vld [vmem:[#allocation11 + $0x718] sm:$0xff]
    %v4765 = vld [vmem:[#allocation11 + $0x720] sm:$0xff]
    %v4766 = vld [vmem:[#allocation11 + $0x728] sm:$0xff]
    %v4767 = vld [vmem:[#allocation11 + $0x730] sm:$0xff]
    %v4768 = vld [vmem:[#allocation11 + $0x738] sm:$0xff]
    %v4769 = vld [vmem:[#allocation11 + $0x740] sm:$0xff]
    %v4770 = vld [vmem:[#allocation11 + $0x748] sm:$0xff]
    %v4771 = vld [vmem:[#allocation11 + $0x750] sm:$0xff]
    %v4772 = vld [vmem:[#allocation11 + $0x758] sm:$0xff]
    %v4773 = vld [vmem:[#allocation11 + $0x760] sm:$0xff]
    %v4774 = vld [vmem:[#allocation11 + $0x768] sm:$0xff]
    %v4775 = vld [vmem:[#allocation11 + $0x770] sm:$0xff]
    %v4776 = vld [vmem:[#allocation11 + $0x778] sm:$0xff]
    %v4777 = vld [vmem:[#allocation11 + $0x780] sm:$0xff]
    %v4778 = vld [vmem:[#allocation11 + $0x788] sm:$0xff]
    %v4779 = vld [vmem:[#allocation11 + $0x790] sm:$0xff]
    %v4780 = vld [vmem:[#allocation11 + $0x798] sm:$0xff]
    %v4781 = vld [vmem:[#allocation11 + $0x7a0] sm:$0xff]
    %v4782 = vld [vmem:[#allocation11 + $0x7a8] sm:$0xff]
    %v4783 = vld [vmem:[#allocation11 + $0x7b0] sm:$0xff]
    %v4784 = vld [vmem:[#allocation11 + $0x7b8] sm:$0xff]
    %v4785 = vld [vmem:[#allocation11 + $0x7c0] sm:$0xff]
    %v4786 = vld [vmem:[#allocation11 + $0x7c8] sm:$0xff]
    %v4787 = vld [vmem:[#allocation11 + $0x7d0] sm:$0xff]
    %v4788 = vld [vmem:[#allocation11 + $0x7d8] sm:$0xff]
    %v4789 = vld [vmem:[#allocation11 + $0x7e0] sm:$0xff]
    %v4790 = vld [vmem:[#allocation11 + $0x7e8] sm:$0xff]
    %v4791 = vld [vmem:[#allocation11 + $0x7f0] sm:$0xff]
    %v4792 = vld [vmem:[#allocation11 + $0x7f8] sm:$0xff]
    %v4793 = vld [vmem:[#allocation13] sm:$0xf]
    %v4794 = vpack.c.bf16 %v4529, %v4529
    %v4795 = vpack.c.bf16 %v4530, %v4530
    %v4796 = vpack.c.bf16 %v4531, %v4531
    %v4797 = vpack.c.bf16 %v4532, %v4532
    %v4798 = vpack.c.bf16 %v4533, %v4533
    %v4799 = vpack.c.bf16 %v4534, %v4534
    %v4800 = vpack.c.bf16 %v4535, %v4535
    %v4801 = vpack.c.bf16 %v4536, %v4536
    %v4803 = vlaneseq
    %v4804 = vshrl.u32 %v4803, 7
    %v4805 = vsub.s32 0, %v4804
    %v4806 = vrot.slane %v4793, %v4805
    %v4807 = vlaneseq
    %v4808 = vshrl.u32 %v4807, 7
    %v4809 = vsub.s32 1, %v4808
    %v4810 = vrot.slane %v4793, %v4809
    %v4811 = vlaneseq
    %v4812 = vshrl.u32 %v4811, 7
    %v4813 = vsub.s32 2, %v4812
    %v4814 = vrot.slane %v4793, %v4813
    %v4815 = vlaneseq
    %v4816 = vshrl.u32 %v4815, 7
    %v4817 = vsub.s32 3, %v4816
    %v4818 = vrot.slane %v4793, %v4817
    %v5079 = vunpack.c.l.b16 %v4537
    %v5080 = vunpack.c.h.b16 %v4537
    %v5081 = vunpack.c.l.b16 %v4538
    %v5082 = vunpack.c.h.b16 %v4538
    %v5083 = vunpack.c.l.b16 %v4539
    %v5084 = vunpack.c.h.b16 %v4539
    %v5085 = vunpack.c.l.b16 %v4540
    %v5086 = vunpack.c.h.b16 %v4540
    %v5087 = vunpack.c.l.b16 %v4541
    %v5088 = vunpack.c.h.b16 %v4541
    %v5089 = vunpack.c.l.b16 %v4542
    %v5090 = vunpack.c.h.b16 %v4542
    %v5091 = vunpack.c.l.b16 %v4543
    %v5092 = vunpack.c.h.b16 %v4543
    %v5093 = vunpack.c.l.b16 %v4544
    %v5094 = vunpack.c.h.b16 %v4544
    %v5095 = vunpack.c.l.b16 %v4545
    %v5096 = vunpack.c.h.b16 %v4545
    %v5097 = vunpack.c.l.b16 %v4546
    %v5098 = vunpack.c.h.b16 %v4546
    %v5099 = vunpack.c.l.b16 %v4547
    %v5100 = vunpack.c.h.b16 %v4547
    %v5101 = vunpack.c.l.b16 %v4548
    %v5102 = vunpack.c.h.b16 %v4548
    %v5103 = vunpack.c.l.b16 %v4549
    %v5104 = vunpack.c.h.b16 %v4549
    %v5105 = vunpack.c.l.b16 %v4550
    %v5106 = vunpack.c.h.b16 %v4550
    %v5107 = vunpack.c.l.b16 %v4551
    %v5108 = vunpack.c.h.b16 %v4551
    %v5109 = vunpack.c.l.b16 %v4552
    %v5110 = vunpack.c.h.b16 %v4552
    %v5111 = vunpack.c.l.b16 %v4553
    %v5112 = vunpack.c.h.b16 %v4553
    %v5113 = vunpack.c.l.b16 %v4554
    %v5114 = vunpack.c.h.b16 %v4554
    %v5115 = vunpack.c.l.b16 %v4555
    %v5116 = vunpack.c.h.b16 %v4555
    %v5117 = vunpack.c.l.b16 %v4556
    %v5118 = vunpack.c.h.b16 %v4556
    %v5119 = vunpack.c.l.b16 %v4557
    %v5120 = vunpack.c.h.b16 %v4557
    %v5121 = vunpack.c.l.b16 %v4558
    %v5122 = vunpack.c.h.b16 %v4558
    %v5123 = vunpack.c.l.b16 %v4559
    %v5124 = vunpack.c.h.b16 %v4559
    %v5125 = vunpack.c.l.b16 %v4560
    %v5126 = vunpack.c.h.b16 %v4560
    %v5127 = vunpack.c.l.b16 %v4561
    %v5128 = vunpack.c.h.b16 %v4561
    %v5129 = vunpack.c.l.b16 %v4562
    %v5130 = vunpack.c.h.b16 %v4562
    %v5131 = vunpack.c.l.b16 %v4563
    %v5132 = vunpack.c.h.b16 %v4563
    %v5133 = vunpack.c.l.b16 %v4564
    %v5134 = vunpack.c.h.b16 %v4564
    %v5135 = vunpack.c.l.b16 %v4565
    %v5136 = vunpack.c.h.b16 %v4565
    %v5137 = vunpack.c.l.b16 %v4566
    %v5138 = vunpack.c.h.b16 %v4566
    %v5139 = vunpack.c.l.b16 %v4567
    %v5140 = vunpack.c.h.b16 %v4567
    %v5141 = vunpack.c.l.b16 %v4568
    %v5142 = vunpack.c.h.b16 %v4568
    %v5143 = vunpack.c.l.b16 %v4569
    %v5144 = vunpack.c.h.b16 %v4569
    %v5145 = vunpack.c.l.b16 %v4570
    %v5146 = vunpack.c.h.b16 %v4570
    %v5147 = vunpack.c.l.b16 %v4571
    %v5148 = vunpack.c.h.b16 %v4571
    %v5149 = vunpack.c.l.b16 %v4572
    %v5150 = vunpack.c.h.b16 %v4572
    %v5151 = vunpack.c.l.b16 %v4573
    %v5152 = vunpack.c.h.b16 %v4573
    %v5153 = vunpack.c.l.b16 %v4574
    %v5154 = vunpack.c.h.b16 %v4574
    %v5155 = vunpack.c.l.b16 %v4575
    %v5156 = vunpack.c.h.b16 %v4575
    %v5157 = vunpack.c.l.b16 %v4576
    %v5158 = vunpack.c.h.b16 %v4576
    %v5159 = vunpack.c.l.b16 %v4577
    %v5160 = vunpack.c.h.b16 %v4577
    %v5161 = vunpack.c.l.b16 %v4578
    %v5162 = vunpack.c.h.b16 %v4578
    %v5163 = vunpack.c.l.b16 %v4579
    %v5164 = vunpack.c.h.b16 %v4579
    %v5165 = vunpack.c.l.b16 %v4580
    %v5166 = vunpack.c.h.b16 %v4580
    %v5167 = vunpack.c.l.b16 %v4581
    %v5168 = vunpack.c.h.b16 %v4581
    %v5169 = vunpack.c.l.b16 %v4582
    %v5170 = vunpack.c.h.b16 %v4582
    %v5171 = vunpack.c.l.b16 %v4583
    %v5172 = vunpack.c.h.b16 %v4583
    %v5173 = vunpack.c.l.b16 %v4584
    %v5174 = vunpack.c.h.b16 %v4584
    %v5175 = vunpack.c.l.b16 %v4585
    %v5176 = vunpack.c.h.b16 %v4585
    %v5177 = vunpack.c.l.b16 %v4586
    %v5178 = vunpack.c.h.b16 %v4586
    %v5179 = vunpack.c.l.b16 %v4587
    %v5180 = vunpack.c.h.b16 %v4587
    %v5181 = vunpack.c.l.b16 %v4588
    %v5182 = vunpack.c.h.b16 %v4588
    %v5183 = vunpack.c.l.b16 %v4589
    %v5184 = vunpack.c.h.b16 %v4589
    %v5185 = vunpack.c.l.b16 %v4590
    %v5186 = vunpack.c.h.b16 %v4590
    %v5187 = vunpack.c.l.b16 %v4591
    %v5188 = vunpack.c.h.b16 %v4591
    %v5189 = vunpack.c.l.b16 %v4592
    %v5190 = vunpack.c.h.b16 %v4592
    %v5191 = vunpack.c.l.b16 %v4593
    %v5192 = vunpack.c.h.b16 %v4593
    %v5193 = vunpack.c.l.b16 %v4594
    %v5194 = vunpack.c.h.b16 %v4594
    %v5195 = vunpack.c.l.b16 %v4595
    %v5196 = vunpack.c.h.b16 %v4595
    %v5197 = vunpack.c.l.b16 %v4596
    %v5198 = vunpack.c.h.b16 %v4596
    %v5199 = vunpack.c.l.b16 %v4597
    %v5200 = vunpack.c.h.b16 %v4597
    %v5201 = vunpack.c.l.b16 %v4598
    %v5202 = vunpack.c.h.b16 %v4598
    %v5203 = vunpack.c.l.b16 %v4599
    %v5204 = vunpack.c.h.b16 %v4599
    %v5205 = vunpack.c.l.b16 %v4600
    %v5206 = vunpack.c.h.b16 %v4600
    %v5207 = vunpack.c.l.b16 %v4601
    %v5208 = vunpack.c.h.b16 %v4601
    %v5209 = vunpack.c.l.b16 %v4602
    %v5210 = vunpack.c.h.b16 %v4602
    %v5211 = vunpack.c.l.b16 %v4603
    %v5212 = vunpack.c.h.b16 %v4603
    %v5213 = vunpack.c.l.b16 %v4604
    %v5214 = vunpack.c.h.b16 %v4604
    %v5215 = vunpack.c.l.b16 %v4605
    %v5216 = vunpack.c.h.b16 %v4605
    %v5217 = vunpack.c.l.b16 %v4606
    %v5218 = vunpack.c.h.b16 %v4606
    %v5219 = vunpack.c.l.b16 %v4607
    %v5220 = vunpack.c.h.b16 %v4607
    %v5221 = vunpack.c.l.b16 %v4608
    %v5222 = vunpack.c.h.b16 %v4608
    %v5223 = vunpack.c.l.b16 %v4609
    %v5224 = vunpack.c.h.b16 %v4609
    %v5225 = vunpack.c.l.b16 %v4610
    %v5226 = vunpack.c.h.b16 %v4610
    %v5227 = vunpack.c.l.b16 %v4611
    %v5228 = vunpack.c.h.b16 %v4611
    %v5229 = vunpack.c.l.b16 %v4612
    %v5230 = vunpack.c.h.b16 %v4612
    %v5231 = vunpack.c.l.b16 %v4613
    %v5232 = vunpack.c.h.b16 %v4613
    %v5233 = vunpack.c.l.b16 %v4614
    %v5234 = vunpack.c.h.b16 %v4614
    %v5235 = vunpack.c.l.b16 %v4615
    %v5236 = vunpack.c.h.b16 %v4615
    %v5237 = vunpack.c.l.b16 %v4616
    %v5238 = vunpack.c.h.b16 %v4616
    %v5239 = vunpack.c.l.b16 %v4617
    %v5240 = vunpack.c.h.b16 %v4617
    %v5241 = vunpack.c.l.b16 %v4618
    %v5242 = vunpack.c.h.b16 %v4618
    %v5243 = vunpack.c.l.b16 %v4619
    %v5244 = vunpack.c.h.b16 %v4619
    %v5245 = vunpack.c.l.b16 %v4620
    %v5246 = vunpack.c.h.b16 %v4620
    %v5247 = vunpack.c.l.b16 %v4621
    %v5248 = vunpack.c.h.b16 %v4621
    %v5249 = vunpack.c.l.b16 %v4622
    %v5250 = vunpack.c.h.b16 %v4622
    %v5251 = vunpack.c.l.b16 %v4623
    %v5252 = vunpack.c.h.b16 %v4623
    %v5253 = vunpack.c.l.b16 %v4624
    %v5254 = vunpack.c.h.b16 %v4624
    %v5255 = vunpack.c.l.b16 %v4625
    %v5256 = vunpack.c.h.b16 %v4625
    %v5257 = vunpack.c.l.b16 %v4626
    %v5258 = vunpack.c.h.b16 %v4626
    %v5259 = vunpack.c.l.b16 %v4627
    %v5260 = vunpack.c.h.b16 %v4627
    %v5261 = vunpack.c.l.b16 %v4628
    %v5262 = vunpack.c.h.b16 %v4628
    %v5263 = vunpack.c.l.b16 %v4629
    %v5264 = vunpack.c.h.b16 %v4629
    %v5265 = vunpack.c.l.b16 %v4630
    %v5266 = vunpack.c.h.b16 %v4630
    %v5267 = vunpack.c.l.b16 %v4631
    %v5268 = vunpack.c.h.b16 %v4631
    %v5269 = vunpack.c.l.b16 %v4632
    %v5270 = vunpack.c.h.b16 %v4632
    %v5271 = vunpack.c.l.b16 %v4633
    %v5272 = vunpack.c.h.b16 %v4633
    %v5273 = vunpack.c.l.b16 %v4634
    %v5274 = vunpack.c.h.b16 %v4634
    %v5275 = vunpack.c.l.b16 %v4635
    %v5276 = vunpack.c.h.b16 %v4635
    %v5277 = vunpack.c.l.b16 %v4636
    %v5278 = vunpack.c.h.b16 %v4636
    %v5279 = vunpack.c.l.b16 %v4637
    %v5280 = vunpack.c.h.b16 %v4637
    %v5281 = vunpack.c.l.b16 %v4638
    %v5282 = vunpack.c.h.b16 %v4638
    %v5283 = vunpack.c.l.b16 %v4639
    %v5284 = vunpack.c.h.b16 %v4639
    %v5285 = vunpack.c.l.b16 %v4640
    %v5286 = vunpack.c.h.b16 %v4640
    %v5287 = vunpack.c.l.b16 %v4641
    %v5288 = vunpack.c.h.b16 %v4641
    %v5289 = vunpack.c.l.b16 %v4642
    %v5290 = vunpack.c.h.b16 %v4642
    %v5291 = vunpack.c.l.b16 %v4643
    %v5292 = vunpack.c.h.b16 %v4643
    %v5293 = vunpack.c.l.b16 %v4644
    %v5294 = vunpack.c.h.b16 %v4644
    %v5295 = vunpack.c.l.b16 %v4645
    %v5296 = vunpack.c.h.b16 %v4645
    %v5297 = vunpack.c.l.b16 %v4646
    %v5298 = vunpack.c.h.b16 %v4646
    %v5299 = vunpack.c.l.b16 %v4647
    %v5300 = vunpack.c.h.b16 %v4647
    %v5301 = vunpack.c.l.b16 %v4648
    %v5302 = vunpack.c.h.b16 %v4648
    %v5303 = vunpack.c.l.b16 %v4649
    %v5304 = vunpack.c.h.b16 %v4649
    %v5305 = vunpack.c.l.b16 %v4650
    %v5306 = vunpack.c.h.b16 %v4650
    %v5307 = vunpack.c.l.b16 %v4651
    %v5308 = vunpack.c.h.b16 %v4651
    %v5309 = vunpack.c.l.b16 %v4652
    %v5310 = vunpack.c.h.b16 %v4652
    %v5311 = vunpack.c.l.b16 %v4653
    %v5312 = vunpack.c.h.b16 %v4653
    %v5313 = vunpack.c.l.b16 %v4654
    %v5314 = vunpack.c.h.b16 %v4654
    %v5315 = vunpack.c.l.b16 %v4655
    %v5316 = vunpack.c.h.b16 %v4655
    %v5317 = vunpack.c.l.b16 %v4656
    %v5318 = vunpack.c.h.b16 %v4656
    %v5319 = vunpack.c.l.b16 %v4657
    %v5320 = vunpack.c.h.b16 %v4657
    %v5321 = vunpack.c.l.b16 %v4658
    %v5322 = vunpack.c.h.b16 %v4658
    %v5323 = vunpack.c.l.b16 %v4659
    %v5324 = vunpack.c.h.b16 %v4659
    %v5325 = vunpack.c.l.b16 %v4660
    %v5326 = vunpack.c.h.b16 %v4660
    %v5327 = vunpack.c.l.b16 %v4661
    %v5328 = vunpack.c.h.b16 %v4661
    %v5329 = vunpack.c.l.b16 %v4662
    %v5330 = vunpack.c.h.b16 %v4662
    %v5331 = vunpack.c.l.b16 %v4663
    %v5332 = vunpack.c.h.b16 %v4663
    %v5333 = vunpack.c.l.b16 %v4664
    %v5334 = vunpack.c.h.b16 %v4664
    %v5335 = vunpack.c.l.b16 %v4665
    %v5336 = vunpack.c.h.b16 %v4665
    %v5337 = vunpack.c.l.b16 %v4666
    %v5338 = vunpack.c.h.b16 %v4666
    %v5339 = vunpack.c.l.b16 %v4667
    %v5340 = vunpack.c.h.b16 %v4667
    %v5341 = vunpack.c.l.b16 %v4668
    %v5342 = vunpack.c.h.b16 %v4668
    %v5343 = vunpack.c.l.b16 %v4669
    %v5344 = vunpack.c.h.b16 %v4669
    %v5345 = vunpack.c.l.b16 %v4670
    %v5346 = vunpack.c.h.b16 %v4670
    %v5347 = vunpack.c.l.b16 %v4671
    %v5348 = vunpack.c.h.b16 %v4671
    %v5349 = vunpack.c.l.b16 %v4672
    %v5350 = vunpack.c.h.b16 %v4672
    %v5351 = vunpack.c.l.b16 %v4673
    %v5352 = vunpack.c.h.b16 %v4673
    %v5353 = vunpack.c.l.b16 %v4674
    %v5354 = vunpack.c.h.b16 %v4674
    %v5355 = vunpack.c.l.b16 %v4675
    %v5356 = vunpack.c.h.b16 %v4675
    %v5357 = vunpack.c.l.b16 %v4676
    %v5358 = vunpack.c.h.b16 %v4676
    %v5359 = vunpack.c.l.b16 %v4677
    %v5360 = vunpack.c.h.b16 %v4677
    %v5361 = vunpack.c.l.b16 %v4678
    %v5362 = vunpack.c.h.b16 %v4678
    %v5363 = vunpack.c.l.b16 %v4679
    %v5364 = vunpack.c.h.b16 %v4679
    %v5365 = vunpack.c.l.b16 %v4680
    %v5366 = vunpack.c.h.b16 %v4680
    %v5367 = vunpack.c.l.b16 %v4681
    %v5368 = vunpack.c.h.b16 %v4681
    %v5369 = vunpack.c.l.b16 %v4682
    %v5370 = vunpack.c.h.b16 %v4682
    %v5371 = vunpack.c.l.b16 %v4683
    %v5372 = vunpack.c.h.b16 %v4683
    %v5373 = vunpack.c.l.b16 %v4684
    %v5374 = vunpack.c.h.b16 %v4684
    %v5375 = vunpack.c.l.b16 %v4685
    %v5376 = vunpack.c.h.b16 %v4685
    %v5377 = vunpack.c.l.b16 %v4686
    %v5378 = vunpack.c.h.b16 %v4686
    %v5379 = vunpack.c.l.b16 %v4687
    %v5380 = vunpack.c.h.b16 %v4687
    %v5381 = vunpack.c.l.b16 %v4688
    %v5382 = vunpack.c.h.b16 %v4688
    %v5383 = vunpack.c.l.b16 %v4689
    %v5384 = vunpack.c.h.b16 %v4689
    %v5385 = vunpack.c.l.b16 %v4690
    %v5386 = vunpack.c.h.b16 %v4690
    %v5387 = vunpack.c.l.b16 %v4691
    %v5388 = vunpack.c.h.b16 %v4691
    %v5389 = vunpack.c.l.b16 %v4692
    %v5390 = vunpack.c.h.b16 %v4692
    %v5391 = vunpack.c.l.b16 %v4693
    %v5392 = vunpack.c.h.b16 %v4693
    %v5393 = vunpack.c.l.b16 %v4694
    %v5394 = vunpack.c.h.b16 %v4694
    %v5395 = vunpack.c.l.b16 %v4695
    %v5396 = vunpack.c.h.b16 %v4695
    %v5397 = vunpack.c.l.b16 %v4696
    %v5398 = vunpack.c.h.b16 %v4696
    %v5399 = vunpack.c.l.b16 %v4697
    %v5400 = vunpack.c.h.b16 %v4697
    %v5401 = vunpack.c.l.b16 %v4698
    %v5402 = vunpack.c.h.b16 %v4698
    %v5403 = vunpack.c.l.b16 %v4699
    %v5404 = vunpack.c.h.b16 %v4699
    %v5405 = vunpack.c.l.b16 %v4700
    %v5406 = vunpack.c.h.b16 %v4700
    %v5407 = vunpack.c.l.b16 %v4701
    %v5408 = vunpack.c.h.b16 %v4701
    %v5409 = vunpack.c.l.b16 %v4702
    %v5410 = vunpack.c.h.b16 %v4702
    %v5411 = vunpack.c.l.b16 %v4703
    %v5412 = vunpack.c.h.b16 %v4703
    %v5413 = vunpack.c.l.b16 %v4704
    %v5414 = vunpack.c.h.b16 %v4704
    %v5415 = vunpack.c.l.b16 %v4705
    %v5416 = vunpack.c.h.b16 %v4705
    %v5417 = vunpack.c.l.b16 %v4706
    %v5418 = vunpack.c.h.b16 %v4706
    %v5419 = vunpack.c.l.b16 %v4707
    %v5420 = vunpack.c.h.b16 %v4707
    %v5421 = vunpack.c.l.b16 %v4708
    %v5422 = vunpack.c.h.b16 %v4708
    %v5423 = vunpack.c.l.b16 %v4709
    %v5424 = vunpack.c.h.b16 %v4709
    %v5425 = vunpack.c.l.b16 %v4710
    %v5426 = vunpack.c.h.b16 %v4710
    %v5427 = vunpack.c.l.b16 %v4711
    %v5428 = vunpack.c.h.b16 %v4711
    %v5429 = vunpack.c.l.b16 %v4712
    %v5430 = vunpack.c.h.b16 %v4712
    %v5431 = vunpack.c.l.b16 %v4713
    %v5432 = vunpack.c.h.b16 %v4713
    %v5433 = vunpack.c.l.b16 %v4714
    %v5434 = vunpack.c.h.b16 %v4714
    %v5435 = vunpack.c.l.b16 %v4715
    %v5436 = vunpack.c.h.b16 %v4715
    %v5437 = vunpack.c.l.b16 %v4716
    %v5438 = vunpack.c.h.b16 %v4716
    %v5439 = vunpack.c.l.b16 %v4717
    %v5440 = vunpack.c.h.b16 %v4717
    %v5441 = vunpack.c.l.b16 %v4718
    %v5442 = vunpack.c.h.b16 %v4718
    %v5443 = vunpack.c.l.b16 %v4719
    %v5444 = vunpack.c.h.b16 %v4719
    %v5445 = vunpack.c.l.b16 %v4720
    %v5446 = vunpack.c.h.b16 %v4720
    %v5447 = vunpack.c.l.b16 %v4721
    %v5448 = vunpack.c.h.b16 %v4721
    %v5449 = vunpack.c.l.b16 %v4722
    %v5450 = vunpack.c.h.b16 %v4722
    %v5451 = vunpack.c.l.b16 %v4723
    %v5452 = vunpack.c.h.b16 %v4723
    %v5453 = vunpack.c.l.b16 %v4724
    %v5454 = vunpack.c.h.b16 %v4724
    %v5455 = vunpack.c.l.b16 %v4725
    %v5456 = vunpack.c.h.b16 %v4725
    %v5457 = vunpack.c.l.b16 %v4726
    %v5458 = vunpack.c.h.b16 %v4726
    %v5459 = vunpack.c.l.b16 %v4727
    %v5460 = vunpack.c.h.b16 %v4727
    %v5461 = vunpack.c.l.b16 %v4728
    %v5462 = vunpack.c.h.b16 %v4728
    %v5463 = vunpack.c.l.b16 %v4729
    %v5464 = vunpack.c.h.b16 %v4729
    %v5465 = vunpack.c.l.b16 %v4730
    %v5466 = vunpack.c.h.b16 %v4730
    %v5467 = vunpack.c.l.b16 %v4731
    %v5468 = vunpack.c.h.b16 %v4731
    %v5469 = vunpack.c.l.b16 %v4732
    %v5470 = vunpack.c.h.b16 %v4732
    %v5471 = vunpack.c.l.b16 %v4733
    %v5472 = vunpack.c.h.b16 %v4733
    %v5473 = vunpack.c.l.b16 %v4734
    %v5474 = vunpack.c.h.b16 %v4734
    %v5475 = vunpack.c.l.b16 %v4735
    %v5476 = vunpack.c.h.b16 %v4735
    %v5477 = vunpack.c.l.b16 %v4736
    %v5478 = vunpack.c.h.b16 %v4736
    %v5479 = vunpack.c.l.b16 %v4737
    %v5480 = vunpack.c.h.b16 %v4737
    %v5481 = vunpack.c.l.b16 %v4738
    %v5482 = vunpack.c.h.b16 %v4738
    %v5483 = vunpack.c.l.b16 %v4739
    %v5484 = vunpack.c.h.b16 %v4739
    %v5485 = vunpack.c.l.b16 %v4740
    %v5486 = vunpack.c.h.b16 %v4740
    %v5487 = vunpack.c.l.b16 %v4741
    %v5488 = vunpack.c.h.b16 %v4741
    %v5489 = vunpack.c.l.b16 %v4742
    %v5490 = vunpack.c.h.b16 %v4742
    %v5491 = vunpack.c.l.b16 %v4743
    %v5492 = vunpack.c.h.b16 %v4743
    %v5493 = vunpack.c.l.b16 %v4744
    %v5494 = vunpack.c.h.b16 %v4744
    %v5495 = vunpack.c.l.b16 %v4745
    %v5496 = vunpack.c.h.b16 %v4745
    %v5497 = vunpack.c.l.b16 %v4746
    %v5498 = vunpack.c.h.b16 %v4746
    %v5499 = vunpack.c.l.b16 %v4747
    %v5500 = vunpack.c.h.b16 %v4747
    %v5501 = vunpack.c.l.b16 %v4748
    %v5502 = vunpack.c.h.b16 %v4748
    %v5503 = vunpack.c.l.b16 %v4749
    %v5504 = vunpack.c.h.b16 %v4749
    %v5505 = vunpack.c.l.b16 %v4750
    %v5506 = vunpack.c.h.b16 %v4750
    %v5507 = vunpack.c.l.b16 %v4751
    %v5508 = vunpack.c.h.b16 %v4751
    %v5509 = vunpack.c.l.b16 %v4752
    %v5510 = vunpack.c.h.b16 %v4752
    %v5511 = vunpack.c.l.b16 %v4753
    %v5512 = vunpack.c.h.b16 %v4753
    %v5513 = vunpack.c.l.b16 %v4754
    %v5514 = vunpack.c.h.b16 %v4754
    %v5515 = vunpack.c.l.b16 %v4755
    %v5516 = vunpack.c.h.b16 %v4755
    %v5517 = vunpack.c.l.b16 %v4756
    %v5518 = vunpack.c.h.b16 %v4756
    %v5519 = vunpack.c.l.b16 %v4757
    %v5520 = vunpack.c.h.b16 %v4757
    %v5521 = vunpack.c.l.b16 %v4758
    %v5522 = vunpack.c.h.b16 %v4758
    %v5523 = vunpack.c.l.b16 %v4759
    %v5524 = vunpack.c.h.b16 %v4759
    %v5525 = vunpack.c.l.b16 %v4760
    %v5526 = vunpack.c.h.b16 %v4760
    %v5527 = vunpack.c.l.b16 %v4761
    %v5528 = vunpack.c.h.b16 %v4761
    %v5529 = vunpack.c.l.b16 %v4762
    %v5530 = vunpack.c.h.b16 %v4762
    %v5531 = vunpack.c.l.b16 %v4763
    %v5532 = vunpack.c.h.b16 %v4763
    %v5533 = vunpack.c.l.b16 %v4764
    %v5534 = vunpack.c.h.b16 %v4764
    %v5535 = vunpack.c.l.b16 %v4765
    %v5536 = vunpack.c.h.b16 %v4765
    %v5537 = vunpack.c.l.b16 %v4766
    %v5538 = vunpack.c.h.b16 %v4766
    %v5539 = vunpack.c.l.b16 %v4767
    %v5540 = vunpack.c.h.b16 %v4767
    %v5541 = vunpack.c.l.b16 %v4768
    %v5542 = vunpack.c.h.b16 %v4768
    %v5543 = vunpack.c.l.b16 %v4769
    %v5544 = vunpack.c.h.b16 %v4769
    %v5545 = vunpack.c.l.b16 %v4770
    %v5546 = vunpack.c.h.b16 %v4770
    %v5547 = vunpack.c.l.b16 %v4771
    %v5548 = vunpack.c.h.b16 %v4771
    %v5549 = vunpack.c.l.b16 %v4772
    %v5550 = vunpack.c.h.b16 %v4772
    %v5551 = vunpack.c.l.b16 %v4773
    %v5552 = vunpack.c.h.b16 %v4773
    %v5553 = vunpack.c.l.b16 %v4774
    %v5554 = vunpack.c.h.b16 %v4774
    %v5555 = vunpack.c.l.b16 %v4775
    %v5556 = vunpack.c.h.b16 %v4775
    %v5557 = vunpack.c.l.b16 %v4776
    %v5558 = vunpack.c.h.b16 %v4776
    %v5559 = vunpack.c.l.b16 %v4777
    %v5560 = vunpack.c.h.b16 %v4777
    %v5561 = vunpack.c.l.b16 %v4778
    %v5562 = vunpack.c.h.b16 %v4778
    %v5563 = vunpack.c.l.b16 %v4779
    %v5564 = vunpack.c.h.b16 %v4779
    %v5565 = vunpack.c.l.b16 %v4780
    %v5566 = vunpack.c.h.b16 %v4780
    %v5567 = vunpack.c.l.b16 %v4781
    %v5568 = vunpack.c.h.b16 %v4781
    %v5569 = vunpack.c.l.b16 %v4782
    %v5570 = vunpack.c.h.b16 %v4782
    %v5571 = vunpack.c.l.b16 %v4783
    %v5572 = vunpack.c.h.b16 %v4783
    %v5573 = vunpack.c.l.b16 %v4784
    %v5574 = vunpack.c.h.b16 %v4784
    %v5575 = vunpack.c.l.b16 %v4785
    %v5576 = vunpack.c.h.b16 %v4785
    %v5577 = vunpack.c.l.b16 %v4786
    %v5578 = vunpack.c.h.b16 %v4786
    %v5579 = vunpack.c.l.b16 %v4787
    %v5580 = vunpack.c.h.b16 %v4787
    %v5581 = vunpack.c.l.b16 %v4788
    %v5582 = vunpack.c.h.b16 %v4788
    %v5583 = vunpack.c.l.b16 %v4789
    %v5584 = vunpack.c.h.b16 %v4789
    %v5585 = vunpack.c.l.b16 %v4790
    %v5586 = vunpack.c.h.b16 %v4790
    %v5587 = vunpack.c.l.b16 %v4791
    %v5588 = vunpack.c.h.b16 %v4791
    %v5589 = vunpack.c.l.b16 %v4792
    %v5590 = vunpack.c.h.b16 %v4792
    %v5591 = vpack.c.b16 %v5083, %v5079
    %v5592 = vpack.c.b16 %v5084, %v5080
    %v5593 = vpack.c.b16 %v5085, %v5081
    %v5594 = vpack.c.b16 %v5086, %v5082
    %v5595 = vpack.c.b16 %v5091, %v5087
    %v5596 = vpack.c.b16 %v5092, %v5088
    %v5597 = vpack.c.b16 %v5093, %v5089
    %v5598 = vpack.c.b16 %v5094, %v5090
    %v5599 = vpack.c.b16 %v5099, %v5095
    %v5600 = vpack.c.b16 %v5100, %v5096
    %v5601 = vpack.c.b16 %v5101, %v5097
    %v5602 = vpack.c.b16 %v5102, %v5098
    %v5603 = vpack.c.b16 %v5107, %v5103
    %v5604 = vpack.c.b16 %v5108, %v5104
    %v5605 = vpack.c.b16 %v5109, %v5105
    %v5606 = vpack.c.b16 %v5110, %v5106
    %v5607 = vpack.c.b16 %v5115, %v5111
    %v5608 = vpack.c.b16 %v5116, %v5112
    %v5609 = vpack.c.b16 %v5117, %v5113
    %v5610 = vpack.c.b16 %v5118, %v5114
    %v5611 = vpack.c.b16 %v5123, %v5119
    %v5612 = vpack.c.b16 %v5124, %v5120
    %v5613 = vpack.c.b16 %v5125, %v5121
    %v5614 = vpack.c.b16 %v5126, %v5122
    %v5615 = vpack.c.b16 %v5131, %v5127
    %v5616 = vpack.c.b16 %v5132, %v5128
    %v5617 = vpack.c.b16 %v5133, %v5129
    %v5618 = vpack.c.b16 %v5134, %v5130
    %v5619 = vpack.c.b16 %v5139, %v5135
    %v5620 = vpack.c.b16 %v5140, %v5136
    %v5621 = vpack.c.b16 %v5141, %v5137
    %v5622 = vpack.c.b16 %v5142, %v5138
    %v5623 = vpack.c.b16 %v5147, %v5143
    %v5624 = vpack.c.b16 %v5148, %v5144
    %v5625 = vpack.c.b16 %v5149, %v5145
    %v5626 = vpack.c.b16 %v5150, %v5146
    %v5627 = vpack.c.b16 %v5155, %v5151
    %v5628 = vpack.c.b16 %v5156, %v5152
    %v5629 = vpack.c.b16 %v5157, %v5153
    %v5630 = vpack.c.b16 %v5158, %v5154
    %v5631 = vpack.c.b16 %v5163, %v5159
    %v5632 = vpack.c.b16 %v5164, %v5160
    %v5633 = vpack.c.b16 %v5165, %v5161
    %v5634 = vpack.c.b16 %v5166, %v5162
    %v5635 = vpack.c.b16 %v5171, %v5167
    %v5636 = vpack.c.b16 %v5172, %v5168
    %v5637 = vpack.c.b16 %v5173, %v5169
    %v5638 = vpack.c.b16 %v5174, %v5170
    %v5639 = vpack.c.b16 %v5179, %v5175
    %v5640 = vpack.c.b16 %v5180, %v5176
    %v5641 = vpack.c.b16 %v5181, %v5177
    %v5642 = vpack.c.b16 %v5182, %v5178
    %v5643 = vpack.c.b16 %v5187, %v5183
    %v5644 = vpack.c.b16 %v5188, %v5184
    %v5645 = vpack.c.b16 %v5189, %v5185
    %v5646 = vpack.c.b16 %v5190, %v5186
    %v5647 = vpack.c.b16 %v5195, %v5191
    %v5648 = vpack.c.b16 %v5196, %v5192
    %v5649 = vpack.c.b16 %v5197, %v5193
    %v5650 = vpack.c.b16 %v5198, %v5194
    %v5651 = vpack.c.b16 %v5203, %v5199
    %v5652 = vpack.c.b16 %v5204, %v5200
    %v5653 = vpack.c.b16 %v5205, %v5201
    %v5654 = vpack.c.b16 %v5206, %v5202
    %v5655 = vpack.c.b16 %v5211, %v5207
    %v5656 = vpack.c.b16 %v5212, %v5208
    %v5657 = vpack.c.b16 %v5213, %v5209
    %v5658 = vpack.c.b16 %v5214, %v5210
    %v5659 = vpack.c.b16 %v5219, %v5215
    %v5660 = vpack.c.b16 %v5220, %v5216
    %v5661 = vpack.c.b16 %v5221, %v5217
    %v5662 = vpack.c.b16 %v5222, %v5218
    %v5663 = vpack.c.b16 %v5227, %v5223
    %v5664 = vpack.c.b16 %v5228, %v5224
    %v5665 = vpack.c.b16 %v5229, %v5225
    %v5666 = vpack.c.b16 %v5230, %v5226
    %v5667 = vpack.c.b16 %v5235, %v5231
    %v5668 = vpack.c.b16 %v5236, %v5232
    %v5669 = vpack.c.b16 %v5237, %v5233
    %v5670 = vpack.c.b16 %v5238, %v5234
    %v5671 = vpack.c.b16 %v5243, %v5239
    %v5672 = vpack.c.b16 %v5244, %v5240
    %v5673 = vpack.c.b16 %v5245, %v5241
    %v5674 = vpack.c.b16 %v5246, %v5242
    %v5675 = vpack.c.b16 %v5251, %v5247
    %v5676 = vpack.c.b16 %v5252, %v5248
    %v5677 = vpack.c.b16 %v5253, %v5249
    %v5678 = vpack.c.b16 %v5254, %v5250
    %v5679 = vpack.c.b16 %v5259, %v5255
    %v5680 = vpack.c.b16 %v5260, %v5256
    %v5681 = vpack.c.b16 %v5261, %v5257
    %v5682 = vpack.c.b16 %v5262, %v5258
    %v5683 = vpack.c.b16 %v5267, %v5263
    %v5684 = vpack.c.b16 %v5268, %v5264
    %v5685 = vpack.c.b16 %v5269, %v5265
    %v5686 = vpack.c.b16 %v5270, %v5266
    %v5687 = vpack.c.b16 %v5275, %v5271
    %v5688 = vpack.c.b16 %v5276, %v5272
    %v5689 = vpack.c.b16 %v5277, %v5273
    %v5690 = vpack.c.b16 %v5278, %v5274
    %v5691 = vpack.c.b16 %v5283, %v5279
    %v5692 = vpack.c.b16 %v5284, %v5280
    %v5693 = vpack.c.b16 %v5285, %v5281
    %v5694 = vpack.c.b16 %v5286, %v5282
    %v5695 = vpack.c.b16 %v5291, %v5287
    %v5696 = vpack.c.b16 %v5292, %v5288
    %v5697 = vpack.c.b16 %v5293, %v5289
    %v5698 = vpack.c.b16 %v5294, %v5290
    %v5699 = vpack.c.b16 %v5299, %v5295
    %v5700 = vpack.c.b16 %v5300, %v5296
    %v5701 = vpack.c.b16 %v5301, %v5297
    %v5702 = vpack.c.b16 %v5302, %v5298
    %v5703 = vpack.c.b16 %v5307, %v5303
    %v5704 = vpack.c.b16 %v5308, %v5304
    %v5705 = vpack.c.b16 %v5309, %v5305
    %v5706 = vpack.c.b16 %v5310, %v5306
    %v5707 = vpack.c.b16 %v5315, %v5311
    %v5708 = vpack.c.b16 %v5316, %v5312
    %v5709 = vpack.c.b16 %v5317, %v5313
    %v5710 = vpack.c.b16 %v5318, %v5314
    %v5711 = vpack.c.b16 %v5323, %v5319
    %v5712 = vpack.c.b16 %v5324, %v5320
    %v5713 = vpack.c.b16 %v5325, %v5321
    %v5714 = vpack.c.b16 %v5326, %v5322
    %v5715 = vpack.c.b16 %v5331, %v5327
    %v5716 = vpack.c.b16 %v5332, %v5328
    %v5717 = vpack.c.b16 %v5333, %v5329
    %v5718 = vpack.c.b16 %v5334, %v5330
    %v5719 = vpack.c.b16 %v5339, %v5335
    %v5720 = vpack.c.b16 %v5340, %v5336
    %v5721 = vpack.c.b16 %v5341, %v5337
    %v5722 = vpack.c.b16 %v5342, %v5338
    %v5723 = vpack.c.b16 %v5347, %v5343
    %v5724 = vpack.c.b16 %v5348, %v5344
    %v5725 = vpack.c.b16 %v5349, %v5345
    %v5726 = vpack.c.b16 %v5350, %v5346
    %v5727 = vpack.c.b16 %v5355, %v5351
    %v5728 = vpack.c.b16 %v5356, %v5352
    %v5729 = vpack.c.b16 %v5357, %v5353
    %v5730 = vpack.c.b16 %v5358, %v5354
    %v5731 = vpack.c.b16 %v5363, %v5359
    %v5732 = vpack.c.b16 %v5364, %v5360
    %v5733 = vpack.c.b16 %v5365, %v5361
    %v5734 = vpack.c.b16 %v5366, %v5362
    %v5735 = vpack.c.b16 %v5371, %v5367
    %v5736 = vpack.c.b16 %v5372, %v5368
    %v5737 = vpack.c.b16 %v5373, %v5369
    %v5738 = vpack.c.b16 %v5374, %v5370
    %v5739 = vpack.c.b16 %v5379, %v5375
    %v5740 = vpack.c.b16 %v5380, %v5376
    %v5741 = vpack.c.b16 %v5381, %v5377
    %v5742 = vpack.c.b16 %v5382, %v5378
    %v5743 = vpack.c.b16 %v5387, %v5383
    %v5744 = vpack.c.b16 %v5388, %v5384
    %v5745 = vpack.c.b16 %v5389, %v5385
    %v5746 = vpack.c.b16 %v5390, %v5386
    %v5747 = vpack.c.b16 %v5395, %v5391
    %v5748 = vpack.c.b16 %v5396, %v5392
    %v5749 = vpack.c.b16 %v5397, %v5393
    %v5750 = vpack.c.b16 %v5398, %v5394
    %v5751 = vpack.c.b16 %v5403, %v5399
    %v5752 = vpack.c.b16 %v5404, %v5400
    %v5753 = vpack.c.b16 %v5405, %v5401
    %v5754 = vpack.c.b16 %v5406, %v5402
    %v5755 = vpack.c.b16 %v5411, %v5407
    %v5756 = vpack.c.b16 %v5412, %v5408
    %v5757 = vpack.c.b16 %v5413, %v5409
    %v5758 = vpack.c.b16 %v5414, %v5410
    %v5759 = vpack.c.b16 %v5419, %v5415
    %v5760 = vpack.c.b16 %v5420, %v5416
    %v5761 = vpack.c.b16 %v5421, %v5417
    %v5762 = vpack.c.b16 %v5422, %v5418
    %v5763 = vpack.c.b16 %v5427, %v5423
    %v5764 = vpack.c.b16 %v5428, %v5424
    %v5765 = vpack.c.b16 %v5429, %v5425
    %v5766 = vpack.c.b16 %v5430, %v5426
    %v5767 = vpack.c.b16 %v5435, %v5431
    %v5768 = vpack.c.b16 %v5436, %v5432
    %v5769 = vpack.c.b16 %v5437, %v5433
    %v5770 = vpack.c.b16 %v5438, %v5434
    %v5771 = vpack.c.b16 %v5443, %v5439
    %v5772 = vpack.c.b16 %v5444, %v5440
    %v5773 = vpack.c.b16 %v5445, %v5441
    %v5774 = vpack.c.b16 %v5446, %v5442
    %v5775 = vpack.c.b16 %v5451, %v5447
    %v5776 = vpack.c.b16 %v5452, %v5448
    %v5777 = vpack.c.b16 %v5453, %v5449
    %v5778 = vpack.c.b16 %v5454, %v5450
    %v5779 = vpack.c.b16 %v5459, %v5455
    %v5780 = vpack.c.b16 %v5460, %v5456
    %v5781 = vpack.c.b16 %v5461, %v5457
    %v5782 = vpack.c.b16 %v5462, %v5458
    %v5783 = vpack.c.b16 %v5467, %v5463
    %v5784 = vpack.c.b16 %v5468, %v5464
    %v5785 = vpack.c.b16 %v5469, %v5465
    %v5786 = vpack.c.b16 %v5470, %v5466
    %v5787 = vpack.c.b16 %v5475, %v5471
    %v5788 = vpack.c.b16 %v5476, %v5472
    %v5789 = vpack.c.b16 %v5477, %v5473
    %v5790 = vpack.c.b16 %v5478, %v5474
    %v5791 = vpack.c.b16 %v5483, %v5479
    %v5792 = vpack.c.b16 %v5484, %v5480
    %v5793 = vpack.c.b16 %v5485, %v5481
    %v5794 = vpack.c.b16 %v5486, %v5482
    %v5795 = vpack.c.b16 %v5491, %v5487
    %v5796 = vpack.c.b16 %v5492, %v5488
    %v5797 = vpack.c.b16 %v5493, %v5489
    %v5798 = vpack.c.b16 %v5494, %v5490
    %v5799 = vpack.c.b16 %v5499, %v5495
    %v5800 = vpack.c.b16 %v5500, %v5496
    %v5801 = vpack.c.b16 %v5501, %v5497
    %v5802 = vpack.c.b16 %v5502, %v5498
    %v5803 = vpack.c.b16 %v5507, %v5503
    %v5804 = vpack.c.b16 %v5508, %v5504
    %v5805 = vpack.c.b16 %v5509, %v5505
    %v5806 = vpack.c.b16 %v5510, %v5506
    %v5807 = vpack.c.b16 %v5515, %v5511
    %v5808 = vpack.c.b16 %v5516, %v5512
    %v5809 = vpack.c.b16 %v5517, %v5513
    %v5810 = vpack.c.b16 %v5518, %v5514
    %v5811 = vpack.c.b16 %v5523, %v5519
    %v5812 = vpack.c.b16 %v5524, %v5520
    %v5813 = vpack.c.b16 %v5525, %v5521
    %v5814 = vpack.c.b16 %v5526, %v5522
    %v5815 = vpack.c.b16 %v5531, %v5527
    %v5816 = vpack.c.b16 %v5532, %v5528
    %v5817 = vpack.c.b16 %v5533, %v5529
    %v5818 = vpack.c.b16 %v5534, %v5530
    %v5819 = vpack.c.b16 %v5539, %v5535
    %v5820 = vpack.c.b16 %v5540, %v5536
    %v5821 = vpack.c.b16 %v5541, %v5537
    %v5822 = vpack.c.b16 %v5542, %v5538
    %v5823 = vpack.c.b16 %v5547, %v5543
    %v5824 = vpack.c.b16 %v5548, %v5544
    %v5825 = vpack.c.b16 %v5549, %v5545
    %v5826 = vpack.c.b16 %v5550, %v5546
    %v5827 = vpack.c.b16 %v5555, %v5551
    %v5828 = vpack.c.b16 %v5556, %v5552
    %v5829 = vpack.c.b16 %v5557, %v5553
    %v5830 = vpack.c.b16 %v5558, %v5554
    %v5831 = vpack.c.b16 %v5563, %v5559
    %v5832 = vpack.c.b16 %v5564, %v5560
    %v5833 = vpack.c.b16 %v5565, %v5561
    %v5834 = vpack.c.b16 %v5566, %v5562
    %v5835 = vpack.c.b16 %v5571, %v5567
    %v5836 = vpack.c.b16 %v5572, %v5568
    %v5837 = vpack.c.b16 %v5573, %v5569
    %v5838 = vpack.c.b16 %v5574, %v5570
    %v5839 = vpack.c.b16 %v5579, %v5575
    %v5840 = vpack.c.b16 %v5580, %v5576
    %v5841 = vpack.c.b16 %v5581, %v5577
    %v5842 = vpack.c.b16 %v5582, %v5578
    %v5843 = vpack.c.b16 %v5587, %v5583
    %v5844 = vpack.c.b16 %v5588, %v5584
    %v5845 = vpack.c.b16 %v5589, %v5585
    %v5846 = vpack.c.b16 %v5590, %v5586
    %6103 = vmatprep.subr.bf16.mxu0 %v5592
    %6104 = vmatpush1.bf16.msra.mxu0 %v5591
    %6105 = vmatprep.subr.bf16.mxu0 %v5596
    %6106 = vmatpush1.bf16.msra.mxu0 %v5595
    %6107 = vmatprep.subr.bf16.mxu0 %v5600
    %6108 = vmatpush1.bf16.msra.mxu0 %v5599
    %6109 = vmatprep.subr.bf16.mxu0 %v5604
    %6110 = vmatpush1.bf16.msra.mxu0 %v5603
    %6111 = vmatprep.subr.bf16.mxu0 %v5608
    %6112 = vmatpush1.bf16.msra.mxu0 %v5607
    %6113 = vmatprep.subr.bf16.mxu0 %v5612
    %6114 = vmatpush1.bf16.msra.mxu0 %v5611
    %6115 = vmatprep.subr.bf16.mxu0 %v5616
    %6116 = vmatpush1.bf16.msra.mxu0 %v5615
    %6117 = vmatprep.subr.bf16.mxu0 %v5620
    %6118 = vmatpush1.bf16.msra.mxu0 %v5619
    %6119 = vmatprep.subr.bf16.mxu0 %v5624
    %6120 = vmatpush1.bf16.msra.mxu0 %v5623
    %6121 = vmatprep.subr.bf16.mxu0 %v5628
    %6122 = vmatpush1.bf16.msra.mxu0 %v5627
    %6123 = vmatprep.subr.bf16.mxu0 %v5632
    %6124 = vmatpush1.bf16.msra.mxu0 %v5631
    %6125 = vmatprep.subr.bf16.mxu0 %v5636
    %6126 = vmatpush1.bf16.msra.mxu0 %v5635
    %6127 = vmatprep.subr.bf16.mxu0 %v5640
    %6128 = vmatpush1.bf16.msra.mxu0 %v5639
    %6129 = vmatprep.subr.bf16.mxu0 %v5644
    %6130 = vmatpush1.bf16.msra.mxu0 %v5643
    %6131 = vmatprep.subr.bf16.mxu0 %v5648
    %6132 = vmatpush1.bf16.msra.mxu0 %v5647
    %6133 = vmatprep.subr.bf16.mxu0 %v5652
    %6134 = vmatpush1.bf16.msra.mxu0 %v5651
    %6135 = vmatprep.mubr.bf16.mxu0 %v4795
    %6136 = vmatmul.mubr.bf16.gmra.mrb[0].mxu0 %v4794
    %v6137 = vpop.f32.mrb[0].mxu0
    %v6138 = vadd.f32 %v4806, %v6137
    %v6139 = vpop.f32.mrb[0].mxu0
    %v6140 = vadd.f32 %v4810, %v6139
    %v6141 = vpop.f32.mrb[0].mxu0
    %v6142 = vpop.f32.mrb[0].mxu0
    %6143 = vdwg.mxu0
    %6144 = vmatprep.subr.bf16.mxu0 %v5656
    %6145 = vmatpush1.bf16.msra.mxu0 %v5655
    %6146 = vmatprep.subr.bf16.mxu0 %v5660
    %6147 = vmatpush1.bf16.msra.mxu0 %v5659
    %6148 = vmatprep.subr.bf16.mxu0 %v5664
    %6149 = vmatpush1.bf16.msra.mxu0 %v5663
    %6150 = vmatprep.subr.bf16.mxu0 %v5668
    %6151 = vmatpush1.bf16.msra.mxu0 %v5667
    %6152 = vmatprep.subr.bf16.mxu0 %v5672
    %6153 = vmatpush1.bf16.msra.mxu0 %v5671
    %6154 = vmatprep.subr.bf16.mxu0 %v5676
    %6155 = vmatpush1.bf16.msra.mxu0 %v5675
    %6156 = vmatprep.subr.bf16.mxu0 %v5680
    %6157 = vmatpush1.bf16.msra.mxu0 %v5679
    %6158 = vmatprep.subr.bf16.mxu0 %v5684
    %6159 = vmatpush1.bf16.msra.mxu0 %v5683
    %6160 = vmatprep.subr.bf16.mxu0 %v5688
    %6161 = vmatpush1.bf16.msra.mxu0 %v5687
    %6162 = vmatprep.subr.bf16.mxu0 %v5692
    %6163 = vmatpush1.bf16.msra.mxu0 %v5691
    %6164 = vmatprep.subr.bf16.mxu0 %v5696
    %6165 = vmatpush1.bf16.msra.mxu0 %v5695
    %6166 = vmatprep.subr.bf16.mxu0 %v5700
    %6167 = vmatpush1.bf16.msra.mxu0 %v5699
    %6168 = vmatprep.subr.bf16.mxu0 %v5704
    %6169 = vmatpush1.bf16.msra.mxu0 %v5703
    %6170 = vmatprep.subr.bf16.mxu0 %v5708
    %6171 = vmatpush1.bf16.msra.mxu0 %v5707
    %6172 = vmatprep.subr.bf16.mxu0 %v5712
    %6173 = vmatpush1.bf16.msra.mxu0 %v5711
    %6174 = vmatprep.subr.bf16.mxu0 %v5716
    %6175 = vmatpush1.bf16.msra.mxu0 %v5715
    %6176 = vmatprep.mubr.bf16.mxu0 %v4797
    %6177 = vmatmul.mubr.bf16.gmra.mrb[0].mxu0 %v4796
    %v6178 = vpop.f32.mrb[0].mxu0
    %v6179 = vadd.f32 %v6138, %v6178
    %v6180 = vpop.f32.mrb[0].mxu0
    %v6181 = vadd.f32 %v6140, %v6180
    %v6182 = vpop.f32.mrb[0].mxu0
    %v6183 = vpop.f32.mrb[0].mxu0
    %6184 = vdwg.mxu0
    %6185 = vmatprep.subr.bf16.mxu0 %v5720
    %6186 = vmatpush1.bf16.msra.mxu0 %v5719
    %6187 = vmatprep.subr.bf16.mxu0 %v5724
    %6188 = vmatpush1.bf16.msra.mxu0 %v5723
    %6189 = vmatprep.subr.bf16.mxu0 %v5728
    %6190 = vmatpush1.bf16.msra.mxu0 %v5727
    %6191 = vmatprep.subr.bf16.mxu0 %v5732
    %6192 = vmatpush1.bf16.msra.mxu0 %v5731
    %6193 = vmatprep.subr.bf16.mxu0 %v5736
    %6194 = vmatpush1.bf16.msra.mxu0 %v5735
    %6195 = vmatprep.subr.bf16.mxu0 %v5740
    %6196 = vmatpush1.bf16.msra.mxu0 %v5739
    %6197 = vmatprep.subr.bf16.mxu0 %v5744
    %6198 = vmatpush1.bf16.msra.mxu0 %v5743
    %6199 = vmatprep.subr.bf16.mxu0 %v5748
    %6200 = vmatpush1.bf16.msra.mxu0 %v5747
    %6201 = vmatprep.subr.bf16.mxu0 %v5752
    %6202 = vmatpush1.bf16.msra.mxu0 %v5751
    %6203 = vmatprep.subr.bf16.mxu0 %v5756
    %6204 = vmatpush1.bf16.msra.mxu0 %v5755
    %6205 = vmatprep.subr.bf16.mxu0 %v5760
    %6206 = vmatpush1.bf16.msra.mxu0 %v5759
    %6207 = vmatprep.subr.bf16.mxu0 %v5764
    %6208 = vmatpush1.bf16.msra.mxu0 %v5763
    %6209 = vmatprep.subr.bf16.mxu0 %v5768
    %6210 = vmatpush1.bf16.msra.mxu0 %v5767
    %6211 = vmatprep.subr.bf16.mxu0 %v5772
    %6212 = vmatpush1.bf16.msra.mxu0 %v5771
    %6213 = vmatprep.subr.bf16.mxu0 %v5776
    %6214 = vmatpush1.bf16.msra.mxu0 %v5775
    %6215 = vmatprep.subr.bf16.mxu0 %v5780
    %6216 = vmatpush1.bf16.msra.mxu0 %v5779
    %6217 = vmatprep.mubr.bf16.mxu0 %v4799
    %6218 = vmatmul.mubr.bf16.gmra.mrb[0].mxu0 %v4798
    %v6219 = vpop.f32.mrb[0].mxu0
    %v6220 = vadd.f32 %v6179, %v6219
    %v6221 = vpop.f32.mrb[0].mxu0
    %v6222 = vadd.f32 %v6181, %v6221
    %v6223 = vpop.f32.mrb[0].mxu0
    %v6224 = vpop.f32.mrb[0].mxu0
    %6225 = vdwg.mxu0
    %6226 = vmatprep.subr.bf16.mxu0 %v5784
    %6227 = vmatpush1.bf16.msra.mxu0 %v5783
    %6228 = vmatprep.subr.bf16.mxu0 %v5788
    %6229 = vmatpush1.bf16.msra.mxu0 %v5787
    %6230 = vmatprep.subr.bf16.mxu0 %v5792
    %6231 = vmatpush1.bf16.msra.mxu0 %v5791
    %6232 = vmatprep.subr.bf16.mxu0 %v5796
    %6233 = vmatpush1.bf16.msra.mxu0 %v5795
    %6234 = vmatprep.subr.bf16.mxu0 %v5800
    %6235 = vmatpush1.bf16.msra.mxu0 %v5799
    %6236 = vmatprep.subr.bf16.mxu0 %v5804
    %6237 = vmatpush1.bf16.msra.mxu0 %v5803
    %6238 = vmatprep.subr.bf16.mxu0 %v5808
    %6239 = vmatpush1.bf16.msra.mxu0 %v5807
    %6240 = vmatprep.subr.bf16.mxu0 %v5812
    %6241 = vmatpush1.bf16.msra.mxu0 %v5811
    %6242 = vmatprep.subr.bf16.mxu0 %v5816
    %6243 = vmatpush1.bf16.msra.mxu0 %v5815
    %6244 = vmatprep.subr.bf16.mxu0 %v5820
    %6245 = vmatpush1.bf16.msra.mxu0 %v5819
    %6246 = vmatprep.subr.bf16.mxu0 %v5824
    %6247 = vmatpush1.bf16.msra.mxu0 %v5823
    %6248 = vmatprep.subr.bf16.mxu0 %v5828
    %6249 = vmatpush1.bf16.msra.mxu0 %v5827
    %6250 = vmatprep.subr.bf16.mxu0 %v5832
    %6251 = vmatpush1.bf16.msra.mxu0 %v5831
    %6252 = vmatprep.subr.bf16.mxu0 %v5836
    %6253 = vmatpush1.bf16.msra.mxu0 %v5835
    %6254 = vmatprep.subr.bf16.mxu0 %v5840
    %6255 = vmatpush1.bf16.msra.mxu0 %v5839
    %6256 = vmatprep.subr.bf16.mxu0 %v5844
    %6257 = vmatpush1.bf16.msra.mxu0 %v5843
    %6258 = vmatprep.mubr.bf16.mxu0 %v4801
    %6259 = vmatmul.mubr.bf16.gmra.mrb[0].mxu0 %v4800
    %v6260 = vpop.f32.mrb[0].mxu0
    %v6261 = vadd.f32 %v6220, %v6260
    %v6262 = vpop.f32.mrb[0].mxu0
    %v6263 = vadd.f32 %v6222, %v6262
    %v6264 = vpop.f32.mrb[0].mxu0
    %v6265 = vpop.f32.mrb[0].mxu0
    %6266 = vdwg.mxu0
    %6267 = vmatprep.subr.bf16.mxu0 %v5594
    %6268 = vmatpush1.bf16.msra.mxu0 %v5593
    %6269 = vmatprep.subr.bf16.mxu0 %v5598
    %6270 = vmatpush1.bf16.msra.mxu0 %v5597
    %6271 = vmatprep.subr.bf16.mxu0 %v5602
    %6272 = vmatpush1.bf16.msra.mxu0 %v5601
    %6273 = vmatprep.subr.bf16.mxu0 %v5606
    %6274 = vmatpush1.bf16.msra.mxu0 %v5605
    %6275 = vmatprep.subr.bf16.mxu0 %v5610
    %6276 = vmatpush1.bf16.msra.mxu0 %v5609
    %6277 = vmatprep.subr.bf16.mxu0 %v5614
    %6278 = vmatpush1.bf16.msra.mxu0 %v5613
    %6279 = vmatprep.subr.bf16.mxu0 %v5618
    %6280 = vmatpush1.bf16.msra.mxu0 %v5617
    %6281 = vmatprep.subr.bf16.mxu0 %v5622
    %6282 = vmatpush1.bf16.msra.mxu0 %v5621
    %6283 = vmatprep.subr.bf16.mxu0 %v5626
    %6284 = vmatpush1.bf16.msra.mxu0 %v5625
    %6285 = vmatprep.subr.bf16.mxu0 %v5630
    %6286 = vmatpush1.bf16.msra.mxu0 %v5629
    %6287 = vmatprep.subr.bf16.mxu0 %v5634
    %6288 = vmatpush1.bf16.msra.mxu0 %v5633
    %6289 = vmatprep.subr.bf16.mxu0 %v5638
    %6290 = vmatpush1.bf16.msra.mxu0 %v5637
    %6291 = vmatprep.subr.bf16.mxu0 %v5642
    %6292 = vmatpush1.bf16.msra.mxu0 %v5641
    %6293 = vmatprep.subr.bf16.mxu0 %v5646
    %6294 = vmatpush1.bf16.msra.mxu0 %v5645
    %6295 = vmatprep.subr.bf16.mxu0 %v5650
    %6296 = vmatpush1.bf16.msra.mxu0 %v5649
    %6297 = vmatprep.subr.bf16.mxu0 %v5654
    %6298 = vmatpush1.bf16.msra.mxu0 %v5653
    %6299 = vmatprep.mubr.bf16.mxu0 %v4795
    %6300 = vmatmul.mubr.bf16.gmra.mrb[0].mxu0 %v4794
    %v6301 = vpop.f32.mrb[0].mxu0
    %v6302 = vadd.f32 %v4814, %v6301
    %v6303 = vpop.f32.mrb[0].mxu0
    %v6304 = vadd.f32 %v4818, %v6303
    %v6305 = vpop.f32.mrb[0].mxu0
    %v6306 = vpop.f32.mrb[0].mxu0
    %6307 = vdwg.mxu0
    %6308 = vmatprep.subr.bf16.mxu0 %v5658
    %6309 = vmatpush1.bf16.msra.mxu0 %v5657
    %6310 = vmatprep.subr.bf16.mxu0 %v5662
    %6311 = vmatpush1.bf16.msra.mxu0 %v5661
    %6312 = vmatprep.subr.bf16.mxu0 %v5666
    %6313 = vmatpush1.bf16.msra.mxu0 %v5665
    %6314 = vmatprep.subr.bf16.mxu0 %v5670
    %6315 = vmatpush1.bf16.msra.mxu0 %v5669
    %6316 = vmatprep.subr.bf16.mxu0 %v5674
    %6317 = vmatpush1.bf16.msra.mxu0 %v5673
    %6318 = vmatprep.subr.bf16.mxu0 %v5678
    %6319 = vmatpush1.bf16.msra.mxu0 %v5677
    %6320 = vmatprep.subr.bf16.mxu0 %v5682
    %6321 = vmatpush1.bf16.msra.mxu0 %v5681
    %6322 = vmatprep.subr.bf16.mxu0 %v5686
    %6323 = vmatpush1.bf16.msra.mxu0 %v5685
    %6324 = vmatprep.subr.bf16.mxu0 %v5690
    %6325 = vmatpush1.bf16.msra.mxu0 %v5689
    %6326 = vmatprep.subr.bf16.mxu0 %v5694
    %6327 = vmatpush1.bf16.msra.mxu0 %v5693
    %6328 = vmatprep.subr.bf16.mxu0 %v5698
    %6329 = vmatpush1.bf16.msra.mxu0 %v5697
    %6330 = vmatprep.subr.bf16.mxu0 %v5702
    %6331 = vmatpush1.bf16.msra.mxu0 %v5701
    %6332 = vmatprep.subr.bf16.mxu0 %v5706
    %6333 = vmatpush1.bf16.msra.mxu0 %v5705
    %6334 = vmatprep.subr.bf16.mxu0 %v5710
    %6335 = vmatpush1.bf16.msra.mxu0 %v5709
    %6336 = vmatprep.subr.bf16.mxu0 %v5714
    %6337 = vmatpush1.bf16.msra.mxu0 %v5713
    %6338 = vmatprep.subr.bf16.mxu0 %v5718
    %6339 = vmatpush1.bf16.msra.mxu0 %v5717
    %6340 = vmatprep.mubr.bf16.mxu0 %v4797
    %6341 = vmatmul.mubr.bf16.gmra.mrb[0].mxu0 %v4796
    %v6342 = vpop.f32.mrb[0].mxu0
    %v6343 = vadd.f32 %v6302, %v6342
    %v6344 = vpop.f32.mrb[0].mxu0
    %v6345 = vadd.f32 %v6304, %v6344
    %v6346 = vpop.f32.mrb[0].mxu0
    %v6347 = vpop.f32.mrb[0].mxu0
    %6348 = vdwg.mxu0
    %6349 = vmatprep.subr.bf16.mxu0 %v5722
    %6350 = vmatpush1.bf16.msra.mxu0 %v5721
    %6351 = vmatprep.subr.bf16.mxu0 %v5726
    %6352 = vmatpush1.bf16.msra.mxu0 %v5725
    %6353 = vmatprep.subr.bf16.mxu0 %v5730
    %6354 = vmatpush1.bf16.msra.mxu0 %v5729
    %6355 = vmatprep.subr.bf16.mxu0 %v5734
    %6356 = vmatpush1.bf16.msra.mxu0 %v5733
    %6357 = vmatprep.subr.bf16.mxu0 %v5738
    %6358 = vmatpush1.bf16.msra.mxu0 %v5737
    %6359 = vmatprep.subr.bf16.mxu0 %v5742
    %6360 = vmatpush1.bf16.msra.mxu0 %v5741
    %6361 = vmatprep.subr.bf16.mxu0 %v5746
    %6362 = vmatpush1.bf16.msra.mxu0 %v5745
    %6363 = vmatprep.subr.bf16.mxu0 %v5750
    %6364 = vmatpush1.bf16.msra.mxu0 %v5749
    %6365 = vmatprep.subr.bf16.mxu0 %v5754
    %6366 = vmatpush1.bf16.msra.mxu0 %v5753
    %6367 = vmatprep.subr.bf16.mxu0 %v5758
    %6368 = vmatpush1.bf16.msra.mxu0 %v5757
    %6369 = vmatprep.subr.bf16.mxu0 %v5762
    %6370 = vmatpush1.bf16.msra.mxu0 %v5761
    %6371 = vmatprep.subr.bf16.mxu0 %v5766
    %6372 = vmatpush1.bf16.msra.mxu0 %v5765
    %6373 = vmatprep.subr.bf16.mxu0 %v5770
    %6374 = vmatpush1.bf16.msra.mxu0 %v5769
    %6375 = vmatprep.subr.bf16.mxu0 %v5774
    %6376 = vmatpush1.bf16.msra.mxu0 %v5773
    %6377 = vmatprep.subr.bf16.mxu0 %v5778
    %6378 = vmatpush1.bf16.msra.mxu0 %v5777
    %6379 = vmatprep.subr.bf16.mxu0 %v5782
    %6380 = vmatpush1.bf16.msra.mxu0 %v5781
    %6381 = vmatprep.mubr.bf16.mxu0 %v4799
    %6382 = vmatmul.mubr.bf16.gmra.mrb[0].mxu0 %v4798
    %v6383 = vpop.f32.mrb[0].mxu0
    %v6384 = vadd.f32 %v6343, %v6383
    %v6385 = vpop.f32.mrb[0].mxu0
    %v6386 = vadd.f32 %v6345, %v6385
    %v6387 = vpop.f32.mrb[0].mxu0
    %v6388 = vpop.f32.mrb[0].mxu0
    %6389 = vdwg.mxu0
    %6390 = vmatprep.subr.bf16.mxu0 %v5786
    %6391 = vmatpush1.bf16.msra.mxu0 %v5785
    %6392 = vmatprep.subr.bf16.mxu0 %v5790
    %6393 = vmatpush1.bf16.msra.mxu0 %v5789
    %6394 = vmatprep.subr.bf16.mxu0 %v5794
    %6395 = vmatpush1.bf16.msra.mxu0 %v5793
    %6396 = vmatprep.subr.bf16.mxu0 %v5798
    %6397 = vmatpush1.bf16.msra.mxu0 %v5797
    %6398 = vmatprep.subr.bf16.mxu0 %v5802
    %6399 = vmatpush1.bf16.msra.mxu0 %v5801
    %6400 = vmatprep.subr.bf16.mxu0 %v5806
    %6401 = vmatpush1.bf16.msra.mxu0 %v5805
    %6402 = vmatprep.subr.bf16.mxu0 %v5810
    %6403 = vmatpush1.bf16.msra.mxu0 %v5809
    %6404 = vmatprep.subr.bf16.mxu0 %v5814
    %6405 = vmatpush1.bf16.msra.mxu0 %v5813
    %6406 = vmatprep.subr.bf16.mxu0 %v5818
    %6407 = vmatpush1.bf16.msra.mxu0 %v5817
    %6408 = vmatprep.subr.bf16.mxu0 %v5822
    %6409 = vmatpush1.bf16.msra.mxu0 %v5821
    %6410 = vmatprep.subr.bf16.mxu0 %v5826
    %6411 = vmatpush1.bf16.msra.mxu0 %v5825
    %6412 = vmatprep.subr.bf16.mxu0 %v5830
    %6413 = vmatpush1.bf16.msra.mxu0 %v5829
    %6414 = vmatprep.subr.bf16.mxu0 %v5834
    %6415 = vmatpush1.bf16.msra.mxu0 %v5833
    %6416 = vmatprep.subr.bf16.mxu0 %v5838
    %6417 = vmatpush1.bf16.msra.mxu0 %v5837
    %6418 = vmatprep.subr.bf16.mxu0 %v5842
    %6419 = vmatpush1.bf16.msra.mxu0 %v5841
    %6420 = vmatprep.subr.bf16.mxu0 %v5846
    %6421 = vmatpush1.bf16.msra.mxu0 %v5845
    %6422 = vmatprep.mubr.bf16.mxu0 %v4801
    %6423 = vmatmul.mubr.bf16.gmra.mrb[0].mxu0 %v4800
    %v6424 = vpop.f32.mrb[0].mxu0
    %v6425 = vadd.f32 %v6384, %v6424
    %v6426 = vpop.f32.mrb[0].mxu0
    %v6427 = vadd.f32 %v6386, %v6426
    %v6428 = vpop.f32.mrb[0].mxu0
    %v6429 = vpop.f32.mrb[0].mxu0
    %6430 = vdwg.mxu0
    %v6431 = vmax.f32 %v6261, 0.0
    %v6432 = vmax.f32 %v6263, 0.0
    %v6433 = vmax.f32 %v6425, 0.0
    %v6434 = vmax.f32 %v6427, 0.0
    %v6435 = vld [vmem:[#allocation14] sm:$0xff]
    %v6436 = vld [vmem:[#allocation14 + $0x8] sm:$0xff]
    %v6437 = vld [vmem:[#allocation14 + $0x10] sm:$0xff]
    %v6438 = vld [vmem:[#allocation14 + $0x18] sm:$0xff]
    %v6439 = vld [vmem:[#allocation14 + $0x20] sm:$0xff]
    %v6440 = vld [vmem:[#allocation14 + $0x28] sm:$0xff]
    %v6441 = vld [vmem:[#allocation14 + $0x30] sm:$0xff]
    %v6442 = vld [vmem:[#allocation14 + $0x38] sm:$0xff]
    %v6443 = vld [vmem:[#allocation14 + $0x40] sm:$0xff]
    %v6444 = vld [vmem:[#allocation14 + $0x48] sm:$0xff]
    %v6445 = vld [vmem:[#allocation14 + $0x50] sm:$0xff]
    %v6446 = vld [vmem:[#allocation14 + $0x58] sm:$0xff]
    %v6447 = vld [vmem:[#allocation14 + $0x60] sm:$0xff]
    %v6448 = vld [vmem:[#allocation14 + $0x68] sm:$0xff]
    %v6449 = vld [vmem:[#allocation14 + $0x70] sm:$0xff]
    %v6450 = vld [vmem:[#allocation14 + $0x78] sm:$0xff]
    %v6451 = vld [vmem:[#allocation14 + $0x80] sm:$0xff]
    %v6452 = vld [vmem:[#allocation14 + $0x88] sm:$0xff]
    %v6453 = vld [vmem:[#allocation14 + $0x90] sm:$0xff]
    %v6454 = vld [vmem:[#allocation14 + $0x98] sm:$0xff]
    %v6455 = vld [vmem:[#allocation14 + $0xa0] sm:$0xff]
    %v6456 = vld [vmem:[#allocation14 + $0xa8] sm:$0xff]
    %v6457 = vld [vmem:[#allocation14 + $0xb0] sm:$0xff]
    %v6458 = vld [vmem:[#allocation14 + $0xb8] sm:$0xff]
    %v6459 = vld [vmem:[#allocation14 + $0xc0] sm:$0xff]
    %v6460 = vld [vmem:[#allocation14 + $0xc8] sm:$0xff]
    %v6461 = vld [vmem:[#allocation14 + $0xd0] sm:$0xff]
    %v6462 = vld [vmem:[#allocation14 + $0xd8] sm:$0xff]
    %v6463 = vld [vmem:[#allocation14 + $0xe0] sm:$0xff]
    %v6464 = vld [vmem:[#allocation14 + $0xe8] sm:$0xff]
    %v6465 = vld [vmem:[#allocation14 + $0xf0] sm:$0xff]
    %v6466 = vld [vmem:[#allocation14 + $0xf8] sm:$0xff]
    %v6467 = vld [vmem:[#allocation14 + $0x100] sm:$0xff]
    %v6468 = vld [vmem:[#allocation14 + $0x108] sm:$0xff]
    %v6469 = vld [vmem:[#allocation14 + $0x110] sm:$0xff]
    %v6470 = vld [vmem:[#allocation14 + $0x118] sm:$0xff]
    %v6471 = vld [vmem:[#allocation14 + $0x120] sm:$0xff]
    %v6472 = vld [vmem:[#allocation14 + $0x128] sm:$0xff]
    %v6473 = vld [vmem:[#allocation14 + $0x130] sm:$0xff]
    %v6474 = vld [vmem:[#allocation14 + $0x138] sm:$0xff]
    %v6475 = vld [vmem:[#allocation14 + $0x140] sm:$0xff]
    %v6476 = vld [vmem:[#allocation14 + $0x148] sm:$0xff]
    %v6477 = vld [vmem:[#allocation14 + $0x150] sm:$0xff]
    %v6478 = vld [vmem:[#allocation14 + $0x158] sm:$0xff]
    %v6479 = vld [vmem:[#allocation14 + $0x160] sm:$0xff]
    %v6480 = vld [vmem:[#allocation14 + $0x168] sm:$0xff]
    %v6481 = vld [vmem:[#allocation14 + $0x170] sm:$0xff]
    %v6482 = vld [vmem:[#allocation14 + $0x178] sm:$0xff]
    %v6483 = vld [vmem:[#allocation14 + $0x180] sm:$0xff]
    %v6484 = vld [vmem:[#allocation14 + $0x188] sm:$0xff]
    %v6485 = vld [vmem:[#allocation14 + $0x190] sm:$0xff]
    %v6486 = vld [vmem:[#allocation14 + $0x198] sm:$0xff]
    %v6487 = vld [vmem:[#allocation14 + $0x1a0] sm:$0xff]
    %v6488 = vld [vmem:[#allocation14 + $0x1a8] sm:$0xff]
    %v6489 = vld [vmem:[#allocation14 + $0x1b0] sm:$0xff]
    %v6490 = vld [vmem:[#allocation14 + $0x1b8] sm:$0xff]
    %v6491 = vld [vmem:[#allocation14 + $0x1c0] sm:$0xff]
    %v6492 = vld [vmem:[#allocation14 + $0x1c8] sm:$0xff]
    %v6493 = vld [vmem:[#allocation14 + $0x1d0] sm:$0xff]
    %v6494 = vld [vmem:[#allocation14 + $0x1d8] sm:$0xff]
    %v6495 = vld [vmem:[#allocation14 + $0x1e0] sm:$0xff]
    %v6496 = vld [vmem:[#allocation14 + $0x1e8] sm:$0xff]
    %v6497 = vld [vmem:[#allocation14 + $0x1f0] sm:$0xff]
    %v6498 = vld [vmem:[#allocation14 + $0x1f8] sm:$0xff]
    %v6499 = vld [vmem:[#allocation16] sm:$0x3]
    %v6500 = vpack.c.bf16 %v6431, %v6431
    %v6501 = vpack.c.bf16 %v6432, %v6432
    %v6502 = vpack.c.bf16 %v6433, %v6433
    %v6503 = vpack.c.bf16 %v6434, %v6434
    %v6505 = vlaneseq
    %v6506 = vshrl.u32 %v6505, 7
    %v6507 = vsub.s32 0, %v6506
    %v6508 = vrot.slane %v6499, %v6507
    %v6509 = vlaneseq
    %v6510 = vshrl.u32 %v6509, 7
    %v6511 = vsub.s32 1, %v6510
    %v6512 = vrot.slane %v6499, %v6511
    %v6579 = vunpack.c.l.b16 %v6435
    %v6580 = vunpack.c.h.b16 %v6435
    %v6581 = vunpack.c.l.b16 %v6436
    %v6582 = vunpack.c.h.b16 %v6436
    %v6583 = vunpack.c.l.b16 %v6437
    %v6584 = vunpack.c.h.b16 %v6437
    %v6585 = vunpack.c.l.b16 %v6438
    %v6586 = vunpack.c.h.b16 %v6438
    %v6587 = vunpack.c.l.b16 %v6439
    %v6588 = vunpack.c.h.b16 %v6439
    %v6589 = vunpack.c.l.b16 %v6440
    %v6590 = vunpack.c.h.b16 %v6440
    %v6591 = vunpack.c.l.b16 %v6441
    %v6592 = vunpack.c.h.b16 %v6441
    %v6593 = vunpack.c.l.b16 %v6442
    %v6594 = vunpack.c.h.b16 %v6442
    %v6595 = vunpack.c.l.b16 %v6443
    %v6596 = vunpack.c.h.b16 %v6443
    %v6597 = vunpack.c.l.b16 %v6444
    %v6598 = vunpack.c.h.b16 %v6444
    %v6599 = vunpack.c.l.b16 %v6445
    %v6600 = vunpack.c.h.b16 %v6445
    %v6601 = vunpack.c.l.b16 %v6446
    %v6602 = vunpack.c.h.b16 %v6446
    %v6603 = vunpack.c.l.b16 %v6447
    %v6604 = vunpack.c.h.b16 %v6447
    %v6605 = vunpack.c.l.b16 %v6448
    %v6606 = vunpack.c.h.b16 %v6448
    %v6607 = vunpack.c.l.b16 %v6449
    %v6608 = vunpack.c.h.b16 %v6449
    %v6609 = vunpack.c.l.b16 %v6450
    %v6610 = vunpack.c.h.b16 %v6450
    %v6611 = vunpack.c.l.b16 %v6451
    %v6612 = vunpack.c.h.b16 %v6451
    %v6613 = vunpack.c.l.b16 %v6452
    %v6614 = vunpack.c.h.b16 %v6452
    %v6615 = vunpack.c.l.b16 %v6453
    %v6616 = vunpack.c.h.b16 %v6453
    %v6617 = vunpack.c.l.b16 %v6454
    %v6618 = vunpack.c.h.b16 %v6454
    %v6619 = vunpack.c.l.b16 %v6455
    %v6620 = vunpack.c.h.b16 %v6455
    %v6621 = vunpack.c.l.b16 %v6456
    %v6622 = vunpack.c.h.b16 %v6456
    %v6623 = vunpack.c.l.b16 %v6457
    %v6624 = vunpack.c.h.b16 %v6457
    %v6625 = vunpack.c.l.b16 %v6458
    %v6626 = vunpack.c.h.b16 %v6458
    %v6627 = vunpack.c.l.b16 %v6459
    %v6628 = vunpack.c.h.b16 %v6459
    %v6629 = vunpack.c.l.b16 %v6460
    %v6630 = vunpack.c.h.b16 %v6460
    %v6631 = vunpack.c.l.b16 %v6461
    %v6632 = vunpack.c.h.b16 %v6461
    %v6633 = vunpack.c.l.b16 %v6462
    %v6634 = vunpack.c.h.b16 %v6462
    %v6635 = vunpack.c.l.b16 %v6463
    %v6636 = vunpack.c.h.b16 %v6463
    %v6637 = vunpack.c.l.b16 %v6464
    %v6638 = vunpack.c.h.b16 %v6464
    %v6639 = vunpack.c.l.b16 %v6465
    %v6640 = vunpack.c.h.b16 %v6465
    %v6641 = vunpack.c.l.b16 %v6466
    %v6642 = vunpack.c.h.b16 %v6466
    %v6643 = vunpack.c.l.b16 %v6467
    %v6644 = vunpack.c.h.b16 %v6467
    %v6645 = vunpack.c.l.b16 %v6468
    %v6646 = vunpack.c.h.b16 %v6468
    %v6647 = vunpack.c.l.b16 %v6469
    %v6648 = vunpack.c.h.b16 %v6469
    %v6649 = vunpack.c.l.b16 %v6470
    %v6650 = vunpack.c.h.b16 %v6470
    %v6651 = vunpack.c.l.b16 %v6471
    %v6652 = vunpack.c.h.b16 %v6471
    %v6653 = vunpack.c.l.b16 %v6472
    %v6654 = vunpack.c.h.b16 %v6472
    %v6655 = vunpack.c.l.b16 %v6473
    %v6656 = vunpack.c.h.b16 %v6473
    %v6657 = vunpack.c.l.b16 %v6474
    %v6658 = vunpack.c.h.b16 %v6474
    %v6659 = vunpack.c.l.b16 %v6475
    %v6660 = vunpack.c.h.b16 %v6475
    %v6661 = vunpack.c.l.b16 %v6476
    %v6662 = vunpack.c.h.b16 %v6476
    %v6663 = vunpack.c.l.b16 %v6477
    %v6664 = vunpack.c.h.b16 %v6477
    %v6665 = vunpack.c.l.b16 %v6478
    %v6666 = vunpack.c.h.b16 %v6478
    %v6667 = vunpack.c.l.b16 %v6479
    %v6668 = vunpack.c.h.b16 %v6479
    %v6669 = vunpack.c.l.b16 %v6480
    %v6670 = vunpack.c.h.b16 %v6480
    %v6671 = vunpack.c.l.b16 %v6481
    %v6672 = vunpack.c.h.b16 %v6481
    %v6673 = vunpack.c.l.b16 %v6482
    %v6674 = vunpack.c.h.b16 %v6482
    %v6675 = vunpack.c.l.b16 %v6483
    %v6676 = vunpack.c.h.b16 %v6483
    %v6677 = vunpack.c.l.b16 %v6484
    %v6678 = vunpack.c.h.b16 %v6484
    %v6679 = vunpack.c.l.b16 %v6485
    %v6680 = vunpack.c.h.b16 %v6485
    %v6681 = vunpack.c.l.b16 %v6486
    %v6682 = vunpack.c.h.b16 %v6486
    %v6683 = vunpack.c.l.b16 %v6487
    %v6684 = vunpack.c.h.b16 %v6487
    %v6685 = vunpack.c.l.b16 %v6488
    %v6686 = vunpack.c.h.b16 %v6488
    %v6687 = vunpack.c.l.b16 %v6489
    %v6688 = vunpack.c.h.b16 %v6489
    %v6689 = vunpack.c.l.b16 %v6490
    %v6690 = vunpack.c.h.b16 %v6490
    %v6691 = vunpack.c.l.b16 %v6491
    %v6692 = vunpack.c.h.b16 %v6491
    %v6693 = vunpack.c.l.b16 %v6492
    %v6694 = vunpack.c.h.b16 %v6492
    %v6695 = vunpack.c.l.b16 %v6493
    %v6696 = vunpack.c.h.b16 %v6493
    %v6697 = vunpack.c.l.b16 %v6494
    %v6698 = vunpack.c.h.b16 %v6494
    %v6699 = vunpack.c.l.b16 %v6495
    %v6700 = vunpack.c.h.b16 %v6495
    %v6701 = vunpack.c.l.b16 %v6496
    %v6702 = vunpack.c.h.b16 %v6496
    %v6703 = vunpack.c.l.b16 %v6497
    %v6704 = vunpack.c.h.b16 %v6497
    %v6705 = vunpack.c.l.b16 %v6498
    %v6706 = vunpack.c.h.b16 %v6498
    %v6707 = vpack.c.b16 %v6581, %v6579
    %v6708 = vpack.c.b16 %v6582, %v6580
    %v6709 = vpack.c.b16 %v6585, %v6583
    %v6710 = vpack.c.b16 %v6586, %v6584
    %v6711 = vpack.c.b16 %v6589, %v6587
    %v6712 = vpack.c.b16 %v6590, %v6588
    %v6713 = vpack.c.b16 %v6593, %v6591
    %v6714 = vpack.c.b16 %v6594, %v6592
    %v6715 = vpack.c.b16 %v6597, %v6595
    %v6716 = vpack.c.b16 %v6598, %v6596
    %v6717 = vpack.c.b16 %v6601, %v6599
    %v6718 = vpack.c.b16 %v6602, %v6600
    %v6719 = vpack.c.b16 %v6605, %v6603
    %v6720 = vpack.c.b16 %v6606, %v6604
    %v6721 = vpack.c.b16 %v6609, %v6607
    %v6722 = vpack.c.b16 %v6610, %v6608
    %v6723 = vpack.c.b16 %v6613, %v6611
    %v6724 = vpack.c.b16 %v6614, %v6612
    %v6725 = vpack.c.b16 %v6617, %v6615
    %v6726 = vpack.c.b16 %v6618, %v6616
    %v6727 = vpack.c.b16 %v6621, %v6619
    %v6728 = vpack.c.b16 %v6622, %v6620
    %v6729 = vpack.c.b16 %v6625, %v6623
    %v6730 = vpack.c.b16 %v6626, %v6624
    %v6731 = vpack.c.b16 %v6629, %v6627
    %v6732 = vpack.c.b16 %v6630, %v6628
    %v6733 = vpack.c.b16 %v6633, %v6631
    %v6734 = vpack.c.b16 %v6634, %v6632
    %v6735 = vpack.c.b16 %v6637, %v6635
    %v6736 = vpack.c.b16 %v6638, %v6636
    %v6737 = vpack.c.b16 %v6641, %v6639
    %v6738 = vpack.c.b16 %v6642, %v6640
    %v6739 = vpack.c.b16 %v6645, %v6643
    %v6740 = vpack.c.b16 %v6646, %v6644
    %v6741 = vpack.c.b16 %v6649, %v6647
    %v6742 = vpack.c.b16 %v6650, %v6648
    %v6743 = vpack.c.b16 %v6653, %v6651
    %v6744 = vpack.c.b16 %v6654, %v6652
    %v6745 = vpack.c.b16 %v6657, %v6655
    %v6746 = vpack.c.b16 %v6658, %v6656
    %v6747 = vpack.c.b16 %v6661, %v6659
    %v6748 = vpack.c.b16 %v6662, %v6660
    %v6749 = vpack.c.b16 %v6665, %v6663
    %v6750 = vpack.c.b16 %v6666, %v6664
    %v6751 = vpack.c.b16 %v6669, %v6667
    %v6752 = vpack.c.b16 %v6670, %v6668
    %v6753 = vpack.c.b16 %v6673, %v6671
    %v6754 = vpack.c.b16 %v6674, %v6672
    %v6755 = vpack.c.b16 %v6677, %v6675
    %v6756 = vpack.c.b16 %v6678, %v6676
    %v6757 = vpack.c.b16 %v6681, %v6679
    %v6758 = vpack.c.b16 %v6682, %v6680
    %v6759 = vpack.c.b16 %v6685, %v6683
    %v6760 = vpack.c.b16 %v6686, %v6684
    %v6761 = vpack.c.b16 %v6689, %v6687
    %v6762 = vpack.c.b16 %v6690, %v6688
    %v6763 = vpack.c.b16 %v6693, %v6691
    %v6764 = vpack.c.b16 %v6694, %v6692
    %v6765 = vpack.c.b16 %v6697, %v6695
    %v6766 = vpack.c.b16 %v6698, %v6696
    %v6767 = vpack.c.b16 %v6701, %v6699
    %v6768 = vpack.c.b16 %v6702, %v6700
    %v6769 = vpack.c.b16 %v6705, %v6703
    %v6770 = vpack.c.b16 %v6706, %v6704
    %6835 = vmatprep.subr.bf16.mxu0 %v6708
    %6836 = vmatpush1.bf16.msra.mxu0 %v6707
    %6837 = vmatprep.subr.bf16.mxu0 %v6710
    %6838 = vmatpush1.bf16.msra.mxu0 %v6709
    %6839 = vmatprep.subr.bf16.mxu0 %v6712
    %6840 = vmatpush1.bf16.msra.mxu0 %v6711
    %6841 = vmatprep.subr.bf16.mxu0 %v6714
    %6842 = vmatpush1.bf16.msra.mxu0 %v6713
    %6843 = vmatprep.subr.bf16.mxu0 %v6716
    %6844 = vmatpush1.bf16.msra.mxu0 %v6715
    %6845 = vmatprep.subr.bf16.mxu0 %v6718
    %6846 = vmatpush1.bf16.msra.mxu0 %v6717
    %6847 = vmatprep.subr.bf16.mxu0 %v6720
    %6848 = vmatpush1.bf16.msra.mxu0 %v6719
    %6849 = vmatprep.subr.bf16.mxu0 %v6722
    %6850 = vmatpush1.bf16.msra.mxu0 %v6721
    %6851 = vmatprep.subr.bf16.mxu0 %v6724
    %6852 = vmatpush1.bf16.msra.mxu0 %v6723
    %6853 = vmatprep.subr.bf16.mxu0 %v6726
    %6854 = vmatpush1.bf16.msra.mxu0 %v6725
    %6855 = vmatprep.subr.bf16.mxu0 %v6728
    %6856 = vmatpush1.bf16.msra.mxu0 %v6727
    %6857 = vmatprep.subr.bf16.mxu0 %v6730
    %6858 = vmatpush1.bf16.msra.mxu0 %v6729
    %6859 = vmatprep.subr.bf16.mxu0 %v6732
    %6860 = vmatpush1.bf16.msra.mxu0 %v6731
    %6861 = vmatprep.subr.bf16.mxu0 %v6734
    %6862 = vmatpush1.bf16.msra.mxu0 %v6733
    %6863 = vmatprep.subr.bf16.mxu0 %v6736
    %6864 = vmatpush1.bf16.msra.mxu0 %v6735
    %6865 = vmatprep.subr.bf16.mxu0 %v6738
    %6866 = vmatpush1.bf16.msra.mxu0 %v6737
    %6867 = vmatprep.mubr.bf16.mxu0 %v6501
    %6868 = vmatmul.mubr.bf16.gmra.mrb[0].mxu0 %v6500
    %v6869 = vpop.f32.mrb[0].mxu0
    %v6870 = vadd.f32 %v6508, %v6869
    %v6871 = vpop.f32.mrb[0].mxu0
    %v6872 = vadd.f32 %v6512, %v6871
    %v6873 = vpop.f32.mrb[0].mxu0
    %v6874 = vpop.f32.mrb[0].mxu0
    %6875 = vdwg.mxu0
    %6876 = vmatprep.subr.bf16.mxu0 %v6740
    %6877 = vmatpush1.bf16.msra.mxu0 %v6739
    %6878 = vmatprep.subr.bf16.mxu0 %v6742
    %6879 = vmatpush1.bf16.msra.mxu0 %v6741
    %6880 = vmatprep.subr.bf16.mxu0 %v6744
    %6881 = vmatpush1.bf16.msra.mxu0 %v6743
    %6882 = vmatprep.subr.bf16.mxu0 %v6746
    %6883 = vmatpush1.bf16.msra.mxu0 %v6745
    %6884 = vmatprep.subr.bf16.mxu0 %v6748
    %6885 = vmatpush1.bf16.msra.mxu0 %v6747
    %6886 = vmatprep.subr.bf16.mxu0 %v6750
    %6887 = vmatpush1.bf16.msra.mxu0 %v6749
    %6888 = vmatprep.subr.bf16.mxu0 %v6752
    %6889 = vmatpush1.bf16.msra.mxu0 %v6751
    %6890 = vmatprep.subr.bf16.mxu0 %v6754
    %6891 = vmatpush1.bf16.msra.mxu0 %v6753
    %6892 = vmatprep.subr.bf16.mxu0 %v6756
    %6893 = vmatpush1.bf16.msra.mxu0 %v6755
    %6894 = vmatprep.subr.bf16.mxu0 %v6758
    %6895 = vmatpush1.bf16.msra.mxu0 %v6757
    %6896 = vmatprep.subr.bf16.mxu0 %v6760
    %6897 = vmatpush1.bf16.msra.mxu0 %v6759
    %6898 = vmatprep.subr.bf16.mxu0 %v6762
    %6899 = vmatpush1.bf16.msra.mxu0 %v6761
    %6900 = vmatprep.subr.bf16.mxu0 %v6764
    %6901 = vmatpush1.bf16.msra.mxu0 %v6763
    %6902 = vmatprep.subr.bf16.mxu0 %v6766
    %6903 = vmatpush1.bf16.msra.mxu0 %v6765
    %6904 = vmatprep.subr.bf16.mxu0 %v6768
    %6905 = vmatpush1.bf16.msra.mxu0 %v6767
    %6906 = vmatprep.subr.bf16.mxu0 %v6770
    %6907 = vmatpush1.bf16.msra.mxu0 %v6769
    %6908 = vmatprep.mubr.bf16.mxu0 %v6503
    %6909 = vmatmul.mubr.bf16.gmra.mrb[0].mxu0 %v6502
    %v6910 = vpop.f32.mrb[0].mxu0
    %v6911 = vadd.f32 %v6870, %v6910
    %v6912 = vpop.f32.mrb[0].mxu0
    %v6913 = vadd.f32 %v6872, %v6912
    %v6914 = vpop.f32.mrb[0].mxu0
    %v6915 = vpop.f32.mrb[0].mxu0
    %6916 = vdwg.mxu0
    %v6917 = vmax.f32 %v6911, 0.0
    %v6918 = vmax.f32 %v6913, 0.0
    %v6919 = vld [vmem:[#allocation17] sm:$0xf]
    %v6920 = vld [vmem:[#allocation17 + $0x4] sm:$0xf]
    %v6921 = vld [vmem:[#allocation17 + $0x8] sm:$0xf]
    %v6922 = vld [vmem:[#allocation17 + $0xc] sm:$0xf]
    %v6923 = vld [vmem:[#allocation17 + $0x10] sm:$0xf]
    %v6924 = vld [vmem:[#allocation17 + $0x14] sm:$0xf]
    %v6925 = vld [vmem:[#allocation17 + $0x18] sm:$0xf]
    %v6926 = vld [vmem:[#allocation17 + $0x1c] sm:$0xf]
    %v6927 = vld [vmem:[#allocation17 + $0x20] sm:$0xf]
    %v6928 = vld [vmem:[#allocation17 + $0x24] sm:$0xf]
    %v6929 = vld [vmem:[#allocation17 + $0x28] sm:$0xf]
    %v6930 = vld [vmem:[#allocation17 + $0x2c] sm:$0xf]
    %v6931 = vld [vmem:[#allocation17 + $0x30] sm:$0xf]
    %v6932 = vld [vmem:[#allocation17 + $0x34] sm:$0xf]
    %v6933 = vld [vmem:[#allocation17 + $0x38] sm:$0xf]
    %v6934 = vld [vmem:[#allocation17 + $0x3c] sm:$0xf]
    %v6935 = vld [vmem:[#allocation17 + $0x40] sm:$0xf]
    %v6936 = vld [vmem:[#allocation17 + $0x44] sm:$0xf]
    %v6937 = vld [vmem:[#allocation17 + $0x48] sm:$0xf]
    %v6938 = vld [vmem:[#allocation17 + $0x4c] sm:$0xf]
    %v6939 = vld [vmem:[#allocation17 + $0x50] sm:$0xf]
    %v6940 = vld [vmem:[#allocation17 + $0x54] sm:$0xf]
    %v6941 = vld [vmem:[#allocation17 + $0x58] sm:$0xf]
    %v6942 = vld [vmem:[#allocation17 + $0x5c] sm:$0xf]
    %v6943 = vld [vmem:[#allocation17 + $0x60] sm:$0xf]
    %v6944 = vld [vmem:[#allocation17 + $0x64] sm:$0xf]
    %v6945 = vld [vmem:[#allocation17 + $0x68] sm:$0xf]
    %v6946 = vld [vmem:[#allocation17 + $0x6c] sm:$0xf]
    %v6947 = vld [vmem:[#allocation17 + $0x70] sm:$0xf]
    %v6948 = vld [vmem:[#allocation17 + $0x74] sm:$0xf]
    %v6949 = vld [vmem:[#allocation17 + $0x78] sm:$0xf]
    %v6950 = vld [vmem:[#allocation17 + $0x7c] sm:$0xf]
    %v6951 = vld [vmem:[#allocation19] sm:$0x1]
    %v6952 = vpack.c.bf16 %v6917, %v6917
    %v6953 = vpack.c.bf16 %v6918, %v6918
    %v6955 = vlaneseq
    %v6956 = vshrl.u32 %v6955, 7
    %v6957 = vsub.s32 0, %v6956
    %v6958 = vrot.slane %v6951, %v6957
    %v6992 = vunpack.c.l.b16 %v6919
    %v6993 = vunpack.c.l.b16 %v6920
    %v6994 = vunpack.c.l.b16 %v6921
    %v6995 = vunpack.c.l.b16 %v6922
    %v6996 = vunpack.c.l.b16 %v6923
    %v6997 = vunpack.c.l.b16 %v6924
    %v6998 = vunpack.c.l.b16 %v6925
    %v6999 = vunpack.c.l.b16 %v6926
    %v7000 = vunpack.c.l.b16 %v6927
    %v7001 = vunpack.c.l.b16 %v6928
    %v7002 = vunpack.c.l.b16 %v6929
    %v7003 = vunpack.c.l.b16 %v6930
    %v7004 = vunpack.c.l.b16 %v6931
    %v7005 = vunpack.c.l.b16 %v6932
    %v7006 = vunpack.c.l.b16 %v6933
    %v7007 = vunpack.c.l.b16 %v6934
    %v7008 = vunpack.c.l.b16 %v6935
    %v7009 = vunpack.c.l.b16 %v6936
    %v7010 = vunpack.c.l.b16 %v6937
    %v7011 = vunpack.c.l.b16 %v6938
    %v7012 = vunpack.c.l.b16 %v6939
    %v7013 = vunpack.c.l.b16 %v6940
    %v7014 = vunpack.c.l.b16 %v6941
    %v7015 = vunpack.c.l.b16 %v6942
    %v7016 = vunpack.c.l.b16 %v6943
    %v7017 = vunpack.c.l.b16 %v6944
    %v7018 = vunpack.c.l.b16 %v6945
    %v7019 = vunpack.c.l.b16 %v6946
    %v7020 = vunpack.c.l.b16 %v6947
    %v7021 = vunpack.c.l.b16 %v6948
    %v7022 = vunpack.c.l.b16 %v6949
    %v7023 = vunpack.c.l.b16 %v6950
    %v7024 = vpack.c.b16 %v6993, %v6992
    %v7025 = vpack.c.b16 %v6995, %v6994
    %v7026 = vpack.c.b16 %v6997, %v6996
    %v7027 = vpack.c.b16 %v6999, %v6998
    %v7028 = vpack.c.b16 %v7001, %v7000
    %v7029 = vpack.c.b16 %v7003, %v7002
    %v7030 = vpack.c.b16 %v7005, %v7004
    %v7031 = vpack.c.b16 %v7007, %v7006
    %v7032 = vpack.c.b16 %v7009, %v7008
    %v7033 = vpack.c.b16 %v7011, %v7010
    %v7034 = vpack.c.b16 %v7013, %v7012
    %v7035 = vpack.c.b16 %v7015, %v7014
    %v7036 = vpack.c.b16 %v7017, %v7016
    %v7037 = vpack.c.b16 %v7019, %v7018
    %v7038 = vpack.c.b16 %v7021, %v7020
    %v7039 = vpack.c.b16 %v7023, %v7022
    %7056 = vmatprep.subr.bf16.mxu0 0
    %7057 = vmatpush1.bf16.msra.mxu0 %v7024
    %7058 = vmatprep.subr.bf16.mxu0 0
    %7059 = vmatpush1.bf16.msra.mxu0 %v7025
    %7060 = vmatprep.subr.bf16.mxu0 0
    %7061 = vmatpush1.bf16.msra.mxu0 %v7026
    %7062 = vmatprep.subr.bf16.mxu0 0
    %7063 = vmatpush1.bf16.msra.mxu0 %v7027
    %7064 = vmatprep.subr.bf16.mxu0 0
    %7065 = vmatpush1.bf16.msra.mxu0 %v7028
    %7066 = vmatprep.subr.bf16.mxu0 0
    %7067 = vmatpush1.bf16.msra.mxu0 %v7029
    %7068 = vmatprep.subr.bf16.mxu0 0
    %7069 = vmatpush1.bf16.msra.mxu0 %v7030
    %7070 = vmatprep.subr.bf16.mxu0 0
    %7071 = vmatpush1.bf16.msra.mxu0 %v7031
    %7072 = vmatprep.subr.bf16.mxu0 0
    %7073 = vmatpush1.bf16.msra.mxu0 %v7032
    %7074 = vmatprep.subr.bf16.mxu0 0
    %7075 = vmatpush1.bf16.msra.mxu0 %v7033
    %7076 = vmatprep.subr.bf16.mxu0 0
    %7077 = vmatpush1.bf16.msra.mxu0 %v7034
    %7078 = vmatprep.subr.bf16.mxu0 0
    %7079 = vmatpush1.bf16.msra.mxu0 %v7035
    %7080 = vmatprep.subr.bf16.mxu0 0
    %7081 = vmatpush1.bf16.msra.mxu0 %v7036
    %7082 = vmatprep.subr.bf16.mxu0 0
    %7083 = vmatpush1.bf16.msra.mxu0 %v7037
    %7084 = vmatprep.subr.bf16.mxu0 0
    %7085 = vmatpush1.bf16.msra.mxu0 %v7038
    %7086 = vmatprep.subr.bf16.mxu0 0
    %7087 = vmatpush1.bf16.msra.mxu0 %v7039
    %7088 = vmatprep.mubr.bf16.mxu0 %v6953
    %7089 = vmatmul.mubr.bf16.gmra.mrb[0].mxu0 %v6952
    %v7090 = vpop.f32.mrb[0].mxu0
    %v7091 = vadd.f32 %v6958, %v7090
    %v7092 = vpop.f32.mrb[0].mxu0
    %v7093 = vpop.f32.mrb[0].mxu0
    %v7094 = vpop.f32.mrb[0].mxu0
    %7095 = vdwg.mxu0
    %v7096 = vmax.f32 %v7091, 0.0
    %v7097 = vld [vmem:[%s11] sm:$0xf]
    %v7098 = vld [vmem:[%s11 + $0x4] sm:$0xf]
    %v7099 = vld [vmem:[%s11 + $0x8] sm:$0xf]
    %v7100 = vld [vmem:[%s11 + $0xc] sm:$0xf]
    %v7101 = vld [vmem:[%s11 + $0x10] sm:$0xf]
    %v7102 = vld [vmem:[%s11 + $0x14] sm:$0xf]
    %v7103 = vld [vmem:[%s11 + $0x18] sm:$0xf]
    %v7104 = vld [vmem:[%s11 + $0x1c] sm:$0xf]
    %v7105 = vld [vmem:[%s11 + $0x20] sm:$0xf]
    %v7106 = vld [vmem:[%s11 + $0x24] sm:$0xf]
    %v7107 = vld [vmem:[%s11 + $0x28] sm:$0xf]
    %v7108 = vld [vmem:[%s11 + $0x2c] sm:$0xf]
    %v7109 = vld [vmem:[%s11 + $0x30] sm:$0xf]
    %v7110 = vld [vmem:[%s11 + $0x34] sm:$0xf]
    %v7111 = vld [vmem:[%s11 + $0x38] sm:$0xf]
    %v7112 = vld [vmem:[%s11 + $0x3c] sm:$0xf]
    %v7113 = vld [vmem:[#allocation20] sm:$0x1]
    %v7114 = vpack.c.bf16 %v7096, %v7096
    %v7116 = vlaneseq
    %v7117 = vshrl.u32 %v7116, 7
    %v7118 = vsub.s32 0, %v7117
    %v7119 = vrot.slane %v7113, %v7118
    %v7137 = vunpack.c.l.b16 %v7097
    %v7138 = vunpack.c.l.b16 %v7098
    %v7139 = vunpack.c.l.b16 %v7099
    %v7140 = vunpack.c.l.b16 %v7100
    %v7141 = vunpack.c.l.b16 %v7101
    %v7142 = vunpack.c.l.b16 %v7102
    %v7143 = vunpack.c.l.b16 %v7103
    %v7144 = vunpack.c.l.b16 %v7104
    %v7145 = vunpack.c.l.b16 %v7105
    %v7146 = vunpack.c.l.b16 %v7106
    %v7147 = vunpack.c.l.b16 %v7107
    %v7148 = vunpack.c.l.b16 %v7108
    %v7149 = vunpack.c.l.b16 %v7109
    %v7150 = vunpack.c.l.b16 %v7110
    %v7151 = vunpack.c.l.b16 %v7111
    %v7152 = vunpack.c.l.b16 %v7112
    %v7153 = vpack.c.b16 %v7138, %v7137
    %v7154 = vpack.c.b16 %v7140, %v7139
    %v7155 = vpack.c.b16 %v7142, %v7141
    %v7156 = vpack.c.b16 %v7144, %v7143
    %v7157 = vpack.c.b16 %v7146, %v7145
    %v7158 = vpack.c.b16 %v7148, %v7147
    %v7159 = vpack.c.b16 %v7150, %v7149
    %v7160 = vpack.c.b16 %v7152, %v7151
    %7169 = vmatprep.subr.bf16.mxu0 0
    %7170 = vmatpush1.bf16.msra.mxu0 %v7153
    %7171 = vmatprep.subr.bf16.mxu0 0
    %7172 = vmatpush1.bf16.msra.mxu0 %v7154
    %7173 = vmatprep.subr.bf16.mxu0 0
    %7174 = vmatpush1.bf16.msra.mxu0 %v7155
    %7175 = vmatprep.subr.bf16.mxu0 0
    %7176 = vmatpush1.bf16.msra.mxu0 %v7156
    %7177 = vmatprep.subr.bf16.mxu0 0
    %7178 = vmatpush1.bf16.msra.mxu0 %v7157
    %7179 = vmatprep.subr.bf16.mxu0 0
    %7180 = vmatpush1.bf16.msra.mxu0 %v7158
    %7181 = vmatprep.subr.bf16.mxu0 0
    %7182 = vmatpush1.bf16.msra.mxu0 %v7159
    %7183 = vmatprep.subr.bf16.mxu0 0
    %7184 = vmatpush1.bf16.msra.mxu0 %v7160
    %7185 = vmatprep.subr.bf16.mxu0 0
    %7186 = vmatpush1.bf16.msra.mxu0 0
    %7187 = vmatprep.subr.bf16.mxu0 0
    %7188 = vmatpush1.bf16.msra.mxu0 0
    %7189 = vmatprep.subr.bf16.mxu0 0
    %7190 = vmatpush1.bf16.msra.mxu0 0
    %7191 = vmatprep.subr.bf16.mxu0 0
    %7192 = vmatpush1.bf16.msra.mxu0 0
    %7193 = vmatprep.subr.bf16.mxu0 0
    %7194 = vmatpush1.bf16.msra.mxu0 0
    %7195 = vmatprep.subr.bf16.mxu0 0
    %7196 = vmatpush1.bf16.msra.mxu0 0
    %7197 = vmatprep.subr.bf16.mxu0 0
    %7198 = vmatpush1.bf16.msra.mxu0 0
    %7199 = vmatprep.subr.bf16.mxu0 0
    %7200 = vmatpush1.bf16.msra.mxu0 0
    %7201 = vmatprep.mubr.bf16.mxu0 0
    %7202 = vmatmul.mubr.bf16.gmra.mrb[0].mxu0 %v7114
    %v7203 = vpop.f32.mrb[0].mxu0
    %v7204 = vadd.f32 %v7119, %v7203
    %v7205 = vpop.f32.mrb[0].mxu0
    %v7206 = vpop.f32.mrb[0].mxu0
    %v7207 = vpop.f32.mrb[0].mxu0
    %7208 = vdwg.mxu0
    %vm7209 = vcmask 74752
    %7210 = vst.msk [vmem:[#allocation22] sm:$0x3] %vm7209, %v7204
    // Predicated region
    $region86: #{tpu_custom_call.1} parent=1 // pred_check
      _
    $region87: #{tpu_custom_call.1} parent=1 // pred_check_branch
      %7212 = sbr.rel (0) target = $region89
    $region88: #{tpu_custom_call.1} parent=1 // pred_region
      %s7214 = ssub.s32 32, 32
      %7215 = vsyncadd [#allocation7], %s7214
      %s7217 = sshll.u32 [#allocation22], 4
      %s7218 = int_to_ptr.vmem [resolvable:$true] %s7217
      %7220 = dma.vmem_to_hbm [thread:$0]  %s7218, 32, %s13, [#allocation7]
    $region89: #{tpu_custom_call.1} parent=1 // pred_fallthru
      _
    // Predicated region
    $region90: #{tpu_custom_call.1} parent=1 // pred_check
      _
    $region91: #{tpu_custom_call.1} parent=1 // pred_check_branch
      %7222 = sbr.rel (0) target = $region93
    $region92: #{tpu_custom_call.1} parent=1 // pred_region
      %7223 = dma.done [#allocation7], 32
    $region93: #{tpu_custom_call.1} parent=1 // pred_fallthru
      _
    %7224 = vsyncpa [#allocation6], 1
    %7225 = vsyncpa [#allocation9], 1
    %7226 = vsyncpa [#allocation12], 1
    %7227 = vsyncpa [#allocation15], 1
    %7228 = vsyncpa [#allocation18], 1
    %7229 = vsyncpa [#allocation21], 1
    %7230 = vsyncpa [#allocation7], 1
  %7231 = vsyncmov [#allocation4]
  %s7232 = vpop.sfrf %7231
  %p7233 = scmp.eq.s32.totalorder %s7232, 0
  %p7234 = pneg %p7233
  %7236 = shalt.err (%p7234)
  %s7237 = scalar_lea.sflag [#allocation4], 1
  %7238 = vsyncmov %s7237
  %s7239 = vpop.sfrf %7238
  %p7240 = scmp.eq.s32.totalorder %s7239, 0
  %p7241 = pneg %p7240
  %7243 = shalt.err (%p7241)

</llo_original>
